<compile_context>
chip_gen: v7x
topology: tpu7x:2x2x1
jax: 0.10.0
libtpu: 0.0.40
codegen_flags: <defaults>
</compile_context>

<pallas_src>
import jax
import jax.numpy as jnp
from jax.experimental import pallas as pl
from jax.experimental.pallas import tpu as pltpu


# ---------------------------------------------------------------------------
# Generation-aware hardware knobs
# ---------------------------------------------------------------------------

def _tpu_generation():
    try:
        kind = jax.devices()[0].device_kind.lower()
    except Exception:
        return "unknown"
    if "v5 lite" in kind or "v5e" in kind or "v5lite" in kind:
        return "v5e"
    if "v6" in kind:
        return "v6e"
    if "v7" in kind:
        return "v7x"
    return "unknown"


def _vmem_limit_bytes(gen):
    """Scoped VMEM limit: query the hardware when possible, else per-generation defaults."""
    try:
        cap = int(pltpu.get_tpu_info().vmem_capacity_bytes)
        return max(32 << 20, (cap * 3) // 4)
    except Exception:
        pass
    if gen in ("v5e", "v6e"):
        return 100 << 20          # 128 MiB physical parts
    return 48 << 20               # v7x (64 MiB physical) / unknown: conservative


def _cout_tile(cout, gen):
    """Output-channel tile.

    v5e/v6e: single TensorCore -> one Cout tile per layer (n_co = 1) so the halo and
    kw-concat are built once per image block and x is DMA'd once (512x512 bf16 weights
    are only ~4.5 MiB). v7x: two TensorCores share the chip and only "parallel" grid
    axes are sharded, so wide layers split Cout in two to keep both cores busy.
    """
    if gen == "v7x" and cout >= 256 and cout % 2 == 0:
        return cout // 2
    cap = 512
    if cout <= cap:
        return cout
    t = cap
    while t > 1 and cout % t:
        t -= 1
    return t


def _batch_tile(n, h, w, cin, tc, vmem_budget):
    """Largest divisor NB of the batch whose conv block fits the VMEM budget, stopping
    once the matmul M dim (NB*H*W) reaches ~1024 rows (>= MXU height on all parts)."""
    target_rows = 1024
    fixed = 3 * 3 * cin * tc * 2                   # single-buffered bf16 weights
    best = 1
    for cand in range(1, n + 1):
        if n % cand:
            continue
        rows = cand * h * w
        est = (fixed
               + 2 * rows * cin * 2                # x, double-buffered bf16
               + cand * (h + 2) * w * 3 * cin * 2  # in-kernel kw-folded halo temp
               + 2 * rows * tc * 2                 # y, double-buffered bf16
               + rows * tc * 4)                    # f32 accumulator (compiler temp)
        if est > vmem_budget:
            break
        best = cand
        if rows >= target_rows:
            break
    return best


def _maybe_single_buffered(block_shape, index_map):
    """Single-buffer a block whose index is constant along the inner grid axis (pure
    VMEM saving); fall back to default double-buffering on older jax versions."""
    try:
        return pl.BlockSpec(block_shape, index_map, pipeline_mode=pl.Buffered(1))
    except Exception:
        return pl.BlockSpec(block_shape, index_map)


# ---------------------------------------------------------------------------
# Kernels
# ---------------------------------------------------------------------------

def conv_stats_kernel(x_ref, w_ref, y_ref, stats_ref):
    # x_ref:     (NB, H, W, Cin)  bf16 un-padded input block (NB batch images)
    # w_ref:     (3, 3*Cin, TC)   bf16 weights, kw taps folded into the contraction dim
    # y_ref:     (NB, H, W, TC)   bf16 conv output block
    # stats_ref: (2, TC)          f32 [sum; sum-of-squares], accumulated over batch tiles
    nb = pl.program_id(1)                      # inner, "arbitrary" batch-tile axis
    NB, H, W = y_ref.shape[0], y_ref.shape[1], y_ref.shape[2]
    cin = x_ref.shape[3]
    rows = NB * H * W

    x = x_ref[...]                                          # (NB, H, W, Cin) bf16
    w = w_ref[...]                                          # (3, 3*Cin, TC)  bf16
    zrow = jnp.zeros((NB, 1, W, cin), x.dtype)
    xh = jnp.concatenate([zrow, x, zrow], axis=1)           # (NB, H+2, W, Cin): H halo
    zcol = jnp.zeros((NB, H + 2, 1, cin), x.dtype)

    if cin % 8 == 0:
        # Fat-K path: fold the 3 kw taps into the contraction dim -> 3 MXU matmuls with
        # K = 3*Cin and M = NB*H*W (batch folded into the M dim). Local f32 accumulation.
        left = jnp.concatenate([zcol, xh[:, :, :W - 1, :]], axis=2)   # kw = 0 shift
        right = jnp.concatenate([xh[:, :, 1:, :], zcol], axis=2)      # kw = 2 shift
        xcat = jnp.concatenate([left, xh, right], axis=-1)            # (NB, H+2, W, 3*Cin)
        acc = jnp.dot(xcat[:, 0:H].reshape(rows, 3 * cin), w[0],
                      preferred_element_type=jnp.float32)
        acc = acc + jnp.dot(xcat[:, 1:H + 1].reshape(rows, 3 * cin), w[1],
                            preferred_element_type=jnp.float32)
        acc = acc + jnp.dot(xcat[:, 2:H + 2].reshape(rows, 3 * cin), w[2],
                            preferred_element_type=jnp.float32)
    else:
        # Tiny/unaligned Cin (VGG stem, Cin = 3): 9 per-tap matmuls; everything is small.
        xp = jnp.concatenate([zcol, xh, zcol], axis=2)                # (NB, H+2, W+2, Cin)
        wt = w.reshape(3, 3, cin, -1)
        acc = jnp.zeros((rows, w.shape[-1]), jnp.float32)
        for kh in range(3):
            for kw in range(3):
                patch = xp[:, kh:kh + H, kw:kw + W, :].reshape(rows, cin)
                acc = acc + jnp.dot(patch, wt[kh, kw],
                                    preferred_element_type=jnp.float32)

    y_ref[...] = acc.reshape(NB, H, W, -1).astype(y_ref.dtype)

    # Per-channel batch statistics, accumulated across the batch-tile ("arbitrary") axis.
    @pl.when(nb == 0)
    def _():
        stats_ref[...] = jnp.zeros_like(stats_ref)
    s = jnp.sum(acc, axis=0, keepdims=True)            # (1, TC)
    s2 = jnp.sum(acc * acc, axis=0, keepdims=True)     # (1, TC)
    stats_ref[...] += jnp.concatenate([s, s2], axis=0)


def bn_relu_kernel(y_ref, scale_ref, shift_ref, o_ref):
    # y_ref: (TR, LW) bf16 flattened conv-output rows; scale/shift: (1, LW) f32.
    y = y_ref[...].astype(jnp.float32)
    o_ref[...] = jnp.maximum(y * scale_ref[...] + shift_ref[...], 0.0).astype(o_ref.dtype)


# ---------------------------------------------------------------------------
# Wrappers
# ---------------------------------------------------------------------------

def _bn_relu(y, scale, shift, out_dtype, vmem_limit):
    """BN + ReLU as a flat, lane-dense, memory-bound sweep over (rows, channels)."""
    n, h, w, cout = y.shape
    rows = n * h * w

    # Fold rows into lanes when Cout < 128 so stores are unmasked (>= 128 lanes).
    fold = 1
    if cout < 128 and 128 % cout == 0 and rows % (128 // cout) == 0:
        fold = 128 // cout
    lw = fold * cout
    rows2 = rows // fold

    y2 = y.reshape(rows2, lw)
    scale2 = jnp.tile(scale, (fold,)).reshape(1, lw)
    shift2 = jnp.tile(shift, (fold,)).reshape(1, lw)

    # Row tiling: one full-array tile when small, else 1024-row tiles (multiple of 8)
    # with explicit zero padding for any ragged tail (never hit for VGG shapes).
    cap = 1024
    if rows2 <= cap:
        tr, rows2p = rows2, rows2
    else:
        tr = cap
        rows2p = ((rows2 + tr - 1) // tr) * tr
    if rows2p != rows2:
        y2 = jnp.pad(y2, ((0, rows2p - rows2), (0, 0)))

    out2 = pl.pallas_call(
        bn_relu_kernel,
        out_shape=jax.ShapeDtypeStruct((rows2p, lw), out_dtype),
        grid_spec=pltpu.PrefetchScalarGridSpec(
            num_scalar_prefetch=0,
            grid=(rows2p // tr,),
            in_specs=[
                pl.BlockSpec((tr, lw), lambda i: (i, 0)),
                pl.BlockSpec((1, lw), lambda i: (0, 0)),
                pl.BlockSpec((1, lw), lambda i: (0, 0)),
            ],
            out_specs=pl.BlockSpec((tr, lw), lambda i: (i, 0)),
        ),
        compiler_params=pltpu.CompilerParams(
            dimension_semantics=("parallel",),
            vmem_limit_bytes=vmem_limit),
    )(y2, scale2, shift2)

    if rows2p != rows2:
        out2 = out2[:rows2]
    return out2.reshape(n, h, w, cout)


def _conv_bn_relu_nhwc(x_nhwc, w_oihw, gamma, beta, eps, out_dtype):
    """ConvBNReLU forward in NHWC: conv3x3(pad=1) -> training-mode BN -> ReLU.

    x is consumed as bf16 (MXU operands, f32 accumulation); BN statistics come from the
    f32 accumulator; the activation is written in `out_dtype` (bf16 when chaining
    ConvBNReLU blocks, f32 only at the network boundary).
    """
    n, h, w_, cin = x_nhwc.shape
    cout = w_oihw.shape[0]
    gen = _tpu_generation()
    vmem_limit = _vmem_limit_bytes(gen)

    x = x_nhwc.astype(jnp.bfloat16)
    # OIHW -> (kh, kw*Cin, Cout): the kw taps pre-folded into the contraction dim.
    wmat = jnp.transpose(w_oihw, (2, 3, 1, 0)).reshape(3, 3 * cin, cout).astype(jnp.bfloat16)

    tc = _cout_tile(cout, gen)
    n_co = cout // tc
    nb = _batch_tile(n, h, w_, cin, tc, (vmem_limit * 3) // 5)
    n_nb = n // nb

    y, stats = pl.pallas_call(
        conv_stats_kernel,
        out_shape=(
            jax.ShapeDtypeStruct((n, h, w_, cout), jnp.bfloat16),
            jax.ShapeDtypeStruct((2, cout), jnp.float32),
        ),
        grid_spec=pltpu.PrefetchScalarGridSpec(
            num_scalar_prefetch=0,
            # Cout tiles outer (independent -> "parallel": megacore / dual-TC sharding);
            # batch tiles inner ("arbitrary": stats accumulate, weights stay resident).
            grid=(n_co, n_nb),
            in_specs=[
                pl.BlockSpec((nb, h, w_, cin), lambda co, b: (b, 0, 0, 0)),
                # Weight block index is constant along the inner batch axis -> 1 buffer.
                _maybe_single_buffered((3, 3 * cin, tc), lambda co, b: (0, 0, co)),
            ],
            out_specs=(
                pl.BlockSpec((nb, h, w_, tc), lambda co, b: (b, 0, 0, co)),
                pl.BlockSpec((2, tc), lambda co, b: (0, co)),
            ),
        ),
        compiler_params=pltpu.CompilerParams(
            dimension_semantics=("parallel", "arbitrary"),
            vmem_limit_bytes=vmem_limit),
    )(x, wmat)

    # BatchNorm2d training-mode statistics over (N, H, W), biased variance.
    cnt = jnp.float32(n * h * w_)
    mean = stats[0] / cnt
    var = jnp.maximum(stats[1] / cnt - mean * mean, 0.0)
    scale = gamma.astype(jnp.float32) * jax.lax.rsqrt(var + jnp.float32(eps))
    shift = beta.astype(jnp.float32) - mean * scale

    return _bn_relu(y, scale, shift, out_dtype, vmem_limit)


def _conv_bn_relu_impl(x_nchw, w_oihw, bias, gamma, beta, eps=1e-3):
    """PyTorch-interface ConvBNReLU: x (N, Cin, H, W) f32 -> (N, Cout, H, W) f32.

    The conv bias is dropped inside: training-mode BN subtracts the per-channel batch
    mean, which cancels a constant per-channel bias exactly in the forward output
    (only the BN running-stat buffers, not modeled here, would see it).
    NCHW<->NHWC and the f32 cast happen only at this boundary wrapper; chained blocks
    should call _conv_bn_relu_nhwc directly with out_dtype=bf16.
    """
    del bias
    x_nhwc = jnp.transpose(x_nchw, (0, 2, 3, 1))
    out_nhwc = _conv_bn_relu_nhwc(x_nhwc, w_oihw, gamma, beta, eps, jnp.float32)
    return jnp.transpose(out_nhwc, (0, 3, 1, 2))


conv_bn_relu = jax.jit(_conv_bn_relu_impl, static_argnames=("eps",))


def _reference(x_nchw, w_oihw, bias, gamma, beta, eps=1e-3):
    """Pure-JAX f32 reference (PyTorch semantics): conv(+bias) -> training-mode BN -> ReLU."""
    y = jax.lax.conv_general_dilated(
        x_nchw, w_oihw, window_strides=(1, 1), padding=((1, 1), (1, 1)),
        dimension_numbers=("NCHW", "OIHW", "NCHW"),
        precision=jax.lax.Precision.HIGHEST)
    y = y + bias.reshape(1, -1, 1, 1)
    mean = jnp.mean(y, axis=(0, 2, 3), keepdims=True)
    var = jnp.mean((y - mean) ** 2, axis=(0, 2, 3), keepdims=True)
    yn = (y - mean) / jnp.sqrt(var + eps)
    yn = yn * gamma.reshape(1, -1, 1, 1) + beta.reshape(1, -1, 1, 1)
    return jnp.maximum(yn, 0.0)


if __name__ == "__main__":
    key = jax.random.PRNGKey(0)
    # Layer shapes drawn from VGGBnDrop (CIFAR-10 scale): the stem ConvBNReLU(3, 64) at
    # 32x32, and a deep ConvBNReLU(256, 512) block at 8x8, which exercises the fat-K
    # contraction, batch folding into the matmul M dim, and the Cout-tiled grid axis.
    configs = [
        (2, 3, 32, 32, 64),
        (4, 256, 8, 8, 512),
    ]
    for (N, Cin, H, W, Cout) in configs:
        key, k_x, k_w, k_b = jax.random.split(key, 4)
        x = jax.random.normal(k_x, (N, Cin, H, W), dtype=jnp.float32)
        fan_in = Cin * 3 * 3
        bound = 1.0 / (fan_in ** 0.5)
        w = jax.random.uniform(k_w, (Cout, Cin, 3, 3), jnp.float32, -bound, bound)
        b = jax.random.uniform(k_b, (Cout,), jnp.float32, -bound, bound)
        gamma = jnp.ones((Cout,), jnp.float32)    # BatchNorm2d default init
        beta = jnp.zeros((Cout,), jnp.float32)

        out = jax.block_until_ready(conv_bn_relu(x, w, b, gamma, beta, eps=1e-3))
        ref = jax.block_until_ready(_reference(x, w, b, gamma, beta, eps=1e-3))

        assert out.shape == (N, Cout, H, W)
        max_err = float(jnp.max(jnp.abs(out - ref)))
        rel_l2 = float(jnp.linalg.norm(out - ref) / (jnp.linalg.norm(ref) + 1e-12))
        # bf16 MXU operands + bf16 intermediate y vs. an all-f32 reference bound the
        # agreement at roughly the 1% level (post-BN outputs are O(1)).
        assert max_err < 1e-1 and rel_l2 < 3e-2, (max_err, rel_l2)

    print("KERNEL_OK")
</pallas_src>

<mosaic_0001>
module attributes {stable_mosaic.version = 11 : i64} {
  func.func @conv_stats_kernel(%arg0: i32, %arg1: i32, %arg2: memref<1x32x32x3xbf16, #tpu.memory_space<vmem>>, %arg3: memref<3x9x64xbf16, #tpu.memory_space<vmem>>, %arg4: memref<1x32x32x64xbf16, #tpu.memory_space<vmem>>, %arg5: memref<2x64xf32, #tpu.memory_space<vmem>>) attributes {dimension_semantics = [#tpu.dimension_semantics<parallel>, #tpu.dimension_semantics<arbitrary>], iteration_bounds = array<i64: 1, 2>, scalar_prefetch = 0 : i64, scratch_operands = 0 : i64, tpu.core_type = #tpu.core_type<tc>, window_params = [{transform_indices = @transform_0, window_bounds = array<i64: 1, 32, 32, 3>}, {pipeline_mode = #tpu.pipeline_mode<synchronous>, transform_indices = @transform_1, window_bounds = array<i64: 3, 9, 64>}, {transform_indices = @transform_2, window_bounds = array<i64: 1, 32, 32, 64>}, {transform_indices = @transform_3, window_bounds = array<i64: 2, 64>}]} {
    %c0 = arith.constant 0 : index
    %c0_0 = arith.constant 0 : index
    %c0_1 = arith.constant 0 : index
    %c0_2 = arith.constant 0 : index
    %0 = vector.load %arg2[%c0, %c0_0, %c0_1, %c0_2] : memref<1x32x32x3xbf16, #tpu.memory_space<vmem>>, vector<1x32x32x3xbf16>
    %c0_3 = arith.constant 0 : index
    %c0_4 = arith.constant 0 : index
    %c0_5 = arith.constant 0 : index
    %1 = vector.load %arg3[%c0_3, %c0_4, %c0_5] : memref<3x9x64xbf16, #tpu.memory_space<vmem>>, vector<3x9x64xbf16>
    %cst = arith.constant 0.000000e+00 : bf16
    %2 = vector.broadcast %cst : bf16 to vector<1x1x32x3xbf16>
    %3 = tpu.concatenate %2, %0, %2 in 1 : vector<1x1x32x3xbf16>, vector<1x32x32x3xbf16>, vector<1x1x32x3xbf16> -> vector<1x34x32x3xbf16>
    %cst_6 = arith.constant 0.000000e+00 : bf16
    %4 = vector.broadcast %cst_6 : bf16 to vector<1x34x1x3xbf16>
    %5 = tpu.concatenate %4, %3, %4 in 2 : vector<1x34x1x3xbf16>, vector<1x34x32x3xbf16>, vector<1x34x1x3xbf16> -> vector<1x34x34x3xbf16>
    %6 = vector.shape_cast %1 : vector<3x9x64xbf16> to vector<3x3x3x64xbf16>
    %cst_7 = arith.constant 0.000000e+00 : f32
    %7 = vector.broadcast %cst_7 : f32 to vector<1024x64xf32>
    %8 = vector.extract_strided_slice %5 {offsets = [0, 0, 0, 0], sizes = [1, 32, 32, 3], strides = [1, 1, 1, 1]} : vector<1x34x34x3xbf16> to vector<1x32x32x3xbf16>
    %9 = vector.shape_cast %8 : vector<1x32x32x3xbf16> to vector<1024x3xbf16>
    %10 = vector.extract_strided_slice %6 {offsets = [0, 0, 0, 0], sizes = [1, 1, 3, 64], strides = [1, 1, 1, 1]} : vector<3x3x3x64xbf16> to vector<1x1x3x64xbf16>
    %11 = vector.shape_cast %10 : vector<1x1x3x64xbf16> to vector<3x64xbf16>
    %cst_8 = arith.constant dense<0.000000e+00> : vector<1024x64xf32>
    %12 = tpu.matmul %9, %11, %cst_8 {dimension_numbers = #tpu.dot_dimension_numbers<[1], [0], [0], [1], [0, 0, 1, 1], [], []>} : vector<1024x3xbf16>, vector<3x64xbf16>, vector<1024x64xf32> -> vector<1024x64xf32>
    %13 = arith.addf %7, %12 : vector<1024x64xf32>
    %14 = vector.extract_strided_slice %5 {offsets = [0, 0, 1, 0], sizes = [1, 32, 32, 3], strides = [1, 1, 1, 1]} : vector<1x34x34x3xbf16> to vector<1x32x32x3xbf16>
    %15 = vector.shape_cast %14 : vector<1x32x32x3xbf16> to vector<1024x3xbf16>
    %16 = vector.extract_strided_slice %6 {offsets = [0, 1, 0, 0], sizes = [1, 1, 3, 64], strides = [1, 1, 1, 1]} : vector<3x3x3x64xbf16> to vector<1x1x3x64xbf16>
    %17 = vector.shape_cast %16 : vector<1x1x3x64xbf16> to vector<3x64xbf16>
    %cst_9 = arith.constant dense<0.000000e+00> : vector<1024x64xf32>
    %18 = tpu.matmul %15, %17, %cst_9 {dimension_numbers = #tpu.dot_dimension_numbers<[1], [0], [0], [1], [0, 0, 1, 1], [], []>} : vector<1024x3xbf16>, vector<3x64xbf16>, vector<1024x64xf32> -> vector<1024x64xf32>
    %19 = arith.addf %13, %18 : vector<1024x64xf32>
    %20 = vector.extract_strided_slice %5 {offsets = [0, 0, 2, 0], sizes = [1, 32, 32, 3], strides = [1, 1, 1, 1]} : vector<1x34x34x3xbf16> to vector<1x32x32x3xbf16>
    %21 = vector.shape_cast %20 : vector<1x32x32x3xbf16> to vector<1024x3xbf16>
    %22 = vector.extract_strided_slice %6 {offsets = [0, 2, 0, 0], sizes = [1, 1, 3, 64], strides = [1, 1, 1, 1]} : vector<3x3x3x64xbf16> to vector<1x1x3x64xbf16>
    %23 = vector.shape_cast %22 : vector<1x1x3x64xbf16> to vector<3x64xbf16>
    %cst_10 = arith.constant dense<0.000000e+00> : vector<1024x64xf32>
    %24 = tpu.matmul %21, %23, %cst_10 {dimension_numbers = #tpu.dot_dimension_numbers<[1], [0], [0], [1], [0, 0, 1, 1], [], []>} : vector<1024x3xbf16>, vector<3x64xbf16>, vector<1024x64xf32> -> vector<1024x64xf32>
    %25 = arith.addf %19, %24 : vector<1024x64xf32>
    %26 = vector.extract_strided_slice %5 {offsets = [0, 1, 0, 0], sizes = [1, 32, 32, 3], strides = [1, 1, 1, 1]} : vector<1x34x34x3xbf16> to vector<1x32x32x3xbf16>
    %27 = vector.shape_cast %26 : vector<1x32x32x3xbf16> to vector<1024x3xbf16>
    %28 = vector.extract_strided_slice %6 {offsets = [1, 0, 0, 0], sizes = [1, 1, 3, 64], strides = [1, 1, 1, 1]} : vector<3x3x3x64xbf16> to vector<1x1x3x64xbf16>
    %29 = vector.shape_cast %28 : vector<1x1x3x64xbf16> to vector<3x64xbf16>
    %cst_11 = arith.constant dense<0.000000e+00> : vector<1024x64xf32>
    %30 = tpu.matmul %27, %29, %cst_11 {dimension_numbers = #tpu.dot_dimension_numbers<[1], [0], [0], [1], [0, 0, 1, 1], [], []>} : vector<1024x3xbf16>, vector<3x64xbf16>, vector<1024x64xf32> -> vector<1024x64xf32>
    %31 = arith.addf %25, %30 : vector<1024x64xf32>
    %32 = vector.extract_strided_slice %5 {offsets = [0, 1, 1, 0], sizes = [1, 32, 32, 3], strides = [1, 1, 1, 1]} : vector<1x34x34x3xbf16> to vector<1x32x32x3xbf16>
    %33 = vector.shape_cast %32 : vector<1x32x32x3xbf16> to vector<1024x3xbf16>
    %34 = vector.extract_strided_slice %6 {offsets = [1, 1, 0, 0], sizes = [1, 1, 3, 64], strides = [1, 1, 1, 1]} : vector<3x3x3x64xbf16> to vector<1x1x3x64xbf16>
    %35 = vector.shape_cast %34 : vector<1x1x3x64xbf16> to vector<3x64xbf16>
    %cst_12 = arith.constant dense<0.000000e+00> : vector<1024x64xf32>
    %36 = tpu.matmul %33, %35, %cst_12 {dimension_numbers = #tpu.dot_dimension_numbers<[1], [0], [0], [1], [0, 0, 1, 1], [], []>} : vector<1024x3xbf16>, vector<3x64xbf16>, vector<1024x64xf32> -> vector<1024x64xf32>
    %37 = arith.addf %31, %36 : vector<1024x64xf32>
    %38 = vector.extract_strided_slice %5 {offsets = [0, 1, 2, 0], sizes = [1, 32, 32, 3], strides = [1, 1, 1, 1]} : vector<1x34x34x3xbf16> to vector<1x32x32x3xbf16>
    %39 = vector.shape_cast %38 : vector<1x32x32x3xbf16> to vector<1024x3xbf16>
    %40 = vector.extract_strided_slice %6 {offsets = [1, 2, 0, 0], sizes = [1, 1, 3, 64], strides = [1, 1, 1, 1]} : vector<3x3x3x64xbf16> to vector<1x1x3x64xbf16>
    %41 = vector.shape_cast %40 : vector<1x1x3x64xbf16> to vector<3x64xbf16>
    %cst_13 = arith.constant dense<0.000000e+00> : vector<1024x64xf32>
    %42 = tpu.matmul %39, %41, %cst_13 {dimension_numbers = #tpu.dot_dimension_numbers<[1], [0], [0], [1], [0, 0, 1, 1], [], []>} : vector<1024x3xbf16>, vector<3x64xbf16>, vector<1024x64xf32> -> vector<1024x64xf32>
    %43 = arith.addf %37, %42 : vector<1024x64xf32>
    %44 = vector.extract_strided_slice %5 {offsets = [0, 2, 0, 0], sizes = [1, 32, 32, 3], strides = [1, 1, 1, 1]} : vector<1x34x34x3xbf16> to vector<1x32x32x3xbf16>
    %45 = vector.shape_cast %44 : vector<1x32x32x3xbf16> to vector<1024x3xbf16>
    %46 = vector.extract_strided_slice %6 {offsets = [2, 0, 0, 0], sizes = [1, 1, 3, 64], strides = [1, 1, 1, 1]} : vector<3x3x3x64xbf16> to vector<1x1x3x64xbf16>
    %47 = vector.shape_cast %46 : vector<1x1x3x64xbf16> to vector<3x64xbf16>
    %cst_14 = arith.constant dense<0.000000e+00> : vector<1024x64xf32>
    %48 = tpu.matmul %45, %47, %cst_14 {dimension_numbers = #tpu.dot_dimension_numbers<[1], [0], [0], [1], [0, 0, 1, 1], [], []>} : vector<1024x3xbf16>, vector<3x64xbf16>, vector<1024x64xf32> -> vector<1024x64xf32>
    %49 = arith.addf %43, %48 : vector<1024x64xf32>
    %50 = vector.extract_strided_slice %5 {offsets = [0, 2, 1, 0], sizes = [1, 32, 32, 3], strides = [1, 1, 1, 1]} : vector<1x34x34x3xbf16> to vector<1x32x32x3xbf16>
    %51 = vector.shape_cast %50 : vector<1x32x32x3xbf16> to vector<1024x3xbf16>
    %52 = vector.extract_strided_slice %6 {offsets = [2, 1, 0, 0], sizes = [1, 1, 3, 64], strides = [1, 1, 1, 1]} : vector<3x3x3x64xbf16> to vector<1x1x3x64xbf16>
    %53 = vector.shape_cast %52 : vector<1x1x3x64xbf16> to vector<3x64xbf16>
    %cst_15 = arith.constant dense<0.000000e+00> : vector<1024x64xf32>
    %54 = tpu.matmul %51, %53, %cst_15 {dimension_numbers = #tpu.dot_dimension_numbers<[1], [0], [0], [1], [0, 0, 1, 1], [], []>} : vector<1024x3xbf16>, vector<3x64xbf16>, vector<1024x64xf32> -> vector<1024x64xf32>
    %55 = arith.addf %49, %54 : vector<1024x64xf32>
    %56 = vector.extract_strided_slice %5 {offsets = [0, 2, 2, 0], sizes = [1, 32, 32, 3], strides = [1, 1, 1, 1]} : vector<1x34x34x3xbf16> to vector<1x32x32x3xbf16>
    %57 = vector.shape_cast %56 : vector<1x32x32x3xbf16> to vector<1024x3xbf16>
    %58 = vector.extract_strided_slice %6 {offsets = [2, 2, 0, 0], sizes = [1, 1, 3, 64], strides = [1, 1, 1, 1]} : vector<3x3x3x64xbf16> to vector<1x1x3x64xbf16>
    %59 = vector.shape_cast %58 : vector<1x1x3x64xbf16> to vector<3x64xbf16>
    %cst_16 = arith.constant dense<0.000000e+00> : vector<1024x64xf32>
    %60 = tpu.matmul %57, %59, %cst_16 {dimension_numbers = #tpu.dot_dimension_numbers<[1], [0], [0], [1], [0, 0, 1, 1], [], []>} : vector<1024x3xbf16>, vector<3x64xbf16>, vector<1024x64xf32> -> vector<1024x64xf32>
    %61 = arith.addf %55, %60 : vector<1024x64xf32>
    %62 = vector.shape_cast %61 : vector<1024x64xf32> to vector<1x32x32x64xf32>
    %63 = arith.truncf %62 : vector<1x32x32x64xf32> to vector<1x32x32x64xbf16>
    %c0_17 = arith.constant 0 : index
    %c0_18 = arith.constant 0 : index
    %c0_19 = arith.constant 0 : index
    %c0_20 = arith.constant 0 : index
    %64 = vector.load %arg4[%c0_17, %c0_18, %c0_19, %c0_20] : memref<1x32x32x64xbf16, #tpu.memory_space<vmem>>, vector<1x32x32x64xbf16>
    tpu.vector_store %arg4[%c0_17, %c0_18, %c0_19, %c0_20], %63 {strides = array<i32>} : memref<1x32x32x64xbf16, #tpu.memory_space<vmem>>, vector<1x32x32x64xbf16>,
    %c0_i32 = arith.constant 0 : i32
    %65 = arith.cmpi eq, %arg1, %c0_i32 : i32
    %66 = arith.extui %65 : i1 to i32
    %c0_i32_21 = arith.constant 0 : i32
    %67 = arith.cmpi ne, %66, %c0_i32_21 : i32
    scf.if %67 {
      %cst_28 = arith.constant 0.000000e+00 : f32
      %77 = vector.broadcast %cst_28 : f32 to vector<2x64xf32>
      %c0_29 = arith.constant 0 : index
      %c0_30 = arith.constant 0 : index
      %78 = vector.load %arg5[%c0_29, %c0_30] : memref<2x64xf32, #tpu.memory_space<vmem>>, vector<2x64xf32>
      tpu.vector_store %arg5[%c0_29, %c0_30], %77 {strides = array<i32>} : memref<2x64xf32, #tpu.memory_space<vmem>>, vector<2x64xf32>,
    } else {
    }
    %cst_22 = arith.constant dense<0.000000e+00> : vector<64xf32>
    %68 = vector.multi_reduction <add>, %61, %cst_22 [0] : vector<1024x64xf32> to vector<64xf32>
    %69 = vector.shape_cast %68 : vector<64xf32> to vector<1x64xf32>
    %70 = arith.mulf %61, %61 : vector<1024x64xf32>
    %cst_23 = arith.constant dense<0.000000e+00> : vector<64xf32>
    %71 = vector.multi_reduction <add>, %70, %cst_23 [0] : vector<1024x64xf32> to vector<64xf32>
    %72 = vector.shape_cast %71 : vector<64xf32> to vector<1x64xf32>
    %c0_24 = arith.constant 0 : index
    %c0_25 = arith.constant 0 : index
    %73 = vector.load %arg5[%c0_24, %c0_25] : memref<2x64xf32, #tpu.memory_space<vmem>>, vector<2x64xf32>
    %74 = tpu.concatenate %69, %72 in 0 : vector<1x64xf32>, vector<1x64xf32> -> vector<2x64xf32>
    %75 = arith.addf %73, %74 : vector<2x64xf32>
    %c0_26 = arith.constant 0 : index
    %c0_27 = arith.constant 0 : index
    %76 = vector.load %arg5[%c0_26, %c0_27] : memref<2x64xf32, #tpu.memory_space<vmem>>, vector<2x64xf32>
    tpu.vector_store %arg5[%c0_26, %c0_27], %75 {strides = array<i32>} : memref<2x64xf32, #tpu.memory_space<vmem>>, vector<2x64xf32>,
    return
  }
  func.func @transform_0(%arg0: i32, %arg1: i32) -> (i32, i32, i32, i32) {
    %c0_i32 = arith.constant 0 : i32
    %c0_i32_0 = arith.constant 0 : i32
    %c0_i32_1 = arith.constant 0 : i32
    %c0_i32_2 = arith.constant 0 : i32
    return %arg1, %c0_i32, %c0_i32_0, %c0_i32_1 : i32, i32, i32, i32
  }
  func.func @transform_1(%arg0: i32, %arg1: i32) -> (i32, i32, i32) {
    %c0_i32 = arith.constant 0 : i32
    %c0_i32_0 = arith.constant 0 : i32
    %c0_i32_1 = arith.constant 0 : i32
    return %c0_i32, %c0_i32_0, %arg0 : i32, i32, i32
  }
  func.func @transform_2(%arg0: i32, %arg1: i32) -> (i32, i32, i32, i32) {
    %c0_i32 = arith.constant 0 : i32
    %c0_i32_0 = arith.constant 0 : i32
    %c0_i32_1 = arith.constant 0 : i32
    return %arg1, %c0_i32, %c0_i32_0, %arg0 : i32, i32, i32, i32
  }
  func.func @transform_3(%arg0: i32, %arg1: i32) -> (i32, i32) {
    %c0_i32 = arith.constant 0 : i32
    %c0_i32_0 = arith.constant 0 : i32
    return %c0_i32, %arg0 : i32, i32
  }
}

module attributes {stable_mosaic.version = 11 : i64} {
  func.func @bn_relu_kernel(%arg0: i32, %arg1: memref<1024x128xbf16, #tpu.memory_space<vmem>>, %arg2: memref<1x128xf32, #tpu.memory_space<vmem>>, %arg3: memref<1x128xf32, #tpu.memory_space<vmem>>, %arg4: memref<1024x128xf32, #tpu.memory_space<vmem>>) attributes {dimension_semantics = [#tpu.dimension_semantics<parallel>], iteration_bounds = array<i64: 1>, scalar_prefetch = 0 : i64, scratch_operands = 0 : i64, tpu.core_type = #tpu.core_type<tc>, window_params = [{transform_indices = @transform_0, window_bounds = array<i64: 1024, 128>}, {pipeline_mode = #tpu.pipeline_mode<synchronous>, transform_indices = @transform_1, window_bounds = array<i64: 1, 128>}, {pipeline_mode = #tpu.pipeline_mode<synchronous>, transform_indices = @transform_2, window_bounds = array<i64: 1, 128>}, {transform_indices = @transform_3, window_bounds = array<i64: 1024, 128>}]} {
    %c0 = arith.constant 0 : index
    %c0_0 = arith.constant 0 : index
    %0 = vector.load %arg1[%c0, %c0_0] : memref<1024x128xbf16, #tpu.memory_space<vmem>>, vector<1024x128xbf16>
    %1 = arith.extf %0 : vector<1024x128xbf16> to vector<1024x128xf32>
    %c0_1 = arith.constant 0 : index
    %c0_2 = arith.constant 0 : index
    %2 = vector.load %arg2[%c0_1, %c0_2] : memref<1x128xf32, #tpu.memory_space<vmem>>, vector<1x128xf32>
    %3 = vector.broadcast %2 : vector<1x128xf32> to vector<1024x128xf32>
    %4 = arith.mulf %1, %3 : vector<1024x128xf32>
    %c0_3 = arith.constant 0 : index
    %c0_4 = arith.constant 0 : index
    %5 = vector.load %arg3[%c0_3, %c0_4] : memref<1x128xf32, #tpu.memory_space<vmem>>, vector<1x128xf32>
    %6 = vector.broadcast %5 : vector<1x128xf32> to vector<1024x128xf32>
    %7 = arith.addf %4, %6 : vector<1024x128xf32>
    %cst = arith.constant 0.000000e+00 : f32
    %8 = vector.broadcast %cst : f32 to vector<1024x128xf32>
    %9 = arith.maximumf %7, %8 : vector<1024x128xf32>
    %c0_5 = arith.constant 0 : index
    %c0_6 = arith.constant 0 : index
    %10 = vector.load %arg4[%c0_5, %c0_6] : memref<1024x128xf32, #tpu.memory_space<vmem>>, vector<1024x128xf32>
    tpu.vector_store %arg4[%c0_5, %c0_6], %9 {strides = array<i32>} : memref<1024x128xf32, #tpu.memory_space<vmem>>, vector<1024x128xf32>,
    return
  }
  func.func @transform_0(%arg0: i32) -> (i32, i32) {
    %c0_i32 = arith.constant 0 : i32
    %c0_i32_0 = arith.constant 0 : i32
    return %arg0, %c0_i32 : i32, i32
  }
  func.func @transform_1(%arg0: i32) -> (i32, i32) {
    %c0_i32 = arith.constant 0 : i32
    %c0_i32_0 = arith.constant 0 : i32
    %c0_i32_1 = arith.constant 0 : i32
    return %c0_i32, %c0_i32_0 : i32, i32
  }
  func.func @transform_2(%arg0: i32) -> (i32, i32) {
    %c0_i32 = arith.constant 0 : i32
    %c0_i32_0 = arith.constant 0 : i32
    %c0_i32_1 = arith.constant 0 : i32
    return %c0_i32, %c0_i32_0 : i32, i32
  }
  func.func @transform_3(%arg0: i32) -> (i32, i32) {
    %c0_i32 = arith.constant 0 : i32
    %c0_i32_0 = arith.constant 0 : i32
    return %arg0, %c0_i32 : i32, i32
  }
}

</mosaic_0001>

<llo_original>
// kernel: tile.18
$region0: #{tile.18}
  #allocation0 [shape = 's32[1]{0}', space=sflag, size = 0x4, scoped, tag = 'scoped memory for tile.18']
  %s0 = inlined_call_operand.vmem [shape: f32[64], index: 0, kind: input, shape index: {}]
  %s1 = inlined_call_operand.vmem [shape: f32[2,64], index: 1, kind: output, shape index: {}]
  // Predicated region
  $region2: #{tile.18} parent=0 // pred_check
    _
  $region3: #{tile.18} parent=0 // pred_check_branch
    %3 = sbr.rel (0) target = $region5
  $region4: #{tile.18} parent=0 // pred_region
    _
  $region5: #{tile.18} parent=0 // pred_fallthru
    _
  %v4 = vld [vmem:[%s0] ss:$0 sm:$0xff]
  %5 = vst [vmem:[%s1] sm:$0x3] %v4

// kernel: tile.19
$region0: #{tile.19}
  %s0 = inlined_call_operand.vmem [shape: f32[2,64], index: 0, kind: input, shape index: {}]
  %s1 = inlined_call_operand.vmem [shape: f32[1,128], index: 1, kind: output, shape index: {}]
  $region1: #{tile.19} parent=0
    #allocation0 [shape = 'u8[4096]{0}', space=vmem, size = 0x1000, scoped, tag = 'scoped mem for output reshape']
    #allocation1 [shape = 'u8[4096]{0}', space=vmem, size = 0x1000, scoped, tag = 'scoped mem for input reshape']
    %s3 = sshllo.u32 0, 2
    %v4 = vld [vmem:[%s0] sm:%s3]
    %5 = vst [vmem:[#allocation1] sm:%s3] %v4
    %v6 = vld [vmem:[#allocation1] sm:$0x1]
    %vm7 = vcmask 523264
    %8 = vst.msk [vmem:[#allocation0] sm:$0x1] %vm7, %v6
    %s9 = scalar_lea.vmem [#allocation1], 1
    %v10 = vld [vmem:[%s9] sm:$0x1]
    %11 = vrot.lane.b32.xlu0 %v10, 64
    %v12 = vpop.permute.xlu0 %11
    %vm13 = vcmask 1048064
    %14 = vst.msk [vmem:[#allocation0] sm:$0x1] %vm13, %v12
    %s16 = sshllo.u32 0, 1
    %v18 = vld [vmem:[#allocation0] sm:%s16]
    %s19 = sshllo.u32 0, 1
    %20 = vst [vmem:[%s1] sm:%s19] %v18

// kernel: _conv_bn_relu_impl.3
$region0: #{_conv_bn_relu_impl.3}
  #allocation0 [shape = 'u32[]', space=smem, size = 0x4, offset = 0x4, fixed_abs, tag = 'smem constant byte address 0x4 - core index']
  #allocation1 [shape = 'u32[144,128]{1,0:T(1,128)}', space=vmem, size = 0x12000, scoped, tag = 'internal scratch']
  %s0 = inlined_call_operand.vmem [shape: bf16[1024,128], index: 0, kind: input, shape index: {}]
  %s1 = inlined_call_operand.vmem [shape: f32[1,128], index: 1, kind: input, shape index: {}]
  %s2 = inlined_call_operand.vmem [shape: f32[1,128], index: 2, kind: input, shape index: {}]
  %s3 = inlined_call_operand.vmem [shape: f32[1024,128], index: 3, kind: output, shape index: {}]
  %s4 = sld [smem:[#allocation0]]
  $region22: #{_conv_bn_relu_impl.3} parent=0
    _
  %s6 = ssub.s32 1, %s4
  %s7 = scalar_select 0, %s6, %s4
  // Predicated region
  $region2: #{_conv_bn_relu_impl.3} parent=0 // pred_check
    _
  $region3: #{_conv_bn_relu_impl.3} parent=0 // pred_check_branch
    %9 = sbr.rel (0) target = $region5
  $region4: #{_conv_bn_relu_impl.3} parent=0 // pred_region
    _
  $region5: #{_conv_bn_relu_impl.3} parent=0 // pred_fallthru
    _
  // Predicated region
  $region6: #{_conv_bn_relu_impl.3} parent=0 // pred_check
    _
  $region7: #{_conv_bn_relu_impl.3} parent=0 // pred_check_branch
    %11 = sbr.rel (0) target = $region9
  $region8: #{_conv_bn_relu_impl.3} parent=0 // pred_region
    _
  $region9: #{_conv_bn_relu_impl.3} parent=0 // pred_fallthru
    _
  // Predicated region
  $region10: #{_conv_bn_relu_impl.3} parent=0 // pred_check
    _
  $region11: #{_conv_bn_relu_impl.3} parent=0 // pred_check_branch
    %13 = sbr.rel (0) target = $region13
  $region12: #{_conv_bn_relu_impl.3} parent=0 // pred_region
    _
  $region13: #{_conv_bn_relu_impl.3} parent=0 // pred_fallthru
    _
  %v14 = vld [vmem:[%s0] sm:$0xf]
  %v15 = vld [vmem:[%s0 + $0x4] sm:$0xf]
  %v16 = vld [vmem:[%s0 + $0x8] sm:$0xf]
  %v17 = vld [vmem:[%s0 + $0xc] sm:$0xf]
  %v18 = vld [vmem:[%s0 + $0x10] sm:$0xf]
  %v19 = vld [vmem:[%s0 + $0x14] sm:$0xf]
  %v20 = vld [vmem:[%s0 + $0x18] sm:$0xf]
  %v21 = vld [vmem:[%s0 + $0x1c] sm:$0xf]
  %v22 = vld [vmem:[%s0 + $0x20] sm:$0xf]
  %v23 = vld [vmem:[%s0 + $0x24] sm:$0xf]
  %v24 = vld [vmem:[%s0 + $0x28] sm:$0xf]
  %v25 = vld [vmem:[%s0 + $0x2c] sm:$0xf]
  %v26 = vld [vmem:[%s0 + $0x30] sm:$0xf]
  %v27 = vld [vmem:[%s0 + $0x34] sm:$0xf]
  %v28 = vld [vmem:[%s0 + $0x38] sm:$0xf]
  %v29 = vld [vmem:[%s0 + $0x3c] sm:$0xf]
  %v30 = vld [vmem:[%s0 + $0x40] sm:$0xf]
  %v31 = vld [vmem:[%s0 + $0x44] sm:$0xf]
  %v32 = vld [vmem:[%s0 + $0x48] sm:$0xf]
  %v33 = vld [vmem:[%s0 + $0x4c] sm:$0xf]
  %v34 = vld [vmem:[%s0 + $0x50] sm:$0xf]
  %v35 = vld [vmem:[%s0 + $0x54] sm:$0xf]
  %v36 = vld [vmem:[%s0 + $0x58] sm:$0xf]
  %v37 = vld [vmem:[%s0 + $0x5c] sm:$0xf]
  %v38 = vld [vmem:[%s0 + $0x60] sm:$0xf]
  %v39 = vld [vmem:[%s0 + $0x64] sm:$0xf]
  %v40 = vld [vmem:[%s0 + $0x68] sm:$0xf]
  %v41 = vld [vmem:[%s0 + $0x6c] sm:$0xf]
  %v42 = vld [vmem:[%s0 + $0x70] sm:$0xf]
  %v43 = vld [vmem:[%s0 + $0x74] sm:$0xf]
  %v44 = vld [vmem:[%s0 + $0x78] sm:$0xf]
  %v45 = vld [vmem:[%s0 + $0x7c] sm:$0xf]
  %v46 = vld [vmem:[%s0 + $0x80] sm:$0xf]
  %v47 = vld [vmem:[%s0 + $0x84] sm:$0xf]
  %v48 = vld [vmem:[%s0 + $0x88] sm:$0xf]
  %v49 = vld [vmem:[%s0 + $0x8c] sm:$0xf]
  %v50 = vld [vmem:[%s0 + $0x90] sm:$0xf]
  %v51 = vld [vmem:[%s0 + $0x94] sm:$0xf]
  %v52 = vld [vmem:[%s0 + $0x98] sm:$0xf]
  %v53 = vld [vmem:[%s0 + $0x9c] sm:$0xf]
  %v54 = vld [vmem:[%s0 + $0xa0] sm:$0xf]
  %v55 = vld [vmem:[%s0 + $0xa4] sm:$0xf]
  %v56 = vld [vmem:[%s0 + $0xa8] sm:$0xf]
  %v57 = vld [vmem:[%s0 + $0xac] sm:$0xf]
  %v58 = vld [vmem:[%s0 + $0xb0] sm:$0xf]
  %v59 = vld [vmem:[%s0 + $0xb4] sm:$0xf]
  %v60 = vld [vmem:[%s0 + $0xb8] sm:$0xf]
  %v61 = vld [vmem:[%s0 + $0xbc] sm:$0xf]
  %v62 = vld [vmem:[%s0 + $0xc0] sm:$0xf]
  %v63 = vld [vmem:[%s0 + $0xc4] sm:$0xf]
  %v64 = vld [vmem:[%s0 + $0xc8] sm:$0xf]
  %v65 = vld [vmem:[%s0 + $0xcc] sm:$0xf]
  %v66 = vld [vmem:[%s0 + $0xd0] sm:$0xf]
  %v67 = vld [vmem:[%s0 + $0xd4] sm:$0xf]
  %v68 = vld [vmem:[%s0 + $0xd8] sm:$0xf]
  %v69 = vld [vmem:[%s0 + $0xdc] sm:$0xf]
  %v70 = vld [vmem:[%s0 + $0xe0] sm:$0xf]
  %v71 = vld [vmem:[%s0 + $0xe4] sm:$0xf]
  %v72 = vld [vmem:[%s0 + $0xe8] sm:$0xf]
  %v73 = vld [vmem:[%s0 + $0xec] sm:$0xf]
  %v74 = vld [vmem:[%s0 + $0xf0] sm:$0xf]
  %v75 = vld [vmem:[%s0 + $0xf4] sm:$0xf]
  %v76 = vld [vmem:[%s0 + $0xf8] sm:$0xf]
  %v77 = vld [vmem:[%s0 + $0xfc] sm:$0xf]
  %v78 = vld [vmem:[%s0 + $0x100] sm:$0xf]
  %v79 = vld [vmem:[%s0 + $0x104] sm:$0xf]
  %v80 = vld [vmem:[%s0 + $0x108] sm:$0xf]
  %v81 = vld [vmem:[%s0 + $0x10c] sm:$0xf]
  %v82 = vld [vmem:[%s0 + $0x110] sm:$0xf]
  %v83 = vld [vmem:[%s0 + $0x114] sm:$0xf]
  %v84 = vld [vmem:[%s0 + $0x118] sm:$0xf]
  %v85 = vld [vmem:[%s0 + $0x11c] sm:$0xf]
  %v86 = vld [vmem:[%s0 + $0x120] sm:$0xf]
  %v87 = vld [vmem:[%s0 + $0x124] sm:$0xf]
  %v88 = vld [vmem:[%s0 + $0x128] sm:$0xf]
  %v89 = vld [vmem:[%s0 + $0x12c] sm:$0xf]
  %v90 = vld [vmem:[%s0 + $0x130] sm:$0xf]
  %v91 = vld [vmem:[%s0 + $0x134] sm:$0xf]
  %v92 = vld [vmem:[%s0 + $0x138] sm:$0xf]
  %v93 = vld [vmem:[%s0 + $0x13c] sm:$0xf]
  %v94 = vld [vmem:[%s0 + $0x140] sm:$0xf]
  %v95 = vld [vmem:[%s0 + $0x144] sm:$0xf]
  %v96 = vld [vmem:[%s0 + $0x148] sm:$0xf]
  %v97 = vld [vmem:[%s0 + $0x14c] sm:$0xf]
  %v98 = vld [vmem:[%s0 + $0x150] sm:$0xf]
  %v99 = vld [vmem:[%s0 + $0x154] sm:$0xf]
  %v100 = vld [vmem:[%s0 + $0x158] sm:$0xf]
  %v101 = vld [vmem:[%s0 + $0x15c] sm:$0xf]
  %v102 = vld [vmem:[%s0 + $0x160] sm:$0xf]
  %v103 = vld [vmem:[%s0 + $0x164] sm:$0xf]
  %v104 = vld [vmem:[%s0 + $0x168] sm:$0xf]
  %v105 = vld [vmem:[%s0 + $0x16c] sm:$0xf]
  %v106 = vld [vmem:[%s0 + $0x170] sm:$0xf]
  %v107 = vld [vmem:[%s0 + $0x174] sm:$0xf]
  %v108 = vld [vmem:[%s0 + $0x178] sm:$0xf]
  %v109 = vld [vmem:[%s0 + $0x17c] sm:$0xf]
  %v110 = vld [vmem:[%s0 + $0x180] sm:$0xf]
  %v111 = vld [vmem:[%s0 + $0x184] sm:$0xf]
  %v112 = vld [vmem:[%s0 + $0x188] sm:$0xf]
  %v113 = vld [vmem:[%s0 + $0x18c] sm:$0xf]
  %v114 = vld [vmem:[%s0 + $0x190] sm:$0xf]
  %v115 = vld [vmem:[%s0 + $0x194] sm:$0xf]
  %v116 = vld [vmem:[%s0 + $0x198] sm:$0xf]
  %v117 = vld [vmem:[%s0 + $0x19c] sm:$0xf]
  %v118 = vld [vmem:[%s0 + $0x1a0] sm:$0xf]
  %v119 = vld [vmem:[%s0 + $0x1a4] sm:$0xf]
  %v120 = vld [vmem:[%s0 + $0x1a8] sm:$0xf]
  %v121 = vld [vmem:[%s0 + $0x1ac] sm:$0xf]
  %v122 = vld [vmem:[%s0 + $0x1b0] sm:$0xf]
  %v123 = vld [vmem:[%s0 + $0x1b4] sm:$0xf]
  %v124 = vld [vmem:[%s0 + $0x1b8] sm:$0xf]
  %v125 = vld [vmem:[%s0 + $0x1bc] sm:$0xf]
  %v126 = vld [vmem:[%s0 + $0x1c0] sm:$0xf]
  %v127 = vld [vmem:[%s0 + $0x1c4] sm:$0xf]
  %v128 = vld [vmem:[%s0 + $0x1c8] sm:$0xf]
  %v129 = vld [vmem:[%s0 + $0x1cc] sm:$0xf]
  %v130 = vld [vmem:[%s0 + $0x1d0] sm:$0xf]
  %v131 = vld [vmem:[%s0 + $0x1d4] sm:$0xf]
  %v132 = vld [vmem:[%s0 + $0x1d8] sm:$0xf]
  %v133 = vld [vmem:[%s0 + $0x1dc] sm:$0xf]
  %v134 = vld [vmem:[%s0 + $0x1e0] sm:$0xf]
  %v135 = vld [vmem:[%s0 + $0x1e4] sm:$0xf]
  %v136 = vld [vmem:[%s0 + $0x1e8] sm:$0xf]
  %v137 = vld [vmem:[%s0 + $0x1ec] sm:$0xf]
  %v138 = vld [vmem:[%s0 + $0x1f0] sm:$0xf]
  %v139 = vld [vmem:[%s0 + $0x1f4] sm:$0xf]
  %v140 = vld [vmem:[%s0 + $0x1f8] sm:$0xf]
  %v141 = vld [vmem:[%s0 + $0x1fc] sm:$0xf]
  %v142 = vunpack.c.l.bf16 %v14
  %v143 = vunpack.c.l.bf16 %v15
  %v144 = vunpack.c.l.bf16 %v16
  %v145 = vunpack.c.l.bf16 %v17
  %v146 = vunpack.c.l.bf16 %v18
  %v147 = vunpack.c.l.bf16 %v19
  %v148 = vunpack.c.l.bf16 %v20
  %v149 = vunpack.c.l.bf16 %v21
  %v150 = vunpack.c.l.bf16 %v22
  %v151 = vunpack.c.l.bf16 %v23
  %v152 = vunpack.c.l.bf16 %v24
  %v153 = vunpack.c.l.bf16 %v25
  %v154 = vunpack.c.l.bf16 %v26
  %v155 = vunpack.c.l.bf16 %v27
  %v156 = vunpack.c.l.bf16 %v28
  %v157 = vunpack.c.l.bf16 %v29
  %v158 = vunpack.c.l.bf16 %v30
  %v159 = vunpack.c.l.bf16 %v31
  %v160 = vunpack.c.l.bf16 %v32
  %v161 = vunpack.c.l.bf16 %v33
  %v162 = vunpack.c.l.bf16 %v34
  %v163 = vunpack.c.l.bf16 %v35
  %v164 = vunpack.c.l.bf16 %v36
  %v165 = vunpack.c.l.bf16 %v37
  %v166 = vunpack.c.l.bf16 %v38
  %v167 = vunpack.c.l.bf16 %v39
  %v168 = vunpack.c.l.bf16 %v40
  %v169 = vunpack.c.l.bf16 %v41
  %v170 = vunpack.c.l.bf16 %v42
  %v171 = vunpack.c.l.bf16 %v43
  %v172 = vunpack.c.l.bf16 %v44
  %v173 = vunpack.c.l.bf16 %v45
  %v174 = vunpack.c.l.bf16 %v46
  %v175 = vunpack.c.l.bf16 %v47
  %v176 = vunpack.c.l.bf16 %v48
  %v177 = vunpack.c.l.bf16 %v49
  %v178 = vunpack.c.l.bf16 %v50
  %v179 = vunpack.c.l.bf16 %v51
  %v180 = vunpack.c.l.bf16 %v52
  %v181 = vunpack.c.l.bf16 %v53
  %v182 = vunpack.c.l.bf16 %v54
  %v183 = vunpack.c.l.bf16 %v55
  %v184 = vunpack.c.l.bf16 %v56
  %v185 = vunpack.c.l.bf16 %v57
  %v186 = vunpack.c.l.bf16 %v58
  %v187 = vunpack.c.l.bf16 %v59
  %v188 = vunpack.c.l.bf16 %v60
  %v189 = vunpack.c.l.bf16 %v61
  %v190 = vunpack.c.l.bf16 %v62
  %v191 = vunpack.c.l.bf16 %v63
  %v192 = vunpack.c.l.bf16 %v64
  %v193 = vunpack.c.l.bf16 %v65
  %v194 = vunpack.c.l.bf16 %v66
  %v195 = vunpack.c.l.bf16 %v67
  %v196 = vunpack.c.l.bf16 %v68
  %v197 = vunpack.c.l.bf16 %v69
  %v198 = vunpack.c.l.bf16 %v70
  %v199 = vunpack.c.l.bf16 %v71
  %v200 = vunpack.c.l.bf16 %v72
  %v201 = vunpack.c.l.bf16 %v73
  %v202 = vunpack.c.l.bf16 %v74
  %v203 = vunpack.c.l.bf16 %v75
  %v204 = vunpack.c.l.bf16 %v76
  %v205 = vunpack.c.l.bf16 %v77
  %v206 = vunpack.c.l.bf16 %v78
  %v207 = vunpack.c.l.bf16 %v79
  %v208 = vunpack.c.l.bf16 %v80
  %v209 = vunpack.c.l.bf16 %v81
  %v210 = vunpack.c.l.bf16 %v82
  %v211 = vunpack.c.l.bf16 %v83
  %v212 = vunpack.c.l.bf16 %v84
  %v213 = vunpack.c.l.bf16 %v85
  %v214 = vunpack.c.l.bf16 %v86
  %v215 = vunpack.c.l.bf16 %v87
  %v216 = vunpack.c.l.bf16 %v88
  %v217 = vunpack.c.l.bf16 %v89
  %v218 = vunpack.c.l.bf16 %v90
  %v219 = vunpack.c.l.bf16 %v91
  %v220 = vunpack.c.l.bf16 %v92
  %v221 = vunpack.c.l.bf16 %v93
  %v222 = vunpack.c.l.bf16 %v94
  %v223 = vunpack.c.l.bf16 %v95
  %v224 = vunpack.c.l.bf16 %v96
  %v225 = vunpack.c.l.bf16 %v97
  %v226 = vunpack.c.l.bf16 %v98
  %v227 = vunpack.c.l.bf16 %v99
  %v228 = vunpack.c.l.bf16 %v100
  %v229 = vunpack.c.l.bf16 %v101
  %v230 = vunpack.c.l.bf16 %v102
  %v231 = vunpack.c.l.bf16 %v103
  %v232 = vunpack.c.l.bf16 %v104
  %v233 = vunpack.c.l.bf16 %v105
  %v234 = vunpack.c.l.bf16 %v106
  %v235 = vunpack.c.l.bf16 %v107
  %v236 = vunpack.c.l.bf16 %v108
  %v237 = vunpack.c.l.bf16 %v109
  %v238 = vunpack.c.l.bf16 %v110
  %v239 = vunpack.c.l.bf16 %v111
  %v240 = vunpack.c.l.bf16 %v112
  %v241 = vunpack.c.l.bf16 %v113
  %v242 = vunpack.c.l.bf16 %v114
  %v243 = vunpack.c.l.bf16 %v115
  %v244 = vunpack.c.l.bf16 %v116
  %v245 = vunpack.c.l.bf16 %v117
  %v246 = vunpack.c.l.bf16 %v118
  %v247 = vunpack.c.l.bf16 %v119
  %v248 = vunpack.c.l.bf16 %v120
  %v249 = vunpack.c.l.bf16 %v121
  %v250 = vunpack.c.l.bf16 %v122
  %v251 = vunpack.c.l.bf16 %v123
  %v252 = vunpack.c.l.bf16 %v124
  %v253 = vunpack.c.l.bf16 %v125
  %v254 = vunpack.c.l.bf16 %v126
  %v255 = vunpack.c.l.bf16 %v127
  %v256 = vunpack.c.l.bf16 %v128
  %v257 = vunpack.c.l.bf16 %v129
  %v258 = vunpack.c.l.bf16 %v130
  %v259 = vunpack.c.l.bf16 %v131
  %v260 = vunpack.c.l.bf16 %v132
  %v261 = vunpack.c.l.bf16 %v133
  %v262 = vunpack.c.l.bf16 %v134
  %v263 = vunpack.c.l.bf16 %v135
  %v264 = vunpack.c.l.bf16 %v136
  %v265 = vunpack.c.l.bf16 %v137
  %v266 = vunpack.c.l.bf16 %v138
  %v267 = vunpack.c.l.bf16 %v139
  %v268 = vunpack.c.l.bf16 %v140
  %v269 = vunpack.c.l.bf16 %v141
  %v270 = vld [vmem:[%s1] sm:$0x1]
  %v272 = vlaneseq
  %v273 = vshrl.u32 %v272, 7
  %v274 = vsub.s32 0, %v273
  %v275 = vrot.slane %v270, %v274
  %v277 = vmul.f32 %v142, %v275
  %v278 = vmul.f32 %v143, %v275
  %v279 = vmul.f32 %v144, %v275
  %v280 = vmul.f32 %v145, %v275
  %v281 = vmul.f32 %v146, %v275
  %v282 = vmul.f32 %v147, %v275
  %v283 = vmul.f32 %v148, %v275
  %v284 = vmul.f32 %v149, %v275
  %v285 = vmul.f32 %v150, %v275
  %v286 = vmul.f32 %v151, %v275
  %v287 = vmul.f32 %v152, %v275
  %v288 = vmul.f32 %v153, %v275
  %v289 = vmul.f32 %v154, %v275
  %v290 = vmul.f32 %v155, %v275
  %v291 = vmul.f32 %v156, %v275
  %v292 = vmul.f32 %v157, %v275
  %v293 = vmul.f32 %v158, %v275
  %v294 = vmul.f32 %v159, %v275
  %v295 = vmul.f32 %v160, %v275
  %v296 = vmul.f32 %v161, %v275
  %v297 = vmul.f32 %v162, %v275
  %v298 = vmul.f32 %v163, %v275
  %v299 = vmul.f32 %v164, %v275
  %v300 = vmul.f32 %v165, %v275
  %v301 = vmul.f32 %v166, %v275
  %v302 = vmul.f32 %v167, %v275
  %v303 = vmul.f32 %v168, %v275
  %v304 = vmul.f32 %v169, %v275
  %v305 = vmul.f32 %v170, %v275
  %v306 = vmul.f32 %v171, %v275
  %v307 = vmul.f32 %v172, %v275
  %v308 = vmul.f32 %v173, %v275
  %v309 = vmul.f32 %v174, %v275
  %v310 = vmul.f32 %v175, %v275
  %v311 = vmul.f32 %v176, %v275
  %v312 = vmul.f32 %v177, %v275
  %v313 = vmul.f32 %v178, %v275
  %v314 = vmul.f32 %v179, %v275
  %v315 = vmul.f32 %v180, %v275
  %v316 = vmul.f32 %v181, %v275
  %v317 = vmul.f32 %v182, %v275
  %v318 = vmul.f32 %v183, %v275
  %v319 = vmul.f32 %v184, %v275
  %v320 = vmul.f32 %v185, %v275
  %v321 = vmul.f32 %v186, %v275
  %v322 = vmul.f32 %v187, %v275
  %v323 = vmul.f32 %v188, %v275
  %v324 = vmul.f32 %v189, %v275
  %v325 = vmul.f32 %v190, %v275
  %v326 = vmul.f32 %v191, %v275
  %v327 = vmul.f32 %v192, %v275
  %v328 = vmul.f32 %v193, %v275
  %v329 = vmul.f32 %v194, %v275
  %v330 = vmul.f32 %v195, %v275
  %v331 = vmul.f32 %v196, %v275
  %v332 = vmul.f32 %v197, %v275
  %v333 = vmul.f32 %v198, %v275
  %v334 = vmul.f32 %v199, %v275
  %v335 = vmul.f32 %v200, %v275
  %v336 = vmul.f32 %v201, %v275
  %v337 = vmul.f32 %v202, %v275
  %v338 = vmul.f32 %v203, %v275
  %v339 = vmul.f32 %v204, %v275
  %v340 = vmul.f32 %v205, %v275
  %v341 = vmul.f32 %v206, %v275
  %v342 = vmul.f32 %v207, %v275
  %v343 = vmul.f32 %v208, %v275
  %v344 = vmul.f32 %v209, %v275
  %v345 = vmul.f32 %v210, %v275
  %v346 = vmul.f32 %v211, %v275
  %v347 = vmul.f32 %v212, %v275
  %v348 = vmul.f32 %v213, %v275
  %v349 = vmul.f32 %v214, %v275
  %v350 = vmul.f32 %v215, %v275
  %v351 = vmul.f32 %v216, %v275
  %v352 = vmul.f32 %v217, %v275
  %v353 = vmul.f32 %v218, %v275
  %v354 = vmul.f32 %v219, %v275
  %v355 = vmul.f32 %v220, %v275
  %v356 = vmul.f32 %v221, %v275
  %v357 = vmul.f32 %v222, %v275
  %v358 = vmul.f32 %v223, %v275
  %v359 = vmul.f32 %v224, %v275
  %v360 = vmul.f32 %v225, %v275
  %v361 = vmul.f32 %v226, %v275
  %v362 = vmul.f32 %v227, %v275
  %v363 = vmul.f32 %v228, %v275
  %v364 = vmul.f32 %v229, %v275
  %v365 = vmul.f32 %v230, %v275
  %v366 = vmul.f32 %v231, %v275
  %v367 = vmul.f32 %v232, %v275
  %v368 = vmul.f32 %v233, %v275
  %v369 = vmul.f32 %v234, %v275
  %v370 = vmul.f32 %v235, %v275
  %v371 = vmul.f32 %v236, %v275
  %v372 = vmul.f32 %v237, %v275
  %v373 = vmul.f32 %v238, %v275
  %v374 = vmul.f32 %v239, %v275
  %v375 = vmul.f32 %v240, %v275
  %v376 = vmul.f32 %v241, %v275
  %v377 = vmul.f32 %v242, %v275
  %v378 = vmul.f32 %v243, %v275
  %v379 = vmul.f32 %v244, %v275
  %v380 = vmul.f32 %v245, %v275
  %v381 = vmul.f32 %v246, %v275
  %v382 = vmul.f32 %v247, %v275
  %v383 = vmul.f32 %v248, %v275
  %v384 = vmul.f32 %v249, %v275
  %v385 = vmul.f32 %v250, %v275
  %v386 = vmul.f32 %v251, %v275
  %v387 = vmul.f32 %v252, %v275
  %v388 = vmul.f32 %v253, %v275
  %v389 = vmul.f32 %v254, %v275
  %v390 = vmul.f32 %v255, %v275
  %v391 = vmul.f32 %v256, %v275
  %v392 = vmul.f32 %v257, %v275
  %v393 = vmul.f32 %v258, %v275
  %v394 = vmul.f32 %v259, %v275
  %v395 = vmul.f32 %v260, %v275
  %v396 = vmul.f32 %v261, %v275
  %v397 = vmul.f32 %v262, %v275
  %v398 = vmul.f32 %v263, %v275
  %v399 = vmul.f32 %v264, %v275
  %v400 = vmul.f32 %v265, %v275
  %v401 = vmul.f32 %v266, %v275
  %v402 = vmul.f32 %v267, %v275
  %v403 = vmul.f32 %v268, %v275
  %v404 = vmul.f32 %v269, %v275
  %v405 = vld [vmem:[%s2] sm:$0x1]
  %v407 = vlaneseq
  %v408 = vshrl.u32 %v407, 7
  %v409 = vsub.s32 0, %v408
  %v410 = vrot.slane %v405, %v409
  %v412 = vadd.f32 %v277, %v410
  %v413 = vadd.f32 %v278, %v410
  %v414 = vadd.f32 %v279, %v410
  %v415 = vadd.f32 %v280, %v410
  %v416 = vadd.f32 %v281, %v410
  %v417 = vadd.f32 %v282, %v410
  %v418 = vadd.f32 %v283, %v410
  %v419 = vadd.f32 %v284, %v410
  %v420 = vadd.f32 %v285, %v410
  %v421 = vadd.f32 %v286, %v410
  %v422 = vadd.f32 %v287, %v410
  %v423 = vadd.f32 %v288, %v410
  %v424 = vadd.f32 %v289, %v410
  %v425 = vadd.f32 %v290, %v410
  %v426 = vadd.f32 %v291, %v410
  %v427 = vadd.f32 %v292, %v410
  %v428 = vadd.f32 %v293, %v410
  %v429 = vadd.f32 %v294, %v410
  %v430 = vadd.f32 %v295, %v410
  %v431 = vadd.f32 %v296, %v410
  %v432 = vadd.f32 %v297, %v410
  %v433 = vadd.f32 %v298, %v410
  %v434 = vadd.f32 %v299, %v410
  %v435 = vadd.f32 %v300, %v410
  %v436 = vadd.f32 %v301, %v410
  %v437 = vadd.f32 %v302, %v410
  %v438 = vadd.f32 %v303, %v410
  %v439 = vadd.f32 %v304, %v410
  %v440 = vadd.f32 %v305, %v410
  %v441 = vadd.f32 %v306, %v410
  %v442 = vadd.f32 %v307, %v410
  %v443 = vadd.f32 %v308, %v410
  %v444 = vadd.f32 %v309, %v410
  %v445 = vadd.f32 %v310, %v410
  %v446 = vadd.f32 %v311, %v410
  %v447 = vadd.f32 %v312, %v410
  %v448 = vadd.f32 %v313, %v410
  %v449 = vadd.f32 %v314, %v410
  %v450 = vadd.f32 %v315, %v410
  %v451 = vadd.f32 %v316, %v410
  %v452 = vadd.f32 %v317, %v410
  %v453 = vadd.f32 %v318, %v410
  %v454 = vadd.f32 %v319, %v410
  %v455 = vadd.f32 %v320, %v410
  %v456 = vadd.f32 %v321, %v410
  %v457 = vadd.f32 %v322, %v410
  %v458 = vadd.f32 %v323, %v410
  %v459 = vadd.f32 %v324, %v410
  %v460 = vadd.f32 %v325, %v410
  %v461 = vadd.f32 %v326, %v410
  %v462 = vadd.f32 %v327, %v410
  %v463 = vadd.f32 %v328, %v410
  %v464 = vadd.f32 %v329, %v410
  %v465 = vadd.f32 %v330, %v410
  %v466 = vadd.f32 %v331, %v410
  %v467 = vadd.f32 %v332, %v410
  %v468 = vadd.f32 %v333, %v410
  %v469 = vadd.f32 %v334, %v410
  %v470 = vadd.f32 %v335, %v410
  %v471 = vadd.f32 %v336, %v410
  %v472 = vadd.f32 %v337, %v410
  %v473 = vadd.f32 %v338, %v410
  %v474 = vadd.f32 %v339, %v410
  %v475 = vadd.f32 %v340, %v410
  %v476 = vadd.f32 %v341, %v410
  %v477 = vadd.f32 %v342, %v410
  %v478 = vadd.f32 %v343, %v410
  %v479 = vadd.f32 %v344, %v410
  %v480 = vadd.f32 %v345, %v410
  %v481 = vadd.f32 %v346, %v410
  %v482 = vadd.f32 %v347, %v410
  %v483 = vadd.f32 %v348, %v410
  %v484 = vadd.f32 %v349, %v410
  %v485 = vadd.f32 %v350, %v410
  %v486 = vadd.f32 %v351, %v410
  %v487 = vadd.f32 %v352, %v410
  %v488 = vadd.f32 %v353, %v410
  %v489 = vadd.f32 %v354, %v410
  %v490 = vadd.f32 %v355, %v410
  %v491 = vadd.f32 %v356, %v410
  %v492 = vadd.f32 %v357, %v410
  %v493 = vadd.f32 %v358, %v410
  %v494 = vadd.f32 %v359, %v410
  %v495 = vadd.f32 %v360, %v410
  %v496 = vadd.f32 %v361, %v410
  %v497 = vadd.f32 %v362, %v410
  %v498 = vadd.f32 %v363, %v410
  %v499 = vadd.f32 %v364, %v410
  %v500 = vadd.f32 %v365, %v410
  %v501 = vadd.f32 %v366, %v410
  %v502 = vadd.f32 %v367, %v410
  %v503 = vadd.f32 %v368, %v410
  %v504 = vadd.f32 %v369, %v410
  %v505 = vadd.f32 %v370, %v410
  %v506 = vadd.f32 %v371, %v410
  %v507 = vadd.f32 %v372, %v410
  %v508 = vadd.f32 %v373, %v410
  %v509 = vadd.f32 %v374, %v410
  %v510 = vadd.f32 %v375, %v410
  %v511 = vadd.f32 %v376, %v410
  %v512 = vadd.f32 %v377, %v410
  %v513 = vadd.f32 %v378, %v410
  %v514 = vadd.f32 %v379, %v410
  %v515 = vadd.f32 %v380, %v410
  %v516 = vadd.f32 %v381, %v410
  %v517 = vadd.f32 %v382, %v410
  %v518 = vadd.f32 %v383, %v410
  %v519 = vadd.f32 %v384, %v410
  %v520 = vadd.f32 %v385, %v410
  %v521 = vadd.f32 %v386, %v410
  %v522 = vadd.f32 %v387, %v410
  %v523 = vadd.f32 %v388, %v410
  %v524 = vadd.f32 %v389, %v410
  %v525 = vadd.f32 %v390, %v410
  %v526 = vadd.f32 %v391, %v410
  %v527 = vadd.f32 %v392, %v410
  %v528 = vadd.f32 %v393, %v410
  %v529 = vadd.f32 %v394, %v410
  %v530 = vadd.f32 %v395, %v410
  %v531 = vadd.f32 %v396, %v410
  %v532 = vadd.f32 %v397, %v410
  %v533 = vadd.f32 %v398, %v410
  %v534 = vadd.f32 %v399, %v410
  %v535 = vadd.f32 %v400, %v410
  %v536 = vadd.f32 %v401, %v410
  %v537 = vadd.f32 %v402, %v410
  %v538 = vadd.f32 %v403, %v410
  %v539 = vadd.f32 %v404, %v410
  %v540 = vmax.f32 %v412, 0.0
  %v541 = vmax.f32 %v413, 0.0
  %v542 = vmax.f32 %v414, 0.0
  %v543 = vmax.f32 %v415, 0.0
  %v544 = vmax.f32 %v416, 0.0
  %v545 = vmax.f32 %v417, 0.0
  %v546 = vmax.f32 %v418, 0.0
  %v547 = vmax.f32 %v419, 0.0
  %v548 = vmax.f32 %v420, 0.0
  %v549 = vmax.f32 %v421, 0.0
  %v550 = vmax.f32 %v422, 0.0
  %v551 = vmax.f32 %v423, 0.0
  %v552 = vmax.f32 %v424, 0.0
  %v553 = vmax.f32 %v425, 0.0
  %v554 = vmax.f32 %v426, 0.0
  %v555 = vmax.f32 %v427, 0.0
  %v556 = vmax.f32 %v428, 0.0
  %v557 = vmax.f32 %v429, 0.0
  %v558 = vmax.f32 %v430, 0.0
  %v559 = vmax.f32 %v431, 0.0
  %v560 = vmax.f32 %v432, 0.0
  %v561 = vmax.f32 %v433, 0.0
  %v562 = vmax.f32 %v434, 0.0
  %v563 = vmax.f32 %v435, 0.0
  %v564 = vmax.f32 %v436, 0.0
  %v565 = vmax.f32 %v437, 0.0
  %v566 = vmax.f32 %v438, 0.0
  %v567 = vmax.f32 %v439, 0.0
  %v568 = vmax.f32 %v440, 0.0
  %v569 = vmax.f32 %v441, 0.0
  %v570 = vmax.f32 %v442, 0.0
  %v571 = vmax.f32 %v443, 0.0
  %v572 = vmax.f32 %v444, 0.0
  %v573 = vmax.f32 %v445, 0.0
  %v574 = vmax.f32 %v446, 0.0
  %v575 = vmax.f32 %v447, 0.0
  %v576 = vmax.f32 %v448, 0.0
  %v577 = vmax.f32 %v449, 0.0
  %v578 = vmax.f32 %v450, 0.0
  %v579 = vmax.f32 %v451, 0.0
  %v580 = vmax.f32 %v452, 0.0
  %v581 = vmax.f32 %v453, 0.0
  %v582 = vmax.f32 %v454, 0.0
  %v583 = vmax.f32 %v455, 0.0
  %v584 = vmax.f32 %v456, 0.0
  %v585 = vmax.f32 %v457, 0.0
  %v586 = vmax.f32 %v458, 0.0
  %v587 = vmax.f32 %v459, 0.0
  %v588 = vmax.f32 %v460, 0.0
  %v589 = vmax.f32 %v461, 0.0
  %v590 = vmax.f32 %v462, 0.0
  %v591 = vmax.f32 %v463, 0.0
  %v592 = vmax.f32 %v464, 0.0
  %v593 = vmax.f32 %v465, 0.0
  %v594 = vmax.f32 %v466, 0.0
  %v595 = vmax.f32 %v467, 0.0
  %v596 = vmax.f32 %v468, 0.0
  %v597 = vmax.f32 %v469, 0.0
  %v598 = vmax.f32 %v470, 0.0
  %v599 = vmax.f32 %v471, 0.0
  %v600 = vmax.f32 %v472, 0.0
  %v601 = vmax.f32 %v473, 0.0
  %v602 = vmax.f32 %v474, 0.0
  %v603 = vmax.f32 %v475, 0.0
  %v604 = vmax.f32 %v476, 0.0
  %v605 = vmax.f32 %v477, 0.0
  %v606 = vmax.f32 %v478, 0.0
  %v607 = vmax.f32 %v479, 0.0
  %v608 = vmax.f32 %v480, 0.0
  %v609 = vmax.f32 %v481, 0.0
  %v610 = vmax.f32 %v482, 0.0
  %v611 = vmax.f32 %v483, 0.0
  %v612 = vmax.f32 %v484, 0.0
  %v613 = vmax.f32 %v485, 0.0
  %v614 = vmax.f32 %v486, 0.0
  %v615 = vmax.f32 %v487, 0.0
  %v616 = vmax.f32 %v488, 0.0
  %v617 = vmax.f32 %v489, 0.0
  %v618 = vmax.f32 %v490, 0.0
  %v619 = vmax.f32 %v491, 0.0
  %v620 = vmax.f32 %v492, 0.0
  %v621 = vmax.f32 %v493, 0.0
  %v622 = vmax.f32 %v494, 0.0
  %v623 = vmax.f32 %v495, 0.0
  %v624 = vmax.f32 %v496, 0.0
  %v625 = vmax.f32 %v497, 0.0
  %v626 = vmax.f32 %v498, 0.0
  %v627 = vmax.f32 %v499, 0.0
  %v628 = vmax.f32 %v500, 0.0
  %v629 = vmax.f32 %v501, 0.0
  %v630 = vmax.f32 %v502, 0.0
  %v631 = vmax.f32 %v503, 0.0
  %v632 = vmax.f32 %v504, 0.0
  %v633 = vmax.f32 %v505, 0.0
  %v634 = vmax.f32 %v506, 0.0
  %v635 = vmax.f32 %v507, 0.0
  %v636 = vmax.f32 %v508, 0.0
  %v637 = vmax.f32 %v509, 0.0
  %v638 = vmax.f32 %v510, 0.0
  %v639 = vmax.f32 %v511, 0.0
  %v640 = vmax.f32 %v512, 0.0
  %v641 = vmax.f32 %v513, 0.0
  %v642 = vmax.f32 %v514, 0.0
  %v643 = vmax.f32 %v515, 0.0
  %v644 = vmax.f32 %v516, 0.0
  %v645 = vmax.f32 %v517, 0.0
  %v646 = vmax.f32 %v518, 0.0
  %v647 = vmax.f32 %v519, 0.0
  %v648 = vmax.f32 %v520, 0.0
  %v649 = vmax.f32 %v521, 0.0
  %v650 = vmax.f32 %v522, 0.0
  %v651 = vmax.f32 %v523, 0.0
  %v652 = vmax.f32 %v524, 0.0
  %v653 = vmax.f32 %v525, 0.0
  %v654 = vmax.f32 %v526, 0.0
  %v655 = vmax.f32 %v527, 0.0
  %v656 = vmax.f32 %v528, 0.0
  %v657 = vmax.f32 %v529, 0.0
  %v658 = vmax.f32 %v530, 0.0
  %v659 = vmax.f32 %v531, 0.0
  %v660 = vmax.f32 %v532, 0.0
  %v661 = vmax.f32 %v533, 0.0
  %v662 = vmax.f32 %v534, 0.0
  %v663 = vmax.f32 %v535, 0.0
  %v664 = vmax.f32 %v536, 0.0
  %v665 = vmax.f32 %v537, 0.0
  %v666 = vmax.f32 %v538, 0.0
  %v667 = vmax.f32 %v539, 0.0
  %668 = vst [vmem:[%s3] sm:$0xff] %v540
  %669 = vst [vmem:[%s3 + $0x8] sm:$0xff] %v541
  %670 = vst [vmem:[%s3 + $0x10] sm:$0xff] %v542
  %671 = vst [vmem:[%s3 + $0x18] sm:$0xff] %v543
  %672 = vst [vmem:[%s3 + $0x20] sm:$0xff] %v544
  %673 = vst [vmem:[%s3 + $0x28] sm:$0xff] %v545
  %674 = vst [vmem:[%s3 + $0x30] sm:$0xff] %v546
  %675 = vst [vmem:[%s3 + $0x38] sm:$0xff] %v547
  %676 = vst [vmem:[%s3 + $0x40] sm:$0xff] %v548
  %677 = vst [vmem:[%s3 + $0x48] sm:$0xff] %v549
  %678 = vst [vmem:[%s3 + $0x50] sm:$0xff] %v550
  %679 = vst [vmem:[%s3 + $0x58] sm:$0xff] %v551
  %680 = vst [vmem:[%s3 + $0x60] sm:$0xff] %v552
  %681 = vst [vmem:[%s3 + $0x68] sm:$0xff] %v553
  %682 = vst [vmem:[%s3 + $0x70] sm:$0xff] %v554
  %683 = vst [vmem:[%s3 + $0x78] sm:$0xff] %v555
  %684 = vst [vmem:[%s3 + $0x80] sm:$0xff] %v556
  %685 = vst [vmem:[%s3 + $0x88] sm:$0xff] %v557
  %686 = vst [vmem:[%s3 + $0x90] sm:$0xff] %v558
  %687 = vst [vmem:[%s3 + $0x98] sm:$0xff] %v559
  %688 = vst [vmem:[%s3 + $0xa0] sm:$0xff] %v560
  %689 = vst [vmem:[%s3 + $0xa8] sm:$0xff] %v561
  %690 = vst [vmem:[%s3 + $0xb0] sm:$0xff] %v562
  %691 = vst [vmem:[%s3 + $0xb8] sm:$0xff] %v563
  %692 = vst [vmem:[%s3 + $0xc0] sm:$0xff] %v564
  %693 = vst [vmem:[%s3 + $0xc8] sm:$0xff] %v565
  %694 = vst [vmem:[%s3 + $0xd0] sm:$0xff] %v566
  %695 = vst [vmem:[%s3 + $0xd8] sm:$0xff] %v567
  %696 = vst [vmem:[%s3 + $0xe0] sm:$0xff] %v568
  %697 = vst [vmem:[%s3 + $0xe8] sm:$0xff] %v569
  %698 = vst [vmem:[%s3 + $0xf0] sm:$0xff] %v570
  %699 = vst [vmem:[%s3 + $0xf8] sm:$0xff] %v571
  %700 = vst [vmem:[%s3 + $0x100] sm:$0xff] %v572
  %701 = vst [vmem:[%s3 + $0x108] sm:$0xff] %v573
  %702 = vst [vmem:[%s3 + $0x110] sm:$0xff] %v574
  %703 = vst [vmem:[%s3 + $0x118] sm:$0xff] %v575
  %704 = vst [vmem:[%s3 + $0x120] sm:$0xff] %v576
  %705 = vst [vmem:[%s3 + $0x128] sm:$0xff] %v577
  %706 = vst [vmem:[%s3 + $0x130] sm:$0xff] %v578
  %707 = vst [vmem:[%s3 + $0x138] sm:$0xff] %v579
  %708 = vst [vmem:[%s3 + $0x140] sm:$0xff] %v580
  %709 = vst [vmem:[%s3 + $0x148] sm:$0xff] %v581
  %710 = vst [vmem:[%s3 + $0x150] sm:$0xff] %v582
  %711 = vst [vmem:[%s3 + $0x158] sm:$0xff] %v583
  %712 = vst [vmem:[%s3 + $0x160] sm:$0xff] %v584
  %713 = vst [vmem:[%s3 + $0x168] sm:$0xff] %v585
  %714 = vst [vmem:[%s3 + $0x170] sm:$0xff] %v586
  %715 = vst [vmem:[%s3 + $0x178] sm:$0xff] %v587
  %716 = vst [vmem:[%s3 + $0x180] sm:$0xff] %v588
  %717 = vst [vmem:[%s3 + $0x188] sm:$0xff] %v589
  %718 = vst [vmem:[%s3 + $0x190] sm:$0xff] %v590
  %719 = vst [vmem:[%s3 + $0x198] sm:$0xff] %v591
  %720 = vst [vmem:[%s3 + $0x1a0] sm:$0xff] %v592
  %721 = vst [vmem:[%s3 + $0x1a8] sm:$0xff] %v593
  %722 = vst [vmem:[%s3 + $0x1b0] sm:$0xff] %v594
  %723 = vst [vmem:[%s3 + $0x1b8] sm:$0xff] %v595
  %724 = vst [vmem:[%s3 + $0x1c0] sm:$0xff] %v596
  %725 = vst [vmem:[%s3 + $0x1c8] sm:$0xff] %v597
  %726 = vst [vmem:[%s3 + $0x1d0] sm:$0xff] %v598
  %727 = vst [vmem:[%s3 + $0x1d8] sm:$0xff] %v599
  %728 = vst [vmem:[%s3 + $0x1e0] sm:$0xff] %v600
  %729 = vst [vmem:[%s3 + $0x1e8] sm:$0xff] %v601
  %730 = vst [vmem:[%s3 + $0x1f0] sm:$0xff] %v602
  %731 = vst [vmem:[%s3 + $0x1f8] sm:$0xff] %v603
  %732 = vst [vmem:[%s3 + $0x200] sm:$0xff] %v604
  %733 = vst [vmem:[%s3 + $0x208] sm:$0xff] %v605
  %734 = vst [vmem:[%s3 + $0x210] sm:$0xff] %v606
  %735 = vst [vmem:[%s3 + $0x218] sm:$0xff] %v607
  %736 = vst [vmem:[%s3 + $0x220] sm:$0xff] %v608
  %737 = vst [vmem:[%s3 + $0x228] sm:$0xff] %v609
  %738 = vst [vmem:[%s3 + $0x230] sm:$0xff] %v610
  %739 = vst [vmem:[%s3 + $0x238] sm:$0xff] %v611
  %740 = vst [vmem:[%s3 + $0x240] sm:$0xff] %v612
  %741 = vst [vmem:[%s3 + $0x248] sm:$0xff] %v613
  %742 = vst [vmem:[%s3 + $0x250] sm:$0xff] %v614
  %743 = vst [vmem:[%s3 + $0x258] sm:$0xff] %v615
  %744 = vst [vmem:[%s3 + $0x260] sm:$0xff] %v616
  %745 = vst [vmem:[%s3 + $0x268] sm:$0xff] %v617
  %746 = vst [vmem:[%s3 + $0x270] sm:$0xff] %v618
  %747 = vst [vmem:[%s3 + $0x278] sm:$0xff] %v619
  %748 = vst [vmem:[%s3 + $0x280] sm:$0xff] %v620
  %749 = vst [vmem:[%s3 + $0x288] sm:$0xff] %v621
  %750 = vst [vmem:[%s3 + $0x290] sm:$0xff] %v622
  %751 = vst [vmem:[%s3 + $0x298] sm:$0xff] %v623
  %752 = vst [vmem:[%s3 + $0x2a0] sm:$0xff] %v624
  %753 = vst [vmem:[%s3 + $0x2a8] sm:$0xff] %v625
  %754 = vst [vmem:[%s3 + $0x2b0] sm:$0xff] %v626
  %755 = vst [vmem:[%s3 + $0x2b8] sm:$0xff] %v627
  %756 = vst [vmem:[%s3 + $0x2c0] sm:$0xff] %v628
  %757 = vst [vmem:[%s3 + $0x2c8] sm:$0xff] %v629
  %758 = vst [vmem:[%s3 + $0x2d0] sm:$0xff] %v630
  %759 = vst [vmem:[%s3 + $0x2d8] sm:$0xff] %v631
  %760 = vst [vmem:[%s3 + $0x2e0] sm:$0xff] %v632
  %761 = vst [vmem:[%s3 + $0x2e8] sm:$0xff] %v633
  %762 = vst [vmem:[%s3 + $0x2f0] sm:$0xff] %v634
  %763 = vst [vmem:[%s3 + $0x2f8] sm:$0xff] %v635
  %764 = vst [vmem:[%s3 + $0x300] sm:$0xff] %v636
  %765 = vst [vmem:[%s3 + $0x308] sm:$0xff] %v637
  %766 = vst [vmem:[%s3 + $0x310] sm:$0xff] %v638
  %767 = vst [vmem:[%s3 + $0x318] sm:$0xff] %v639
  %768 = vst [vmem:[%s3 + $0x320] sm:$0xff] %v640
  %769 = vst [vmem:[%s3 + $0x328] sm:$0xff] %v641
  %770 = vst [vmem:[%s3 + $0x330] sm:$0xff] %v642
  %771 = vst [vmem:[%s3 + $0x338] sm:$0xff] %v643
  %772 = vst [vmem:[%s3 + $0x340] sm:$0xff] %v644
  %773 = vst [vmem:[%s3 + $0x348] sm:$0xff] %v645
  %774 = vst [vmem:[%s3 + $0x350] sm:$0xff] %v646
  %775 = vst [vmem:[%s3 + $0x358] sm:$0xff] %v647
  %776 = vst [vmem:[%s3 + $0x360] sm:$0xff] %v648
  %777 = vst [vmem:[%s3 + $0x368] sm:$0xff] %v649
  %778 = vst [vmem:[%s3 + $0x370] sm:$0xff] %v650
  %779 = vst [vmem:[%s3 + $0x378] sm:$0xff] %v651
  %780 = vst [vmem:[%s3 + $0x380] sm:$0xff] %v652
  %781 = vst [vmem:[%s3 + $0x388] sm:$0xff] %v653
  %782 = vst [vmem:[%s3 + $0x390] sm:$0xff] %v654
  %783 = vst [vmem:[%s3 + $0x398] sm:$0xff] %v655
  %784 = vst [vmem:[%s3 + $0x3a0] sm:$0xff] %v656
  %785 = vst [vmem:[%s3 + $0x3a8] sm:$0xff] %v657
  %786 = vst [vmem:[%s3 + $0x3b0] sm:$0xff] %v658
  %787 = vst [vmem:[%s3 + $0x3b8] sm:$0xff] %v659
  %788 = vst [vmem:[%s3 + $0x3c0] sm:$0xff] %v660
  %789 = vst [vmem:[%s3 + $0x3c8] sm:$0xff] %v661
  %790 = vst [vmem:[%s3 + $0x3d0] sm:$0xff] %v662
  %791 = vst [vmem:[%s3 + $0x3d8] sm:$0xff] %v663
  %792 = vst [vmem:[%s3 + $0x3e0] sm:$0xff] %v664
  %793 = vst [vmem:[%s3 + $0x3e8] sm:$0xff] %v665
  %794 = vst [vmem:[%s3 + $0x3f0] sm:$0xff] %v666
  %795 = vst [vmem:[%s3 + $0x3f8] sm:$0xff] %v667
  // Predicated region
  $region14: #{_conv_bn_relu_impl.3} parent=0 // pred_check
    _
  $region15: #{_conv_bn_relu_impl.3} parent=0 // pred_check_branch
    %797 = sbr.rel (0) target = $region17
  $region16: #{_conv_bn_relu_impl.3} parent=0 // pred_region
    _
  $region17: #{_conv_bn_relu_impl.3} parent=0 // pred_fallthru
    _
  // Predicated region
  $region18: #{_conv_bn_relu_impl.3} parent=0 // pred_check
    _
  $region19: #{_conv_bn_relu_impl.3} parent=0 // pred_check_branch
    %799 = sbr.rel (0) target = $region21
  $region20: #{_conv_bn_relu_impl.3} parent=0 // pred_region
    _
  $region21: #{_conv_bn_relu_impl.3} parent=0 // pred_fallthru
    _

// kernel: _conv_bn_relu_impl.2
$region0: #{_conv_bn_relu_impl.2}
  #allocation0 [shape = 'u32[]', space=smem, size = 0x4, offset = 0x4, fixed_abs, tag = 'smem constant byte address 0x4 - core index']
  #allocation1 [shape = 'u32[144,128]{1,0:T(1,128)}', space=vmem, size = 0x12000, scoped, tag = 'internal scratch']
  %s0 = inlined_call_operand.vmem [shape: bf16[2,32,32,3], index: 0, kind: input, shape index: {}]
  %s1 = inlined_call_operand.vmem [shape: bf16[3,9,64], index: 1, kind: input, shape index: {}]
  %s2 = inlined_call_operand.vmem [shape: bf16[2,32,32,64], index: 2, kind: output, shape index: {0}]
  %s3 = inlined_call_operand.vmem [shape: f32[2,64], index: 3, kind: output, shape index: {1}]
  %4 = xla_tuple %s2, %s3
  %s5 = sld [smem:[#allocation0]]
  $region53: #{_conv_bn_relu_impl.2} parent=0
    _
  %s7 = ssub.s32 1, %s5
  %s8 = scalar_select 0, %s7, %s5
  loop: start=0, step=1, limit=4
  $region2: #{_conv_bn_relu_impl.2} parent=0 // loop_pre_header
    _
  $region3: #{_conv_bn_relu_impl.2} parent=0 // loop_header
    %s10 = sphi 0, %s14
    %p11 = scmp.ge.s32.totalorder %s10, 4
    %s17 = sphi 0, %s29
    %s18 = sphi 0, %s25
    %s19 = sphi 0, %s17
    %s20 = sphi 0, %s18
    %s21 = sphi 0, %s19
    %s22 = sphi 0, %s20
    %s32 = sphi 0, %s34
    %s35 = sphi 0, %s32
    %s36 = sphi 0, %s35
    %s52 = sphi 0, %s36
    %s58 = sphi 0, %s60
    %s61 = sphi 0, %s58
    %s62 = sphi 0, %s61
    %s78 = sphi 0, %s62
    %s86 = sphi 0, %s88
    %s89 = sphi 0, %s86
    %s90 = sphi 0, %s89
    %s106 = sphi 0, %s90
    %s112 = sphi 0, %s114
    %s115 = sphi 0, %s112
    %s116 = sphi 0, %s115
    %s132 = sphi 0, %s116
  $region4: #{_conv_bn_relu_impl.2} parent=0 // loop_header_branch
    %13 = sbr.rel (%p11) target = $region8
  $region5: #{_conv_bn_relu_impl.2} parent=0 // loop_body
    %s15 = ssub.s32 %s10, 1
    %s16 = ssub.s32 %s10, 2
    %s23 = sadd.s32 1, %s18
    %p24 = scmp.ge.s32.totalorder %s23, 2
    %s25 = scalar_select %p24, 0, %s23
    %s26 = sadd.s32 1, %s17
    %s27 = scalar_select %p24, %s26, %s17
    %p28 = scmp.ge.s32.totalorder %s27, 1
    %s29 = scalar_select %p28, 0, %s27
    %s30 = ssub.s32 %s18, %s25
    %p31 = scmp.eq.s32.totalorder %s30, 0
    %s33 = sadd.s32 %s32, 1
    %s34 = scalar_select %p31, %s32, %s33
    %p37 = pneg %p31
    %p38 = scmp.eq.s32.totalorder %s10, 1
    %p39 = por %p37, %p38
    %p40 = scmp.ne.s32.totalorder %s32, %s35
    %p41 = scmp.eq.s32.totalorder %s10, 0
    %p42 = por %p40, %p41
    %p43 = scmp.ne.s32.totalorder %s32, %s35
    %p44 = scmp.eq.s32.totalorder %s15, 1
    %p45 = por %p43, %p44
    %p46 = scmp.ne.s32.totalorder %s35, %s36
    %p47 = scmp.eq.s32.totalorder %s15, 0
    %p48 = por %p46, %p47
    %p49 = scmp.ne.s32.totalorder %s35, %s36
    %p50 = scmp.eq.s32.totalorder %s16, 1
    %p51 = por %p49, %p50
    %p53 = scmp.ne.s32.totalorder %s36, %s52
    %p54 = scmp.eq.s32.totalorder %s16, 0
    %p55 = por %p53, %p54
    %s56 = ssub.s32 %s17, %s29
    %p57 = scmp.eq.s32.totalorder %s56, 0
    %s59 = sadd.s32 %s58, 1
    %s60 = scalar_select %p57, %s58, %s59
    %p63 = pneg %p57
    %p64 = scmp.eq.s32.totalorder %s10, 1
    %p65 = por %p63, %p64
    %p66 = scmp.ne.s32.totalorder %s58, %s61
    %p67 = scmp.eq.s32.totalorder %s10, 0
    %p68 = por %p66, %p67
    %p69 = scmp.ne.s32.totalorder %s58, %s61
    %p70 = scmp.eq.s32.totalorder %s15, 1
    %p71 = por %p69, %p70
    %p72 = scmp.ne.s32.totalorder %s61, %s62
    %p73 = scmp.eq.s32.totalorder %s15, 0
    %p74 = por %p72, %p73
    %p75 = scmp.ne.s32.totalorder %s61, %s62
    %p76 = scmp.eq.s32.totalorder %s16, 1
    %p77 = por %p75, %p76
    %p79 = scmp.ne.s32.totalorder %s62, %s78
    %p80 = scmp.eq.s32.totalorder %s16, 0
    %p81 = por %p79, %p80
    %s82 = ssub.s32 %s18, %s25
    %s83 = ssub.s32 %s17, %s29
    %s84 = sor.u32 %s82, %s83
    %p85 = scmp.eq.s32.totalorder %s84, 0
    %s87 = sadd.s32 %s86, 1
    %s88 = scalar_select %p85, %s86, %s87
    %p91 = pneg %p85
    %p92 = scmp.eq.s32.totalorder %s10, 1
    %p93 = por %p91, %p92
    %p94 = scmp.ne.s32.totalorder %s86, %s89
    %p95 = scmp.eq.s32.totalorder %s10, 0
    %p96 = por %p94, %p95
    %p97 = scmp.ne.s32.totalorder %s86, %s89
    %p98 = scmp.eq.s32.totalorder %s15, 1
    %p99 = por %p97, %p98
    %p100 = scmp.ne.s32.totalorder %s89, %s90
    %p101 = scmp.eq.s32.totalorder %s15, 0
    %p102 = por %p100, %p101
    %p103 = scmp.ne.s32.totalorder %s89, %s90
    %p104 = scmp.eq.s32.totalorder %s16, 1
    %p105 = por %p103, %p104
    %p107 = scmp.ne.s32.totalorder %s90, %s106
    %p108 = scmp.eq.s32.totalorder %s16, 0
    %p109 = por %p107, %p108
    %s110 = ssub.s32 %s17, %s29
    %p111 = scmp.eq.s32.totalorder %s110, 0
    %s113 = sadd.s32 %s112, 1
    %s114 = scalar_select %p111, %s112, %s113
    %p117 = pneg %p111
    %p118 = scmp.eq.s32.totalorder %s10, 1
    %p119 = por %p117, %p118
    %p120 = scmp.ne.s32.totalorder %s112, %s115
    %p121 = scmp.eq.s32.totalorder %s10, 0
    %p122 = por %p120, %p121
    %p123 = scmp.ne.s32.totalorder %s112, %s115
    %p124 = scmp.eq.s32.totalorder %s15, 1
    %p125 = por %p123, %p124
    %p126 = scmp.ne.s32.totalorder %s115, %s116
    %p127 = scmp.eq.s32.totalorder %s15, 0
    %p128 = por %p126, %p127
    %p129 = scmp.ne.s32.totalorder %s115, %s116
    %p130 = scmp.eq.s32.totalorder %s16, 1
    %p131 = por %p129, %p130
    %p133 = scmp.ne.s32.totalorder %s116, %s132
    %p134 = scmp.eq.s32.totalorder %s16, 0
    %p135 = por %p133, %p134
    %p136 = scmp.le.s32.totalorder 1, %s10
    %p137 = scmp.lt.s32.totalorder %s10, 3
    %p138 = pnand %p136, %p137
    %p139 = pneg %p138
    // Predicated region
    $region9: #{_conv_bn_relu_impl.2} parent=5 // pred_check
      _
    $region10: #{_conv_bn_relu_impl.2} parent=5 // pred_check_branch
      %141 = sbr.rel (%p138) target = $region12
    $region11: #{_conv_bn_relu_impl.2} parent=5 // pred_region
      %s142 = ssub.s32 %s10, 1
      // Predicated region
      $region13: #{_conv_bn_relu_impl.2} parent=11 // pred_check
        %p143 = pneg %p74
      $region14: #{_conv_bn_relu_impl.2} parent=11 // pred_check_branch
        %145 = sbr.rel (%p143) target = $region16
      $region15: #{_conv_bn_relu_impl.2} parent=11 // pred_region
        %p146 = scmp.lt.s32.totalorder %s19, 0
        %s147 = scalar_select %p146, %s19, 0
        %s148 = smul.addr %s147, 4
        %s149 = scalar_lea.vmem %s1, %s148
      $region16: #{_conv_bn_relu_impl.2} parent=11 // pred_fallthru
        _
    $region12: #{_conv_bn_relu_impl.2} parent=5 // pred_fallthru
      _
    %p150 = scmp.lt.s32.totalorder %s10, 2
    // Predicated region
    $region17: #{_conv_bn_relu_impl.2} parent=5 // pred_check
      %p151 = pneg %p150
    $region18: #{_conv_bn_relu_impl.2} parent=5 // pred_check_branch
      %153 = sbr.rel (%p151) target = $region20
    $region19: #{_conv_bn_relu_impl.2} parent=5 // pred_region
      // Predicated region
      $region21: #{_conv_bn_relu_impl.2} parent=19 // pred_check
        %p154 = pneg %p42
      $region22: #{_conv_bn_relu_impl.2} parent=19 // pred_check_branch
        %156 = sbr.rel (%p154) target = $region24
      $region23: #{_conv_bn_relu_impl.2} parent=19 // pred_region
        %p157 = scmp.lt.s32.totalorder %s18, 1
        %s158 = scalar_select %p157, %s18, 1
        %s159 = smul.addr %s158, 128
        %s160 = smul.addr %s159, 4
        %s161 = scalar_lea.vmem %s0, %s160
      $region24: #{_conv_bn_relu_impl.2} parent=19 // pred_fallthru
        _
    $region20: #{_conv_bn_relu_impl.2} parent=5 // pred_fallthru
      _
    %p162 = scmp.le.s32.totalorder 1, %s10
    %p163 = scmp.lt.s32.totalorder %s10, 3
    %p164 = pnand %p162, %p163
    %p165 = pneg %p164
    // Predicated region
    $region25: #{_conv_bn_relu_impl.2} parent=5 // pred_check
      _
    $region26: #{_conv_bn_relu_impl.2} parent=5 // pred_check_branch
      %167 = sbr.rel (%p164) target = $region28
    $region27: #{_conv_bn_relu_impl.2} parent=5 // pred_region
      %s168 = ssub.s32 %s10, 1
      %p169 = scmp.lt.s32.totalorder %s20, 1
      %s170 = scalar_select %p169, %s20, 1
      %s171 = smul.addr %s170, 128
      %s172 = smul.addr %s171, 4
      %s173 = scalar_lea.vmem %s0, %s172
      %p174 = pneg %p48
      %p175 = pneg %p45
      %p176 = scmp.lt.s32.totalorder %s19, 0
      %s177 = scalar_select %p176, %s19, 0
      %s178 = smul.addr %s177, 4
      %s179 = scalar_lea.vmem %s1, %s178
      %p180 = pneg %p74
      %p181 = pneg %p71
      %p182 = pneg %p102
      %p183 = pneg %p99
      %p184 = scmp.lt.s32.totalorder %s20, 1
      %s185 = scalar_select %p184, %s20, 1
      %p186 = scmp.lt.s32.totalorder %s19, 0
      %s187 = scalar_select %p186, %s19, 0
      %s188 = smul.addr %s185, 128
      %s189 = sadd.s32 %s187, %s188
      %s190 = smul.addr %s189, 4
      %s191 = scalar_lea.vmem %s2, %s190
      %p192 = pneg %p128
      %p193 = pneg %p125
      %p194 = scmp.lt.s32.totalorder %s19, 0
      %s195 = scalar_select %p194, %s19, 0
      %s196 = smul.addr %s195, 2
      %s197 = scalar_lea.vmem %s3, %s196
      %p198 = scmp.lt.s32.totalorder %s20, 1
      %s199 = scalar_select %p198, %s20, 1
      %s200 = smul.addr %s199, 128
      %s201 = smul.addr %s200, 4
      %s202 = scalar_lea.vmem %s0, %s201
      %p203 = scmp.lt.s32.totalorder %s19, 0
      %s204 = scalar_select %p203, %s19, 0
      %s205 = smul.addr %s204, 4
      %s206 = scalar_lea.vmem %s1, %s205
      %p207 = scmp.lt.s32.totalorder %s20, 1
      %s208 = scalar_select %p207, %s20, 1
      %p209 = scmp.lt.s32.totalorder %s19, 0
      %s210 = scalar_select %p209, %s19, 0
      %s211 = smul.addr %s208, 128
      %s212 = sadd.s32 %s210, %s211
      %s213 = smul.addr %s212, 4
      %s214 = scalar_lea.vmem %s2, %s213
      %p215 = scmp.lt.s32.totalorder %s19, 0
      %s216 = scalar_select %p215, %s19, 0
      %s217 = smul.addr %s216, 2
      %s218 = scalar_lea.vmem %s3, %s217
      %v220 = vld [vmem:[%s202] sm:$0xf]
      %v221 = vld [vmem:[%s202 + $0x4] sm:$0xf]
      %v222 = vld [vmem:[%s202 + $0x8] sm:$0xf]
      %v223 = vld [vmem:[%s202 + $0xc] sm:$0xf]
      %v224 = vld [vmem:[%s202 + $0x10] sm:$0xf]
      %v225 = vld [vmem:[%s202 + $0x14] sm:$0xf]
      %v226 = vld [vmem:[%s202 + $0x18] sm:$0xf]
      %v227 = vld [vmem:[%s202 + $0x1c] sm:$0xf]
      %v228 = vld [vmem:[%s202 + $0x20] sm:$0xf]
      %v229 = vld [vmem:[%s202 + $0x24] sm:$0xf]
      %v230 = vld [vmem:[%s202 + $0x28] sm:$0xf]
      %v231 = vld [vmem:[%s202 + $0x2c] sm:$0xf]
      %v232 = vld [vmem:[%s202 + $0x30] sm:$0xf]
      %v233 = vld [vmem:[%s202 + $0x34] sm:$0xf]
      %v234 = vld [vmem:[%s202 + $0x38] sm:$0xf]
      %v235 = vld [vmem:[%s202 + $0x3c] sm:$0xf]
      %v236 = vld [vmem:[%s202 + $0x40] sm:$0xf]
      %v237 = vld [vmem:[%s202 + $0x44] sm:$0xf]
      %v238 = vld [vmem:[%s202 + $0x48] sm:$0xf]
      %v239 = vld [vmem:[%s202 + $0x4c] sm:$0xf]
      %v240 = vld [vmem:[%s202 + $0x50] sm:$0xf]
      %v241 = vld [vmem:[%s202 + $0x54] sm:$0xf]
      %v242 = vld [vmem:[%s202 + $0x58] sm:$0xf]
      %v243 = vld [vmem:[%s202 + $0x5c] sm:$0xf]
      %v244 = vld [vmem:[%s202 + $0x60] sm:$0xf]
      %v245 = vld [vmem:[%s202 + $0x64] sm:$0xf]
      %v246 = vld [vmem:[%s202 + $0x68] sm:$0xf]
      %v247 = vld [vmem:[%s202 + $0x6c] sm:$0xf]
      %v248 = vld [vmem:[%s202 + $0x70] sm:$0xf]
      %v249 = vld [vmem:[%s202 + $0x74] sm:$0xf]
      %v250 = vld [vmem:[%s202 + $0x78] sm:$0xf]
      %v251 = vld [vmem:[%s202 + $0x7c] sm:$0xf]
      %v252 = vld [vmem:[%s202 + $0x80] sm:$0xf]
      %v253 = vld [vmem:[%s202 + $0x84] sm:$0xf]
      %v254 = vld [vmem:[%s202 + $0x88] sm:$0xf]
      %v255 = vld [vmem:[%s202 + $0x8c] sm:$0xf]
      %v256 = vld [vmem:[%s202 + $0x90] sm:$0xf]
      %v257 = vld [vmem:[%s202 + $0x94] sm:$0xf]
      %v258 = vld [vmem:[%s202 + $0x98] sm:$0xf]
      %v259 = vld [vmem:[%s202 + $0x9c] sm:$0xf]
      %v260 = vld [vmem:[%s202 + $0xa0] sm:$0xf]
      %v261 = vld [vmem:[%s202 + $0xa4] sm:$0xf]
      %v262 = vld [vmem:[%s202 + $0xa8] sm:$0xf]
      %v263 = vld [vmem:[%s202 + $0xac] sm:$0xf]
      %v264 = vld [vmem:[%s202 + $0xb0] sm:$0xf]
      %v265 = vld [vmem:[%s202 + $0xb4] sm:$0xf]
      %v266 = vld [vmem:[%s202 + $0xb8] sm:$0xf]
      %v267 = vld [vmem:[%s202 + $0xbc] sm:$0xf]
      %v268 = vld [vmem:[%s202 + $0xc0] sm:$0xf]
      %v269 = vld [vmem:[%s202 + $0xc4] sm:$0xf]
      %v270 = vld [vmem:[%s202 + $0xc8] sm:$0xf]
      %v271 = vld [vmem:[%s202 + $0xcc] sm:$0xf]
      %v272 = vld [vmem:[%s202 + $0xd0] sm:$0xf]
      %v273 = vld [vmem:[%s202 + $0xd4] sm:$0xf]
      %v274 = vld [vmem:[%s202 + $0xd8] sm:$0xf]
      %v275 = vld [vmem:[%s202 + $0xdc] sm:$0xf]
      %v276 = vld [vmem:[%s202 + $0xe0] sm:$0xf]
      %v277 = vld [vmem:[%s202 + $0xe4] sm:$0xf]
      %v278 = vld [vmem:[%s202 + $0xe8] sm:$0xf]
      %v279 = vld [vmem:[%s202 + $0xec] sm:$0xf]
      %v280 = vld [vmem:[%s202 + $0xf0] sm:$0xf]
      %v281 = vld [vmem:[%s202 + $0xf4] sm:$0xf]
      %v282 = vld [vmem:[%s202 + $0xf8] sm:$0xf]
      %v283 = vld [vmem:[%s202 + $0xfc] sm:$0xf]
      %v284 = vld [vmem:[%s202 + $0x100] sm:$0xf]
      %v285 = vld [vmem:[%s202 + $0x104] sm:$0xf]
      %v286 = vld [vmem:[%s202 + $0x108] sm:$0xf]
      %v287 = vld [vmem:[%s202 + $0x10c] sm:$0xf]
      %v288 = vld [vmem:[%s202 + $0x110] sm:$0xf]
      %v289 = vld [vmem:[%s202 + $0x114] sm:$0xf]
      %v290 = vld [vmem:[%s202 + $0x118] sm:$0xf]
      %v291 = vld [vmem:[%s202 + $0x11c] sm:$0xf]
      %v292 = vld [vmem:[%s202 + $0x120] sm:$0xf]
      %v293 = vld [vmem:[%s202 + $0x124] sm:$0xf]
      %v294 = vld [vmem:[%s202 + $0x128] sm:$0xf]
      %v295 = vld [vmem:[%s202 + $0x12c] sm:$0xf]
      %v296 = vld [vmem:[%s202 + $0x130] sm:$0xf]
      %v297 = vld [vmem:[%s202 + $0x134] sm:$0xf]
      %v298 = vld [vmem:[%s202 + $0x138] sm:$0xf]
      %v299 = vld [vmem:[%s202 + $0x13c] sm:$0xf]
      %v300 = vld [vmem:[%s202 + $0x140] sm:$0xf]
      %v301 = vld [vmem:[%s202 + $0x144] sm:$0xf]
      %v302 = vld [vmem:[%s202 + $0x148] sm:$0xf]
      %v303 = vld [vmem:[%s202 + $0x14c] sm:$0xf]
      %v304 = vld [vmem:[%s202 + $0x150] sm:$0xf]
      %v305 = vld [vmem:[%s202 + $0x154] sm:$0xf]
      %v306 = vld [vmem:[%s202 + $0x158] sm:$0xf]
      %v307 = vld [vmem:[%s202 + $0x15c] sm:$0xf]
      %v308 = vld [vmem:[%s202 + $0x160] sm:$0xf]
      %v309 = vld [vmem:[%s202 + $0x164] sm:$0xf]
      %v310 = vld [vmem:[%s202 + $0x168] sm:$0xf]
      %v311 = vld [vmem:[%s202 + $0x16c] sm:$0xf]
      %v312 = vld [vmem:[%s202 + $0x170] sm:$0xf]
      %v313 = vld [vmem:[%s202 + $0x174] sm:$0xf]
      %v314 = vld [vmem:[%s202 + $0x178] sm:$0xf]
      %v315 = vld [vmem:[%s202 + $0x17c] sm:$0xf]
      %v316 = vld [vmem:[%s202 + $0x180] sm:$0xf]
      %v317 = vld [vmem:[%s202 + $0x184] sm:$0xf]
      %v318 = vld [vmem:[%s202 + $0x188] sm:$0xf]
      %v319 = vld [vmem:[%s202 + $0x18c] sm:$0xf]
      %v320 = vld [vmem:[%s202 + $0x190] sm:$0xf]
      %v321 = vld [vmem:[%s202 + $0x194] sm:$0xf]
      %v322 = vld [vmem:[%s202 + $0x198] sm:$0xf]
      %v323 = vld [vmem:[%s202 + $0x19c] sm:$0xf]
      %v324 = vld [vmem:[%s202 + $0x1a0] sm:$0xf]
      %v325 = vld [vmem:[%s202 + $0x1a4] sm:$0xf]
      %v326 = vld [vmem:[%s202 + $0x1a8] sm:$0xf]
      %v327 = vld [vmem:[%s202 + $0x1ac] sm:$0xf]
      %v328 = vld [vmem:[%s202 + $0x1b0] sm:$0xf]
      %v329 = vld [vmem:[%s202 + $0x1b4] sm:$0xf]
      %v330 = vld [vmem:[%s202 + $0x1b8] sm:$0xf]
      %v331 = vld [vmem:[%s202 + $0x1bc] sm:$0xf]
      %v332 = vld [vmem:[%s202 + $0x1c0] sm:$0xf]
      %v333 = vld [vmem:[%s202 + $0x1c4] sm:$0xf]
      %v334 = vld [vmem:[%s202 + $0x1c8] sm:$0xf]
      %v335 = vld [vmem:[%s202 + $0x1cc] sm:$0xf]
      %v336 = vld [vmem:[%s202 + $0x1d0] sm:$0xf]
      %v337 = vld [vmem:[%s202 + $0x1d4] sm:$0xf]
      %v338 = vld [vmem:[%s202 + $0x1d8] sm:$0xf]
      %v339 = vld [vmem:[%s202 + $0x1dc] sm:$0xf]
      %v340 = vld [vmem:[%s202 + $0x1e0] sm:$0xf]
      %v341 = vld [vmem:[%s202 + $0x1e4] sm:$0xf]
      %v342 = vld [vmem:[%s202 + $0x1e8] sm:$0xf]
      %v343 = vld [vmem:[%s202 + $0x1ec] sm:$0xf]
      %v344 = vld [vmem:[%s202 + $0x1f0] sm:$0xf]
      %v345 = vld [vmem:[%s202 + $0x1f4] sm:$0xf]
      %v346 = vld [vmem:[%s202 + $0x1f8] sm:$0xf]
      %v347 = vld [vmem:[%s202 + $0x1fc] sm:$0xf]
      %v348 = vld [vmem:[%s206] sm:$0xf]
      %v349 = vld [vmem:[%s206 + $0x4] sm:$0x1]
      %v350 = vld [vmem:[%s206 + $0x8] sm:$0xf]
      %v351 = vld [vmem:[%s206 + $0xc] sm:$0x1]
      %v352 = vld [vmem:[%s206 + $0x10] sm:$0xf]
      %v353 = vld [vmem:[%s206 + $0x14] sm:$0x1]
      %v482 = vunpack.c.l.b16 %v220
      %v483 = vunpack.c.l.b16 %v221
      %v484 = vunpack.c.l.b16 %v222
      %v485 = vunpack.c.l.b16 %v223
      %v486 = vunpack.c.l.b16 %v224
      %v487 = vunpack.c.l.b16 %v225
      %v488 = vunpack.c.l.b16 %v226
      %v489 = vunpack.c.l.b16 %v227
      %v490 = vunpack.c.l.b16 %v228
      %v491 = vunpack.c.l.b16 %v229
      %v492 = vunpack.c.l.b16 %v230
      %v493 = vunpack.c.l.b16 %v231
      %v494 = vunpack.c.l.b16 %v232
      %v495 = vunpack.c.l.b16 %v233
      %v496 = vunpack.c.l.b16 %v234
      %v497 = vunpack.c.l.b16 %v235
      %v498 = vunpack.c.l.b16 %v236
      %v499 = vunpack.c.l.b16 %v237
      %v500 = vunpack.c.l.b16 %v238
      %v501 = vunpack.c.l.b16 %v239
      %v502 = vunpack.c.l.b16 %v240
      %v503 = vunpack.c.l.b16 %v241
      %v504 = vunpack.c.l.b16 %v242
      %v505 = vunpack.c.l.b16 %v243
      %v506 = vunpack.c.l.b16 %v244
      %v507 = vunpack.c.l.b16 %v245
      %v508 = vunpack.c.l.b16 %v246
      %v509 = vunpack.c.l.b16 %v247
      %v510 = vunpack.c.l.b16 %v248
      %v511 = vunpack.c.l.b16 %v249
      %v512 = vunpack.c.l.b16 %v250
      %v513 = vunpack.c.l.b16 %v251
      %v514 = vunpack.c.l.b16 %v252
      %v515 = vunpack.c.l.b16 %v253
      %v516 = vunpack.c.l.b16 %v254
      %v517 = vunpack.c.l.b16 %v255
      %v518 = vunpack.c.l.b16 %v256
      %v519 = vunpack.c.l.b16 %v257
      %v520 = vunpack.c.l.b16 %v258
      %v521 = vunpack.c.l.b16 %v259
      %v522 = vunpack.c.l.b16 %v260
      %v523 = vunpack.c.l.b16 %v261
      %v524 = vunpack.c.l.b16 %v262
      %v525 = vunpack.c.l.b16 %v263
      %v526 = vunpack.c.l.b16 %v264
      %v527 = vunpack.c.l.b16 %v265
      %v528 = vunpack.c.l.b16 %v266
      %v529 = vunpack.c.l.b16 %v267
      %v530 = vunpack.c.l.b16 %v268
      %v531 = vunpack.c.l.b16 %v269
      %v532 = vunpack.c.l.b16 %v270
      %v533 = vunpack.c.l.b16 %v271
      %v534 = vunpack.c.l.b16 %v272
      %v535 = vunpack.c.l.b16 %v273
      %v536 = vunpack.c.l.b16 %v274
      %v537 = vunpack.c.l.b16 %v275
      %v538 = vunpack.c.l.b16 %v276
      %v539 = vunpack.c.l.b16 %v277
      %v540 = vunpack.c.l.b16 %v278
      %v541 = vunpack.c.l.b16 %v279
      %v542 = vunpack.c.l.b16 %v280
      %v543 = vunpack.c.l.b16 %v281
      %v544 = vunpack.c.l.b16 %v282
      %v545 = vunpack.c.l.b16 %v283
      %v546 = vunpack.c.l.b16 %v284
      %v547 = vunpack.c.l.b16 %v285
      %v548 = vunpack.c.l.b16 %v286
      %v549 = vunpack.c.l.b16 %v287
      %v550 = vunpack.c.l.b16 %v288
      %v551 = vunpack.c.l.b16 %v289
      %v552 = vunpack.c.l.b16 %v290
      %v553 = vunpack.c.l.b16 %v291
      %v554 = vunpack.c.l.b16 %v292
      %v555 = vunpack.c.l.b16 %v293
      %v556 = vunpack.c.l.b16 %v294
      %v557 = vunpack.c.l.b16 %v295
      %v558 = vunpack.c.l.b16 %v296
      %v559 = vunpack.c.l.b16 %v297
      %v560 = vunpack.c.l.b16 %v298
      %v561 = vunpack.c.l.b16 %v299
      %v562 = vunpack.c.l.b16 %v300
      %v563 = vunpack.c.l.b16 %v301
      %v564 = vunpack.c.l.b16 %v302
      %v565 = vunpack.c.l.b16 %v303
      %v566 = vunpack.c.l.b16 %v304
      %v567 = vunpack.c.l.b16 %v305
      %v568 = vunpack.c.l.b16 %v306
      %v569 = vunpack.c.l.b16 %v307
      %v570 = vunpack.c.l.b16 %v308
      %v571 = vunpack.c.l.b16 %v309
      %v572 = vunpack.c.l.b16 %v310
      %v573 = vunpack.c.l.b16 %v311
      %v574 = vunpack.c.l.b16 %v312
      %v575 = vunpack.c.l.b16 %v313
      %v576 = vunpack.c.l.b16 %v314
      %v577 = vunpack.c.l.b16 %v315
      %v578 = vunpack.c.l.b16 %v316
      %v579 = vunpack.c.l.b16 %v317
      %v580 = vunpack.c.l.b16 %v318
      %v581 = vunpack.c.l.b16 %v319
      %v582 = vunpack.c.l.b16 %v320
      %v583 = vunpack.c.l.b16 %v321
      %v584 = vunpack.c.l.b16 %v322
      %v585 = vunpack.c.l.b16 %v323
      %v586 = vunpack.c.l.b16 %v324
      %v587 = vunpack.c.l.b16 %v325
      %v588 = vunpack.c.l.b16 %v326
      %v589 = vunpack.c.l.b16 %v327
      %v590 = vunpack.c.l.b16 %v328
      %v591 = vunpack.c.l.b16 %v329
      %v592 = vunpack.c.l.b16 %v330
      %v593 = vunpack.c.l.b16 %v331
      %v594 = vunpack.c.l.b16 %v332
      %v595 = vunpack.c.l.b16 %v333
      %v596 = vunpack.c.l.b16 %v334
      %v597 = vunpack.c.l.b16 %v335
      %v598 = vunpack.c.l.b16 %v336
      %v599 = vunpack.c.l.b16 %v337
      %v600 = vunpack.c.l.b16 %v338
      %v601 = vunpack.c.l.b16 %v339
      %v602 = vunpack.c.l.b16 %v340
      %v603 = vunpack.c.l.b16 %v341
      %v604 = vunpack.c.l.b16 %v342
      %v605 = vunpack.c.l.b16 %v343
      %v606 = vunpack.c.l.b16 %v344
      %v607 = vunpack.c.l.b16 %v345
      %v608 = vunpack.c.l.b16 %v346
      %v609 = vunpack.c.l.b16 %v347
      %v610 = vpack.c.b16 %v483, %v482
      %v611 = vpack.c.b16 %v485, %v484
      %v612 = vpack.c.b16 %v487, %v486
      %v613 = vpack.c.b16 %v489, %v488
      %v614 = vpack.c.b16 %v491, %v490
      %v615 = vpack.c.b16 %v493, %v492
      %v616 = vpack.c.b16 %v495, %v494
      %v617 = vpack.c.b16 %v497, %v496
      %v618 = vpack.c.b16 %v499, %v498
      %v619 = vpack.c.b16 %v501, %v500
      %v620 = vpack.c.b16 %v503, %v502
      %v621 = vpack.c.b16 %v505, %v504
      %v622 = vpack.c.b16 %v507, %v506
      %v623 = vpack.c.b16 %v509, %v508
      %v624 = vpack.c.b16 %v511, %v510
      %v625 = vpack.c.b16 %v513, %v512
      %v626 = vpack.c.b16 %v515, %v514
      %v627 = vpack.c.b16 %v517, %v516
      %v628 = vpack.c.b16 %v519, %v518
      %v629 = vpack.c.b16 %v521, %v520
      %v630 = vpack.c.b16 %v523, %v522
      %v631 = vpack.c.b16 %v525, %v524
      %v632 = vpack.c.b16 %v527, %v526
      %v633 = vpack.c.b16 %v529, %v528
      %v634 = vpack.c.b16 %v531, %v530
      %v635 = vpack.c.b16 %v533, %v532
      %v636 = vpack.c.b16 %v535, %v534
      %v637 = vpack.c.b16 %v537, %v536
      %v638 = vpack.c.b16 %v539, %v538
      %v639 = vpack.c.b16 %v541, %v540
      %v640 = vpack.c.b16 %v543, %v542
      %v641 = vpack.c.b16 %v545, %v544
      %v642 = vpack.c.b16 %v547, %v546
      %v643 = vpack.c.b16 %v549, %v548
      %v644 = vpack.c.b16 %v551, %v550
      %v645 = vpack.c.b16 %v553, %v552
      %v646 = vpack.c.b16 %v555, %v554
      %v647 = vpack.c.b16 %v557, %v556
      %v648 = vpack.c.b16 %v559, %v558
      %v649 = vpack.c.b16 %v561, %v560
      %v650 = vpack.c.b16 %v563, %v562
      %v651 = vpack.c.b16 %v565, %v564
      %v652 = vpack.c.b16 %v567, %v566
      %v653 = vpack.c.b16 %v569, %v568
      %v654 = vpack.c.b16 %v571, %v570
      %v655 = vpack.c.b16 %v573, %v572
      %v656 = vpack.c.b16 %v575, %v574
      %v657 = vpack.c.b16 %v577, %v576
      %v658 = vpack.c.b16 %v579, %v578
      %v659 = vpack.c.b16 %v581, %v580
      %v660 = vpack.c.b16 %v583, %v582
      %v661 = vpack.c.b16 %v585, %v584
      %v662 = vpack.c.b16 %v587, %v586
      %v663 = vpack.c.b16 %v589, %v588
      %v664 = vpack.c.b16 %v591, %v590
      %v665 = vpack.c.b16 %v593, %v592
      %v666 = vpack.c.b16 %v595, %v594
      %v667 = vpack.c.b16 %v597, %v596
      %v668 = vpack.c.b16 %v599, %v598
      %v669 = vpack.c.b16 %v601, %v600
      %v670 = vpack.c.b16 %v603, %v602
      %v671 = vpack.c.b16 %v605, %v604
      %v672 = vpack.c.b16 %v607, %v606
      %v673 = vpack.c.b16 %v609, %v608
      %vm674 = vsmask.f32 256
      %v676 = vshrl.u32 0, 16
      %v678 = vrot.slane %v676, 7
      %v679 = vshll.u32 0, 16
      %v681 = vor.u32 %v678, %v679
      %v682 = vsel %vm674, %v678, %v681
      %v684 = vshrl.u32 %v610, 16
      %v686 = vrot.slane %v684, 7
      %v687 = vshll.u32 %v610, 16
      %v689 = vor.u32 %v686, %v687
      %v691 = vshrl.u32 %v611, 16
      %v693 = vrot.slane %v691, 7
      %v694 = vshll.u32 %v611, 16
      %v696 = vor.u32 %v693, %v694
      %v697 = vsel %vm674, %v686, %v696
      %v699 = vshrl.u32 %v612, 16
      %v701 = vrot.slane %v699, 7
      %v702 = vshll.u32 %v612, 16
      %v704 = vor.u32 %v701, %v702
      %v706 = vshrl.u32 %v613, 16
      %v708 = vrot.slane %v706, 7
      %v709 = vshll.u32 %v613, 16
      %v711 = vor.u32 %v708, %v709
      %v712 = vsel %vm674, %v701, %v711
      %v714 = vshrl.u32 %v614, 16
      %v716 = vrot.slane %v714, 7
      %v717 = vshll.u32 %v614, 16
      %v719 = vor.u32 %v716, %v717
      %v721 = vshrl.u32 %v615, 16
      %v723 = vrot.slane %v721, 7
      %v724 = vshll.u32 %v615, 16
      %v726 = vor.u32 %v723, %v724
      %v727 = vsel %vm674, %v716, %v726
      %v729 = vshrl.u32 %v616, 16
      %v731 = vrot.slane %v729, 7
      %v732 = vshll.u32 %v616, 16
      %v734 = vor.u32 %v731, %v732
      %v736 = vshrl.u32 %v617, 16
      %v738 = vrot.slane %v736, 7
      %v739 = vshll.u32 %v617, 16
      %v741 = vor.u32 %v738, %v739
      %v742 = vsel %vm674, %v731, %v741
      %v744 = vshrl.u32 %v618, 16
      %v746 = vrot.slane %v744, 7
      %v747 = vshll.u32 %v618, 16
      %v749 = vor.u32 %v746, %v747
      %v751 = vshrl.u32 %v619, 16
      %v753 = vrot.slane %v751, 7
      %v754 = vshll.u32 %v619, 16
      %v756 = vor.u32 %v753, %v754
      %v757 = vsel %vm674, %v746, %v756
      %v759 = vshrl.u32 %v620, 16
      %v761 = vrot.slane %v759, 7
      %v762 = vshll.u32 %v620, 16
      %v764 = vor.u32 %v761, %v762
      %v766 = vshrl.u32 %v621, 16
      %v768 = vrot.slane %v766, 7
      %v769 = vshll.u32 %v621, 16
      %v771 = vor.u32 %v768, %v769
      %v772 = vsel %vm674, %v761, %v771
      %v774 = vshrl.u32 %v622, 16
      %v776 = vrot.slane %v774, 7
      %v777 = vshll.u32 %v622, 16
      %v779 = vor.u32 %v776, %v777
      %v781 = vshrl.u32 %v623, 16
      %v783 = vrot.slane %v781, 7
      %v784 = vshll.u32 %v623, 16
      %v786 = vor.u32 %v783, %v784
      %v787 = vsel %vm674, %v776, %v786
      %v789 = vshrl.u32 %v624, 16
      %v791 = vrot.slane %v789, 7
      %v792 = vshll.u32 %v624, 16
      %v794 = vor.u32 %v791, %v792
      %v796 = vshrl.u32 %v625, 16
      %v798 = vrot.slane %v796, 7
      %v799 = vshll.u32 %v625, 16
      %v801 = vor.u32 %v798, %v799
      %v802 = vsel %vm674, %v791, %v801
      %v804 = vshrl.u32 %v626, 16
      %v806 = vrot.slane %v804, 7
      %v807 = vshll.u32 %v626, 16
      %v809 = vor.u32 %v806, %v807
      %v811 = vshrl.u32 %v627, 16
      %v813 = vrot.slane %v811, 7
      %v814 = vshll.u32 %v627, 16
      %v816 = vor.u32 %v813, %v814
      %v817 = vsel %vm674, %v806, %v816
      %v819 = vshrl.u32 %v628, 16
      %v821 = vrot.slane %v819, 7
      %v822 = vshll.u32 %v628, 16
      %v824 = vor.u32 %v821, %v822
      %v826 = vshrl.u32 %v629, 16
      %v828 = vrot.slane %v826, 7
      %v829 = vshll.u32 %v629, 16
      %v831 = vor.u32 %v828, %v829
      %v832 = vsel %vm674, %v821, %v831
      %v834 = vshrl.u32 %v630, 16
      %v836 = vrot.slane %v834, 7
      %v837 = vshll.u32 %v630, 16
      %v839 = vor.u32 %v836, %v837
      %v841 = vshrl.u32 %v631, 16
      %v843 = vrot.slane %v841, 7
      %v844 = vshll.u32 %v631, 16
      %v846 = vor.u32 %v843, %v844
      %v847 = vsel %vm674, %v836, %v846
      %v849 = vshrl.u32 %v632, 16
      %v851 = vrot.slane %v849, 7
      %v852 = vshll.u32 %v632, 16
      %v854 = vor.u32 %v851, %v852
      %v856 = vshrl.u32 %v633, 16
      %v858 = vrot.slane %v856, 7
      %v859 = vshll.u32 %v633, 16
      %v861 = vor.u32 %v858, %v859
      %v862 = vsel %vm674, %v851, %v861
      %v864 = vshrl.u32 %v634, 16
      %v866 = vrot.slane %v864, 7
      %v867 = vshll.u32 %v634, 16
      %v869 = vor.u32 %v866, %v867
      %v871 = vshrl.u32 %v635, 16
      %v873 = vrot.slane %v871, 7
      %v874 = vshll.u32 %v635, 16
      %v876 = vor.u32 %v873, %v874
      %v877 = vsel %vm674, %v866, %v876
      %v879 = vshrl.u32 %v636, 16
      %v881 = vrot.slane %v879, 7
      %v882 = vshll.u32 %v636, 16
      %v884 = vor.u32 %v881, %v882
      %v886 = vshrl.u32 %v637, 16
      %v888 = vrot.slane %v886, 7
      %v889 = vshll.u32 %v637, 16
      %v891 = vor.u32 %v888, %v889
      %v892 = vsel %vm674, %v881, %v891
      %v894 = vshrl.u32 %v638, 16
      %v896 = vrot.slane %v894, 7
      %v897 = vshll.u32 %v638, 16
      %v899 = vor.u32 %v896, %v897
      %v901 = vshrl.u32 %v639, 16
      %v903 = vrot.slane %v901, 7
      %v904 = vshll.u32 %v639, 16
      %v906 = vor.u32 %v903, %v904
      %v907 = vsel %vm674, %v896, %v906
      %v909 = vshrl.u32 %v640, 16
      %v911 = vrot.slane %v909, 7
      %v912 = vshll.u32 %v640, 16
      %v914 = vor.u32 %v911, %v912
      %v916 = vshrl.u32 %v641, 16
      %v918 = vrot.slane %v916, 7
      %v919 = vshll.u32 %v641, 16
      %v921 = vor.u32 %v918, %v919
      %v922 = vsel %vm674, %v911, %v921
      %v924 = vshrl.u32 %v642, 16
      %v926 = vrot.slane %v924, 7
      %v927 = vshll.u32 %v642, 16
      %v929 = vor.u32 %v926, %v927
      %v931 = vshrl.u32 %v643, 16
      %v933 = vrot.slane %v931, 7
      %v934 = vshll.u32 %v643, 16
      %v936 = vor.u32 %v933, %v934
      %v937 = vsel %vm674, %v926, %v936
      %v939 = vshrl.u32 %v644, 16
      %v941 = vrot.slane %v939, 7
      %v942 = vshll.u32 %v644, 16
      %v944 = vor.u32 %v941, %v942
      %v946 = vshrl.u32 %v645, 16
      %v948 = vrot.slane %v946, 7
      %v949 = vshll.u32 %v645, 16
      %v951 = vor.u32 %v948, %v949
      %v952 = vsel %vm674, %v941, %v951
      %v954 = vshrl.u32 %v646, 16
      %v956 = vrot.slane %v954, 7
      %v957 = vshll.u32 %v646, 16
      %v959 = vor.u32 %v956, %v957
      %v961 = vshrl.u32 %v647, 16
      %v963 = vrot.slane %v961, 7
      %v964 = vshll.u32 %v647, 16
      %v966 = vor.u32 %v963, %v964
      %v967 = vsel %vm674, %v956, %v966
      %v969 = vshrl.u32 %v648, 16
      %v971 = vrot.slane %v969, 7
      %v972 = vshll.u32 %v648, 16
      %v974 = vor.u32 %v971, %v972
      %v976 = vshrl.u32 %v649, 16
      %v978 = vrot.slane %v976, 7
      %v979 = vshll.u32 %v649, 16
      %v981 = vor.u32 %v978, %v979
      %v982 = vsel %vm674, %v971, %v981
      %v984 = vshrl.u32 %v650, 16
      %v986 = vrot.slane %v984, 7
      %v987 = vshll.u32 %v650, 16
      %v989 = vor.u32 %v986, %v987
      %v991 = vshrl.u32 %v651, 16
      %v993 = vrot.slane %v991, 7
      %v994 = vshll.u32 %v651, 16
      %v996 = vor.u32 %v993, %v994
      %v997 = vsel %vm674, %v986, %v996
      %v999 = vshrl.u32 %v652, 16
      %v1001 = vrot.slane %v999, 7
      %v1002 = vshll.u32 %v652, 16
      %v1004 = vor.u32 %v1001, %v1002
      %v1006 = vshrl.u32 %v653, 16
      %v1008 = vrot.slane %v1006, 7
      %v1009 = vshll.u32 %v653, 16
      %v1011 = vor.u32 %v1008, %v1009
      %v1012 = vsel %vm674, %v1001, %v1011
      %v1014 = vshrl.u32 %v654, 16
      %v1016 = vrot.slane %v1014, 7
      %v1017 = vshll.u32 %v654, 16
      %v1019 = vor.u32 %v1016, %v1017
      %v1021 = vshrl.u32 %v655, 16
      %v1023 = vrot.slane %v1021, 7
      %v1024 = vshll.u32 %v655, 16
      %v1026 = vor.u32 %v1023, %v1024
      %v1027 = vsel %vm674, %v1016, %v1026
      %v1029 = vshrl.u32 %v656, 16
      %v1031 = vrot.slane %v1029, 7
      %v1032 = vshll.u32 %v656, 16
      %v1034 = vor.u32 %v1031, %v1032
      %v1036 = vshrl.u32 %v657, 16
      %v1038 = vrot.slane %v1036, 7
      %v1039 = vshll.u32 %v657, 16
      %v1041 = vor.u32 %v1038, %v1039
      %v1042 = vsel %vm674, %v1031, %v1041
      %v1044 = vshrl.u32 %v658, 16
      %v1046 = vrot.slane %v1044, 7
      %v1047 = vshll.u32 %v658, 16
      %v1049 = vor.u32 %v1046, %v1047
      %v1051 = vshrl.u32 %v659, 16
      %v1053 = vrot.slane %v1051, 7
      %v1054 = vshll.u32 %v659, 16
      %v1056 = vor.u32 %v1053, %v1054
      %v1057 = vsel %vm674, %v1046, %v1056
      %v1059 = vshrl.u32 %v660, 16
      %v1061 = vrot.slane %v1059, 7
      %v1062 = vshll.u32 %v660, 16
      %v1064 = vor.u32 %v1061, %v1062
      %v1066 = vshrl.u32 %v661, 16
      %v1068 = vrot.slane %v1066, 7
      %v1069 = vshll.u32 %v661, 16
      %v1071 = vor.u32 %v1068, %v1069
      %v1072 = vsel %vm674, %v1061, %v1071
      %v1074 = vshrl.u32 %v662, 16
      %v1076 = vrot.slane %v1074, 7
      %v1077 = vshll.u32 %v662, 16
      %v1079 = vor.u32 %v1076, %v1077
      %v1081 = vshrl.u32 %v663, 16
      %v1083 = vrot.slane %v1081, 7
      %v1084 = vshll.u32 %v663, 16
      %v1086 = vor.u32 %v1083, %v1084
      %v1087 = vsel %vm674, %v1076, %v1086
      %v1089 = vshrl.u32 %v664, 16
      %v1091 = vrot.slane %v1089, 7
      %v1092 = vshll.u32 %v664, 16
      %v1094 = vor.u32 %v1091, %v1092
      %v1096 = vshrl.u32 %v665, 16
      %v1098 = vrot.slane %v1096, 7
      %v1099 = vshll.u32 %v665, 16
      %v1101 = vor.u32 %v1098, %v1099
      %v1102 = vsel %vm674, %v1091, %v1101
      %v1104 = vshrl.u32 %v666, 16
      %v1106 = vrot.slane %v1104, 7
      %v1107 = vshll.u32 %v666, 16
      %v1109 = vor.u32 %v1106, %v1107
      %v1111 = vshrl.u32 %v667, 16
      %v1113 = vrot.slane %v1111, 7
      %v1114 = vshll.u32 %v667, 16
      %v1116 = vor.u32 %v1113, %v1114
      %v1117 = vsel %vm674, %v1106, %v1116
      %v1119 = vshrl.u32 %v668, 16
      %v1121 = vrot.slane %v1119, 7
      %v1122 = vshll.u32 %v668, 16
      %v1124 = vor.u32 %v1121, %v1122
      %v1126 = vshrl.u32 %v669, 16
      %v1128 = vrot.slane %v1126, 7
      %v1129 = vshll.u32 %v669, 16
      %v1131 = vor.u32 %v1128, %v1129
      %v1132 = vsel %vm674, %v1121, %v1131
      %v1134 = vshrl.u32 %v670, 16
      %v1136 = vrot.slane %v1134, 7
      %v1137 = vshll.u32 %v670, 16
      %v1139 = vor.u32 %v1136, %v1137
      %v1141 = vshrl.u32 %v671, 16
      %v1143 = vrot.slane %v1141, 7
      %v1144 = vshll.u32 %v671, 16
      %v1146 = vor.u32 %v1143, %v1144
      %v1147 = vsel %vm674, %v1136, %v1146
      %v1149 = vshrl.u32 %v672, 16
      %v1151 = vrot.slane %v1149, 7
      %v1152 = vshll.u32 %v672, 16
      %v1154 = vor.u32 %v1151, %v1152
      %v1156 = vshrl.u32 %v673, 16
      %v1158 = vrot.slane %v1156, 7
      %v1159 = vshll.u32 %v673, 16
      %v1161 = vor.u32 %v1158, %v1159
      %v1162 = vsel %vm674, %v1151, %v1161
      %vm1229 = vcmask 1040384
      %vm1230 = vmand %vm1229, %vm674
      %v1231 = vsel %vm1230, 0, %v681
      %v1232 = vsel %vm1230, 0, %v689
      %v1233 = vsel %vm1230, 0, %v704
      %v1234 = vsel %vm1230, 0, %v719
      %v1235 = vsel %vm1230, 0, %v734
      %v1236 = vsel %vm1230, 0, %v749
      %v1237 = vsel %vm1230, 0, %v764
      %v1238 = vsel %vm1230, 0, %v779
      %v1239 = vsel %vm1230, 0, %v794
      %v1240 = vsel %vm1230, 0, %v809
      %v1241 = vsel %vm1230, 0, %v824
      %v1242 = vsel %vm1230, 0, %v839
      %v1243 = vsel %vm1230, 0, %v854
      %v1244 = vsel %vm1230, 0, %v869
      %v1245 = vsel %vm1230, 0, %v884
      %v1246 = vsel %vm1230, 0, %v899
      %v1247 = vsel %vm1230, 0, %v914
      %v1248 = vsel %vm1230, 0, %v929
      %v1249 = vsel %vm1230, 0, %v944
      %v1250 = vsel %vm1230, 0, %v959
      %v1251 = vsel %vm1230, 0, %v974
      %v1252 = vsel %vm1230, 0, %v989
      %v1253 = vsel %vm1230, 0, %v1004
      %v1254 = vsel %vm1230, 0, %v1019
      %v1255 = vsel %vm1230, 0, %v1034
      %v1256 = vsel %vm1230, 0, %v1049
      %v1257 = vsel %vm1230, 0, %v1064
      %v1258 = vsel %vm1230, 0, %v1079
      %v1259 = vsel %vm1230, 0, %v1094
      %v1260 = vsel %vm1230, 0, %v1109
      %v1261 = vsel %vm1230, 0, %v1124
      %v1262 = vsel %vm1230, 0, %v1139
      %v1263 = vsel %vm1230, 0, %v1154
      %v1264 = vsel %vm1230, %v678, 0
      %v1265 = vsel %vm1230, %v693, 0
      %v1266 = vsel %vm1230, %v708, 0
      %v1267 = vsel %vm1230, %v723, 0
      %v1268 = vsel %vm1230, %v738, 0
      %v1269 = vsel %vm1230, %v753, 0
      %v1270 = vsel %vm1230, %v768, 0
      %v1271 = vsel %vm1230, %v783, 0
      %v1272 = vsel %vm1230, %v798, 0
      %v1273 = vsel %vm1230, %v813, 0
      %v1274 = vsel %vm1230, %v828, 0
      %v1275 = vsel %vm1230, %v843, 0
      %v1276 = vsel %vm1230, %v858, 0
      %v1277 = vsel %vm1230, %v873, 0
      %v1278 = vsel %vm1230, %v888, 0
      %v1279 = vsel %vm1230, %v903, 0
      %v1280 = vsel %vm1230, %v918, 0
      %v1281 = vsel %vm1230, %v933, 0
      %v1282 = vsel %vm1230, %v948, 0
      %v1283 = vsel %vm1230, %v963, 0
      %v1284 = vsel %vm1230, %v978, 0
      %v1285 = vsel %vm1230, %v993, 0
      %v1286 = vsel %vm1230, %v1008, 0
      %v1287 = vsel %vm1230, %v1023, 0
      %v1288 = vsel %vm1230, %v1038, 0
      %v1289 = vsel %vm1230, %v1053, 0
      %v1290 = vsel %vm1230, %v1068, 0
      %v1291 = vsel %vm1230, %v1083, 0
      %v1292 = vsel %vm1230, %v1098, 0
      %v1293 = vsel %vm1230, %v1113, 0
      %v1294 = vsel %vm1230, %v1128, 0
      %v1295 = vsel %vm1230, %v1143, 0
      %v1296 = vsel %vm1230, %v1158, 0
      %v1304 = vunpack.c.l.s4 1966171168
      %v1305 = vunpack.c.0.s8 %v1304
      %v1306 = vlaneseq
      %v1307 = vshrl.u32 %v1306, 7
      %v1308 = vsub.s32 %v1305, %v1307
      %v1309 = vrot.slane %v348, %v1308
      %v1310 = vcombine.high %v1309, %v1309
      %v1312 = vunpack.c.l.s4 1966171168
      %v1313 = vunpack.c.0.s8 %v1312
      %v1314 = vlaneseq
      %v1315 = vshrl.u32 %v1314, 7
      %v1316 = vsub.s32 %v1313, %v1315
      %v1317 = vrot.slane %v1309, %v1316
      %v1319 = vunpack.c.l.s4 1966171168
      %v1320 = vunpack.c.0.s8 %v1319
      %v1321 = vlaneseq
      %v1322 = vshrl.u32 %v1321, 7
      %v1323 = vsub.s32 %v1320, %v1322
      %v1324 = vrot.slane %v1310, %v1323
      %v1325 = vcombine.high %v1317, %v1317
      %v1326 = vcombine.high %v1324, %v1324
      %v1328 = vunpack.c.l.s4 1966171168
      %v1329 = vunpack.c.0.s8 %v1328
      %v1330 = vlaneseq
      %v1331 = vshrl.u32 %v1330, 7
      %v1332 = vsub.s32 %v1329, %v1331
      %v1333 = vrot.slane %v349, %v1332
      %v1335 = vunpack.c.l.s4 1966171168
      %v1336 = vunpack.c.0.s8 %v1335
      %v1337 = vlaneseq
      %v1338 = vshrl.u32 %v1337, 7
      %v1339 = vsub.s32 %v1336, %v1338
      %v1340 = vrot.slane %v1333, %v1339
      %v1342 = vunpack.c.l.s4 1966171168
      %v1343 = vunpack.c.0.s8 %v1342
      %v1344 = vlaneseq
      %v1345 = vshrl.u32 %v1344, 7
      %v1346 = vsub.s32 %v1343, %v1345
      %v1347 = vrot.slane %v350, %v1346
      %v1348 = vcombine.high %v1347, %v1347
      %v1350 = vunpack.c.l.s4 1966171168
      %v1351 = vunpack.c.0.s8 %v1350
      %v1352 = vlaneseq
      %v1353 = vshrl.u32 %v1352, 7
      %v1354 = vsub.s32 %v1351, %v1353
      %v1355 = vrot.slane %v1347, %v1354
      %v1357 = vunpack.c.l.s4 1966171168
      %v1358 = vunpack.c.0.s8 %v1357
      %v1359 = vlaneseq
      %v1360 = vshrl.u32 %v1359, 7
      %v1361 = vsub.s32 %v1358, %v1360
      %v1362 = vrot.slane %v1348, %v1361
      %v1363 = vcombine.high %v1355, %v1355
      %v1364 = vcombine.high %v1362, %v1362
      %v1366 = vunpack.c.l.s4 1966171168
      %v1367 = vunpack.c.0.s8 %v1366
      %v1368 = vlaneseq
      %v1369 = vshrl.u32 %v1368, 7
      %v1370 = vsub.s32 %v1367, %v1369
      %v1371 = vrot.slane %v351, %v1370
      %v1373 = vunpack.c.l.s4 1966171168
      %v1374 = vunpack.c.0.s8 %v1373
      %v1375 = vlaneseq
      %v1376 = vshrl.u32 %v1375, 7
      %v1377 = vsub.s32 %v1374, %v1376
      %v1378 = vrot.slane %v1371, %v1377
      %v1380 = vunpack.c.l.s4 1966171168
      %v1381 = vunpack.c.0.s8 %v1380
      %v1382 = vlaneseq
      %v1383 = vshrl.u32 %v1382, 7
      %v1384 = vsub.s32 %v1381, %v1383
      %v1385 = vrot.slane %v352, %v1384
      %v1386 = vcombine.high %v1385, %v1385
      %v1388 = vunpack.c.l.s4 1966171168
      %v1389 = vunpack.c.0.s8 %v1388
      %v1390 = vlaneseq
      %v1391 = vshrl.u32 %v1390, 7
      %v1392 = vsub.s32 %v1389, %v1391
      %v1393 = vrot.slane %v1385, %v1392
      %v1395 = vunpack.c.l.s4 1966171168
      %v1396 = vunpack.c.0.s8 %v1395
      %v1397 = vlaneseq
      %v1398 = vshrl.u32 %v1397, 7
      %v1399 = vsub.s32 %v1396, %v1398
      %v1400 = vrot.slane %v1386, %v1399
      %v1401 = vcombine.high %v1393, %v1393
      %v1402 = vcombine.high %v1400, %v1400
      %v1404 = vunpack.c.l.s4 1966171168
      %v1405 = vunpack.c.0.s8 %v1404
      %v1406 = vlaneseq
      %v1407 = vshrl.u32 %v1406, 7
      %v1408 = vsub.s32 %v1405, %v1407
      %v1409 = vrot.slane %v353, %v1408
      %v1411 = vunpack.c.l.s4 1966171168
      %v1412 = vunpack.c.0.s8 %v1411
      %v1413 = vlaneseq
      %v1414 = vshrl.u32 %v1413, 7
      %v1415 = vsub.s32 %v1412, %v1414
      %v1416 = vrot.slane %v1409, %v1415
      %v1417 = vunpack.i.l.s16 %v1317
      %v1418 = vunpack.i.h.s16 %v1317
      %v1419 = vunpack.i.l.s16 %v1324
      %v1420 = vunpack.i.h.s16 %v1324
      %v1421 = vunpack.i.l.s16 %v1325
      %v1422 = vunpack.i.h.s16 %v1325
      %v1423 = vunpack.i.l.s16 %v1326
      %v1424 = vunpack.i.h.s16 %v1326
      %v1425 = vunpack.i.l.s16 %v1340
      %v1426 = vunpack.i.l.s16 %v1355
      %v1427 = vunpack.i.h.s16 %v1355
      %v1428 = vunpack.i.l.s16 %v1362
      %v1429 = vunpack.i.h.s16 %v1362
      %v1430 = vunpack.i.l.s16 %v1363
      %v1431 = vunpack.i.h.s16 %v1363
      %v1432 = vunpack.i.l.s16 %v1364
      %v1433 = vunpack.i.h.s16 %v1364
      %v1434 = vunpack.i.l.s16 %v1378
      %v1435 = vunpack.i.l.s16 %v1393
      %v1436 = vunpack.i.h.s16 %v1393
      %v1437 = vunpack.i.l.s16 %v1400
      %v1438 = vunpack.i.h.s16 %v1400
      %v1439 = vunpack.i.l.s16 %v1401
      %v1440 = vunpack.i.h.s16 %v1401
      %v1441 = vunpack.i.l.s16 %v1402
      %v1442 = vunpack.i.h.s16 %v1402
      %v1443 = vunpack.i.l.s16 %v1416
      %vm1444 = vsmask.f32 7424
      %v1446 = vshrl.u32 %v1231, 16
      %v1448 = vshll.u32 %v1231, 16
      %v1450 = vrot.slane %v1448, 1
      %v1451 = vor.u32 %v1446, %v1450
      %v1453 = vshll.u32 %v682, 16
      %v1455 = vrot.slane %v1453, 1
      %v1456 = vsel %vm1444, %v1451, %v1455
      %v1457 = vshrl.u32 %v682, 16
      %v1459 = vor.u32 %v1457, %v1455
      %v1461 = vshll.u32 %v1264, 16
      %v1463 = vrot.slane %v1461, 1
      %v1464 = vsel %vm1444, %v1459, %v1463
      %v1466 = vshrl.u32 %v1232, 16
      %v1468 = vshll.u32 %v1232, 16
      %v1470 = vrot.slane %v1468, 1
      %v1471 = vor.u32 %v1466, %v1470
      %v1473 = vshll.u32 %v697, 16
      %v1475 = vrot.slane %v1473, 1
      %v1476 = vsel %vm1444, %v1471, %v1475
      %v1477 = vshrl.u32 %v697, 16
      %v1479 = vor.u32 %v1477, %v1475
      %v1481 = vshll.u32 %v1265, 16
      %v1483 = vrot.slane %v1481, 1
      %v1484 = vsel %vm1444, %v1479, %v1483
      %v1486 = vshrl.u32 %v1233, 16
      %v1488 = vshll.u32 %v1233, 16
      %v1490 = vrot.slane %v1488, 1
      %v1491 = vor.u32 %v1486, %v1490
      %v1493 = vshll.u32 %v712, 16
      %v1495 = vrot.slane %v1493, 1
      %v1496 = vsel %vm1444, %v1491, %v1495
      %v1497 = vshrl.u32 %v712, 16
      %v1499 = vor.u32 %v1497, %v1495
      %v1501 = vshll.u32 %v1266, 16
      %v1503 = vrot.slane %v1501, 1
      %v1504 = vsel %vm1444, %v1499, %v1503
      %v1506 = vshrl.u32 %v1234, 16
      %v1508 = vshll.u32 %v1234, 16
      %v1510 = vrot.slane %v1508, 1
      %v1511 = vor.u32 %v1506, %v1510
      %v1513 = vshll.u32 %v727, 16
      %v1515 = vrot.slane %v1513, 1
      %v1516 = vsel %vm1444, %v1511, %v1515
      %v1517 = vshrl.u32 %v727, 16
      %v1519 = vor.u32 %v1517, %v1515
      %v1521 = vshll.u32 %v1267, 16
      %v1523 = vrot.slane %v1521, 1
      %v1524 = vsel %vm1444, %v1519, %v1523
      %v1526 = vshrl.u32 %v1235, 16
      %v1528 = vshll.u32 %v1235, 16
      %v1530 = vrot.slane %v1528, 1
      %v1531 = vor.u32 %v1526, %v1530
      %v1533 = vshll.u32 %v742, 16
      %v1535 = vrot.slane %v1533, 1
      %v1536 = vsel %vm1444, %v1531, %v1535
      %v1537 = vshrl.u32 %v742, 16
      %v1539 = vor.u32 %v1537, %v1535
      %v1541 = vshll.u32 %v1268, 16
      %v1543 = vrot.slane %v1541, 1
      %v1544 = vsel %vm1444, %v1539, %v1543
      %v1546 = vshrl.u32 %v1236, 16
      %v1548 = vshll.u32 %v1236, 16
      %v1550 = vrot.slane %v1548, 1
      %v1551 = vor.u32 %v1546, %v1550
      %v1553 = vshll.u32 %v757, 16
      %v1555 = vrot.slane %v1553, 1
      %v1556 = vsel %vm1444, %v1551, %v1555
      %v1557 = vshrl.u32 %v757, 16
      %v1559 = vor.u32 %v1557, %v1555
      %v1561 = vshll.u32 %v1269, 16
      %v1563 = vrot.slane %v1561, 1
      %v1564 = vsel %vm1444, %v1559, %v1563
      %v1566 = vshrl.u32 %v1237, 16
      %v1568 = vshll.u32 %v1237, 16
      %v1570 = vrot.slane %v1568, 1
      %v1571 = vor.u32 %v1566, %v1570
      %v1573 = vshll.u32 %v772, 16
      %v1575 = vrot.slane %v1573, 1
      %v1576 = vsel %vm1444, %v1571, %v1575
      %v1577 = vshrl.u32 %v772, 16
      %v1579 = vor.u32 %v1577, %v1575
      %v1581 = vshll.u32 %v1270, 16
      %v1583 = vrot.slane %v1581, 1
      %v1584 = vsel %vm1444, %v1579, %v1583
      %v1586 = vshrl.u32 %v1238, 16
      %v1588 = vshll.u32 %v1238, 16
      %v1590 = vrot.slane %v1588, 1
      %v1591 = vor.u32 %v1586, %v1590
      %v1593 = vshll.u32 %v787, 16
      %v1595 = vrot.slane %v1593, 1
      %v1596 = vsel %vm1444, %v1591, %v1595
      %v1597 = vshrl.u32 %v787, 16
      %v1599 = vor.u32 %v1597, %v1595
      %v1601 = vshll.u32 %v1271, 16
      %v1603 = vrot.slane %v1601, 1
      %v1604 = vsel %vm1444, %v1599, %v1603
      %v1606 = vshrl.u32 %v1239, 16
      %v1608 = vshll.u32 %v1239, 16
      %v1610 = vrot.slane %v1608, 1
      %v1611 = vor.u32 %v1606, %v1610
      %v1613 = vshll.u32 %v802, 16
      %v1615 = vrot.slane %v1613, 1
      %v1616 = vsel %vm1444, %v1611, %v1615
      %v1617 = vshrl.u32 %v802, 16
      %v1619 = vor.u32 %v1617, %v1615
      %v1621 = vshll.u32 %v1272, 16
      %v1623 = vrot.slane %v1621, 1
      %v1624 = vsel %vm1444, %v1619, %v1623
      %v1626 = vshrl.u32 %v1240, 16
      %v1628 = vshll.u32 %v1240, 16
      %v1630 = vrot.slane %v1628, 1
      %v1631 = vor.u32 %v1626, %v1630
      %v1633 = vshll.u32 %v817, 16
      %v1635 = vrot.slane %v1633, 1
      %v1636 = vsel %vm1444, %v1631, %v1635
      %v1637 = vshrl.u32 %v817, 16
      %v1639 = vor.u32 %v1637, %v1635
      %v1641 = vshll.u32 %v1273, 16
      %v1643 = vrot.slane %v1641, 1
      %v1644 = vsel %vm1444, %v1639, %v1643
      %v1646 = vshrl.u32 %v1241, 16
      %v1648 = vshll.u32 %v1241, 16
      %v1650 = vrot.slane %v1648, 1
      %v1651 = vor.u32 %v1646, %v1650
      %v1653 = vshll.u32 %v832, 16
      %v1655 = vrot.slane %v1653, 1
      %v1656 = vsel %vm1444, %v1651, %v1655
      %v1657 = vshrl.u32 %v832, 16
      %v1659 = vor.u32 %v1657, %v1655
      %v1661 = vshll.u32 %v1274, 16
      %v1663 = vrot.slane %v1661, 1
      %v1664 = vsel %vm1444, %v1659, %v1663
      %v1666 = vshrl.u32 %v1242, 16
      %v1668 = vshll.u32 %v1242, 16
      %v1670 = vrot.slane %v1668, 1
      %v1671 = vor.u32 %v1666, %v1670
      %v1673 = vshll.u32 %v847, 16
      %v1675 = vrot.slane %v1673, 1
      %v1676 = vsel %vm1444, %v1671, %v1675
      %v1677 = vshrl.u32 %v847, 16
      %v1679 = vor.u32 %v1677, %v1675
      %v1681 = vshll.u32 %v1275, 16
      %v1683 = vrot.slane %v1681, 1
      %v1684 = vsel %vm1444, %v1679, %v1683
      %v1686 = vshrl.u32 %v1243, 16
      %v1688 = vshll.u32 %v1243, 16
      %v1690 = vrot.slane %v1688, 1
      %v1691 = vor.u32 %v1686, %v1690
      %v1693 = vshll.u32 %v862, 16
      %v1695 = vrot.slane %v1693, 1
      %v1696 = vsel %vm1444, %v1691, %v1695
      %v1697 = vshrl.u32 %v862, 16
      %v1699 = vor.u32 %v1697, %v1695
      %v1701 = vshll.u32 %v1276, 16
      %v1703 = vrot.slane %v1701, 1
      %v1704 = vsel %vm1444, %v1699, %v1703
      %v1706 = vshrl.u32 %v1244, 16
      %v1708 = vshll.u32 %v1244, 16
      %v1710 = vrot.slane %v1708, 1
      %v1711 = vor.u32 %v1706, %v1710
      %v1713 = vshll.u32 %v877, 16
      %v1715 = vrot.slane %v1713, 1
      %v1716 = vsel %vm1444, %v1711, %v1715
      %v1717 = vshrl.u32 %v877, 16
      %v1719 = vor.u32 %v1717, %v1715
      %v1721 = vshll.u32 %v1277, 16
      %v1723 = vrot.slane %v1721, 1
      %v1724 = vsel %vm1444, %v1719, %v1723
      %v1726 = vshrl.u32 %v1245, 16
      %v1728 = vshll.u32 %v1245, 16
      %v1730 = vrot.slane %v1728, 1
      %v1731 = vor.u32 %v1726, %v1730
      %v1733 = vshll.u32 %v892, 16
      %v1735 = vrot.slane %v1733, 1
      %v1736 = vsel %vm1444, %v1731, %v1735
      %v1737 = vshrl.u32 %v892, 16
      %v1739 = vor.u32 %v1737, %v1735
      %v1741 = vshll.u32 %v1278, 16
      %v1743 = vrot.slane %v1741, 1
      %v1744 = vsel %vm1444, %v1739, %v1743
      %v1746 = vshrl.u32 %v1246, 16
      %v1748 = vshll.u32 %v1246, 16
      %v1750 = vrot.slane %v1748, 1
      %v1751 = vor.u32 %v1746, %v1750
      %v1753 = vshll.u32 %v907, 16
      %v1755 = vrot.slane %v1753, 1
      %v1756 = vsel %vm1444, %v1751, %v1755
      %v1757 = vshrl.u32 %v907, 16
      %v1759 = vor.u32 %v1757, %v1755
      %v1761 = vshll.u32 %v1279, 16
      %v1763 = vrot.slane %v1761, 1
      %v1764 = vsel %vm1444, %v1759, %v1763
      %v1766 = vshrl.u32 %v1247, 16
      %v1768 = vshll.u32 %v1247, 16
      %v1770 = vrot.slane %v1768, 1
      %v1771 = vor.u32 %v1766, %v1770
      %v1773 = vshll.u32 %v922, 16
      %v1775 = vrot.slane %v1773, 1
      %v1776 = vsel %vm1444, %v1771, %v1775
      %v1777 = vshrl.u32 %v922, 16
      %v1779 = vor.u32 %v1777, %v1775
      %v1781 = vshll.u32 %v1280, 16
      %v1783 = vrot.slane %v1781, 1
      %v1784 = vsel %vm1444, %v1779, %v1783
      %v1786 = vshrl.u32 %v1248, 16
      %v1788 = vshll.u32 %v1248, 16
      %v1790 = vrot.slane %v1788, 1
      %v1791 = vor.u32 %v1786, %v1790
      %v1793 = vshll.u32 %v937, 16
      %v1795 = vrot.slane %v1793, 1
      %v1796 = vsel %vm1444, %v1791, %v1795
      %v1797 = vshrl.u32 %v937, 16
      %v1799 = vor.u32 %v1797, %v1795
      %v1801 = vshll.u32 %v1281, 16
      %v1803 = vrot.slane %v1801, 1
      %v1804 = vsel %vm1444, %v1799, %v1803
      %v1806 = vshrl.u32 %v1249, 16
      %v1808 = vshll.u32 %v1249, 16
      %v1810 = vrot.slane %v1808, 1
      %v1811 = vor.u32 %v1806, %v1810
      %v1813 = vshll.u32 %v952, 16
      %v1815 = vrot.slane %v1813, 1
      %v1816 = vsel %vm1444, %v1811, %v1815
      %v1817 = vshrl.u32 %v952, 16
      %v1819 = vor.u32 %v1817, %v1815
      %v1821 = vshll.u32 %v1282, 16
      %v1823 = vrot.slane %v1821, 1
      %v1824 = vsel %vm1444, %v1819, %v1823
      %v1826 = vshrl.u32 %v1250, 16
      %v1828 = vshll.u32 %v1250, 16
      %v1830 = vrot.slane %v1828, 1
      %v1831 = vor.u32 %v1826, %v1830
      %v1833 = vshll.u32 %v967, 16
      %v1835 = vrot.slane %v1833, 1
      %v1836 = vsel %vm1444, %v1831, %v1835
      %v1837 = vshrl.u32 %v967, 16
      %v1839 = vor.u32 %v1837, %v1835
      %v1841 = vshll.u32 %v1283, 16
      %v1843 = vrot.slane %v1841, 1
      %v1844 = vsel %vm1444, %v1839, %v1843
      %v1846 = vshrl.u32 %v1251, 16
      %v1848 = vshll.u32 %v1251, 16
      %v1850 = vrot.slane %v1848, 1
      %v1851 = vor.u32 %v1846, %v1850
      %v1853 = vshll.u32 %v982, 16
      %v1855 = vrot.slane %v1853, 1
      %v1856 = vsel %vm1444, %v1851, %v1855
      %v1857 = vshrl.u32 %v982, 16
      %v1859 = vor.u32 %v1857, %v1855
      %v1861 = vshll.u32 %v1284, 16
      %v1863 = vrot.slane %v1861, 1
      %v1864 = vsel %vm1444, %v1859, %v1863
      %v1866 = vshrl.u32 %v1252, 16
      %v1868 = vshll.u32 %v1252, 16
      %v1870 = vrot.slane %v1868, 1
      %v1871 = vor.u32 %v1866, %v1870
      %v1873 = vshll.u32 %v997, 16
      %v1875 = vrot.slane %v1873, 1
      %v1876 = vsel %vm1444, %v1871, %v1875
      %v1877 = vshrl.u32 %v997, 16
      %v1879 = vor.u32 %v1877, %v1875
      %v1881 = vshll.u32 %v1285, 16
      %v1883 = vrot.slane %v1881, 1
      %v1884 = vsel %vm1444, %v1879, %v1883
      %v1886 = vshrl.u32 %v1253, 16
      %v1888 = vshll.u32 %v1253, 16
      %v1890 = vrot.slane %v1888, 1
      %v1891 = vor.u32 %v1886, %v1890
      %v1893 = vshll.u32 %v1012, 16
      %v1895 = vrot.slane %v1893, 1
      %v1896 = vsel %vm1444, %v1891, %v1895
      %v1897 = vshrl.u32 %v1012, 16
      %v1899 = vor.u32 %v1897, %v1895
      %v1901 = vshll.u32 %v1286, 16
      %v1903 = vrot.slane %v1901, 1
      %v1904 = vsel %vm1444, %v1899, %v1903
      %v1906 = vshrl.u32 %v1254, 16
      %v1908 = vshll.u32 %v1254, 16
      %v1910 = vrot.slane %v1908, 1
      %v1911 = vor.u32 %v1906, %v1910
      %v1913 = vshll.u32 %v1027, 16
      %v1915 = vrot.slane %v1913, 1
      %v1916 = vsel %vm1444, %v1911, %v1915
      %v1917 = vshrl.u32 %v1027, 16
      %v1919 = vor.u32 %v1917, %v1915
      %v1921 = vshll.u32 %v1287, 16
      %v1923 = vrot.slane %v1921, 1
      %v1924 = vsel %vm1444, %v1919, %v1923
      %v1926 = vshrl.u32 %v1255, 16
      %v1928 = vshll.u32 %v1255, 16
      %v1930 = vrot.slane %v1928, 1
      %v1931 = vor.u32 %v1926, %v1930
      %v1933 = vshll.u32 %v1042, 16
      %v1935 = vrot.slane %v1933, 1
      %v1936 = vsel %vm1444, %v1931, %v1935
      %v1937 = vshrl.u32 %v1042, 16
      %v1939 = vor.u32 %v1937, %v1935
      %v1941 = vshll.u32 %v1288, 16
      %v1943 = vrot.slane %v1941, 1
      %v1944 = vsel %vm1444, %v1939, %v1943
      %v1946 = vshrl.u32 %v1256, 16
      %v1948 = vshll.u32 %v1256, 16
      %v1950 = vrot.slane %v1948, 1
      %v1951 = vor.u32 %v1946, %v1950
      %v1953 = vshll.u32 %v1057, 16
      %v1955 = vrot.slane %v1953, 1
      %v1956 = vsel %vm1444, %v1951, %v1955
      %v1957 = vshrl.u32 %v1057, 16
      %v1959 = vor.u32 %v1957, %v1955
      %v1961 = vshll.u32 %v1289, 16
      %v1963 = vrot.slane %v1961, 1
      %v1964 = vsel %vm1444, %v1959, %v1963
      %v1966 = vshrl.u32 %v1257, 16
      %v1968 = vshll.u32 %v1257, 16
      %v1970 = vrot.slane %v1968, 1
      %v1971 = vor.u32 %v1966, %v1970
      %v1973 = vshll.u32 %v1072, 16
      %v1975 = vrot.slane %v1973, 1
      %v1976 = vsel %vm1444, %v1971, %v1975
      %v1977 = vshrl.u32 %v1072, 16
      %v1979 = vor.u32 %v1977, %v1975
      %v1981 = vshll.u32 %v1290, 16
      %v1983 = vrot.slane %v1981, 1
      %v1984 = vsel %vm1444, %v1979, %v1983
      %v1986 = vshrl.u32 %v1258, 16
      %v1988 = vshll.u32 %v1258, 16
      %v1990 = vrot.slane %v1988, 1
      %v1991 = vor.u32 %v1986, %v1990
      %v1993 = vshll.u32 %v1087, 16
      %v1995 = vrot.slane %v1993, 1
      %v1996 = vsel %vm1444, %v1991, %v1995
      %v1997 = vshrl.u32 %v1087, 16
      %v1999 = vor.u32 %v1997, %v1995
      %v2001 = vshll.u32 %v1291, 16
      %v2003 = vrot.slane %v2001, 1
      %v2004 = vsel %vm1444, %v1999, %v2003
      %v2006 = vshrl.u32 %v1259, 16
      %v2008 = vshll.u32 %v1259, 16
      %v2010 = vrot.slane %v2008, 1
      %v2011 = vor.u32 %v2006, %v2010
      %v2013 = vshll.u32 %v1102, 16
      %v2015 = vrot.slane %v2013, 1
      %v2016 = vsel %vm1444, %v2011, %v2015
      %v2017 = vshrl.u32 %v1102, 16
      %v2019 = vor.u32 %v2017, %v2015
      %v2021 = vshll.u32 %v1292, 16
      %v2023 = vrot.slane %v2021, 1
      %v2024 = vsel %vm1444, %v2019, %v2023
      %v2026 = vshrl.u32 %v1260, 16
      %v2028 = vshll.u32 %v1260, 16
      %v2030 = vrot.slane %v2028, 1
      %v2031 = vor.u32 %v2026, %v2030
      %v2033 = vshll.u32 %v1117, 16
      %v2035 = vrot.slane %v2033, 1
      %v2036 = vsel %vm1444, %v2031, %v2035
      %v2037 = vshrl.u32 %v1117, 16
      %v2039 = vor.u32 %v2037, %v2035
      %v2041 = vshll.u32 %v1293, 16
      %v2043 = vrot.slane %v2041, 1
      %v2044 = vsel %vm1444, %v2039, %v2043
      %v2046 = vshrl.u32 %v1261, 16
      %v2048 = vshll.u32 %v1261, 16
      %v2050 = vrot.slane %v2048, 1
      %v2051 = vor.u32 %v2046, %v2050
      %v2053 = vshll.u32 %v1132, 16
      %v2055 = vrot.slane %v2053, 1
      %v2056 = vsel %vm1444, %v2051, %v2055
      %v2057 = vshrl.u32 %v1132, 16
      %v2059 = vor.u32 %v2057, %v2055
      %v2061 = vshll.u32 %v1294, 16
      %v2063 = vrot.slane %v2061, 1
      %v2064 = vsel %vm1444, %v2059, %v2063
      %v2066 = vshrl.u32 %v1262, 16
      %v2068 = vshll.u32 %v1262, 16
      %v2070 = vrot.slane %v2068, 1
      %v2071 = vor.u32 %v2066, %v2070
      %v2073 = vshll.u32 %v1147, 16
      %v2075 = vrot.slane %v2073, 1
      %v2076 = vsel %vm1444, %v2071, %v2075
      %v2077 = vshrl.u32 %v1147, 16
      %v2079 = vor.u32 %v2077, %v2075
      %v2081 = vshll.u32 %v1295, 16
      %v2083 = vrot.slane %v2081, 1
      %v2084 = vsel %vm1444, %v2079, %v2083
      %v2085 = vpack.i.b16 %v1421, %v1420
      %v2087 = vcombine.low %v2085, %v1422
      %v2089 = vunpack.c.l.s4 1966171168
      %v2090 = vunpack.c.0.s8 %v2089
      %v2091 = vlaneseq
      %v2092 = vshrl.u32 %v2091, 7
      %v2093 = vsub.s32 %v2090, %v2092
      %v2094 = vrot.slane %v2087, %v2093
      %v2096 = vunpack.c.l.s4 1966171168
      %v2097 = vunpack.c.0.s8 %v2096
      %v2098 = vlaneseq
      %v2099 = vshrl.u32 %v2098, 7
      %v2100 = vsub.s32 %v2097, %v2099
      %v2101 = vrot.slane %v2094, %v2100
      %vm2102 = vcmask 23552
      %v2104 = vsel %vm2102, %v1456, 0
      %v2107 = vsel %vm2102, %v1464, 0
      %v2110 = vsel %vm2102, %v1476, 0
      %v2113 = vsel %vm2102, %v1484, 0
      %v2116 = vsel %vm2102, %v1496, 0
      %v2119 = vsel %vm2102, %v1504, 0
      %v2122 = vsel %vm2102, %v1516, 0
      %v2125 = vsel %vm2102, %v1524, 0
      %v2128 = vsel %vm2102, %v1536, 0
      %v2131 = vsel %vm2102, %v1544, 0
      %v2134 = vsel %vm2102, %v1556, 0
      %v2137 = vsel %vm2102, %v1564, 0
      %v2140 = vsel %vm2102, %v1576, 0
      %v2143 = vsel %vm2102, %v1584, 0
      %v2146 = vsel %vm2102, %v1596, 0
      %v2149 = vsel %vm2102, %v1604, 0
      %v2152 = vsel %vm2102, %v1616, 0
      %v2155 = vsel %vm2102, %v1624, 0
      %v2158 = vsel %vm2102, %v1636, 0
      %v2161 = vsel %vm2102, %v1644, 0
      %v2164 = vsel %vm2102, %v1656, 0
      %v2167 = vsel %vm2102, %v1664, 0
      %v2170 = vsel %vm2102, %v1676, 0
      %v2173 = vsel %vm2102, %v1684, 0
      %v2176 = vsel %vm2102, %v1696, 0
      %v2179 = vsel %vm2102, %v1704, 0
      %v2182 = vsel %vm2102, %v1716, 0
      %v2185 = vsel %vm2102, %v1724, 0
      %v2188 = vsel %vm2102, %v1736, 0
      %v2191 = vsel %vm2102, %v1744, 0
      %v2194 = vsel %vm2102, %v1756, 0
      %v2197 = vsel %vm2102, %v1764, 0
      %v2200 = vsel %vm2102, %v1776, 0
      %v2203 = vsel %vm2102, %v1784, 0
      %v2206 = vsel %vm2102, %v1796, 0
      %v2209 = vsel %vm2102, %v1804, 0
      %v2212 = vsel %vm2102, %v1816, 0
      %v2215 = vsel %vm2102, %v1824, 0
      %v2218 = vsel %vm2102, %v1836, 0
      %v2221 = vsel %vm2102, %v1844, 0
      %v2224 = vsel %vm2102, %v1856, 0
      %v2227 = vsel %vm2102, %v1864, 0
      %v2230 = vsel %vm2102, %v1876, 0
      %v2233 = vsel %vm2102, %v1884, 0
      %v2236 = vsel %vm2102, %v1896, 0
      %v2239 = vsel %vm2102, %v1904, 0
      %v2242 = vsel %vm2102, %v1916, 0
      %v2245 = vsel %vm2102, %v1924, 0
      %v2248 = vsel %vm2102, %v1936, 0
      %v2251 = vsel %vm2102, %v1944, 0
      %v2254 = vsel %vm2102, %v1956, 0
      %v2257 = vsel %vm2102, %v1964, 0
      %v2260 = vsel %vm2102, %v1976, 0
      %v2263 = vsel %vm2102, %v1984, 0
      %v2266 = vsel %vm2102, %v1996, 0
      %v2269 = vsel %vm2102, %v2004, 0
      %v2272 = vsel %vm2102, %v2016, 0
      %v2275 = vsel %vm2102, %v2024, 0
      %v2278 = vsel %vm2102, %v2036, 0
      %v2281 = vsel %vm2102, %v2044, 0
      %v2284 = vsel %vm2102, %v2056, 0
      %v2287 = vsel %vm2102, %v2064, 0
      %v2290 = vsel %vm2102, %v2076, 0
      %v2293 = vsel %vm2102, %v2084, 0
      %vm2295 = vcmask 1040384
      %vm2296 = vcmask 1041408
      %v2297 = vsel %vm2295, 4294967295, 65535
      %v2298 = vsel %vm2296, %v2297, 0
      %v2300 = vand.u32 %v2101, %v2298
      %2302 = vmatprep.subr.bf16.mxu0 0
      %2303 = vmatpush1.bf16.msra.mxu0 %v2300
      %2304 = vmatprep.subr.bf16.mxu0 0
      %2305 = vmatpush1.bf16.msra.mxu0 0
      %2306 = vmatprep.subr.bf16.mxu0 0
      %2307 = vmatpush1.bf16.msra.mxu0 0
      %2308 = vmatprep.subr.bf16.mxu0 0
      %2309 = vmatpush1.bf16.msra.mxu0 0
      %2310 = vmatprep.subr.bf16.mxu0 0
      %2311 = vmatpush1.bf16.msra.mxu0 0
      %2312 = vmatprep.subr.bf16.mxu0 0
      %2313 = vmatpush1.bf16.msra.mxu0 0
      %2314 = vmatprep.subr.bf16.mxu0 0
      %2315 = vmatpush1.bf16.msra.mxu0 0
      %2316 = vmatprep.subr.bf16.mxu0 0
      %2317 = vmatpush1.bf16.msra.mxu0 0
      %2318 = vmatprep.subr.bf16.mxu0 0
      %2319 = vmatpush1.bf16.msra.mxu0 0
      %2320 = vmatprep.subr.bf16.mxu0 0
      %2321 = vmatpush1.bf16.msra.mxu0 0
      %2322 = vmatprep.subr.bf16.mxu0 0
      %2323 = vmatpush1.bf16.msra.mxu0 0
      %2324 = vmatprep.subr.bf16.mxu0 0
      %2325 = vmatpush1.bf16.msra.mxu0 0
      %2326 = vmatprep.subr.bf16.mxu0 0
      %2327 = vmatpush1.bf16.msra.mxu0 0
      %2328 = vmatprep.subr.bf16.mxu0 0
      %2329 = vmatpush1.bf16.msra.mxu0 0
      %2330 = vmatprep.subr.bf16.mxu0 0
      %2331 = vmatpush1.bf16.msra.mxu0 0
      %2332 = vmatprep.subr.bf16.mxu0 0
      %2333 = vmatpush1.bf16.msra.mxu0 0
      %2334 = vmatprep.mubr.bf16.mxu0 0
      %2335 = vmatmul.mubr.bf16.gmra.mrb[0].mxu0 %v2104
      %v2336 = vpop.f32.mrb[0].mxu0
      %v2337 = vadd.f32 0.0, %v2336
      %v2338 = vpop.f32.mrb[0].mxu0
      %v2339 = vpop.f32.mrb[0].mxu0
      %v2340 = vadd.f32 0.0, %v2339
      %v2341 = vpop.f32.mrb[0].mxu0
      %2342 = vmatprep.mubr.bf16.mxu0 0
      %2343 = vmatmul.mubr.bf16.gmra.mrb[0].mxu0 %v2107
      %v2344 = vpop.f32.mrb[0].mxu0
      %v2345 = vadd.f32 0.0, %v2344
      %v2346 = vpop.f32.mrb[0].mxu0
      %v2347 = vpop.f32.mrb[0].mxu0
      %v2348 = vadd.f32 0.0, %v2347
      %v2349 = vpop.f32.mrb[0].mxu0
      %2350 = vmatprep.mubr.bf16.mxu0 0
      %2351 = vmatmul.mubr.bf16.gmra.mrb[0].mxu0 %v2110
      %v2352 = vpop.f32.mrb[0].mxu0
      %v2353 = vadd.f32 0.0, %v2352
      %v2354 = vpop.f32.mrb[0].mxu0
      %v2355 = vpop.f32.mrb[0].mxu0
      %v2356 = vadd.f32 0.0, %v2355
      %v2357 = vpop.f32.mrb[0].mxu0
      %2358 = vmatprep.mubr.bf16.mxu0 0
      %2359 = vmatmul.mubr.bf16.gmra.mrb[0].mxu0 %v2113
      %v2360 = vpop.f32.mrb[0].mxu0
      %v2361 = vadd.f32 0.0, %v2360
      %v2362 = vpop.f32.mrb[0].mxu0
      %v2363 = vpop.f32.mrb[0].mxu0
      %v2364 = vadd.f32 0.0, %v2363
      %v2365 = vpop.f32.mrb[0].mxu0
      %2366 = vmatprep.mubr.bf16.mxu0 0
      %2367 = vmatmul.mubr.bf16.gmra.mrb[0].mxu0 %v2116
      %v2368 = vpop.f32.mrb[0].mxu0
      %v2369 = vadd.f32 0.0, %v2368
      %v2370 = vpop.f32.mrb[0].mxu0
      %v2371 = vpop.f32.mrb[0].mxu0
      %v2372 = vadd.f32 0.0, %v2371
      %v2373 = vpop.f32.mrb[0].mxu0
      %2374 = vmatprep.mubr.bf16.mxu0 0
      %2375 = vmatmul.mubr.bf16.gmra.mrb[0].mxu0 %v2119
      %v2376 = vpop.f32.mrb[0].mxu0
      %v2377 = vadd.f32 0.0, %v2376
      %v2378 = vpop.f32.mrb[0].mxu0
      %v2379 = vpop.f32.mrb[0].mxu0
      %v2380 = vadd.f32 0.0, %v2379
      %v2381 = vpop.f32.mrb[0].mxu0
      %2382 = vmatprep.mubr.bf16.mxu0 0
      %2383 = vmatmul.mubr.bf16.gmra.mrb[0].mxu0 %v2122
      %v2384 = vpop.f32.mrb[0].mxu0
      %v2385 = vadd.f32 0.0, %v2384
      %v2386 = vpop.f32.mrb[0].mxu0
      %v2387 = vpop.f32.mrb[0].mxu0
      %v2388 = vadd.f32 0.0, %v2387
      %v2389 = vpop.f32.mrb[0].mxu0
      %2390 = vmatprep.mubr.bf16.mxu0 0
      %2391 = vmatmul.mubr.bf16.gmra.mrb[0].mxu0 %v2125
      %v2392 = vpop.f32.mrb[0].mxu0
      %v2393 = vadd.f32 0.0, %v2392
      %v2394 = vpop.f32.mrb[0].mxu0
      %v2395 = vpop.f32.mrb[0].mxu0
      %v2396 = vadd.f32 0.0, %v2395
      %v2397 = vpop.f32.mrb[0].mxu0
      %2398 = vmatprep.mubr.bf16.mxu0 0
      %2399 = vmatmul.mubr.bf16.gmra.mrb[0].mxu0 %v2128
      %v2400 = vpop.f32.mrb[0].mxu0
      %v2401 = vadd.f32 0.0, %v2400
      %v2402 = vpop.f32.mrb[0].mxu0
      %v2403 = vpop.f32.mrb[0].mxu0
      %v2404 = vadd.f32 0.0, %v2403
      %v2405 = vpop.f32.mrb[0].mxu0
      %2406 = vmatprep.mubr.bf16.mxu0 0
      %2407 = vmatmul.mubr.bf16.gmra.mrb[0].mxu0 %v2131
      %v2408 = vpop.f32.mrb[0].mxu0
      %v2409 = vadd.f32 0.0, %v2408
      %v2410 = vpop.f32.mrb[0].mxu0
      %v2411 = vpop.f32.mrb[0].mxu0
      %v2412 = vadd.f32 0.0, %v2411
      %v2413 = vpop.f32.mrb[0].mxu0
      %2414 = vmatprep.mubr.bf16.mxu0 0
      %2415 = vmatmul.mubr.bf16.gmra.mrb[0].mxu0 %v2134
      %v2416 = vpop.f32.mrb[0].mxu0
      %v2417 = vadd.f32 0.0, %v2416
      %v2418 = vpop.f32.mrb[0].mxu0
      %v2419 = vpop.f32.mrb[0].mxu0
      %v2420 = vadd.f32 0.0, %v2419
      %v2421 = vpop.f32.mrb[0].mxu0
      %2422 = vmatprep.mubr.bf16.mxu0 0
      %2423 = vmatmul.mubr.bf16.gmra.mrb[0].mxu0 %v2137
      %v2424 = vpop.f32.mrb[0].mxu0
      %v2425 = vadd.f32 0.0, %v2424
      %v2426 = vpop.f32.mrb[0].mxu0
      %v2427 = vpop.f32.mrb[0].mxu0
      %v2428 = vadd.f32 0.0, %v2427
      %v2429 = vpop.f32.mrb[0].mxu0
      %2430 = vmatprep.mubr.bf16.mxu0 0
      %2431 = vmatmul.mubr.bf16.gmra.mrb[0].mxu0 %v2140
      %v2432 = vpop.f32.mrb[0].mxu0
      %v2433 = vadd.f32 0.0, %v2432
      %v2434 = vpop.f32.mrb[0].mxu0
      %v2435 = vpop.f32.mrb[0].mxu0
      %v2436 = vadd.f32 0.0, %v2435
      %v2437 = vpop.f32.mrb[0].mxu0
      %2438 = vmatprep.mubr.bf16.mxu0 0
      %2439 = vmatmul.mubr.bf16.gmra.mrb[0].mxu0 %v2143
      %v2440 = vpop.f32.mrb[0].mxu0
      %v2441 = vadd.f32 0.0, %v2440
      %v2442 = vpop.f32.mrb[0].mxu0
      %v2443 = vpop.f32.mrb[0].mxu0
      %v2444 = vadd.f32 0.0, %v2443
      %v2445 = vpop.f32.mrb[0].mxu0
      %2446 = vmatprep.mubr.bf16.mxu0 0
      %2447 = vmatmul.mubr.bf16.gmra.mrb[0].mxu0 %v2146
      %v2448 = vpop.f32.mrb[0].mxu0
      %v2449 = vadd.f32 0.0, %v2448
      %v2450 = vpop.f32.mrb[0].mxu0
      %v2451 = vpop.f32.mrb[0].mxu0
      %v2452 = vadd.f32 0.0, %v2451
      %v2453 = vpop.f32.mrb[0].mxu0
      %2454 = vmatprep.mubr.bf16.mxu0 0
      %2455 = vmatmul.mubr.bf16.gmra.mrb[0].mxu0 %v2149
      %v2456 = vpop.f32.mrb[0].mxu0
      %v2457 = vadd.f32 0.0, %v2456
      %v2458 = vpop.f32.mrb[0].mxu0
      %v2459 = vpop.f32.mrb[0].mxu0
      %v2460 = vadd.f32 0.0, %v2459
      %v2461 = vpop.f32.mrb[0].mxu0
      %2462 = vmatprep.mubr.bf16.mxu0 0
      %2463 = vmatmul.mubr.bf16.gmra.mrb[0].mxu0 %v2152
      %v2464 = vpop.f32.mrb[0].mxu0
      %v2465 = vadd.f32 0.0, %v2464
      %v2466 = vpop.f32.mrb[0].mxu0
      %v2467 = vpop.f32.mrb[0].mxu0
      %v2468 = vadd.f32 0.0, %v2467
      %v2469 = vpop.f32.mrb[0].mxu0
      %2470 = vmatprep.mubr.bf16.mxu0 0
      %2471 = vmatmul.mubr.bf16.gmra.mrb[0].mxu0 %v2155
      %v2472 = vpop.f32.mrb[0].mxu0
      %v2473 = vadd.f32 0.0, %v2472
      %v2474 = vpop.f32.mrb[0].mxu0
      %v2475 = vpop.f32.mrb[0].mxu0
      %v2476 = vadd.f32 0.0, %v2475
      %v2477 = vpop.f32.mrb[0].mxu0
      %2478 = vmatprep.mubr.bf16.mxu0 0
      %2479 = vmatmul.mubr.bf16.gmra.mrb[0].mxu0 %v2158
      %v2480 = vpop.f32.mrb[0].mxu0
      %v2481 = vadd.f32 0.0, %v2480
      %v2482 = vpop.f32.mrb[0].mxu0
      %v2483 = vpop.f32.mrb[0].mxu0
      %v2484 = vadd.f32 0.0, %v2483
      %v2485 = vpop.f32.mrb[0].mxu0
      %2486 = vmatprep.mubr.bf16.mxu0 0
      %2487 = vmatmul.mubr.bf16.gmra.mrb[0].mxu0 %v2161
      %v2488 = vpop.f32.mrb[0].mxu0
      %v2489 = vadd.f32 0.0, %v2488
      %v2490 = vpop.f32.mrb[0].mxu0
      %v2491 = vpop.f32.mrb[0].mxu0
      %v2492 = vadd.f32 0.0, %v2491
      %v2493 = vpop.f32.mrb[0].mxu0
      %2494 = vmatprep.mubr.bf16.mxu0 0
      %2495 = vmatmul.mubr.bf16.gmra.mrb[0].mxu0 %v2164
      %v2496 = vpop.f32.mrb[0].mxu0
      %v2497 = vadd.f32 0.0, %v2496
      %v2498 = vpop.f32.mrb[0].mxu0
      %v2499 = vpop.f32.mrb[0].mxu0
      %v2500 = vadd.f32 0.0, %v2499
      %v2501 = vpop.f32.mrb[0].mxu0
      %2502 = vmatprep.mubr.bf16.mxu0 0
      %2503 = vmatmul.mubr.bf16.gmra.mrb[0].mxu0 %v2167
      %v2504 = vpop.f32.mrb[0].mxu0
      %v2505 = vadd.f32 0.0, %v2504
      %v2506 = vpop.f32.mrb[0].mxu0
      %v2507 = vpop.f32.mrb[0].mxu0
      %v2508 = vadd.f32 0.0, %v2507
      %v2509 = vpop.f32.mrb[0].mxu0
      %2510 = vmatprep.mubr.bf16.mxu0 0
      %2511 = vmatmul.mubr.bf16.gmra.mrb[0].mxu0 %v2170
      %v2512 = vpop.f32.mrb[0].mxu0
      %v2513 = vadd.f32 0.0, %v2512
      %v2514 = vpop.f32.mrb[0].mxu0
      %v2515 = vpop.f32.mrb[0].mxu0
      %v2516 = vadd.f32 0.0, %v2515
      %v2517 = vpop.f32.mrb[0].mxu0
      %2518 = vmatprep.mubr.bf16.mxu0 0
      %2519 = vmatmul.mubr.bf16.gmra.mrb[0].mxu0 %v2173
      %v2520 = vpop.f32.mrb[0].mxu0
      %v2521 = vadd.f32 0.0, %v2520
      %v2522 = vpop.f32.mrb[0].mxu0
      %v2523 = vpop.f32.mrb[0].mxu0
      %v2524 = vadd.f32 0.0, %v2523
      %v2525 = vpop.f32.mrb[0].mxu0
      %2526 = vmatprep.mubr.bf16.mxu0 0
      %2527 = vmatmul.mubr.bf16.gmra.mrb[0].mxu0 %v2176
      %v2528 = vpop.f32.mrb[0].mxu0
      %v2529 = vadd.f32 0.0, %v2528
      %v2530 = vpop.f32.mrb[0].mxu0
      %v2531 = vpop.f32.mrb[0].mxu0
      %v2532 = vadd.f32 0.0, %v2531
      %v2533 = vpop.f32.mrb[0].mxu0
      %2534 = vmatprep.mubr.bf16.mxu0 0
      %2535 = vmatmul.mubr.bf16.gmra.mrb[0].mxu0 %v2179
      %v2536 = vpop.f32.mrb[0].mxu0
      %v2537 = vadd.f32 0.0, %v2536
      %v2538 = vpop.f32.mrb[0].mxu0
      %v2539 = vpop.f32.mrb[0].mxu0
      %v2540 = vadd.f32 0.0, %v2539
      %v2541 = vpop.f32.mrb[0].mxu0
      %2542 = vmatprep.mubr.bf16.mxu0 0
      %2543 = vmatmul.mubr.bf16.gmra.mrb[0].mxu0 %v2182
      %v2544 = vpop.f32.mrb[0].mxu0
      %v2545 = vadd.f32 0.0, %v2544
      %v2546 = vpop.f32.mrb[0].mxu0
      %v2547 = vpop.f32.mrb[0].mxu0
      %v2548 = vadd.f32 0.0, %v2547
      %v2549 = vpop.f32.mrb[0].mxu0
      %2550 = vmatprep.mubr.bf16.mxu0 0
      %2551 = vmatmul.mubr.bf16.gmra.mrb[0].mxu0 %v2185
      %v2552 = vpop.f32.mrb[0].mxu0
      %v2553 = vadd.f32 0.0, %v2552
      %v2554 = vpop.f32.mrb[0].mxu0
      %v2555 = vpop.f32.mrb[0].mxu0
      %v2556 = vadd.f32 0.0, %v2555
      %v2557 = vpop.f32.mrb[0].mxu0
      %2558 = vmatprep.mubr.bf16.mxu0 0
      %2559 = vmatmul.mubr.bf16.gmra.mrb[0].mxu0 %v2188
      %v2560 = vpop.f32.mrb[0].mxu0
      %v2561 = vadd.f32 0.0, %v2560
      %v2562 = vpop.f32.mrb[0].mxu0
      %v2563 = vpop.f32.mrb[0].mxu0
      %v2564 = vadd.f32 0.0, %v2563
      %v2565 = vpop.f32.mrb[0].mxu0
      %2566 = vmatprep.mubr.bf16.mxu0 0
      %2567 = vmatmul.mubr.bf16.gmra.mrb[0].mxu0 %v2191
      %v2568 = vpop.f32.mrb[0].mxu0
      %v2569 = vadd.f32 0.0, %v2568
      %v2570 = vpop.f32.mrb[0].mxu0
      %v2571 = vpop.f32.mrb[0].mxu0
      %v2572 = vadd.f32 0.0, %v2571
      %v2573 = vpop.f32.mrb[0].mxu0
      %2574 = vmatprep.mubr.bf16.mxu0 0
      %2575 = vmatmul.mubr.bf16.gmra.mrb[0].mxu0 %v2194
      %v2576 = vpop.f32.mrb[0].mxu0
      %v2577 = vadd.f32 0.0, %v2576
      %v2578 = vpop.f32.mrb[0].mxu0
      %v2579 = vpop.f32.mrb[0].mxu0
      %v2580 = vadd.f32 0.0, %v2579
      %v2581 = vpop.f32.mrb[0].mxu0
      %2582 = vmatprep.mubr.bf16.mxu0 0
      %2583 = vmatmul.mubr.bf16.gmra.mrb[0].mxu0 %v2197
      %v2584 = vpop.f32.mrb[0].mxu0
      %v2585 = vadd.f32 0.0, %v2584
      %v2586 = vpop.f32.mrb[0].mxu0
      %v2587 = vpop.f32.mrb[0].mxu0
      %v2588 = vadd.f32 0.0, %v2587
      %v2589 = vpop.f32.mrb[0].mxu0
      %2590 = vmatprep.mubr.bf16.mxu0 0
      %2591 = vmatmul.mubr.bf16.gmra.mrb[0].mxu0 %v2200
      %v2592 = vpop.f32.mrb[0].mxu0
      %v2593 = vadd.f32 0.0, %v2592
      %v2594 = vpop.f32.mrb[0].mxu0
      %v2595 = vpop.f32.mrb[0].mxu0
      %v2596 = vadd.f32 0.0, %v2595
      %v2597 = vpop.f32.mrb[0].mxu0
      %2598 = vmatprep.mubr.bf16.mxu0 0
      %2599 = vmatmul.mubr.bf16.gmra.mrb[0].mxu0 %v2203
      %v2600 = vpop.f32.mrb[0].mxu0
      %v2601 = vadd.f32 0.0, %v2600
      %v2602 = vpop.f32.mrb[0].mxu0
      %v2603 = vpop.f32.mrb[0].mxu0
      %v2604 = vadd.f32 0.0, %v2603
      %v2605 = vpop.f32.mrb[0].mxu0
      %2606 = vmatprep.mubr.bf16.mxu0 0
      %2607 = vmatmul.mubr.bf16.gmra.mrb[0].mxu0 %v2206
      %v2608 = vpop.f32.mrb[0].mxu0
      %v2609 = vadd.f32 0.0, %v2608
      %v2610 = vpop.f32.mrb[0].mxu0
      %v2611 = vpop.f32.mrb[0].mxu0
      %v2612 = vadd.f32 0.0, %v2611
      %v2613 = vpop.f32.mrb[0].mxu0
      %2614 = vmatprep.mubr.bf16.mxu0 0
      %2615 = vmatmul.mubr.bf16.gmra.mrb[0].mxu0 %v2209
      %v2616 = vpop.f32.mrb[0].mxu0
      %v2617 = vadd.f32 0.0, %v2616
      %v2618 = vpop.f32.mrb[0].mxu0
      %v2619 = vpop.f32.mrb[0].mxu0
      %v2620 = vadd.f32 0.0, %v2619
      %v2621 = vpop.f32.mrb[0].mxu0
      %2622 = vmatprep.mubr.bf16.mxu0 0
      %2623 = vmatmul.mubr.bf16.gmra.mrb[0].mxu0 %v2212
      %v2624 = vpop.f32.mrb[0].mxu0
      %v2625 = vadd.f32 0.0, %v2624
      %v2626 = vpop.f32.mrb[0].mxu0
      %v2627 = vpop.f32.mrb[0].mxu0
      %v2628 = vadd.f32 0.0, %v2627
      %v2629 = vpop.f32.mrb[0].mxu0
      %2630 = vmatprep.mubr.bf16.mxu0 0
      %2631 = vmatmul.mubr.bf16.gmra.mrb[0].mxu0 %v2215
      %v2632 = vpop.f32.mrb[0].mxu0
      %v2633 = vadd.f32 0.0, %v2632
      %v2634 = vpop.f32.mrb[0].mxu0
      %v2635 = vpop.f32.mrb[0].mxu0
      %v2636 = vadd.f32 0.0, %v2635
      %v2637 = vpop.f32.mrb[0].mxu0
      %2638 = vmatprep.mubr.bf16.mxu0 0
      %2639 = vmatmul.mubr.bf16.gmra.mrb[0].mxu0 %v2218
      %v2640 = vpop.f32.mrb[0].mxu0
      %v2641 = vadd.f32 0.0, %v2640
      %v2642 = vpop.f32.mrb[0].mxu0
      %v2643 = vpop.f32.mrb[0].mxu0
      %v2644 = vadd.f32 0.0, %v2643
      %v2645 = vpop.f32.mrb[0].mxu0
      %2646 = vmatprep.mubr.bf16.mxu0 0
      %2647 = vmatmul.mubr.bf16.gmra.mrb[0].mxu0 %v2221
      %v2648 = vpop.f32.mrb[0].mxu0
      %v2649 = vadd.f32 0.0, %v2648
      %v2650 = vpop.f32.mrb[0].mxu0
      %v2651 = vpop.f32.mrb[0].mxu0
      %v2652 = vadd.f32 0.0, %v2651
      %v2653 = vpop.f32.mrb[0].mxu0
      %2654 = vmatprep.mubr.bf16.mxu0 0
      %2655 = vmatmul.mubr.bf16.gmra.mrb[0].mxu0 %v2224
      %v2656 = vpop.f32.mrb[0].mxu0
      %v2657 = vadd.f32 0.0, %v2656
      %v2658 = vpop.f32.mrb[0].mxu0
      %v2659 = vpop.f32.mrb[0].mxu0
      %v2660 = vadd.f32 0.0, %v2659
      %v2661 = vpop.f32.mrb[0].mxu0
      %2662 = vmatprep.mubr.bf16.mxu0 0
      %2663 = vmatmul.mubr.bf16.gmra.mrb[0].mxu0 %v2227
      %v2664 = vpop.f32.mrb[0].mxu0
      %v2665 = vadd.f32 0.0, %v2664
      %v2666 = vpop.f32.mrb[0].mxu0
      %v2667 = vpop.f32.mrb[0].mxu0
      %v2668 = vadd.f32 0.0, %v2667
      %v2669 = vpop.f32.mrb[0].mxu0
      %2670 = vmatprep.mubr.bf16.mxu0 0
      %2671 = vmatmul.mubr.bf16.gmra.mrb[0].mxu0 %v2230
      %v2672 = vpop.f32.mrb[0].mxu0
      %v2673 = vadd.f32 0.0, %v2672
      %v2674 = vpop.f32.mrb[0].mxu0
      %v2675 = vpop.f32.mrb[0].mxu0
      %v2676 = vadd.f32 0.0, %v2675
      %v2677 = vpop.f32.mrb[0].mxu0
      %2678 = vmatprep.mubr.bf16.mxu0 0
      %2679 = vmatmul.mubr.bf16.gmra.mrb[0].mxu0 %v2233
      %v2680 = vpop.f32.mrb[0].mxu0
      %v2681 = vadd.f32 0.0, %v2680
      %v2682 = vpop.f32.mrb[0].mxu0
      %v2683 = vpop.f32.mrb[0].mxu0
      %v2684 = vadd.f32 0.0, %v2683
      %v2685 = vpop.f32.mrb[0].mxu0
      %2686 = vmatprep.mubr.bf16.mxu0 0
      %2687 = vmatmul.mubr.bf16.gmra.mrb[0].mxu0 %v2236
      %v2688 = vpop.f32.mrb[0].mxu0
      %v2689 = vadd.f32 0.0, %v2688
      %v2690 = vpop.f32.mrb[0].mxu0
      %v2691 = vpop.f32.mrb[0].mxu0
      %v2692 = vadd.f32 0.0, %v2691
      %v2693 = vpop.f32.mrb[0].mxu0
      %2694 = vmatprep.mubr.bf16.mxu0 0
      %2695 = vmatmul.mubr.bf16.gmra.mrb[0].mxu0 %v2239
      %v2696 = vpop.f32.mrb[0].mxu0
      %v2697 = vadd.f32 0.0, %v2696
      %v2698 = vpop.f32.mrb[0].mxu0
      %v2699 = vpop.f32.mrb[0].mxu0
      %v2700 = vadd.f32 0.0, %v2699
      %v2701 = vpop.f32.mrb[0].mxu0
      %2702 = vmatprep.mubr.bf16.mxu0 0
      %2703 = vmatmul.mubr.bf16.gmra.mrb[0].mxu0 %v2242
      %v2704 = vpop.f32.mrb[0].mxu0
      %v2705 = vadd.f32 0.0, %v2704
      %v2706 = vpop.f32.mrb[0].mxu0
      %v2707 = vpop.f32.mrb[0].mxu0
      %v2708 = vadd.f32 0.0, %v2707
      %v2709 = vpop.f32.mrb[0].mxu0
      %2710 = vmatprep.mubr.bf16.mxu0 0
      %2711 = vmatmul.mubr.bf16.gmra.mrb[0].mxu0 %v2245
      %v2712 = vpop.f32.mrb[0].mxu0
      %v2713 = vadd.f32 0.0, %v2712
      %v2714 = vpop.f32.mrb[0].mxu0
      %v2715 = vpop.f32.mrb[0].mxu0
      %v2716 = vadd.f32 0.0, %v2715
      %v2717 = vpop.f32.mrb[0].mxu0
      %2718 = vmatprep.mubr.bf16.mxu0 0
      %2719 = vmatmul.mubr.bf16.gmra.mrb[0].mxu0 %v2248
      %v2720 = vpop.f32.mrb[0].mxu0
      %v2721 = vadd.f32 0.0, %v2720
      %v2722 = vpop.f32.mrb[0].mxu0
      %v2723 = vpop.f32.mrb[0].mxu0
      %v2724 = vadd.f32 0.0, %v2723
      %v2725 = vpop.f32.mrb[0].mxu0
      %2726 = vmatprep.mubr.bf16.mxu0 0
      %2727 = vmatmul.mubr.bf16.gmra.mrb[0].mxu0 %v2251
      %v2728 = vpop.f32.mrb[0].mxu0
      %v2729 = vadd.f32 0.0, %v2728
      %v2730 = vpop.f32.mrb[0].mxu0
      %v2731 = vpop.f32.mrb[0].mxu0
      %v2732 = vadd.f32 0.0, %v2731
      %v2733 = vpop.f32.mrb[0].mxu0
      %2734 = vmatprep.mubr.bf16.mxu0 0
      %2735 = vmatmul.mubr.bf16.gmra.mrb[0].mxu0 %v2254
      %v2736 = vpop.f32.mrb[0].mxu0
      %v2737 = vadd.f32 0.0, %v2736
      %v2738 = vpop.f32.mrb[0].mxu0
      %v2739 = vpop.f32.mrb[0].mxu0
      %v2740 = vadd.f32 0.0, %v2739
      %v2741 = vpop.f32.mrb[0].mxu0
      %2742 = vmatprep.mubr.bf16.mxu0 0
      %2743 = vmatmul.mubr.bf16.gmra.mrb[0].mxu0 %v2257
      %v2744 = vpop.f32.mrb[0].mxu0
      %v2745 = vadd.f32 0.0, %v2744
      %v2746 = vpop.f32.mrb[0].mxu0
      %v2747 = vpop.f32.mrb[0].mxu0
      %v2748 = vadd.f32 0.0, %v2747
      %v2749 = vpop.f32.mrb[0].mxu0
      %2750 = vmatprep.mubr.bf16.mxu0 0
      %2751 = vmatmul.mubr.bf16.gmra.mrb[0].mxu0 %v2260
      %v2752 = vpop.f32.mrb[0].mxu0
      %v2753 = vadd.f32 0.0, %v2752
      %v2754 = vpop.f32.mrb[0].mxu0
      %v2755 = vpop.f32.mrb[0].mxu0
      %v2756 = vadd.f32 0.0, %v2755
      %v2757 = vpop.f32.mrb[0].mxu0
      %2758 = vmatprep.mubr.bf16.mxu0 0
      %2759 = vmatmul.mubr.bf16.gmra.mrb[0].mxu0 %v2263
      %v2760 = vpop.f32.mrb[0].mxu0
      %v2761 = vadd.f32 0.0, %v2760
      %v2762 = vpop.f32.mrb[0].mxu0
      %v2763 = vpop.f32.mrb[0].mxu0
      %v2764 = vadd.f32 0.0, %v2763
      %v2765 = vpop.f32.mrb[0].mxu0
      %2766 = vmatprep.mubr.bf16.mxu0 0
      %2767 = vmatmul.mubr.bf16.gmra.mrb[0].mxu0 %v2266
      %v2768 = vpop.f32.mrb[0].mxu0
      %v2769 = vadd.f32 0.0, %v2768
      %v2770 = vpop.f32.mrb[0].mxu0
      %v2771 = vpop.f32.mrb[0].mxu0
      %v2772 = vadd.f32 0.0, %v2771
      %v2773 = vpop.f32.mrb[0].mxu0
      %2774 = vmatprep.mubr.bf16.mxu0 0
      %2775 = vmatmul.mubr.bf16.gmra.mrb[0].mxu0 %v2269
      %v2776 = vpop.f32.mrb[0].mxu0
      %v2777 = vadd.f32 0.0, %v2776
      %v2778 = vpop.f32.mrb[0].mxu0
      %v2779 = vpop.f32.mrb[0].mxu0
      %v2780 = vadd.f32 0.0, %v2779
      %v2781 = vpop.f32.mrb[0].mxu0
      %2782 = vmatprep.mubr.bf16.mxu0 0
      %2783 = vmatmul.mubr.bf16.gmra.mrb[0].mxu0 %v2272
      %v2784 = vpop.f32.mrb[0].mxu0
      %v2785 = vadd.f32 0.0, %v2784
      %v2786 = vpop.f32.mrb[0].mxu0
      %v2787 = vpop.f32.mrb[0].mxu0
      %v2788 = vadd.f32 0.0, %v2787
      %v2789 = vpop.f32.mrb[0].mxu0
      %2790 = vmatprep.mubr.bf16.mxu0 0
      %2791 = vmatmul.mubr.bf16.gmra.mrb[0].mxu0 %v2275
      %v2792 = vpop.f32.mrb[0].mxu0
      %v2793 = vadd.f32 0.0, %v2792
      %v2794 = vpop.f32.mrb[0].mxu0
      %v2795 = vpop.f32.mrb[0].mxu0
      %v2796 = vadd.f32 0.0, %v2795
      %v2797 = vpop.f32.mrb[0].mxu0
      %2798 = vmatprep.mubr.bf16.mxu0 0
      %2799 = vmatmul.mubr.bf16.gmra.mrb[0].mxu0 %v2278
      %v2800 = vpop.f32.mrb[0].mxu0
      %v2801 = vadd.f32 0.0, %v2800
      %v2802 = vpop.f32.mrb[0].mxu0
      %v2803 = vpop.f32.mrb[0].mxu0
      %v2804 = vadd.f32 0.0, %v2803
      %v2805 = vpop.f32.mrb[0].mxu0
      %2806 = vmatprep.mubr.bf16.mxu0 0
      %2807 = vmatmul.mubr.bf16.gmra.mrb[0].mxu0 %v2281
      %v2808 = vpop.f32.mrb[0].mxu0
      %v2809 = vadd.f32 0.0, %v2808
      %v2810 = vpop.f32.mrb[0].mxu0
      %v2811 = vpop.f32.mrb[0].mxu0
      %v2812 = vadd.f32 0.0, %v2811
      %v2813 = vpop.f32.mrb[0].mxu0
      %2814 = vmatprep.mubr.bf16.mxu0 0
      %2815 = vmatmul.mubr.bf16.gmra.mrb[0].mxu0 %v2284
      %v2816 = vpop.f32.mrb[0].mxu0
      %v2817 = vadd.f32 0.0, %v2816
      %v2818 = vpop.f32.mrb[0].mxu0
      %v2819 = vpop.f32.mrb[0].mxu0
      %v2820 = vadd.f32 0.0, %v2819
      %v2821 = vpop.f32.mrb[0].mxu0
      %2822 = vmatprep.mubr.bf16.mxu0 0
      %2823 = vmatmul.mubr.bf16.gmra.mrb[0].mxu0 %v2287
      %v2824 = vpop.f32.mrb[0].mxu0
      %v2825 = vadd.f32 0.0, %v2824
      %v2826 = vpop.f32.mrb[0].mxu0
      %v2827 = vpop.f32.mrb[0].mxu0
      %v2828 = vadd.f32 0.0, %v2827
      %v2829 = vpop.f32.mrb[0].mxu0
      %2830 = vmatprep.mubr.bf16.mxu0 0
      %2831 = vmatmul.mubr.bf16.gmra.mrb[0].mxu0 %v2290
      %v2832 = vpop.f32.mrb[0].mxu0
      %v2833 = vadd.f32 0.0, %v2832
      %v2834 = vpop.f32.mrb[0].mxu0
      %v2835 = vpop.f32.mrb[0].mxu0
      %v2836 = vadd.f32 0.0, %v2835
      %v2837 = vpop.f32.mrb[0].mxu0
      %2838 = vmatprep.mubr.bf16.mxu0 0
      %2839 = vmatmul.mubr.bf16.gmra.mrb[0].mxu0 %v2293
      %v2840 = vpop.f32.mrb[0].mxu0
      %v2841 = vadd.f32 0.0, %v2840
      %v2842 = vpop.f32.mrb[0].mxu0
      %v2843 = vpop.f32.mrb[0].mxu0
      %v2844 = vadd.f32 0.0, %v2843
      %v2845 = vpop.f32.mrb[0].mxu0
      %2846 = vdwg.mxu0
      %v2847 = vpack.i.b16 %v1418, %v1417
      %v2849 = vcombine.low %v2847, %v1419
      %v2851 = vunpack.c.l.s4 1966171168
      %v2852 = vunpack.c.0.s8 %v2851
      %v2853 = vlaneseq
      %v2854 = vshrl.u32 %v2853, 7
      %v2855 = vsub.s32 %v2852, %v2854
      %v2856 = vrot.slane %v2849, %v2855
      %v2858 = vunpack.c.l.s4 1966171168
      %v2859 = vunpack.c.0.s8 %v2858
      %v2860 = vlaneseq
      %v2861 = vshrl.u32 %v2860, 7
      %v2862 = vsub.s32 %v2859, %v2861
      %v2863 = vrot.slane %v2856, %v2862
      %v2864 = vsel %vm2102, %v1231, 0
      %v2866 = vsel %vm2102, %v682, 0
      %v2868 = vsel %vm2102, %v1232, 0
      %v2870 = vsel %vm2102, %v697, 0
      %v2872 = vsel %vm2102, %v1233, 0
      %v2874 = vsel %vm2102, %v712, 0
      %v2876 = vsel %vm2102, %v1234, 0
      %v2878 = vsel %vm2102, %v727, 0
      %v2880 = vsel %vm2102, %v1235, 0
      %v2882 = vsel %vm2102, %v742, 0
      %v2884 = vsel %vm2102, %v1236, 0
      %v2886 = vsel %vm2102, %v757, 0
      %v2888 = vsel %vm2102, %v1237, 0
      %v2890 = vsel %vm2102, %v772, 0
      %v2892 = vsel %vm2102, %v1238, 0
      %v2894 = vsel %vm2102, %v787, 0
      %v2896 = vsel %vm2102, %v1239, 0
      %v2898 = vsel %vm2102, %v802, 0
      %v2900 = vsel %vm2102, %v1240, 0
      %v2902 = vsel %vm2102, %v817, 0
      %v2904 = vsel %vm2102, %v1241, 0
      %v2906 = vsel %vm2102, %v832, 0
      %v2908 = vsel %vm2102, %v1242, 0
      %v2910 = vsel %vm2102, %v847, 0
      %v2912 = vsel %vm2102, %v1243, 0
      %v2914 = vsel %vm2102, %v862, 0
      %v2916 = vsel %vm2102, %v1244, 0
      %v2918 = vsel %vm2102, %v877, 0
      %v2920 = vsel %vm2102, %v1245, 0
      %v2922 = vsel %vm2102, %v892, 0
      %v2924 = vsel %vm2102, %v1246, 0
      %v2926 = vsel %vm2102, %v907, 0
      %v2928 = vsel %vm2102, %v1247, 0
      %v2930 = vsel %vm2102, %v922, 0
      %v2932 = vsel %vm2102, %v1248, 0
      %v2934 = vsel %vm2102, %v937, 0
      %v2936 = vsel %vm2102, %v1249, 0
      %v2938 = vsel %vm2102, %v952, 0
      %v2940 = vsel %vm2102, %v1250, 0
      %v2942 = vsel %vm2102, %v967, 0
      %v2944 = vsel %vm2102, %v1251, 0
      %v2946 = vsel %vm2102, %v982, 0
      %v2948 = vsel %vm2102, %v1252, 0
      %v2950 = vsel %vm2102, %v997, 0
      %v2952 = vsel %vm2102, %v1253, 0
      %v2954 = vsel %vm2102, %v1012, 0
      %v2956 = vsel %vm2102, %v1254, 0
      %v2958 = vsel %vm2102, %v1027, 0
      %v2960 = vsel %vm2102, %v1255, 0
      %v2962 = vsel %vm2102, %v1042, 0
      %v2964 = vsel %vm2102, %v1256, 0
      %v2966 = vsel %vm2102, %v1057, 0
      %v2968 = vsel %vm2102, %v1257, 0
      %v2970 = vsel %vm2102, %v1072, 0
      %v2972 = vsel %vm2102, %v1258, 0
      %v2974 = vsel %vm2102, %v1087, 0
      %v2976 = vsel %vm2102, %v1259, 0
      %v2978 = vsel %vm2102, %v1102, 0
      %v2980 = vsel %vm2102, %v1260, 0
      %v2982 = vsel %vm2102, %v1117, 0
      %v2984 = vsel %vm2102, %v1261, 0
      %v2986 = vsel %vm2102, %v1132, 0
      %v2988 = vsel %vm2102, %v1262, 0
      %v2990 = vsel %vm2102, %v1147, 0
      %v2993 = vand.u32 %v2863, %v2298
      %2995 = vmatprep.subr.bf16.mxu0 0
      %2996 = vmatpush1.bf16.msra.mxu0 %v2993
      %2997 = vmatprep.subr.bf16.mxu0 0
      %2998 = vmatpush1.bf16.msra.mxu0 0
      %2999 = vmatprep.subr.bf16.mxu0 0
      %3000 = vmatpush1.bf16.msra.mxu0 0
      %3001 = vmatprep.subr.bf16.mxu0 0
      %3002 = vmatpush1.bf16.msra.mxu0 0
      %3003 = vmatprep.subr.bf16.mxu0 0
      %3004 = vmatpush1.bf16.msra.mxu0 0
      %3005 = vmatprep.subr.bf16.mxu0 0
      %3006 = vmatpush1.bf16.msra.mxu0 0
      %3007 = vmatprep.subr.bf16.mxu0 0
      %3008 = vmatpush1.bf16.msra.mxu0 0
      %3009 = vmatprep.subr.bf16.mxu0 0
      %3010 = vmatpush1.bf16.msra.mxu0 0
      %3011 = vmatprep.subr.bf16.mxu0 0
      %3012 = vmatpush1.bf16.msra.mxu0 0
      %3013 = vmatprep.subr.bf16.mxu0 0
      %3014 = vmatpush1.bf16.msra.mxu0 0
      %3015 = vmatprep.subr.bf16.mxu0 0
      %3016 = vmatpush1.bf16.msra.mxu0 0
      %3017 = vmatprep.subr.bf16.mxu0 0
      %3018 = vmatpush1.bf16.msra.mxu0 0
      %3019 = vmatprep.subr.bf16.mxu0 0
      %3020 = vmatpush1.bf16.msra.mxu0 0
      %3021 = vmatprep.subr.bf16.mxu0 0
      %3022 = vmatpush1.bf16.msra.mxu0 0
      %3023 = vmatprep.subr.bf16.mxu0 0
      %3024 = vmatpush1.bf16.msra.mxu0 0
      %3025 = vmatprep.subr.bf16.mxu0 0
      %3026 = vmatpush1.bf16.msra.mxu0 0
      %3027 = vmatprep.mubr.bf16.mxu0 0
      %3028 = vmatmul.mubr.bf16.gmra.mrb[0].mxu0 %v2864
      %v3029 = vpop.f32.mrb[0].mxu0
      %v3030 = vadd.f32 %v2337, %v3029
      %v3031 = vpop.f32.mrb[0].mxu0
      %v3032 = vpop.f32.mrb[0].mxu0
      %v3033 = vadd.f32 %v2340, %v3032
      %v3034 = vpop.f32.mrb[0].mxu0
      %3035 = vmatprep.mubr.bf16.mxu0 0
      %3036 = vmatmul.mubr.bf16.gmra.mrb[0].mxu0 %v2866
      %v3037 = vpop.f32.mrb[0].mxu0
      %v3038 = vadd.f32 %v2345, %v3037
      %v3039 = vpop.f32.mrb[0].mxu0
      %v3040 = vpop.f32.mrb[0].mxu0
      %v3041 = vadd.f32 %v2348, %v3040
      %v3042 = vpop.f32.mrb[0].mxu0
      %3043 = vmatprep.mubr.bf16.mxu0 0
      %3044 = vmatmul.mubr.bf16.gmra.mrb[0].mxu0 %v2868
      %v3045 = vpop.f32.mrb[0].mxu0
      %v3046 = vadd.f32 %v2353, %v3045
      %v3047 = vpop.f32.mrb[0].mxu0
      %v3048 = vpop.f32.mrb[0].mxu0
      %v3049 = vadd.f32 %v2356, %v3048
      %v3050 = vpop.f32.mrb[0].mxu0
      %3051 = vmatprep.mubr.bf16.mxu0 0
      %3052 = vmatmul.mubr.bf16.gmra.mrb[0].mxu0 %v2870
      %v3053 = vpop.f32.mrb[0].mxu0
      %v3054 = vadd.f32 %v2361, %v3053
      %v3055 = vpop.f32.mrb[0].mxu0
      %v3056 = vpop.f32.mrb[0].mxu0
      %v3057 = vadd.f32 %v2364, %v3056
      %v3058 = vpop.f32.mrb[0].mxu0
      %3059 = vmatprep.mubr.bf16.mxu0 0
      %3060 = vmatmul.mubr.bf16.gmra.mrb[0].mxu0 %v2872
      %v3061 = vpop.f32.mrb[0].mxu0
      %v3062 = vadd.f32 %v2369, %v3061
      %v3063 = vpop.f32.mrb[0].mxu0
      %v3064 = vpop.f32.mrb[0].mxu0
      %v3065 = vadd.f32 %v2372, %v3064
      %v3066 = vpop.f32.mrb[0].mxu0
      %3067 = vmatprep.mubr.bf16.mxu0 0
      %3068 = vmatmul.mubr.bf16.gmra.mrb[0].mxu0 %v2874
      %v3069 = vpop.f32.mrb[0].mxu0
      %v3070 = vadd.f32 %v2377, %v3069
      %v3071 = vpop.f32.mrb[0].mxu0
      %v3072 = vpop.f32.mrb[0].mxu0
      %v3073 = vadd.f32 %v2380, %v3072
      %v3074 = vpop.f32.mrb[0].mxu0
      %3075 = vmatprep.mubr.bf16.mxu0 0
      %3076 = vmatmul.mubr.bf16.gmra.mrb[0].mxu0 %v2876
      %v3077 = vpop.f32.mrb[0].mxu0
      %v3078 = vadd.f32 %v2385, %v3077
      %v3079 = vpop.f32.mrb[0].mxu0
      %v3080 = vpop.f32.mrb[0].mxu0
      %v3081 = vadd.f32 %v2388, %v3080
      %v3082 = vpop.f32.mrb[0].mxu0
      %3083 = vmatprep.mubr.bf16.mxu0 0
      %3084 = vmatmul.mubr.bf16.gmra.mrb[0].mxu0 %v2878
      %v3085 = vpop.f32.mrb[0].mxu0
      %v3086 = vadd.f32 %v2393, %v3085
      %v3087 = vpop.f32.mrb[0].mxu0
      %v3088 = vpop.f32.mrb[0].mxu0
      %v3089 = vadd.f32 %v2396, %v3088
      %v3090 = vpop.f32.mrb[0].mxu0
      %3091 = vmatprep.mubr.bf16.mxu0 0
      %3092 = vmatmul.mubr.bf16.gmra.mrb[0].mxu0 %v2880
      %v3093 = vpop.f32.mrb[0].mxu0
      %v3094 = vadd.f32 %v2401, %v3093
      %v3095 = vpop.f32.mrb[0].mxu0
      %v3096 = vpop.f32.mrb[0].mxu0
      %v3097 = vadd.f32 %v2404, %v3096
      %v3098 = vpop.f32.mrb[0].mxu0
      %3099 = vmatprep.mubr.bf16.mxu0 0
      %3100 = vmatmul.mubr.bf16.gmra.mrb[0].mxu0 %v2882
      %v3101 = vpop.f32.mrb[0].mxu0
      %v3102 = vadd.f32 %v2409, %v3101
      %v3103 = vpop.f32.mrb[0].mxu0
      %v3104 = vpop.f32.mrb[0].mxu0
      %v3105 = vadd.f32 %v2412, %v3104
      %v3106 = vpop.f32.mrb[0].mxu0
      %3107 = vmatprep.mubr.bf16.mxu0 0
      %3108 = vmatmul.mubr.bf16.gmra.mrb[0].mxu0 %v2884
      %v3109 = vpop.f32.mrb[0].mxu0
      %v3110 = vadd.f32 %v2417, %v3109
      %v3111 = vpop.f32.mrb[0].mxu0
      %v3112 = vpop.f32.mrb[0].mxu0
      %v3113 = vadd.f32 %v2420, %v3112
      %v3114 = vpop.f32.mrb[0].mxu0
      %3115 = vmatprep.mubr.bf16.mxu0 0
      %3116 = vmatmul.mubr.bf16.gmra.mrb[0].mxu0 %v2886
      %v3117 = vpop.f32.mrb[0].mxu0
      %v3118 = vadd.f32 %v2425, %v3117
      %v3119 = vpop.f32.mrb[0].mxu0
      %v3120 = vpop.f32.mrb[0].mxu0
      %v3121 = vadd.f32 %v2428, %v3120
      %v3122 = vpop.f32.mrb[0].mxu0
      %3123 = vmatprep.mubr.bf16.mxu0 0
      %3124 = vmatmul.mubr.bf16.gmra.mrb[0].mxu0 %v2888
      %v3125 = vpop.f32.mrb[0].mxu0
      %v3126 = vadd.f32 %v2433, %v3125
      %v3127 = vpop.f32.mrb[0].mxu0
      %v3128 = vpop.f32.mrb[0].mxu0
      %v3129 = vadd.f32 %v2436, %v3128
      %v3130 = vpop.f32.mrb[0].mxu0
      %3131 = vmatprep.mubr.bf16.mxu0 0
      %3132 = vmatmul.mubr.bf16.gmra.mrb[0].mxu0 %v2890
      %v3133 = vpop.f32.mrb[0].mxu0
      %v3134 = vadd.f32 %v2441, %v3133
      %v3135 = vpop.f32.mrb[0].mxu0
      %v3136 = vpop.f32.mrb[0].mxu0
      %v3137 = vadd.f32 %v2444, %v3136
      %v3138 = vpop.f32.mrb[0].mxu0
      %3139 = vmatprep.mubr.bf16.mxu0 0
      %3140 = vmatmul.mubr.bf16.gmra.mrb[0].mxu0 %v2892
      %v3141 = vpop.f32.mrb[0].mxu0
      %v3142 = vadd.f32 %v2449, %v3141
      %v3143 = vpop.f32.mrb[0].mxu0
      %v3144 = vpop.f32.mrb[0].mxu0
      %v3145 = vadd.f32 %v2452, %v3144
      %v3146 = vpop.f32.mrb[0].mxu0
      %3147 = vmatprep.mubr.bf16.mxu0 0
      %3148 = vmatmul.mubr.bf16.gmra.mrb[0].mxu0 %v2894
      %v3149 = vpop.f32.mrb[0].mxu0
      %v3150 = vadd.f32 %v2457, %v3149
      %v3151 = vpop.f32.mrb[0].mxu0
      %v3152 = vpop.f32.mrb[0].mxu0
      %v3153 = vadd.f32 %v2460, %v3152
      %v3154 = vpop.f32.mrb[0].mxu0
      %3155 = vmatprep.mubr.bf16.mxu0 0
      %3156 = vmatmul.mubr.bf16.gmra.mrb[0].mxu0 %v2896
      %v3157 = vpop.f32.mrb[0].mxu0
      %v3158 = vadd.f32 %v2465, %v3157
      %v3159 = vpop.f32.mrb[0].mxu0
      %v3160 = vpop.f32.mrb[0].mxu0
      %v3161 = vadd.f32 %v2468, %v3160
      %v3162 = vpop.f32.mrb[0].mxu0
      %3163 = vmatprep.mubr.bf16.mxu0 0
      %3164 = vmatmul.mubr.bf16.gmra.mrb[0].mxu0 %v2898
      %v3165 = vpop.f32.mrb[0].mxu0
      %v3166 = vadd.f32 %v2473, %v3165
      %v3167 = vpop.f32.mrb[0].mxu0
      %v3168 = vpop.f32.mrb[0].mxu0
      %v3169 = vadd.f32 %v2476, %v3168
      %v3170 = vpop.f32.mrb[0].mxu0
      %3171 = vmatprep.mubr.bf16.mxu0 0
      %3172 = vmatmul.mubr.bf16.gmra.mrb[0].mxu0 %v2900
      %v3173 = vpop.f32.mrb[0].mxu0
      %v3174 = vadd.f32 %v2481, %v3173
      %v3175 = vpop.f32.mrb[0].mxu0
      %v3176 = vpop.f32.mrb[0].mxu0
      %v3177 = vadd.f32 %v2484, %v3176
      %v3178 = vpop.f32.mrb[0].mxu0
      %3179 = vmatprep.mubr.bf16.mxu0 0
      %3180 = vmatmul.mubr.bf16.gmra.mrb[0].mxu0 %v2902
      %v3181 = vpop.f32.mrb[0].mxu0
      %v3182 = vadd.f32 %v2489, %v3181
      %v3183 = vpop.f32.mrb[0].mxu0
      %v3184 = vpop.f32.mrb[0].mxu0
      %v3185 = vadd.f32 %v2492, %v3184
      %v3186 = vpop.f32.mrb[0].mxu0
      %3187 = vmatprep.mubr.bf16.mxu0 0
      %3188 = vmatmul.mubr.bf16.gmra.mrb[0].mxu0 %v2904
      %v3189 = vpop.f32.mrb[0].mxu0
      %v3190 = vadd.f32 %v2497, %v3189
      %v3191 = vpop.f32.mrb[0].mxu0
      %v3192 = vpop.f32.mrb[0].mxu0
      %v3193 = vadd.f32 %v2500, %v3192
      %v3194 = vpop.f32.mrb[0].mxu0
      %3195 = vmatprep.mubr.bf16.mxu0 0
      %3196 = vmatmul.mubr.bf16.gmra.mrb[0].mxu0 %v2906
      %v3197 = vpop.f32.mrb[0].mxu0
      %v3198 = vadd.f32 %v2505, %v3197
      %v3199 = vpop.f32.mrb[0].mxu0
      %v3200 = vpop.f32.mrb[0].mxu0
      %v3201 = vadd.f32 %v2508, %v3200
      %v3202 = vpop.f32.mrb[0].mxu0
      %3203 = vmatprep.mubr.bf16.mxu0 0
      %3204 = vmatmul.mubr.bf16.gmra.mrb[0].mxu0 %v2908
      %v3205 = vpop.f32.mrb[0].mxu0
      %v3206 = vadd.f32 %v2513, %v3205
      %v3207 = vpop.f32.mrb[0].mxu0
      %v3208 = vpop.f32.mrb[0].mxu0
      %v3209 = vadd.f32 %v2516, %v3208
      %v3210 = vpop.f32.mrb[0].mxu0
      %3211 = vmatprep.mubr.bf16.mxu0 0
      %3212 = vmatmul.mubr.bf16.gmra.mrb[0].mxu0 %v2910
      %v3213 = vpop.f32.mrb[0].mxu0
      %v3214 = vadd.f32 %v2521, %v3213
      %v3215 = vpop.f32.mrb[0].mxu0
      %v3216 = vpop.f32.mrb[0].mxu0
      %v3217 = vadd.f32 %v2524, %v3216
      %v3218 = vpop.f32.mrb[0].mxu0
      %3219 = vmatprep.mubr.bf16.mxu0 0
      %3220 = vmatmul.mubr.bf16.gmra.mrb[0].mxu0 %v2912
      %v3221 = vpop.f32.mrb[0].mxu0
      %v3222 = vadd.f32 %v2529, %v3221
      %v3223 = vpop.f32.mrb[0].mxu0
      %v3224 = vpop.f32.mrb[0].mxu0
      %v3225 = vadd.f32 %v2532, %v3224
      %v3226 = vpop.f32.mrb[0].mxu0
      %3227 = vmatprep.mubr.bf16.mxu0 0
      %3228 = vmatmul.mubr.bf16.gmra.mrb[0].mxu0 %v2914
      %v3229 = vpop.f32.mrb[0].mxu0
      %v3230 = vadd.f32 %v2537, %v3229
      %v3231 = vpop.f32.mrb[0].mxu0
      %v3232 = vpop.f32.mrb[0].mxu0
      %v3233 = vadd.f32 %v2540, %v3232
      %v3234 = vpop.f32.mrb[0].mxu0
      %3235 = vmatprep.mubr.bf16.mxu0 0
      %3236 = vmatmul.mubr.bf16.gmra.mrb[0].mxu0 %v2916
      %v3237 = vpop.f32.mrb[0].mxu0
      %v3238 = vadd.f32 %v2545, %v3237
      %v3239 = vpop.f32.mrb[0].mxu0
      %v3240 = vpop.f32.mrb[0].mxu0
      %v3241 = vadd.f32 %v2548, %v3240
      %v3242 = vpop.f32.mrb[0].mxu0
      %3243 = vmatprep.mubr.bf16.mxu0 0
      %3244 = vmatmul.mubr.bf16.gmra.mrb[0].mxu0 %v2918
      %v3245 = vpop.f32.mrb[0].mxu0
      %v3246 = vadd.f32 %v2553, %v3245
      %v3247 = vpop.f32.mrb[0].mxu0
      %v3248 = vpop.f32.mrb[0].mxu0
      %v3249 = vadd.f32 %v2556, %v3248
      %v3250 = vpop.f32.mrb[0].mxu0
      %3251 = vmatprep.mubr.bf16.mxu0 0
      %3252 = vmatmul.mubr.bf16.gmra.mrb[0].mxu0 %v2920
      %v3253 = vpop.f32.mrb[0].mxu0
      %v3254 = vadd.f32 %v2561, %v3253
      %v3255 = vpop.f32.mrb[0].mxu0
      %v3256 = vpop.f32.mrb[0].mxu0
      %v3257 = vadd.f32 %v2564, %v3256
      %v3258 = vpop.f32.mrb[0].mxu0
      %3259 = vmatprep.mubr.bf16.mxu0 0
      %3260 = vmatmul.mubr.bf16.gmra.mrb[0].mxu0 %v2922
      %v3261 = vpop.f32.mrb[0].mxu0
      %v3262 = vadd.f32 %v2569, %v3261
      %v3263 = vpop.f32.mrb[0].mxu0
      %v3264 = vpop.f32.mrb[0].mxu0
      %v3265 = vadd.f32 %v2572, %v3264
      %v3266 = vpop.f32.mrb[0].mxu0
      %3267 = vmatprep.mubr.bf16.mxu0 0
      %3268 = vmatmul.mubr.bf16.gmra.mrb[0].mxu0 %v2924
      %v3269 = vpop.f32.mrb[0].mxu0
      %v3270 = vadd.f32 %v2577, %v3269
      %v3271 = vpop.f32.mrb[0].mxu0
      %v3272 = vpop.f32.mrb[0].mxu0
      %v3273 = vadd.f32 %v2580, %v3272
      %v3274 = vpop.f32.mrb[0].mxu0
      %3275 = vmatprep.mubr.bf16.mxu0 0
      %3276 = vmatmul.mubr.bf16.gmra.mrb[0].mxu0 %v2926
      %v3277 = vpop.f32.mrb[0].mxu0
      %v3278 = vadd.f32 %v2585, %v3277
      %v3279 = vpop.f32.mrb[0].mxu0
      %v3280 = vpop.f32.mrb[0].mxu0
      %v3281 = vadd.f32 %v2588, %v3280
      %v3282 = vpop.f32.mrb[0].mxu0
      %3283 = vmatprep.mubr.bf16.mxu0 0
      %3284 = vmatmul.mubr.bf16.gmra.mrb[0].mxu0 %v2928
      %v3285 = vpop.f32.mrb[0].mxu0
      %v3286 = vadd.f32 %v2593, %v3285
      %v3287 = vpop.f32.mrb[0].mxu0
      %v3288 = vpop.f32.mrb[0].mxu0
      %v3289 = vadd.f32 %v2596, %v3288
      %v3290 = vpop.f32.mrb[0].mxu0
      %3291 = vmatprep.mubr.bf16.mxu0 0
      %3292 = vmatmul.mubr.bf16.gmra.mrb[0].mxu0 %v2930
      %v3293 = vpop.f32.mrb[0].mxu0
      %v3294 = vadd.f32 %v2601, %v3293
      %v3295 = vpop.f32.mrb[0].mxu0
      %v3296 = vpop.f32.mrb[0].mxu0
      %v3297 = vadd.f32 %v2604, %v3296
      %v3298 = vpop.f32.mrb[0].mxu0
      %3299 = vmatprep.mubr.bf16.mxu0 0
      %3300 = vmatmul.mubr.bf16.gmra.mrb[0].mxu0 %v2932
      %v3301 = vpop.f32.mrb[0].mxu0
      %v3302 = vadd.f32 %v2609, %v3301
      %v3303 = vpop.f32.mrb[0].mxu0
      %v3304 = vpop.f32.mrb[0].mxu0
      %v3305 = vadd.f32 %v2612, %v3304
      %v3306 = vpop.f32.mrb[0].mxu0
      %3307 = vmatprep.mubr.bf16.mxu0 0
      %3308 = vmatmul.mubr.bf16.gmra.mrb[0].mxu0 %v2934
      %v3309 = vpop.f32.mrb[0].mxu0
      %v3310 = vadd.f32 %v2617, %v3309
      %v3311 = vpop.f32.mrb[0].mxu0
      %v3312 = vpop.f32.mrb[0].mxu0
      %v3313 = vadd.f32 %v2620, %v3312
      %v3314 = vpop.f32.mrb[0].mxu0
      %3315 = vmatprep.mubr.bf16.mxu0 0
      %3316 = vmatmul.mubr.bf16.gmra.mrb[0].mxu0 %v2936
      %v3317 = vpop.f32.mrb[0].mxu0
      %v3318 = vadd.f32 %v2625, %v3317
      %v3319 = vpop.f32.mrb[0].mxu0
      %v3320 = vpop.f32.mrb[0].mxu0
      %v3321 = vadd.f32 %v2628, %v3320
      %v3322 = vpop.f32.mrb[0].mxu0
      %3323 = vmatprep.mubr.bf16.mxu0 0
      %3324 = vmatmul.mubr.bf16.gmra.mrb[0].mxu0 %v2938
      %v3325 = vpop.f32.mrb[0].mxu0
      %v3326 = vadd.f32 %v2633, %v3325
      %v3327 = vpop.f32.mrb[0].mxu0
      %v3328 = vpop.f32.mrb[0].mxu0
      %v3329 = vadd.f32 %v2636, %v3328
      %v3330 = vpop.f32.mrb[0].mxu0
      %3331 = vmatprep.mubr.bf16.mxu0 0
      %3332 = vmatmul.mubr.bf16.gmra.mrb[0].mxu0 %v2940
      %v3333 = vpop.f32.mrb[0].mxu0
      %v3334 = vadd.f32 %v2641, %v3333
      %v3335 = vpop.f32.mrb[0].mxu0
      %v3336 = vpop.f32.mrb[0].mxu0
      %v3337 = vadd.f32 %v2644, %v3336
      %v3338 = vpop.f32.mrb[0].mxu0
      %3339 = vmatprep.mubr.bf16.mxu0 0
      %3340 = vmatmul.mubr.bf16.gmra.mrb[0].mxu0 %v2942
      %v3341 = vpop.f32.mrb[0].mxu0
      %v3342 = vadd.f32 %v2649, %v3341
      %v3343 = vpop.f32.mrb[0].mxu0
      %v3344 = vpop.f32.mrb[0].mxu0
      %v3345 = vadd.f32 %v2652, %v3344
      %v3346 = vpop.f32.mrb[0].mxu0
      %3347 = vmatprep.mubr.bf16.mxu0 0
      %3348 = vmatmul.mubr.bf16.gmra.mrb[0].mxu0 %v2944
      %v3349 = vpop.f32.mrb[0].mxu0
      %v3350 = vadd.f32 %v2657, %v3349
      %v3351 = vpop.f32.mrb[0].mxu0
      %v3352 = vpop.f32.mrb[0].mxu0
      %v3353 = vadd.f32 %v2660, %v3352
      %v3354 = vpop.f32.mrb[0].mxu0
      %3355 = vmatprep.mubr.bf16.mxu0 0
      %3356 = vmatmul.mubr.bf16.gmra.mrb[0].mxu0 %v2946
      %v3357 = vpop.f32.mrb[0].mxu0
      %v3358 = vadd.f32 %v2665, %v3357
      %v3359 = vpop.f32.mrb[0].mxu0
      %v3360 = vpop.f32.mrb[0].mxu0
      %v3361 = vadd.f32 %v2668, %v3360
      %v3362 = vpop.f32.mrb[0].mxu0
      %3363 = vmatprep.mubr.bf16.mxu0 0
      %3364 = vmatmul.mubr.bf16.gmra.mrb[0].mxu0 %v2948
      %v3365 = vpop.f32.mrb[0].mxu0
      %v3366 = vadd.f32 %v2673, %v3365
      %v3367 = vpop.f32.mrb[0].mxu0
      %v3368 = vpop.f32.mrb[0].mxu0
      %v3369 = vadd.f32 %v2676, %v3368
      %v3370 = vpop.f32.mrb[0].mxu0
      %3371 = vmatprep.mubr.bf16.mxu0 0
      %3372 = vmatmul.mubr.bf16.gmra.mrb[0].mxu0 %v2950
      %v3373 = vpop.f32.mrb[0].mxu0
      %v3374 = vadd.f32 %v2681, %v3373
      %v3375 = vpop.f32.mrb[0].mxu0
      %v3376 = vpop.f32.mrb[0].mxu0
      %v3377 = vadd.f32 %v2684, %v3376
      %v3378 = vpop.f32.mrb[0].mxu0
      %3379 = vmatprep.mubr.bf16.mxu0 0
      %3380 = vmatmul.mubr.bf16.gmra.mrb[0].mxu0 %v2952
      %v3381 = vpop.f32.mrb[0].mxu0
      %v3382 = vadd.f32 %v2689, %v3381
      %v3383 = vpop.f32.mrb[0].mxu0
      %v3384 = vpop.f32.mrb[0].mxu0
      %v3385 = vadd.f32 %v2692, %v3384
      %v3386 = vpop.f32.mrb[0].mxu0
      %3387 = vmatprep.mubr.bf16.mxu0 0
      %3388 = vmatmul.mubr.bf16.gmra.mrb[0].mxu0 %v2954
      %v3389 = vpop.f32.mrb[0].mxu0
      %v3390 = vadd.f32 %v2697, %v3389
      %v3391 = vpop.f32.mrb[0].mxu0
      %v3392 = vpop.f32.mrb[0].mxu0
      %v3393 = vadd.f32 %v2700, %v3392
      %v3394 = vpop.f32.mrb[0].mxu0
      %3395 = vmatprep.mubr.bf16.mxu0 0
      %3396 = vmatmul.mubr.bf16.gmra.mrb[0].mxu0 %v2956
      %v3397 = vpop.f32.mrb[0].mxu0
      %v3398 = vadd.f32 %v2705, %v3397
      %v3399 = vpop.f32.mrb[0].mxu0
      %v3400 = vpop.f32.mrb[0].mxu0
      %v3401 = vadd.f32 %v2708, %v3400
      %v3402 = vpop.f32.mrb[0].mxu0
      %3403 = vmatprep.mubr.bf16.mxu0 0
      %3404 = vmatmul.mubr.bf16.gmra.mrb[0].mxu0 %v2958
      %v3405 = vpop.f32.mrb[0].mxu0
      %v3406 = vadd.f32 %v2713, %v3405
      %v3407 = vpop.f32.mrb[0].mxu0
      %v3408 = vpop.f32.mrb[0].mxu0
      %v3409 = vadd.f32 %v2716, %v3408
      %v3410 = vpop.f32.mrb[0].mxu0
      %3411 = vmatprep.mubr.bf16.mxu0 0
      %3412 = vmatmul.mubr.bf16.gmra.mrb[0].mxu0 %v2960
      %v3413 = vpop.f32.mrb[0].mxu0
      %v3414 = vadd.f32 %v2721, %v3413
      %v3415 = vpop.f32.mrb[0].mxu0
      %v3416 = vpop.f32.mrb[0].mxu0
      %v3417 = vadd.f32 %v2724, %v3416
      %v3418 = vpop.f32.mrb[0].mxu0
      %3419 = vmatprep.mubr.bf16.mxu0 0
      %3420 = vmatmul.mubr.bf16.gmra.mrb[0].mxu0 %v2962
      %v3421 = vpop.f32.mrb[0].mxu0
      %v3422 = vadd.f32 %v2729, %v3421
      %v3423 = vpop.f32.mrb[0].mxu0
      %v3424 = vpop.f32.mrb[0].mxu0
      %v3425 = vadd.f32 %v2732, %v3424
      %v3426 = vpop.f32.mrb[0].mxu0
      %3427 = vmatprep.mubr.bf16.mxu0 0
      %3428 = vmatmul.mubr.bf16.gmra.mrb[0].mxu0 %v2964
      %v3429 = vpop.f32.mrb[0].mxu0
      %v3430 = vadd.f32 %v2737, %v3429
      %v3431 = vpop.f32.mrb[0].mxu0
      %v3432 = vpop.f32.mrb[0].mxu0
      %v3433 = vadd.f32 %v2740, %v3432
      %v3434 = vpop.f32.mrb[0].mxu0
      %3435 = vmatprep.mubr.bf16.mxu0 0
      %3436 = vmatmul.mubr.bf16.gmra.mrb[0].mxu0 %v2966
      %v3437 = vpop.f32.mrb[0].mxu0
      %v3438 = vadd.f32 %v2745, %v3437
      %v3439 = vpop.f32.mrb[0].mxu0
      %v3440 = vpop.f32.mrb[0].mxu0
      %v3441 = vadd.f32 %v2748, %v3440
      %v3442 = vpop.f32.mrb[0].mxu0
      %3443 = vmatprep.mubr.bf16.mxu0 0
      %3444 = vmatmul.mubr.bf16.gmra.mrb[0].mxu0 %v2968
      %v3445 = vpop.f32.mrb[0].mxu0
      %v3446 = vadd.f32 %v2753, %v3445
      %v3447 = vpop.f32.mrb[0].mxu0
      %v3448 = vpop.f32.mrb[0].mxu0
      %v3449 = vadd.f32 %v2756, %v3448
      %v3450 = vpop.f32.mrb[0].mxu0
      %3451 = vmatprep.mubr.bf16.mxu0 0
      %3452 = vmatmul.mubr.bf16.gmra.mrb[0].mxu0 %v2970
      %v3453 = vpop.f32.mrb[0].mxu0
      %v3454 = vadd.f32 %v2761, %v3453
      %v3455 = vpop.f32.mrb[0].mxu0
      %v3456 = vpop.f32.mrb[0].mxu0
      %v3457 = vadd.f32 %v2764, %v3456
      %v3458 = vpop.f32.mrb[0].mxu0
      %3459 = vmatprep.mubr.bf16.mxu0 0
      %3460 = vmatmul.mubr.bf16.gmra.mrb[0].mxu0 %v2972
      %v3461 = vpop.f32.mrb[0].mxu0
      %v3462 = vadd.f32 %v2769, %v3461
      %v3463 = vpop.f32.mrb[0].mxu0
      %v3464 = vpop.f32.mrb[0].mxu0
      %v3465 = vadd.f32 %v2772, %v3464
      %v3466 = vpop.f32.mrb[0].mxu0
      %3467 = vmatprep.mubr.bf16.mxu0 0
      %3468 = vmatmul.mubr.bf16.gmra.mrb[0].mxu0 %v2974
      %v3469 = vpop.f32.mrb[0].mxu0
      %v3470 = vadd.f32 %v2777, %v3469
      %v3471 = vpop.f32.mrb[0].mxu0
      %v3472 = vpop.f32.mrb[0].mxu0
      %v3473 = vadd.f32 %v2780, %v3472
      %v3474 = vpop.f32.mrb[0].mxu0
      %3475 = vmatprep.mubr.bf16.mxu0 0
      %3476 = vmatmul.mubr.bf16.gmra.mrb[0].mxu0 %v2976
      %v3477 = vpop.f32.mrb[0].mxu0
      %v3478 = vadd.f32 %v2785, %v3477
      %v3479 = vpop.f32.mrb[0].mxu0
      %v3480 = vpop.f32.mrb[0].mxu0
      %v3481 = vadd.f32 %v2788, %v3480
      %v3482 = vpop.f32.mrb[0].mxu0
      %3483 = vmatprep.mubr.bf16.mxu0 0
      %3484 = vmatmul.mubr.bf16.gmra.mrb[0].mxu0 %v2978
      %v3485 = vpop.f32.mrb[0].mxu0
      %v3486 = vadd.f32 %v2793, %v3485
      %v3487 = vpop.f32.mrb[0].mxu0
      %v3488 = vpop.f32.mrb[0].mxu0
      %v3489 = vadd.f32 %v2796, %v3488
      %v3490 = vpop.f32.mrb[0].mxu0
      %3491 = vmatprep.mubr.bf16.mxu0 0
      %3492 = vmatmul.mubr.bf16.gmra.mrb[0].mxu0 %v2980
      %v3493 = vpop.f32.mrb[0].mxu0
      %v3494 = vadd.f32 %v2801, %v3493
      %v3495 = vpop.f32.mrb[0].mxu0
      %v3496 = vpop.f32.mrb[0].mxu0
      %v3497 = vadd.f32 %v2804, %v3496
      %v3498 = vpop.f32.mrb[0].mxu0
      %3499 = vmatprep.mubr.bf16.mxu0 0
      %3500 = vmatmul.mubr.bf16.gmra.mrb[0].mxu0 %v2982
      %v3501 = vpop.f32.mrb[0].mxu0
      %v3502 = vadd.f32 %v2809, %v3501
      %v3503 = vpop.f32.mrb[0].mxu0
      %v3504 = vpop.f32.mrb[0].mxu0
      %v3505 = vadd.f32 %v2812, %v3504
      %v3506 = vpop.f32.mrb[0].mxu0
      %3507 = vmatprep.mubr.bf16.mxu0 0
      %3508 = vmatmul.mubr.bf16.gmra.mrb[0].mxu0 %v2984
      %v3509 = vpop.f32.mrb[0].mxu0
      %v3510 = vadd.f32 %v2817, %v3509
      %v3511 = vpop.f32.mrb[0].mxu0
      %v3512 = vpop.f32.mrb[0].mxu0
      %v3513 = vadd.f32 %v2820, %v3512
      %v3514 = vpop.f32.mrb[0].mxu0
      %3515 = vmatprep.mubr.bf16.mxu0 0
      %3516 = vmatmul.mubr.bf16.gmra.mrb[0].mxu0 %v2986
      %v3517 = vpop.f32.mrb[0].mxu0
      %v3518 = vadd.f32 %v2825, %v3517
      %v3519 = vpop.f32.mrb[0].mxu0
      %v3520 = vpop.f32.mrb[0].mxu0
      %v3521 = vadd.f32 %v2828, %v3520
      %v3522 = vpop.f32.mrb[0].mxu0
      %3523 = vmatprep.mubr.bf16.mxu0 0
      %3524 = vmatmul.mubr.bf16.gmra.mrb[0].mxu0 %v2988
      %v3525 = vpop.f32.mrb[0].mxu0
      %v3526 = vadd.f32 %v2833, %v3525
      %v3527 = vpop.f32.mrb[0].mxu0
      %v3528 = vpop.f32.mrb[0].mxu0
      %v3529 = vadd.f32 %v2836, %v3528
      %v3530 = vpop.f32.mrb[0].mxu0
      %3531 = vmatprep.mubr.bf16.mxu0 0
      %3532 = vmatmul.mubr.bf16.gmra.mrb[0].mxu0 %v2990
      %v3533 = vpop.f32.mrb[0].mxu0
      %v3534 = vadd.f32 %v2841, %v3533
      %v3535 = vpop.f32.mrb[0].mxu0
      %v3536 = vpop.f32.mrb[0].mxu0
      %v3537 = vadd.f32 %v2844, %v3536
      %v3538 = vpop.f32.mrb[0].mxu0
      %3539 = vdwg.mxu0
      %vm3604 = vcmask 1046528
      %v3605 = vrot.slane %v1231, 1
      %v3606 = vrot.slane %v682, 1
      %v3607 = vsel %vm3604, %v3605, %v3606
      %v3608 = vrot.slane %v1264, 1
      %v3609 = vsel %vm3604, %v3606, %v3608
      %v3610 = vrot.slane %v1232, 1
      %v3611 = vrot.slane %v697, 1
      %v3612 = vsel %vm3604, %v3610, %v3611
      %v3613 = vrot.slane %v1265, 1
      %v3614 = vsel %vm3604, %v3611, %v3613
      %v3615 = vrot.slane %v1233, 1
      %v3616 = vrot.slane %v712, 1
      %v3617 = vsel %vm3604, %v3615, %v3616
      %v3618 = vrot.slane %v1266, 1
      %v3619 = vsel %vm3604, %v3616, %v3618
      %v3620 = vrot.slane %v1234, 1
      %v3621 = vrot.slane %v727, 1
      %v3622 = vsel %vm3604, %v3620, %v3621
      %v3623 = vrot.slane %v1267, 1
      %v3624 = vsel %vm3604, %v3621, %v3623
      %v3625 = vrot.slane %v1235, 1
      %v3626 = vrot.slane %v742, 1
      %v3627 = vsel %vm3604, %v3625, %v3626
      %v3628 = vrot.slane %v1268, 1
      %v3629 = vsel %vm3604, %v3626, %v3628
      %v3630 = vrot.slane %v1236, 1
      %v3631 = vrot.slane %v757, 1
      %v3632 = vsel %vm3604, %v3630, %v3631
      %v3633 = vrot.slane %v1269, 1
      %v3634 = vsel %vm3604, %v3631, %v3633
      %v3635 = vrot.slane %v1237, 1
      %v3636 = vrot.slane %v772, 1
      %v3637 = vsel %vm3604, %v3635, %v3636
      %v3638 = vrot.slane %v1270, 1
      %v3639 = vsel %vm3604, %v3636, %v3638
      %v3640 = vrot.slane %v1238, 1
      %v3641 = vrot.slane %v787, 1
      %v3642 = vsel %vm3604, %v3640, %v3641
      %v3643 = vrot.slane %v1271, 1
      %v3644 = vsel %vm3604, %v3641, %v3643
      %v3645 = vrot.slane %v1239, 1
      %v3646 = vrot.slane %v802, 1
      %v3647 = vsel %vm3604, %v3645, %v3646
      %v3648 = vrot.slane %v1272, 1
      %v3649 = vsel %vm3604, %v3646, %v3648
      %v3650 = vrot.slane %v1240, 1
      %v3651 = vrot.slane %v817, 1
      %v3652 = vsel %vm3604, %v3650, %v3651
      %v3653 = vrot.slane %v1273, 1
      %v3654 = vsel %vm3604, %v3651, %v3653
      %v3655 = vrot.slane %v1241, 1
      %v3656 = vrot.slane %v832, 1
      %v3657 = vsel %vm3604, %v3655, %v3656
      %v3658 = vrot.slane %v1274, 1
      %v3659 = vsel %vm3604, %v3656, %v3658
      %v3660 = vrot.slane %v1242, 1
      %v3661 = vrot.slane %v847, 1
      %v3662 = vsel %vm3604, %v3660, %v3661
      %v3663 = vrot.slane %v1275, 1
      %v3664 = vsel %vm3604, %v3661, %v3663
      %v3665 = vrot.slane %v1243, 1
      %v3666 = vrot.slane %v862, 1
      %v3667 = vsel %vm3604, %v3665, %v3666
      %v3668 = vrot.slane %v1276, 1
      %v3669 = vsel %vm3604, %v3666, %v3668
      %v3670 = vrot.slane %v1244, 1
      %v3671 = vrot.slane %v877, 1
      %v3672 = vsel %vm3604, %v3670, %v3671
      %v3673 = vrot.slane %v1277, 1
      %v3674 = vsel %vm3604, %v3671, %v3673
      %v3675 = vrot.slane %v1245, 1
      %v3676 = vrot.slane %v892, 1
      %v3677 = vsel %vm3604, %v3675, %v3676
      %v3678 = vrot.slane %v1278, 1
      %v3679 = vsel %vm3604, %v3676, %v3678
      %v3680 = vrot.slane %v1246, 1
      %v3681 = vrot.slane %v907, 1
      %v3682 = vsel %vm3604, %v3680, %v3681
      %v3683 = vrot.slane %v1279, 1
      %v3684 = vsel %vm3604, %v3681, %v3683
      %v3685 = vrot.slane %v1247, 1
      %v3686 = vrot.slane %v922, 1
      %v3687 = vsel %vm3604, %v3685, %v3686
      %v3688 = vrot.slane %v1280, 1
      %v3689 = vsel %vm3604, %v3686, %v3688
      %v3690 = vrot.slane %v1248, 1
      %v3691 = vrot.slane %v937, 1
      %v3692 = vsel %vm3604, %v3690, %v3691
      %v3693 = vrot.slane %v1281, 1
      %v3694 = vsel %vm3604, %v3691, %v3693
      %v3695 = vrot.slane %v1249, 1
      %v3696 = vrot.slane %v952, 1
      %v3697 = vsel %vm3604, %v3695, %v3696
      %v3698 = vrot.slane %v1282, 1
      %v3699 = vsel %vm3604, %v3696, %v3698
      %v3700 = vrot.slane %v1250, 1
      %v3701 = vrot.slane %v967, 1
      %v3702 = vsel %vm3604, %v3700, %v3701
      %v3703 = vrot.slane %v1283, 1
      %v3704 = vsel %vm3604, %v3701, %v3703
      %v3705 = vrot.slane %v1251, 1
      %v3706 = vrot.slane %v982, 1
      %v3707 = vsel %vm3604, %v3705, %v3706
      %v3708 = vrot.slane %v1284, 1
      %v3709 = vsel %vm3604, %v3706, %v3708
      %v3710 = vrot.slane %v1252, 1
      %v3711 = vrot.slane %v997, 1
      %v3712 = vsel %vm3604, %v3710, %v3711
      %v3713 = vrot.slane %v1285, 1
      %v3714 = vsel %vm3604, %v3711, %v3713
      %v3715 = vrot.slane %v1253, 1
      %v3716 = vrot.slane %v1012, 1
      %v3717 = vsel %vm3604, %v3715, %v3716
      %v3718 = vrot.slane %v1286, 1
      %v3719 = vsel %vm3604, %v3716, %v3718
      %v3720 = vrot.slane %v1254, 1
      %v3721 = vrot.slane %v1027, 1
      %v3722 = vsel %vm3604, %v3720, %v3721
      %v3723 = vrot.slane %v1287, 1
      %v3724 = vsel %vm3604, %v3721, %v3723
      %v3725 = vrot.slane %v1255, 1
      %v3726 = vrot.slane %v1042, 1
      %v3727 = vsel %vm3604, %v3725, %v3726
      %v3728 = vrot.slane %v1288, 1
      %v3729 = vsel %vm3604, %v3726, %v3728
      %v3730 = vrot.slane %v1256, 1
      %v3731 = vrot.slane %v1057, 1
      %v3732 = vsel %vm3604, %v3730, %v3731
      %v3733 = vrot.slane %v1289, 1
      %v3734 = vsel %vm3604, %v3731, %v3733
      %v3735 = vrot.slane %v1257, 1
      %v3736 = vrot.slane %v1072, 1
      %v3737 = vsel %vm3604, %v3735, %v3736
      %v3738 = vrot.slane %v1290, 1
      %v3739 = vsel %vm3604, %v3736, %v3738
      %v3740 = vrot.slane %v1258, 1
      %v3741 = vrot.slane %v1087, 1
      %v3742 = vsel %vm3604, %v3740, %v3741
      %v3743 = vrot.slane %v1291, 1
      %v3744 = vsel %vm3604, %v3741, %v3743
      %v3745 = vrot.slane %v1259, 1
      %v3746 = vrot.slane %v1102, 1
      %v3747 = vsel %vm3604, %v3745, %v3746
      %v3748 = vrot.slane %v1292, 1
      %v3749 = vsel %vm3604, %v3746, %v3748
      %v3750 = vrot.slane %v1260, 1
      %v3751 = vrot.slane %v1117, 1
      %v3752 = vsel %vm3604, %v3750, %v3751
      %v3753 = vrot.slane %v1293, 1
      %v3754 = vsel %vm3604, %v3751, %v3753
      %v3755 = vrot.slane %v1261, 1
      %v3756 = vrot.slane %v1132, 1
      %v3757 = vsel %vm3604, %v3755, %v3756
      %v3758 = vrot.slane %v1294, 1
      %v3759 = vsel %vm3604, %v3756, %v3758
      %v3760 = vrot.slane %v1262, 1
      %v3761 = vrot.slane %v1147, 1
      %v3762 = vsel %vm3604, %v3760, %v3761
      %v3763 = vrot.slane %v1295, 1
      %v3764 = vsel %vm3604, %v3761, %v3763
      %v3765 = vpack.i.b16 %v1424, %v1423
      %v3767 = vcombine.low %v3765, %v1425
      %v3769 = vunpack.c.l.s4 1966171168
      %v3770 = vunpack.c.0.s8 %v3769
      %v3771 = vlaneseq
      %v3772 = vshrl.u32 %v3771, 7
      %v3773 = vsub.s32 %v3770, %v3772
      %v3774 = vrot.slane %v3767, %v3773
      %v3776 = vunpack.c.l.s4 1966171168
      %v3777 = vunpack.c.0.s8 %v3776
      %v3778 = vlaneseq
      %v3779 = vshrl.u32 %v3778, 7
      %v3780 = vsub.s32 %v3777, %v3779
      %v3781 = vrot.slane %v3774, %v3780
      %v3783 = vsel %vm2102, %v3607, 0
      %v3786 = vsel %vm2102, %v3609, 0
      %v3789 = vsel %vm2102, %v3612, 0
      %v3792 = vsel %vm2102, %v3614, 0
      %v3795 = vsel %vm2102, %v3617, 0
      %v3798 = vsel %vm2102, %v3619, 0
      %v3801 = vsel %vm2102, %v3622, 0
      %v3804 = vsel %vm2102, %v3624, 0
      %v3807 = vsel %vm2102, %v3627, 0
      %v3810 = vsel %vm2102, %v3629, 0
      %v3813 = vsel %vm2102, %v3632, 0
      %v3816 = vsel %vm2102, %v3634, 0
      %v3819 = vsel %vm2102, %v3637, 0
      %v3822 = vsel %vm2102, %v3639, 0
      %v3825 = vsel %vm2102, %v3642, 0
      %v3828 = vsel %vm2102, %v3644, 0
      %v3831 = vsel %vm2102, %v3647, 0
      %v3834 = vsel %vm2102, %v3649, 0
      %v3837 = vsel %vm2102, %v3652, 0
      %v3840 = vsel %vm2102, %v3654, 0
      %v3843 = vsel %vm2102, %v3657, 0
      %v3846 = vsel %vm2102, %v3659, 0
      %v3849 = vsel %vm2102, %v3662, 0
      %v3852 = vsel %vm2102, %v3664, 0
      %v3855 = vsel %vm2102, %v3667, 0
      %v3858 = vsel %vm2102, %v3669, 0
      %v3861 = vsel %vm2102, %v3672, 0
      %v3864 = vsel %vm2102, %v3674, 0
      %v3867 = vsel %vm2102, %v3677, 0
      %v3870 = vsel %vm2102, %v3679, 0
      %v3873 = vsel %vm2102, %v3682, 0
      %v3876 = vsel %vm2102, %v3684, 0
      %v3879 = vsel %vm2102, %v3687, 0
      %v3882 = vsel %vm2102, %v3689, 0
      %v3885 = vsel %vm2102, %v3692, 0
      %v3888 = vsel %vm2102, %v3694, 0
      %v3891 = vsel %vm2102, %v3697, 0
      %v3894 = vsel %vm2102, %v3699, 0
      %v3897 = vsel %vm2102, %v3702, 0
      %v3900 = vsel %vm2102, %v3704, 0
      %v3903 = vsel %vm2102, %v3707, 0
      %v3906 = vsel %vm2102, %v3709, 0
      %v3909 = vsel %vm2102, %v3712, 0
      %v3912 = vsel %vm2102, %v3714, 0
      %v3915 = vsel %vm2102, %v3717, 0
      %v3918 = vsel %vm2102, %v3719, 0
      %v3921 = vsel %vm2102, %v3722, 0
      %v3924 = vsel %vm2102, %v3724, 0
      %v3927 = vsel %vm2102, %v3727, 0
      %v3930 = vsel %vm2102, %v3729, 0
      %v3933 = vsel %vm2102, %v3732, 0
      %v3936 = vsel %vm2102, %v3734, 0
      %v3939 = vsel %vm2102, %v3737, 0
      %v3942 = vsel %vm2102, %v3739, 0
      %v3945 = vsel %vm2102, %v3742, 0
      %v3948 = vsel %vm2102, %v3744, 0
      %v3951 = vsel %vm2102, %v3747, 0
      %v3954 = vsel %vm2102, %v3749, 0
      %v3957 = vsel %vm2102, %v3752, 0
      %v3960 = vsel %vm2102, %v3754, 0
      %v3963 = vsel %vm2102, %v3757, 0
      %v3966 = vsel %vm2102, %v3759, 0
      %v3969 = vsel %vm2102, %v3762, 0
      %v3972 = vsel %vm2102, %v3764, 0
      %v3975 = vand.u32 %v3781, %v2298
      %3977 = vmatprep.subr.bf16.mxu0 0
      %3978 = vmatpush1.bf16.msra.mxu0 %v3975
      %3979 = vmatprep.subr.bf16.mxu0 0
      %3980 = vmatpush1.bf16.msra.mxu0 0
      %3981 = vmatprep.subr.bf16.mxu0 0
      %3982 = vmatpush1.bf16.msra.mxu0 0
      %3983 = vmatprep.subr.bf16.mxu0 0
      %3984 = vmatpush1.bf16.msra.mxu0 0
      %3985 = vmatprep.subr.bf16.mxu0 0
      %3986 = vmatpush1.bf16.msra.mxu0 0
      %3987 = vmatprep.subr.bf16.mxu0 0
      %3988 = vmatpush1.bf16.msra.mxu0 0
      %3989 = vmatprep.subr.bf16.mxu0 0
      %3990 = vmatpush1.bf16.msra.mxu0 0
      %3991 = vmatprep.subr.bf16.mxu0 0
      %3992 = vmatpush1.bf16.msra.mxu0 0
      %3993 = vmatprep.subr.bf16.mxu0 0
      %3994 = vmatpush1.bf16.msra.mxu0 0
      %3995 = vmatprep.subr.bf16.mxu0 0
      %3996 = vmatpush1.bf16.msra.mxu0 0
      %3997 = vmatprep.subr.bf16.mxu0 0
      %3998 = vmatpush1.bf16.msra.mxu0 0
      %3999 = vmatprep.subr.bf16.mxu0 0
      %4000 = vmatpush1.bf16.msra.mxu0 0
      %4001 = vmatprep.subr.bf16.mxu0 0
      %4002 = vmatpush1.bf16.msra.mxu0 0
      %4003 = vmatprep.subr.bf16.mxu0 0
      %4004 = vmatpush1.bf16.msra.mxu0 0
      %4005 = vmatprep.subr.bf16.mxu0 0
      %4006 = vmatpush1.bf16.msra.mxu0 0
      %4007 = vmatprep.subr.bf16.mxu0 0
      %4008 = vmatpush1.bf16.msra.mxu0 0
      %4009 = vmatprep.mubr.bf16.mxu0 0
      %4010 = vmatmul.mubr.bf16.gmra.mrb[0].mxu0 %v3783
      %v4011 = vpop.f32.mrb[0].mxu0
      %v4012 = vadd.f32 0.0, %v4011
      %v4013 = vpop.f32.mrb[0].mxu0
      %v4014 = vpop.f32.mrb[0].mxu0
      %v4015 = vadd.f32 0.0, %v4014
      %v4016 = vpop.f32.mrb[0].mxu0
      %4017 = vmatprep.mubr.bf16.mxu0 0
      %4018 = vmatmul.mubr.bf16.gmra.mrb[0].mxu0 %v3786
      %v4019 = vpop.f32.mrb[0].mxu0
      %v4020 = vadd.f32 0.0, %v4019
      %v4021 = vpop.f32.mrb[0].mxu0
      %v4022 = vpop.f32.mrb[0].mxu0
      %v4023 = vadd.f32 0.0, %v4022
      %v4024 = vpop.f32.mrb[0].mxu0
      %4025 = vmatprep.mubr.bf16.mxu0 0
      %4026 = vmatmul.mubr.bf16.gmra.mrb[0].mxu0 %v3789
      %v4027 = vpop.f32.mrb[0].mxu0
      %v4028 = vadd.f32 0.0, %v4027
      %v4029 = vpop.f32.mrb[0].mxu0
      %v4030 = vpop.f32.mrb[0].mxu0
      %v4031 = vadd.f32 0.0, %v4030
      %v4032 = vpop.f32.mrb[0].mxu0
      %4033 = vmatprep.mubr.bf16.mxu0 0
      %4034 = vmatmul.mubr.bf16.gmra.mrb[0].mxu0 %v3792
      %v4035 = vpop.f32.mrb[0].mxu0
      %v4036 = vadd.f32 0.0, %v4035
      %v4037 = vpop.f32.mrb[0].mxu0
      %v4038 = vpop.f32.mrb[0].mxu0
      %v4039 = vadd.f32 0.0, %v4038
      %v4040 = vpop.f32.mrb[0].mxu0
      %4041 = vmatprep.mubr.bf16.mxu0 0
      %4042 = vmatmul.mubr.bf16.gmra.mrb[0].mxu0 %v3795
      %v4043 = vpop.f32.mrb[0].mxu0
      %v4044 = vadd.f32 0.0, %v4043
      %v4045 = vpop.f32.mrb[0].mxu0
      %v4046 = vpop.f32.mrb[0].mxu0
      %v4047 = vadd.f32 0.0, %v4046
      %v4048 = vpop.f32.mrb[0].mxu0
      %4049 = vmatprep.mubr.bf16.mxu0 0
      %4050 = vmatmul.mubr.bf16.gmra.mrb[0].mxu0 %v3798
      %v4051 = vpop.f32.mrb[0].mxu0
      %v4052 = vadd.f32 0.0, %v4051
      %v4053 = vpop.f32.mrb[0].mxu0
      %v4054 = vpop.f32.mrb[0].mxu0
      %v4055 = vadd.f32 0.0, %v4054
      %v4056 = vpop.f32.mrb[0].mxu0
      %4057 = vmatprep.mubr.bf16.mxu0 0
      %4058 = vmatmul.mubr.bf16.gmra.mrb[0].mxu0 %v3801
      %v4059 = vpop.f32.mrb[0].mxu0
      %v4060 = vadd.f32 0.0, %v4059
      %v4061 = vpop.f32.mrb[0].mxu0
      %v4062 = vpop.f32.mrb[0].mxu0
      %v4063 = vadd.f32 0.0, %v4062
      %v4064 = vpop.f32.mrb[0].mxu0
      %4065 = vmatprep.mubr.bf16.mxu0 0
      %4066 = vmatmul.mubr.bf16.gmra.mrb[0].mxu0 %v3804
      %v4067 = vpop.f32.mrb[0].mxu0
      %v4068 = vadd.f32 0.0, %v4067
      %v4069 = vpop.f32.mrb[0].mxu0
      %v4070 = vpop.f32.mrb[0].mxu0
      %v4071 = vadd.f32 0.0, %v4070
      %v4072 = vpop.f32.mrb[0].mxu0
      %4073 = vmatprep.mubr.bf16.mxu0 0
      %4074 = vmatmul.mubr.bf16.gmra.mrb[0].mxu0 %v3807
      %v4075 = vpop.f32.mrb[0].mxu0
      %v4076 = vadd.f32 0.0, %v4075
      %v4077 = vpop.f32.mrb[0].mxu0
      %v4078 = vpop.f32.mrb[0].mxu0
      %v4079 = vadd.f32 0.0, %v4078
      %v4080 = vpop.f32.mrb[0].mxu0
      %4081 = vmatprep.mubr.bf16.mxu0 0
      %4082 = vmatmul.mubr.bf16.gmra.mrb[0].mxu0 %v3810
      %v4083 = vpop.f32.mrb[0].mxu0
      %v4084 = vadd.f32 0.0, %v4083
      %v4085 = vpop.f32.mrb[0].mxu0
      %v4086 = vpop.f32.mrb[0].mxu0
      %v4087 = vadd.f32 0.0, %v4086
      %v4088 = vpop.f32.mrb[0].mxu0
      %4089 = vmatprep.mubr.bf16.mxu0 0
      %4090 = vmatmul.mubr.bf16.gmra.mrb[0].mxu0 %v3813
      %v4091 = vpop.f32.mrb[0].mxu0
      %v4092 = vadd.f32 0.0, %v4091
      %v4093 = vpop.f32.mrb[0].mxu0
      %v4094 = vpop.f32.mrb[0].mxu0
      %v4095 = vadd.f32 0.0, %v4094
      %v4096 = vpop.f32.mrb[0].mxu0
      %4097 = vmatprep.mubr.bf16.mxu0 0
      %4098 = vmatmul.mubr.bf16.gmra.mrb[0].mxu0 %v3816
      %v4099 = vpop.f32.mrb[0].mxu0
      %v4100 = vadd.f32 0.0, %v4099
      %v4101 = vpop.f32.mrb[0].mxu0
      %v4102 = vpop.f32.mrb[0].mxu0
      %v4103 = vadd.f32 0.0, %v4102
      %v4104 = vpop.f32.mrb[0].mxu0
      %4105 = vmatprep.mubr.bf16.mxu0 0
      %4106 = vmatmul.mubr.bf16.gmra.mrb[0].mxu0 %v3819
      %v4107 = vpop.f32.mrb[0].mxu0
      %v4108 = vadd.f32 0.0, %v4107
      %v4109 = vpop.f32.mrb[0].mxu0
      %v4110 = vpop.f32.mrb[0].mxu0
      %v4111 = vadd.f32 0.0, %v4110
      %v4112 = vpop.f32.mrb[0].mxu0
      %4113 = vmatprep.mubr.bf16.mxu0 0
      %4114 = vmatmul.mubr.bf16.gmra.mrb[0].mxu0 %v3822
      %v4115 = vpop.f32.mrb[0].mxu0
      %v4116 = vadd.f32 0.0, %v4115
      %v4117 = vpop.f32.mrb[0].mxu0
      %v4118 = vpop.f32.mrb[0].mxu0
      %v4119 = vadd.f32 0.0, %v4118
      %v4120 = vpop.f32.mrb[0].mxu0
      %4121 = vmatprep.mubr.bf16.mxu0 0
      %4122 = vmatmul.mubr.bf16.gmra.mrb[0].mxu0 %v3825
      %v4123 = vpop.f32.mrb[0].mxu0
      %v4124 = vadd.f32 0.0, %v4123
      %v4125 = vpop.f32.mrb[0].mxu0
      %v4126 = vpop.f32.mrb[0].mxu0
      %v4127 = vadd.f32 0.0, %v4126
      %v4128 = vpop.f32.mrb[0].mxu0
      %4129 = vmatprep.mubr.bf16.mxu0 0
      %4130 = vmatmul.mubr.bf16.gmra.mrb[0].mxu0 %v3828
      %v4131 = vpop.f32.mrb[0].mxu0
      %v4132 = vadd.f32 0.0, %v4131
      %v4133 = vpop.f32.mrb[0].mxu0
      %v4134 = vpop.f32.mrb[0].mxu0
      %v4135 = vadd.f32 0.0, %v4134
      %v4136 = vpop.f32.mrb[0].mxu0
      %4137 = vmatprep.mubr.bf16.mxu0 0
      %4138 = vmatmul.mubr.bf16.gmra.mrb[0].mxu0 %v3831
      %v4139 = vpop.f32.mrb[0].mxu0
      %v4140 = vadd.f32 0.0, %v4139
      %v4141 = vpop.f32.mrb[0].mxu0
      %v4142 = vpop.f32.mrb[0].mxu0
      %v4143 = vadd.f32 0.0, %v4142
      %v4144 = vpop.f32.mrb[0].mxu0
      %4145 = vmatprep.mubr.bf16.mxu0 0
      %4146 = vmatmul.mubr.bf16.gmra.mrb[0].mxu0 %v3834
      %v4147 = vpop.f32.mrb[0].mxu0
      %v4148 = vadd.f32 0.0, %v4147
      %v4149 = vpop.f32.mrb[0].mxu0
      %v4150 = vpop.f32.mrb[0].mxu0
      %v4151 = vadd.f32 0.0, %v4150
      %v4152 = vpop.f32.mrb[0].mxu0
      %4153 = vmatprep.mubr.bf16.mxu0 0
      %4154 = vmatmul.mubr.bf16.gmra.mrb[0].mxu0 %v3837
      %v4155 = vpop.f32.mrb[0].mxu0
      %v4156 = vadd.f32 0.0, %v4155
      %v4157 = vpop.f32.mrb[0].mxu0
      %v4158 = vpop.f32.mrb[0].mxu0
      %v4159 = vadd.f32 0.0, %v4158
      %v4160 = vpop.f32.mrb[0].mxu0
      %4161 = vmatprep.mubr.bf16.mxu0 0
      %4162 = vmatmul.mubr.bf16.gmra.mrb[0].mxu0 %v3840
      %v4163 = vpop.f32.mrb[0].mxu0
      %v4164 = vadd.f32 0.0, %v4163
      %v4165 = vpop.f32.mrb[0].mxu0
      %v4166 = vpop.f32.mrb[0].mxu0
      %v4167 = vadd.f32 0.0, %v4166
      %v4168 = vpop.f32.mrb[0].mxu0
      %4169 = vmatprep.mubr.bf16.mxu0 0
      %4170 = vmatmul.mubr.bf16.gmra.mrb[0].mxu0 %v3843
      %v4171 = vpop.f32.mrb[0].mxu0
      %v4172 = vadd.f32 0.0, %v4171
      %v4173 = vpop.f32.mrb[0].mxu0
      %v4174 = vpop.f32.mrb[0].mxu0
      %v4175 = vadd.f32 0.0, %v4174
      %v4176 = vpop.f32.mrb[0].mxu0
      %4177 = vmatprep.mubr.bf16.mxu0 0
      %4178 = vmatmul.mubr.bf16.gmra.mrb[0].mxu0 %v3846
      %v4179 = vpop.f32.mrb[0].mxu0
      %v4180 = vadd.f32 0.0, %v4179
      %v4181 = vpop.f32.mrb[0].mxu0
      %v4182 = vpop.f32.mrb[0].mxu0
      %v4183 = vadd.f32 0.0, %v4182
      %v4184 = vpop.f32.mrb[0].mxu0
      %4185 = vmatprep.mubr.bf16.mxu0 0
      %4186 = vmatmul.mubr.bf16.gmra.mrb[0].mxu0 %v3849
      %v4187 = vpop.f32.mrb[0].mxu0
      %v4188 = vadd.f32 0.0, %v4187
      %v4189 = vpop.f32.mrb[0].mxu0
      %v4190 = vpop.f32.mrb[0].mxu0
      %v4191 = vadd.f32 0.0, %v4190
      %v4192 = vpop.f32.mrb[0].mxu0
      %4193 = vmatprep.mubr.bf16.mxu0 0
      %4194 = vmatmul.mubr.bf16.gmra.mrb[0].mxu0 %v3852
      %v4195 = vpop.f32.mrb[0].mxu0
      %v4196 = vadd.f32 0.0, %v4195
      %v4197 = vpop.f32.mrb[0].mxu0
      %v4198 = vpop.f32.mrb[0].mxu0
      %v4199 = vadd.f32 0.0, %v4198
      %v4200 = vpop.f32.mrb[0].mxu0
      %4201 = vmatprep.mubr.bf16.mxu0 0
      %4202 = vmatmul.mubr.bf16.gmra.mrb[0].mxu0 %v3855
      %v4203 = vpop.f32.mrb[0].mxu0
      %v4204 = vadd.f32 0.0, %v4203
      %v4205 = vpop.f32.mrb[0].mxu0
      %v4206 = vpop.f32.mrb[0].mxu0
      %v4207 = vadd.f32 0.0, %v4206
      %v4208 = vpop.f32.mrb[0].mxu0
      %4209 = vmatprep.mubr.bf16.mxu0 0
      %4210 = vmatmul.mubr.bf16.gmra.mrb[0].mxu0 %v3858
      %v4211 = vpop.f32.mrb[0].mxu0
      %v4212 = vadd.f32 0.0, %v4211
      %v4213 = vpop.f32.mrb[0].mxu0
      %v4214 = vpop.f32.mrb[0].mxu0
      %v4215 = vadd.f32 0.0, %v4214
      %v4216 = vpop.f32.mrb[0].mxu0
      %4217 = vmatprep.mubr.bf16.mxu0 0
      %4218 = vmatmul.mubr.bf16.gmra.mrb[0].mxu0 %v3861
      %v4219 = vpop.f32.mrb[0].mxu0
      %v4220 = vadd.f32 0.0, %v4219
      %v4221 = vpop.f32.mrb[0].mxu0
      %v4222 = vpop.f32.mrb[0].mxu0
      %v4223 = vadd.f32 0.0, %v4222
      %v4224 = vpop.f32.mrb[0].mxu0
      %4225 = vmatprep.mubr.bf16.mxu0 0
      %4226 = vmatmul.mubr.bf16.gmra.mrb[0].mxu0 %v3864
      %v4227 = vpop.f32.mrb[0].mxu0
      %v4228 = vadd.f32 0.0, %v4227
      %v4229 = vpop.f32.mrb[0].mxu0
      %v4230 = vpop.f32.mrb[0].mxu0
      %v4231 = vadd.f32 0.0, %v4230
      %v4232 = vpop.f32.mrb[0].mxu0
      %4233 = vmatprep.mubr.bf16.mxu0 0
      %4234 = vmatmul.mubr.bf16.gmra.mrb[0].mxu0 %v3867
      %v4235 = vpop.f32.mrb[0].mxu0
      %v4236 = vadd.f32 0.0, %v4235
      %v4237 = vpop.f32.mrb[0].mxu0
      %v4238 = vpop.f32.mrb[0].mxu0
      %v4239 = vadd.f32 0.0, %v4238
      %v4240 = vpop.f32.mrb[0].mxu0
      %4241 = vmatprep.mubr.bf16.mxu0 0
      %4242 = vmatmul.mubr.bf16.gmra.mrb[0].mxu0 %v3870
      %v4243 = vpop.f32.mrb[0].mxu0
      %v4244 = vadd.f32 0.0, %v4243
      %v4245 = vpop.f32.mrb[0].mxu0
      %v4246 = vpop.f32.mrb[0].mxu0
      %v4247 = vadd.f32 0.0, %v4246
      %v4248 = vpop.f32.mrb[0].mxu0
      %4249 = vmatprep.mubr.bf16.mxu0 0
      %4250 = vmatmul.mubr.bf16.gmra.mrb[0].mxu0 %v3873
      %v4251 = vpop.f32.mrb[0].mxu0
      %v4252 = vadd.f32 0.0, %v4251
      %v4253 = vpop.f32.mrb[0].mxu0
      %v4254 = vpop.f32.mrb[0].mxu0
      %v4255 = vadd.f32 0.0, %v4254
      %v4256 = vpop.f32.mrb[0].mxu0
      %4257 = vmatprep.mubr.bf16.mxu0 0
      %4258 = vmatmul.mubr.bf16.gmra.mrb[0].mxu0 %v3876
      %v4259 = vpop.f32.mrb[0].mxu0
      %v4260 = vadd.f32 0.0, %v4259
      %v4261 = vpop.f32.mrb[0].mxu0
      %v4262 = vpop.f32.mrb[0].mxu0
      %v4263 = vadd.f32 0.0, %v4262
      %v4264 = vpop.f32.mrb[0].mxu0
      %4265 = vmatprep.mubr.bf16.mxu0 0
      %4266 = vmatmul.mubr.bf16.gmra.mrb[0].mxu0 %v3879
      %v4267 = vpop.f32.mrb[0].mxu0
      %v4268 = vadd.f32 0.0, %v4267
      %v4269 = vpop.f32.mrb[0].mxu0
      %v4270 = vpop.f32.mrb[0].mxu0
      %v4271 = vadd.f32 0.0, %v4270
      %v4272 = vpop.f32.mrb[0].mxu0
      %4273 = vmatprep.mubr.bf16.mxu0 0
      %4274 = vmatmul.mubr.bf16.gmra.mrb[0].mxu0 %v3882
      %v4275 = vpop.f32.mrb[0].mxu0
      %v4276 = vadd.f32 0.0, %v4275
      %v4277 = vpop.f32.mrb[0].mxu0
      %v4278 = vpop.f32.mrb[0].mxu0
      %v4279 = vadd.f32 0.0, %v4278
      %v4280 = vpop.f32.mrb[0].mxu0
      %4281 = vmatprep.mubr.bf16.mxu0 0
      %4282 = vmatmul.mubr.bf16.gmra.mrb[0].mxu0 %v3885
      %v4283 = vpop.f32.mrb[0].mxu0
      %v4284 = vadd.f32 0.0, %v4283
      %v4285 = vpop.f32.mrb[0].mxu0
      %v4286 = vpop.f32.mrb[0].mxu0
      %v4287 = vadd.f32 0.0, %v4286
      %v4288 = vpop.f32.mrb[0].mxu0
      %4289 = vmatprep.mubr.bf16.mxu0 0
      %4290 = vmatmul.mubr.bf16.gmra.mrb[0].mxu0 %v3888
      %v4291 = vpop.f32.mrb[0].mxu0
      %v4292 = vadd.f32 0.0, %v4291
      %v4293 = vpop.f32.mrb[0].mxu0
      %v4294 = vpop.f32.mrb[0].mxu0
      %v4295 = vadd.f32 0.0, %v4294
      %v4296 = vpop.f32.mrb[0].mxu0
      %4297 = vmatprep.mubr.bf16.mxu0 0
      %4298 = vmatmul.mubr.bf16.gmra.mrb[0].mxu0 %v3891
      %v4299 = vpop.f32.mrb[0].mxu0
      %v4300 = vadd.f32 0.0, %v4299
      %v4301 = vpop.f32.mrb[0].mxu0
      %v4302 = vpop.f32.mrb[0].mxu0
      %v4303 = vadd.f32 0.0, %v4302
      %v4304 = vpop.f32.mrb[0].mxu0
      %4305 = vmatprep.mubr.bf16.mxu0 0
      %4306 = vmatmul.mubr.bf16.gmra.mrb[0].mxu0 %v3894
      %v4307 = vpop.f32.mrb[0].mxu0
      %v4308 = vadd.f32 0.0, %v4307
      %v4309 = vpop.f32.mrb[0].mxu0
      %v4310 = vpop.f32.mrb[0].mxu0
      %v4311 = vadd.f32 0.0, %v4310
      %v4312 = vpop.f32.mrb[0].mxu0
      %4313 = vmatprep.mubr.bf16.mxu0 0
      %4314 = vmatmul.mubr.bf16.gmra.mrb[0].mxu0 %v3897
      %v4315 = vpop.f32.mrb[0].mxu0
      %v4316 = vadd.f32 0.0, %v4315
      %v4317 = vpop.f32.mrb[0].mxu0
      %v4318 = vpop.f32.mrb[0].mxu0
      %v4319 = vadd.f32 0.0, %v4318
      %v4320 = vpop.f32.mrb[0].mxu0
      %4321 = vmatprep.mubr.bf16.mxu0 0
      %4322 = vmatmul.mubr.bf16.gmra.mrb[0].mxu0 %v3900
      %v4323 = vpop.f32.mrb[0].mxu0
      %v4324 = vadd.f32 0.0, %v4323
      %v4325 = vpop.f32.mrb[0].mxu0
      %v4326 = vpop.f32.mrb[0].mxu0
      %v4327 = vadd.f32 0.0, %v4326
      %v4328 = vpop.f32.mrb[0].mxu0
      %4329 = vmatprep.mubr.bf16.mxu0 0
      %4330 = vmatmul.mubr.bf16.gmra.mrb[0].mxu0 %v3903
      %v4331 = vpop.f32.mrb[0].mxu0
      %v4332 = vadd.f32 0.0, %v4331
      %v4333 = vpop.f32.mrb[0].mxu0
      %v4334 = vpop.f32.mrb[0].mxu0
      %v4335 = vadd.f32 0.0, %v4334
      %v4336 = vpop.f32.mrb[0].mxu0
      %4337 = vmatprep.mubr.bf16.mxu0 0
      %4338 = vmatmul.mubr.bf16.gmra.mrb[0].mxu0 %v3906
      %v4339 = vpop.f32.mrb[0].mxu0
      %v4340 = vadd.f32 0.0, %v4339
      %v4341 = vpop.f32.mrb[0].mxu0
      %v4342 = vpop.f32.mrb[0].mxu0
      %v4343 = vadd.f32 0.0, %v4342
      %v4344 = vpop.f32.mrb[0].mxu0
      %4345 = vmatprep.mubr.bf16.mxu0 0
      %4346 = vmatmul.mubr.bf16.gmra.mrb[0].mxu0 %v3909
      %v4347 = vpop.f32.mrb[0].mxu0
      %v4348 = vadd.f32 0.0, %v4347
      %v4349 = vpop.f32.mrb[0].mxu0
      %v4350 = vpop.f32.mrb[0].mxu0
      %v4351 = vadd.f32 0.0, %v4350
      %v4352 = vpop.f32.mrb[0].mxu0
      %4353 = vmatprep.mubr.bf16.mxu0 0
      %4354 = vmatmul.mubr.bf16.gmra.mrb[0].mxu0 %v3912
      %v4355 = vpop.f32.mrb[0].mxu0
      %v4356 = vadd.f32 0.0, %v4355
      %v4357 = vpop.f32.mrb[0].mxu0
      %v4358 = vpop.f32.mrb[0].mxu0
      %v4359 = vadd.f32 0.0, %v4358
      %v4360 = vpop.f32.mrb[0].mxu0
      %4361 = vmatprep.mubr.bf16.mxu0 0
      %4362 = vmatmul.mubr.bf16.gmra.mrb[0].mxu0 %v3915
      %v4363 = vpop.f32.mrb[0].mxu0
      %v4364 = vadd.f32 0.0, %v4363
      %v4365 = vpop.f32.mrb[0].mxu0
      %v4366 = vpop.f32.mrb[0].mxu0
      %v4367 = vadd.f32 0.0, %v4366
      %v4368 = vpop.f32.mrb[0].mxu0
      %4369 = vmatprep.mubr.bf16.mxu0 0
      %4370 = vmatmul.mubr.bf16.gmra.mrb[0].mxu0 %v3918
      %v4371 = vpop.f32.mrb[0].mxu0
      %v4372 = vadd.f32 0.0, %v4371
      %v4373 = vpop.f32.mrb[0].mxu0
      %v4374 = vpop.f32.mrb[0].mxu0
      %v4375 = vadd.f32 0.0, %v4374
      %v4376 = vpop.f32.mrb[0].mxu0
      %4377 = vmatprep.mubr.bf16.mxu0 0
      %4378 = vmatmul.mubr.bf16.gmra.mrb[0].mxu0 %v3921
      %v4379 = vpop.f32.mrb[0].mxu0
      %v4380 = vadd.f32 0.0, %v4379
      %v4381 = vpop.f32.mrb[0].mxu0
      %v4382 = vpop.f32.mrb[0].mxu0
      %v4383 = vadd.f32 0.0, %v4382
      %v4384 = vpop.f32.mrb[0].mxu0
      %4385 = vmatprep.mubr.bf16.mxu0 0
      %4386 = vmatmul.mubr.bf16.gmra.mrb[0].mxu0 %v3924
      %v4387 = vpop.f32.mrb[0].mxu0
      %v4388 = vadd.f32 0.0, %v4387
      %v4389 = vpop.f32.mrb[0].mxu0
      %v4390 = vpop.f32.mrb[0].mxu0
      %v4391 = vadd.f32 0.0, %v4390
      %v4392 = vpop.f32.mrb[0].mxu0
      %4393 = vmatprep.mubr.bf16.mxu0 0
      %4394 = vmatmul.mubr.bf16.gmra.mrb[0].mxu0 %v3927
      %v4395 = vpop.f32.mrb[0].mxu0
      %v4396 = vadd.f32 0.0, %v4395
      %v4397 = vpop.f32.mrb[0].mxu0
      %v4398 = vpop.f32.mrb[0].mxu0
      %v4399 = vadd.f32 0.0, %v4398
      %v4400 = vpop.f32.mrb[0].mxu0
      %4401 = vmatprep.mubr.bf16.mxu0 0
      %4402 = vmatmul.mubr.bf16.gmra.mrb[0].mxu0 %v3930
      %v4403 = vpop.f32.mrb[0].mxu0
      %v4404 = vadd.f32 0.0, %v4403
      %v4405 = vpop.f32.mrb[0].mxu0
      %v4406 = vpop.f32.mrb[0].mxu0
      %v4407 = vadd.f32 0.0, %v4406
      %v4408 = vpop.f32.mrb[0].mxu0
      %4409 = vmatprep.mubr.bf16.mxu0 0
      %4410 = vmatmul.mubr.bf16.gmra.mrb[0].mxu0 %v3933
      %v4411 = vpop.f32.mrb[0].mxu0
      %v4412 = vadd.f32 0.0, %v4411
      %v4413 = vpop.f32.mrb[0].mxu0
      %v4414 = vpop.f32.mrb[0].mxu0
      %v4415 = vadd.f32 0.0, %v4414
      %v4416 = vpop.f32.mrb[0].mxu0
      %4417 = vmatprep.mubr.bf16.mxu0 0
      %4418 = vmatmul.mubr.bf16.gmra.mrb[0].mxu0 %v3936
      %v4419 = vpop.f32.mrb[0].mxu0
      %v4420 = vadd.f32 0.0, %v4419
      %v4421 = vpop.f32.mrb[0].mxu0
      %v4422 = vpop.f32.mrb[0].mxu0
      %v4423 = vadd.f32 0.0, %v4422
      %v4424 = vpop.f32.mrb[0].mxu0
      %4425 = vmatprep.mubr.bf16.mxu0 0
      %4426 = vmatmul.mubr.bf16.gmra.mrb[0].mxu0 %v3939
      %v4427 = vpop.f32.mrb[0].mxu0
      %v4428 = vadd.f32 0.0, %v4427
      %v4429 = vpop.f32.mrb[0].mxu0
      %v4430 = vpop.f32.mrb[0].mxu0
      %v4431 = vadd.f32 0.0, %v4430
      %v4432 = vpop.f32.mrb[0].mxu0
      %4433 = vmatprep.mubr.bf16.mxu0 0
      %4434 = vmatmul.mubr.bf16.gmra.mrb[0].mxu0 %v3942
      %v4435 = vpop.f32.mrb[0].mxu0
      %v4436 = vadd.f32 0.0, %v4435
      %v4437 = vpop.f32.mrb[0].mxu0
      %v4438 = vpop.f32.mrb[0].mxu0
      %v4439 = vadd.f32 0.0, %v4438
      %v4440 = vpop.f32.mrb[0].mxu0
      %4441 = vmatprep.mubr.bf16.mxu0 0
      %4442 = vmatmul.mubr.bf16.gmra.mrb[0].mxu0 %v3945
      %v4443 = vpop.f32.mrb[0].mxu0
      %v4444 = vadd.f32 0.0, %v4443
      %v4445 = vpop.f32.mrb[0].mxu0
      %v4446 = vpop.f32.mrb[0].mxu0
      %v4447 = vadd.f32 0.0, %v4446
      %v4448 = vpop.f32.mrb[0].mxu0
      %4449 = vmatprep.mubr.bf16.mxu0 0
      %4450 = vmatmul.mubr.bf16.gmra.mrb[0].mxu0 %v3948
      %v4451 = vpop.f32.mrb[0].mxu0
      %v4452 = vadd.f32 0.0, %v4451
      %v4453 = vpop.f32.mrb[0].mxu0
      %v4454 = vpop.f32.mrb[0].mxu0
      %v4455 = vadd.f32 0.0, %v4454
      %v4456 = vpop.f32.mrb[0].mxu0
      %4457 = vmatprep.mubr.bf16.mxu0 0
      %4458 = vmatmul.mubr.bf16.gmra.mrb[0].mxu0 %v3951
      %v4459 = vpop.f32.mrb[0].mxu0
      %v4460 = vadd.f32 0.0, %v4459
      %v4461 = vpop.f32.mrb[0].mxu0
      %v4462 = vpop.f32.mrb[0].mxu0
      %v4463 = vadd.f32 0.0, %v4462
      %v4464 = vpop.f32.mrb[0].mxu0
      %4465 = vmatprep.mubr.bf16.mxu0 0
      %4466 = vmatmul.mubr.bf16.gmra.mrb[0].mxu0 %v3954
      %v4467 = vpop.f32.mrb[0].mxu0
      %v4468 = vadd.f32 0.0, %v4467
      %v4469 = vpop.f32.mrb[0].mxu0
      %v4470 = vpop.f32.mrb[0].mxu0
      %v4471 = vadd.f32 0.0, %v4470
      %v4472 = vpop.f32.mrb[0].mxu0
      %4473 = vmatprep.mubr.bf16.mxu0 0
      %4474 = vmatmul.mubr.bf16.gmra.mrb[0].mxu0 %v3957
      %v4475 = vpop.f32.mrb[0].mxu0
      %v4476 = vadd.f32 0.0, %v4475
      %v4477 = vpop.f32.mrb[0].mxu0
      %v4478 = vpop.f32.mrb[0].mxu0
      %v4479 = vadd.f32 0.0, %v4478
      %v4480 = vpop.f32.mrb[0].mxu0
      %4481 = vmatprep.mubr.bf16.mxu0 0
      %4482 = vmatmul.mubr.bf16.gmra.mrb[0].mxu0 %v3960
      %v4483 = vpop.f32.mrb[0].mxu0
      %v4484 = vadd.f32 0.0, %v4483
      %v4485 = vpop.f32.mrb[0].mxu0
      %v4486 = vpop.f32.mrb[0].mxu0
      %v4487 = vadd.f32 0.0, %v4486
      %v4488 = vpop.f32.mrb[0].mxu0
      %4489 = vmatprep.mubr.bf16.mxu0 0
      %4490 = vmatmul.mubr.bf16.gmra.mrb[0].mxu0 %v3963
      %v4491 = vpop.f32.mrb[0].mxu0
      %v4492 = vadd.f32 0.0, %v4491
      %v4493 = vpop.f32.mrb[0].mxu0
      %v4494 = vpop.f32.mrb[0].mxu0
      %v4495 = vadd.f32 0.0, %v4494
      %v4496 = vpop.f32.mrb[0].mxu0
      %4497 = vmatprep.mubr.bf16.mxu0 0
      %4498 = vmatmul.mubr.bf16.gmra.mrb[0].mxu0 %v3966
      %v4499 = vpop.f32.mrb[0].mxu0
      %v4500 = vadd.f32 0.0, %v4499
      %v4501 = vpop.f32.mrb[0].mxu0
      %v4502 = vpop.f32.mrb[0].mxu0
      %v4503 = vadd.f32 0.0, %v4502
      %v4504 = vpop.f32.mrb[0].mxu0
      %4505 = vmatprep.mubr.bf16.mxu0 0
      %4506 = vmatmul.mubr.bf16.gmra.mrb[0].mxu0 %v3969
      %v4507 = vpop.f32.mrb[0].mxu0
      %v4508 = vadd.f32 0.0, %v4507
      %v4509 = vpop.f32.mrb[0].mxu0
      %v4510 = vpop.f32.mrb[0].mxu0
      %v4511 = vadd.f32 0.0, %v4510
      %v4512 = vpop.f32.mrb[0].mxu0
      %4513 = vmatprep.mubr.bf16.mxu0 0
      %4514 = vmatmul.mubr.bf16.gmra.mrb[0].mxu0 %v3972
      %v4515 = vpop.f32.mrb[0].mxu0
      %v4516 = vadd.f32 0.0, %v4515
      %v4517 = vpop.f32.mrb[0].mxu0
      %v4518 = vpop.f32.mrb[0].mxu0
      %v4519 = vadd.f32 0.0, %v4518
      %v4520 = vpop.f32.mrb[0].mxu0
      %4521 = vdwg.mxu0
      %v4522 = vadd.f32 %v3030, %v4012
      %v4523 = vadd.f32 %v3033, %v4015
      %v4524 = vadd.f32 %v3038, %v4020
      %v4525 = vadd.f32 %v3041, %v4023
      %v4526 = vadd.f32 %v3046, %v4028
      %v4527 = vadd.f32 %v3049, %v4031
      %v4528 = vadd.f32 %v3054, %v4036
      %v4529 = vadd.f32 %v3057, %v4039
      %v4530 = vadd.f32 %v3062, %v4044
      %v4531 = vadd.f32 %v3065, %v4047
      %v4532 = vadd.f32 %v3070, %v4052
      %v4533 = vadd.f32 %v3073, %v4055
      %v4534 = vadd.f32 %v3078, %v4060
      %v4535 = vadd.f32 %v3081, %v4063
      %v4536 = vadd.f32 %v3086, %v4068
      %v4537 = vadd.f32 %v3089, %v4071
      %v4538 = vadd.f32 %v3094, %v4076
      %v4539 = vadd.f32 %v3097, %v4079
      %v4540 = vadd.f32 %v3102, %v4084
      %v4541 = vadd.f32 %v3105, %v4087
      %v4542 = vadd.f32 %v3110, %v4092
      %v4543 = vadd.f32 %v3113, %v4095
      %v4544 = vadd.f32 %v3118, %v4100
      %v4545 = vadd.f32 %v3121, %v4103
      %v4546 = vadd.f32 %v3126, %v4108
      %v4547 = vadd.f32 %v3129, %v4111
      %v4548 = vadd.f32 %v3134, %v4116
      %v4549 = vadd.f32 %v3137, %v4119
      %v4550 = vadd.f32 %v3142, %v4124
      %v4551 = vadd.f32 %v3145, %v4127
      %v4552 = vadd.f32 %v3150, %v4132
      %v4553 = vadd.f32 %v3153, %v4135
      %v4554 = vadd.f32 %v3158, %v4140
      %v4555 = vadd.f32 %v3161, %v4143
      %v4556 = vadd.f32 %v3166, %v4148
      %v4557 = vadd.f32 %v3169, %v4151
      %v4558 = vadd.f32 %v3174, %v4156
      %v4559 = vadd.f32 %v3177, %v4159
      %v4560 = vadd.f32 %v3182, %v4164
      %v4561 = vadd.f32 %v3185, %v4167
      %v4562 = vadd.f32 %v3190, %v4172
      %v4563 = vadd.f32 %v3193, %v4175
      %v4564 = vadd.f32 %v3198, %v4180
      %v4565 = vadd.f32 %v3201, %v4183
      %v4566 = vadd.f32 %v3206, %v4188
      %v4567 = vadd.f32 %v3209, %v4191
      %v4568 = vadd.f32 %v3214, %v4196
      %v4569 = vadd.f32 %v3217, %v4199
      %v4570 = vadd.f32 %v3222, %v4204
      %v4571 = vadd.f32 %v3225, %v4207
      %v4572 = vadd.f32 %v3230, %v4212
      %v4573 = vadd.f32 %v3233, %v4215
      %v4574 = vadd.f32 %v3238, %v4220
      %v4575 = vadd.f32 %v3241, %v4223
      %v4576 = vadd.f32 %v3246, %v4228
      %v4577 = vadd.f32 %v3249, %v4231
      %v4578 = vadd.f32 %v3254, %v4236
      %v4579 = vadd.f32 %v3257, %v4239
      %v4580 = vadd.f32 %v3262, %v4244
      %v4581 = vadd.f32 %v3265, %v4247
      %v4582 = vadd.f32 %v3270, %v4252
      %v4583 = vadd.f32 %v3273, %v4255
      %v4584 = vadd.f32 %v3278, %v4260
      %v4585 = vadd.f32 %v3281, %v4263
      %v4586 = vadd.f32 %v3286, %v4268
      %v4587 = vadd.f32 %v3289, %v4271
      %v4588 = vadd.f32 %v3294, %v4276
      %v4589 = vadd.f32 %v3297, %v4279
      %v4590 = vadd.f32 %v3302, %v4284
      %v4591 = vadd.f32 %v3305, %v4287
      %v4592 = vadd.f32 %v3310, %v4292
      %v4593 = vadd.f32 %v3313, %v4295
      %v4594 = vadd.f32 %v3318, %v4300
      %v4595 = vadd.f32 %v3321, %v4303
      %v4596 = vadd.f32 %v3326, %v4308
      %v4597 = vadd.f32 %v3329, %v4311
      %v4598 = vadd.f32 %v3334, %v4316
      %v4599 = vadd.f32 %v3337, %v4319
      %v4600 = vadd.f32 %v3342, %v4324
      %v4601 = vadd.f32 %v3345, %v4327
      %v4602 = vadd.f32 %v3350, %v4332
      %v4603 = vadd.f32 %v3353, %v4335
      %v4604 = vadd.f32 %v3358, %v4340
      %v4605 = vadd.f32 %v3361, %v4343
      %v4606 = vadd.f32 %v3366, %v4348
      %v4607 = vadd.f32 %v3369, %v4351
      %v4608 = vadd.f32 %v3374, %v4356
      %v4609 = vadd.f32 %v3377, %v4359
      %v4610 = vadd.f32 %v3382, %v4364
      %v4611 = vadd.f32 %v3385, %v4367
      %v4612 = vadd.f32 %v3390, %v4372
      %v4613 = vadd.f32 %v3393, %v4375
      %v4614 = vadd.f32 %v3398, %v4380
      %v4615 = vadd.f32 %v3401, %v4383
      %v4616 = vadd.f32 %v3406, %v4388
      %v4617 = vadd.f32 %v3409, %v4391
      %v4618 = vadd.f32 %v3414, %v4396
      %v4619 = vadd.f32 %v3417, %v4399
      %v4620 = vadd.f32 %v3422, %v4404
      %v4621 = vadd.f32 %v3425, %v4407
      %v4622 = vadd.f32 %v3430, %v4412
      %v4623 = vadd.f32 %v3433, %v4415
      %v4624 = vadd.f32 %v3438, %v4420
      %v4625 = vadd.f32 %v3441, %v4423
      %v4626 = vadd.f32 %v3446, %v4428
      %v4627 = vadd.f32 %v3449, %v4431
      %v4628 = vadd.f32 %v3454, %v4436
      %v4629 = vadd.f32 %v3457, %v4439
      %v4630 = vadd.f32 %v3462, %v4444
      %v4631 = vadd.f32 %v3465, %v4447
      %v4632 = vadd.f32 %v3470, %v4452
      %v4633 = vadd.f32 %v3473, %v4455
      %v4634 = vadd.f32 %v3478, %v4460
      %v4635 = vadd.f32 %v3481, %v4463
      %v4636 = vadd.f32 %v3486, %v4468
      %v4637 = vadd.f32 %v3489, %v4471
      %v4638 = vadd.f32 %v3494, %v4476
      %v4639 = vadd.f32 %v3497, %v4479
      %v4640 = vadd.f32 %v3502, %v4484
      %v4641 = vadd.f32 %v3505, %v4487
      %v4642 = vadd.f32 %v3510, %v4492
      %v4643 = vadd.f32 %v3513, %v4495
      %v4644 = vadd.f32 %v3518, %v4500
      %v4645 = vadd.f32 %v3521, %v4503
      %v4646 = vadd.f32 %v3526, %v4508
      %v4647 = vadd.f32 %v3529, %v4511
      %v4648 = vadd.f32 %v3534, %v4516
      %v4649 = vadd.f32 %v3537, %v4519
      %v4650 = vpack.i.b16 %v1427, %v1426
      %v4652 = vcombine.low %v4650, %v1428
      %v4654 = vunpack.c.l.s4 1966171168
      %v4655 = vunpack.c.0.s8 %v4654
      %v4656 = vlaneseq
      %v4657 = vshrl.u32 %v4656, 7
      %v4658 = vsub.s32 %v4655, %v4657
      %v4659 = vrot.slane %v4652, %v4658
      %v4661 = vunpack.c.l.s4 1966171168
      %v4662 = vunpack.c.0.s8 %v4661
      %v4663 = vlaneseq
      %v4664 = vshrl.u32 %v4663, 7
      %v4665 = vsub.s32 %v4662, %v4664
      %v4666 = vrot.slane %v4659, %v4665
      %v4668 = vsel %vm2102, %v1263, 0
      %v4671 = vsel %vm2102, %v1162, 0
      %v4674 = vand.u32 %v4666, %v2298
      %4676 = vmatprep.subr.bf16.mxu0 0
      %4677 = vmatpush1.bf16.msra.mxu0 %v4674
      %4678 = vmatprep.subr.bf16.mxu0 0
      %4679 = vmatpush1.bf16.msra.mxu0 0
      %4680 = vmatprep.subr.bf16.mxu0 0
      %4681 = vmatpush1.bf16.msra.mxu0 0
      %4682 = vmatprep.subr.bf16.mxu0 0
      %4683 = vmatpush1.bf16.msra.mxu0 0
      %4684 = vmatprep.subr.bf16.mxu0 0
      %4685 = vmatpush1.bf16.msra.mxu0 0
      %4686 = vmatprep.subr.bf16.mxu0 0
      %4687 = vmatpush1.bf16.msra.mxu0 0
      %4688 = vmatprep.subr.bf16.mxu0 0
      %4689 = vmatpush1.bf16.msra.mxu0 0
      %4690 = vmatprep.subr.bf16.mxu0 0
      %4691 = vmatpush1.bf16.msra.mxu0 0
      %4692 = vmatprep.subr.bf16.mxu0 0
      %4693 = vmatpush1.bf16.msra.mxu0 0
      %4694 = vmatprep.subr.bf16.mxu0 0
      %4695 = vmatpush1.bf16.msra.mxu0 0
      %4696 = vmatprep.subr.bf16.mxu0 0
      %4697 = vmatpush1.bf16.msra.mxu0 0
      %4698 = vmatprep.subr.bf16.mxu0 0
      %4699 = vmatpush1.bf16.msra.mxu0 0
      %4700 = vmatprep.subr.bf16.mxu0 0
      %4701 = vmatpush1.bf16.msra.mxu0 0
      %4702 = vmatprep.subr.bf16.mxu0 0
      %4703 = vmatpush1.bf16.msra.mxu0 0
      %4704 = vmatprep.subr.bf16.mxu0 0
      %4705 = vmatpush1.bf16.msra.mxu0 0
      %4706 = vmatprep.subr.bf16.mxu0 0
      %4707 = vmatpush1.bf16.msra.mxu0 0
      %4708 = vmatprep.mubr.bf16.mxu0 0
      %4709 = vmatmul.mubr.bf16.gmra.mrb[0].mxu0 %v2868
      %v4710 = vpop.f32.mrb[0].mxu0
      %v4711 = vadd.f32 0.0, %v4710
      %v4712 = vpop.f32.mrb[0].mxu0
      %v4713 = vpop.f32.mrb[0].mxu0
      %v4714 = vadd.f32 0.0, %v4713
      %v4715 = vpop.f32.mrb[0].mxu0
      %4716 = vmatprep.mubr.bf16.mxu0 0
      %4717 = vmatmul.mubr.bf16.gmra.mrb[0].mxu0 %v2870
      %v4718 = vpop.f32.mrb[0].mxu0
      %v4719 = vadd.f32 0.0, %v4718
      %v4720 = vpop.f32.mrb[0].mxu0
      %v4721 = vpop.f32.mrb[0].mxu0
      %v4722 = vadd.f32 0.0, %v4721
      %v4723 = vpop.f32.mrb[0].mxu0
      %4724 = vmatprep.mubr.bf16.mxu0 0
      %4725 = vmatmul.mubr.bf16.gmra.mrb[0].mxu0 %v2872
      %v4726 = vpop.f32.mrb[0].mxu0
      %v4727 = vadd.f32 0.0, %v4726
      %v4728 = vpop.f32.mrb[0].mxu0
      %v4729 = vpop.f32.mrb[0].mxu0
      %v4730 = vadd.f32 0.0, %v4729
      %v4731 = vpop.f32.mrb[0].mxu0
      %4732 = vmatprep.mubr.bf16.mxu0 0
      %4733 = vmatmul.mubr.bf16.gmra.mrb[0].mxu0 %v2874
      %v4734 = vpop.f32.mrb[0].mxu0
      %v4735 = vadd.f32 0.0, %v4734
      %v4736 = vpop.f32.mrb[0].mxu0
      %v4737 = vpop.f32.mrb[0].mxu0
      %v4738 = vadd.f32 0.0, %v4737
      %v4739 = vpop.f32.mrb[0].mxu0
      %4740 = vmatprep.mubr.bf16.mxu0 0
      %4741 = vmatmul.mubr.bf16.gmra.mrb[0].mxu0 %v2876
      %v4742 = vpop.f32.mrb[0].mxu0
      %v4743 = vadd.f32 0.0, %v4742
      %v4744 = vpop.f32.mrb[0].mxu0
      %v4745 = vpop.f32.mrb[0].mxu0
      %v4746 = vadd.f32 0.0, %v4745
      %v4747 = vpop.f32.mrb[0].mxu0
      %4748 = vmatprep.mubr.bf16.mxu0 0
      %4749 = vmatmul.mubr.bf16.gmra.mrb[0].mxu0 %v2878
      %v4750 = vpop.f32.mrb[0].mxu0
      %v4751 = vadd.f32 0.0, %v4750
      %v4752 = vpop.f32.mrb[0].mxu0
      %v4753 = vpop.f32.mrb[0].mxu0
      %v4754 = vadd.f32 0.0, %v4753
      %v4755 = vpop.f32.mrb[0].mxu0
      %4756 = vmatprep.mubr.bf16.mxu0 0
      %4757 = vmatmul.mubr.bf16.gmra.mrb[0].mxu0 %v2880
      %v4758 = vpop.f32.mrb[0].mxu0
      %v4759 = vadd.f32 0.0, %v4758
      %v4760 = vpop.f32.mrb[0].mxu0
      %v4761 = vpop.f32.mrb[0].mxu0
      %v4762 = vadd.f32 0.0, %v4761
      %v4763 = vpop.f32.mrb[0].mxu0
      %4764 = vmatprep.mubr.bf16.mxu0 0
      %4765 = vmatmul.mubr.bf16.gmra.mrb[0].mxu0 %v2882
      %v4766 = vpop.f32.mrb[0].mxu0
      %v4767 = vadd.f32 0.0, %v4766
      %v4768 = vpop.f32.mrb[0].mxu0
      %v4769 = vpop.f32.mrb[0].mxu0
      %v4770 = vadd.f32 0.0, %v4769
      %v4771 = vpop.f32.mrb[0].mxu0
      %4772 = vmatprep.mubr.bf16.mxu0 0
      %4773 = vmatmul.mubr.bf16.gmra.mrb[0].mxu0 %v2884
      %v4774 = vpop.f32.mrb[0].mxu0
      %v4775 = vadd.f32 0.0, %v4774
      %v4776 = vpop.f32.mrb[0].mxu0
      %v4777 = vpop.f32.mrb[0].mxu0
      %v4778 = vadd.f32 0.0, %v4777
      %v4779 = vpop.f32.mrb[0].mxu0
      %4780 = vmatprep.mubr.bf16.mxu0 0
      %4781 = vmatmul.mubr.bf16.gmra.mrb[0].mxu0 %v2886
      %v4782 = vpop.f32.mrb[0].mxu0
      %v4783 = vadd.f32 0.0, %v4782
      %v4784 = vpop.f32.mrb[0].mxu0
      %v4785 = vpop.f32.mrb[0].mxu0
      %v4786 = vadd.f32 0.0, %v4785
      %v4787 = vpop.f32.mrb[0].mxu0
      %4788 = vmatprep.mubr.bf16.mxu0 0
      %4789 = vmatmul.mubr.bf16.gmra.mrb[0].mxu0 %v2888
      %v4790 = vpop.f32.mrb[0].mxu0
      %v4791 = vadd.f32 0.0, %v4790
      %v4792 = vpop.f32.mrb[0].mxu0
      %v4793 = vpop.f32.mrb[0].mxu0
      %v4794 = vadd.f32 0.0, %v4793
      %v4795 = vpop.f32.mrb[0].mxu0
      %4796 = vmatprep.mubr.bf16.mxu0 0
      %4797 = vmatmul.mubr.bf16.gmra.mrb[0].mxu0 %v2890
      %v4798 = vpop.f32.mrb[0].mxu0
      %v4799 = vadd.f32 0.0, %v4798
      %v4800 = vpop.f32.mrb[0].mxu0
      %v4801 = vpop.f32.mrb[0].mxu0
      %v4802 = vadd.f32 0.0, %v4801
      %v4803 = vpop.f32.mrb[0].mxu0
      %4804 = vmatprep.mubr.bf16.mxu0 0
      %4805 = vmatmul.mubr.bf16.gmra.mrb[0].mxu0 %v2892
      %v4806 = vpop.f32.mrb[0].mxu0
      %v4807 = vadd.f32 0.0, %v4806
      %v4808 = vpop.f32.mrb[0].mxu0
      %v4809 = vpop.f32.mrb[0].mxu0
      %v4810 = vadd.f32 0.0, %v4809
      %v4811 = vpop.f32.mrb[0].mxu0
      %4812 = vmatprep.mubr.bf16.mxu0 0
      %4813 = vmatmul.mubr.bf16.gmra.mrb[0].mxu0 %v2894
      %v4814 = vpop.f32.mrb[0].mxu0
      %v4815 = vadd.f32 0.0, %v4814
      %v4816 = vpop.f32.mrb[0].mxu0
      %v4817 = vpop.f32.mrb[0].mxu0
      %v4818 = vadd.f32 0.0, %v4817
      %v4819 = vpop.f32.mrb[0].mxu0
      %4820 = vmatprep.mubr.bf16.mxu0 0
      %4821 = vmatmul.mubr.bf16.gmra.mrb[0].mxu0 %v2896
      %v4822 = vpop.f32.mrb[0].mxu0
      %v4823 = vadd.f32 0.0, %v4822
      %v4824 = vpop.f32.mrb[0].mxu0
      %v4825 = vpop.f32.mrb[0].mxu0
      %v4826 = vadd.f32 0.0, %v4825
      %v4827 = vpop.f32.mrb[0].mxu0
      %4828 = vmatprep.mubr.bf16.mxu0 0
      %4829 = vmatmul.mubr.bf16.gmra.mrb[0].mxu0 %v2898
      %v4830 = vpop.f32.mrb[0].mxu0
      %v4831 = vadd.f32 0.0, %v4830
      %v4832 = vpop.f32.mrb[0].mxu0
      %v4833 = vpop.f32.mrb[0].mxu0
      %v4834 = vadd.f32 0.0, %v4833
      %v4835 = vpop.f32.mrb[0].mxu0
      %4836 = vmatprep.mubr.bf16.mxu0 0
      %4837 = vmatmul.mubr.bf16.gmra.mrb[0].mxu0 %v2900
      %v4838 = vpop.f32.mrb[0].mxu0
      %v4839 = vadd.f32 0.0, %v4838
      %v4840 = vpop.f32.mrb[0].mxu0
      %v4841 = vpop.f32.mrb[0].mxu0
      %v4842 = vadd.f32 0.0, %v4841
      %v4843 = vpop.f32.mrb[0].mxu0
      %4844 = vmatprep.mubr.bf16.mxu0 0
      %4845 = vmatmul.mubr.bf16.gmra.mrb[0].mxu0 %v2902
      %v4846 = vpop.f32.mrb[0].mxu0
      %v4847 = vadd.f32 0.0, %v4846
      %v4848 = vpop.f32.mrb[0].mxu0
      %v4849 = vpop.f32.mrb[0].mxu0
      %v4850 = vadd.f32 0.0, %v4849
      %v4851 = vpop.f32.mrb[0].mxu0
      %4852 = vmatprep.mubr.bf16.mxu0 0
      %4853 = vmatmul.mubr.bf16.gmra.mrb[0].mxu0 %v2904
      %v4854 = vpop.f32.mrb[0].mxu0
      %v4855 = vadd.f32 0.0, %v4854
      %v4856 = vpop.f32.mrb[0].mxu0
      %v4857 = vpop.f32.mrb[0].mxu0
      %v4858 = vadd.f32 0.0, %v4857
      %v4859 = vpop.f32.mrb[0].mxu0
      %4860 = vmatprep.mubr.bf16.mxu0 0
      %4861 = vmatmul.mubr.bf16.gmra.mrb[0].mxu0 %v2906
      %v4862 = vpop.f32.mrb[0].mxu0
      %v4863 = vadd.f32 0.0, %v4862
      %v4864 = vpop.f32.mrb[0].mxu0
      %v4865 = vpop.f32.mrb[0].mxu0
      %v4866 = vadd.f32 0.0, %v4865
      %v4867 = vpop.f32.mrb[0].mxu0
      %4868 = vmatprep.mubr.bf16.mxu0 0
      %4869 = vmatmul.mubr.bf16.gmra.mrb[0].mxu0 %v2908
      %v4870 = vpop.f32.mrb[0].mxu0
      %v4871 = vadd.f32 0.0, %v4870
      %v4872 = vpop.f32.mrb[0].mxu0
      %v4873 = vpop.f32.mrb[0].mxu0
      %v4874 = vadd.f32 0.0, %v4873
      %v4875 = vpop.f32.mrb[0].mxu0
      %4876 = vmatprep.mubr.bf16.mxu0 0
      %4877 = vmatmul.mubr.bf16.gmra.mrb[0].mxu0 %v2910
      %v4878 = vpop.f32.mrb[0].mxu0
      %v4879 = vadd.f32 0.0, %v4878
      %v4880 = vpop.f32.mrb[0].mxu0
      %v4881 = vpop.f32.mrb[0].mxu0
      %v4882 = vadd.f32 0.0, %v4881
      %v4883 = vpop.f32.mrb[0].mxu0
      %4884 = vmatprep.mubr.bf16.mxu0 0
      %4885 = vmatmul.mubr.bf16.gmra.mrb[0].mxu0 %v2912
      %v4886 = vpop.f32.mrb[0].mxu0
      %v4887 = vadd.f32 0.0, %v4886
      %v4888 = vpop.f32.mrb[0].mxu0
      %v4889 = vpop.f32.mrb[0].mxu0
      %v4890 = vadd.f32 0.0, %v4889
      %v4891 = vpop.f32.mrb[0].mxu0
      %4892 = vmatprep.mubr.bf16.mxu0 0
      %4893 = vmatmul.mubr.bf16.gmra.mrb[0].mxu0 %v2914
      %v4894 = vpop.f32.mrb[0].mxu0
      %v4895 = vadd.f32 0.0, %v4894
      %v4896 = vpop.f32.mrb[0].mxu0
      %v4897 = vpop.f32.mrb[0].mxu0
      %v4898 = vadd.f32 0.0, %v4897
      %v4899 = vpop.f32.mrb[0].mxu0
      %4900 = vmatprep.mubr.bf16.mxu0 0
      %4901 = vmatmul.mubr.bf16.gmra.mrb[0].mxu0 %v2916
      %v4902 = vpop.f32.mrb[0].mxu0
      %v4903 = vadd.f32 0.0, %v4902
      %v4904 = vpop.f32.mrb[0].mxu0
      %v4905 = vpop.f32.mrb[0].mxu0
      %v4906 = vadd.f32 0.0, %v4905
      %v4907 = vpop.f32.mrb[0].mxu0
      %4908 = vmatprep.mubr.bf16.mxu0 0
      %4909 = vmatmul.mubr.bf16.gmra.mrb[0].mxu0 %v2918
      %v4910 = vpop.f32.mrb[0].mxu0
      %v4911 = vadd.f32 0.0, %v4910
      %v4912 = vpop.f32.mrb[0].mxu0
      %v4913 = vpop.f32.mrb[0].mxu0
      %v4914 = vadd.f32 0.0, %v4913
      %v4915 = vpop.f32.mrb[0].mxu0
      %4916 = vmatprep.mubr.bf16.mxu0 0
      %4917 = vmatmul.mubr.bf16.gmra.mrb[0].mxu0 %v2920
      %v4918 = vpop.f32.mrb[0].mxu0
      %v4919 = vadd.f32 0.0, %v4918
      %v4920 = vpop.f32.mrb[0].mxu0
      %v4921 = vpop.f32.mrb[0].mxu0
      %v4922 = vadd.f32 0.0, %v4921
      %v4923 = vpop.f32.mrb[0].mxu0
      %4924 = vmatprep.mubr.bf16.mxu0 0
      %4925 = vmatmul.mubr.bf16.gmra.mrb[0].mxu0 %v2922
      %v4926 = vpop.f32.mrb[0].mxu0
      %v4927 = vadd.f32 0.0, %v4926
      %v4928 = vpop.f32.mrb[0].mxu0
      %v4929 = vpop.f32.mrb[0].mxu0
      %v4930 = vadd.f32 0.0, %v4929
      %v4931 = vpop.f32.mrb[0].mxu0
      %4932 = vmatprep.mubr.bf16.mxu0 0
      %4933 = vmatmul.mubr.bf16.gmra.mrb[0].mxu0 %v2924
      %v4934 = vpop.f32.mrb[0].mxu0
      %v4935 = vadd.f32 0.0, %v4934
      %v4936 = vpop.f32.mrb[0].mxu0
      %v4937 = vpop.f32.mrb[0].mxu0
      %v4938 = vadd.f32 0.0, %v4937
      %v4939 = vpop.f32.mrb[0].mxu0
      %4940 = vmatprep.mubr.bf16.mxu0 0
      %4941 = vmatmul.mubr.bf16.gmra.mrb[0].mxu0 %v2926
      %v4942 = vpop.f32.mrb[0].mxu0
      %v4943 = vadd.f32 0.0, %v4942
      %v4944 = vpop.f32.mrb[0].mxu0
      %v4945 = vpop.f32.mrb[0].mxu0
      %v4946 = vadd.f32 0.0, %v4945
      %v4947 = vpop.f32.mrb[0].mxu0
      %4948 = vmatprep.mubr.bf16.mxu0 0
      %4949 = vmatmul.mubr.bf16.gmra.mrb[0].mxu0 %v2928
      %v4950 = vpop.f32.mrb[0].mxu0
      %v4951 = vadd.f32 0.0, %v4950
      %v4952 = vpop.f32.mrb[0].mxu0
      %v4953 = vpop.f32.mrb[0].mxu0
      %v4954 = vadd.f32 0.0, %v4953
      %v4955 = vpop.f32.mrb[0].mxu0
      %4956 = vmatprep.mubr.bf16.mxu0 0
      %4957 = vmatmul.mubr.bf16.gmra.mrb[0].mxu0 %v2930
      %v4958 = vpop.f32.mrb[0].mxu0
      %v4959 = vadd.f32 0.0, %v4958
      %v4960 = vpop.f32.mrb[0].mxu0
      %v4961 = vpop.f32.mrb[0].mxu0
      %v4962 = vadd.f32 0.0, %v4961
      %v4963 = vpop.f32.mrb[0].mxu0
      %4964 = vmatprep.mubr.bf16.mxu0 0
      %4965 = vmatmul.mubr.bf16.gmra.mrb[0].mxu0 %v2932
      %v4966 = vpop.f32.mrb[0].mxu0
      %v4967 = vadd.f32 0.0, %v4966
      %v4968 = vpop.f32.mrb[0].mxu0
      %v4969 = vpop.f32.mrb[0].mxu0
      %v4970 = vadd.f32 0.0, %v4969
      %v4971 = vpop.f32.mrb[0].mxu0
      %4972 = vmatprep.mubr.bf16.mxu0 0
      %4973 = vmatmul.mubr.bf16.gmra.mrb[0].mxu0 %v2934
      %v4974 = vpop.f32.mrb[0].mxu0
      %v4975 = vadd.f32 0.0, %v4974
      %v4976 = vpop.f32.mrb[0].mxu0
      %v4977 = vpop.f32.mrb[0].mxu0
      %v4978 = vadd.f32 0.0, %v4977
      %v4979 = vpop.f32.mrb[0].mxu0
      %4980 = vmatprep.mubr.bf16.mxu0 0
      %4981 = vmatmul.mubr.bf16.gmra.mrb[0].mxu0 %v2936
      %v4982 = vpop.f32.mrb[0].mxu0
      %v4983 = vadd.f32 0.0, %v4982
      %v4984 = vpop.f32.mrb[0].mxu0
      %v4985 = vpop.f32.mrb[0].mxu0
      %v4986 = vadd.f32 0.0, %v4985
      %v4987 = vpop.f32.mrb[0].mxu0
      %4988 = vmatprep.mubr.bf16.mxu0 0
      %4989 = vmatmul.mubr.bf16.gmra.mrb[0].mxu0 %v2938
      %v4990 = vpop.f32.mrb[0].mxu0
      %v4991 = vadd.f32 0.0, %v4990
      %v4992 = vpop.f32.mrb[0].mxu0
      %v4993 = vpop.f32.mrb[0].mxu0
      %v4994 = vadd.f32 0.0, %v4993
      %v4995 = vpop.f32.mrb[0].mxu0
      %4996 = vmatprep.mubr.bf16.mxu0 0
      %4997 = vmatmul.mubr.bf16.gmra.mrb[0].mxu0 %v2940
      %v4998 = vpop.f32.mrb[0].mxu0
      %v4999 = vadd.f32 0.0, %v4998
      %v5000 = vpop.f32.mrb[0].mxu0
      %v5001 = vpop.f32.mrb[0].mxu0
      %v5002 = vadd.f32 0.0, %v5001
      %v5003 = vpop.f32.mrb[0].mxu0
      %5004 = vmatprep.mubr.bf16.mxu0 0
      %5005 = vmatmul.mubr.bf16.gmra.mrb[0].mxu0 %v2942
      %v5006 = vpop.f32.mrb[0].mxu0
      %v5007 = vadd.f32 0.0, %v5006
      %v5008 = vpop.f32.mrb[0].mxu0
      %v5009 = vpop.f32.mrb[0].mxu0
      %v5010 = vadd.f32 0.0, %v5009
      %v5011 = vpop.f32.mrb[0].mxu0
      %5012 = vmatprep.mubr.bf16.mxu0 0
      %5013 = vmatmul.mubr.bf16.gmra.mrb[0].mxu0 %v2944
      %v5014 = vpop.f32.mrb[0].mxu0
      %v5015 = vadd.f32 0.0, %v5014
      %v5016 = vpop.f32.mrb[0].mxu0
      %v5017 = vpop.f32.mrb[0].mxu0
      %v5018 = vadd.f32 0.0, %v5017
      %v5019 = vpop.f32.mrb[0].mxu0
      %5020 = vmatprep.mubr.bf16.mxu0 0
      %5021 = vmatmul.mubr.bf16.gmra.mrb[0].mxu0 %v2946
      %v5022 = vpop.f32.mrb[0].mxu0
      %v5023 = vadd.f32 0.0, %v5022
      %v5024 = vpop.f32.mrb[0].mxu0
      %v5025 = vpop.f32.mrb[0].mxu0
      %v5026 = vadd.f32 0.0, %v5025
      %v5027 = vpop.f32.mrb[0].mxu0
      %5028 = vmatprep.mubr.bf16.mxu0 0
      %5029 = vmatmul.mubr.bf16.gmra.mrb[0].mxu0 %v2948
      %v5030 = vpop.f32.mrb[0].mxu0
      %v5031 = vadd.f32 0.0, %v5030
      %v5032 = vpop.f32.mrb[0].mxu0
      %v5033 = vpop.f32.mrb[0].mxu0
      %v5034 = vadd.f32 0.0, %v5033
      %v5035 = vpop.f32.mrb[0].mxu0
      %5036 = vmatprep.mubr.bf16.mxu0 0
      %5037 = vmatmul.mubr.bf16.gmra.mrb[0].mxu0 %v2950
      %v5038 = vpop.f32.mrb[0].mxu0
      %v5039 = vadd.f32 0.0, %v5038
      %v5040 = vpop.f32.mrb[0].mxu0
      %v5041 = vpop.f32.mrb[0].mxu0
      %v5042 = vadd.f32 0.0, %v5041
      %v5043 = vpop.f32.mrb[0].mxu0
      %5044 = vmatprep.mubr.bf16.mxu0 0
      %5045 = vmatmul.mubr.bf16.gmra.mrb[0].mxu0 %v2952
      %v5046 = vpop.f32.mrb[0].mxu0
      %v5047 = vadd.f32 0.0, %v5046
      %v5048 = vpop.f32.mrb[0].mxu0
      %v5049 = vpop.f32.mrb[0].mxu0
      %v5050 = vadd.f32 0.0, %v5049
      %v5051 = vpop.f32.mrb[0].mxu0
      %5052 = vmatprep.mubr.bf16.mxu0 0
      %5053 = vmatmul.mubr.bf16.gmra.mrb[0].mxu0 %v2954
      %v5054 = vpop.f32.mrb[0].mxu0
      %v5055 = vadd.f32 0.0, %v5054
      %v5056 = vpop.f32.mrb[0].mxu0
      %v5057 = vpop.f32.mrb[0].mxu0
      %v5058 = vadd.f32 0.0, %v5057
      %v5059 = vpop.f32.mrb[0].mxu0
      %5060 = vmatprep.mubr.bf16.mxu0 0
      %5061 = vmatmul.mubr.bf16.gmra.mrb[0].mxu0 %v2956
      %v5062 = vpop.f32.mrb[0].mxu0
      %v5063 = vadd.f32 0.0, %v5062
      %v5064 = vpop.f32.mrb[0].mxu0
      %v5065 = vpop.f32.mrb[0].mxu0
      %v5066 = vadd.f32 0.0, %v5065
      %v5067 = vpop.f32.mrb[0].mxu0
      %5068 = vmatprep.mubr.bf16.mxu0 0
      %5069 = vmatmul.mubr.bf16.gmra.mrb[0].mxu0 %v2958
      %v5070 = vpop.f32.mrb[0].mxu0
      %v5071 = vadd.f32 0.0, %v5070
      %v5072 = vpop.f32.mrb[0].mxu0
      %v5073 = vpop.f32.mrb[0].mxu0
      %v5074 = vadd.f32 0.0, %v5073
      %v5075 = vpop.f32.mrb[0].mxu0
      %5076 = vmatprep.mubr.bf16.mxu0 0
      %5077 = vmatmul.mubr.bf16.gmra.mrb[0].mxu0 %v2960
      %v5078 = vpop.f32.mrb[0].mxu0
      %v5079 = vadd.f32 0.0, %v5078
      %v5080 = vpop.f32.mrb[0].mxu0
      %v5081 = vpop.f32.mrb[0].mxu0
      %v5082 = vadd.f32 0.0, %v5081
      %v5083 = vpop.f32.mrb[0].mxu0
      %5084 = vmatprep.mubr.bf16.mxu0 0
      %5085 = vmatmul.mubr.bf16.gmra.mrb[0].mxu0 %v2962
      %v5086 = vpop.f32.mrb[0].mxu0
      %v5087 = vadd.f32 0.0, %v5086
      %v5088 = vpop.f32.mrb[0].mxu0
      %v5089 = vpop.f32.mrb[0].mxu0
      %v5090 = vadd.f32 0.0, %v5089
      %v5091 = vpop.f32.mrb[0].mxu0
      %5092 = vmatprep.mubr.bf16.mxu0 0
      %5093 = vmatmul.mubr.bf16.gmra.mrb[0].mxu0 %v2964
      %v5094 = vpop.f32.mrb[0].mxu0
      %v5095 = vadd.f32 0.0, %v5094
      %v5096 = vpop.f32.mrb[0].mxu0
      %v5097 = vpop.f32.mrb[0].mxu0
      %v5098 = vadd.f32 0.0, %v5097
      %v5099 = vpop.f32.mrb[0].mxu0
      %5100 = vmatprep.mubr.bf16.mxu0 0
      %5101 = vmatmul.mubr.bf16.gmra.mrb[0].mxu0 %v2966
      %v5102 = vpop.f32.mrb[0].mxu0
      %v5103 = vadd.f32 0.0, %v5102
      %v5104 = vpop.f32.mrb[0].mxu0
      %v5105 = vpop.f32.mrb[0].mxu0
      %v5106 = vadd.f32 0.0, %v5105
      %v5107 = vpop.f32.mrb[0].mxu0
      %5108 = vmatprep.mubr.bf16.mxu0 0
      %5109 = vmatmul.mubr.bf16.gmra.mrb[0].mxu0 %v2968
      %v5110 = vpop.f32.mrb[0].mxu0
      %v5111 = vadd.f32 0.0, %v5110
      %v5112 = vpop.f32.mrb[0].mxu0
      %v5113 = vpop.f32.mrb[0].mxu0
      %v5114 = vadd.f32 0.0, %v5113
      %v5115 = vpop.f32.mrb[0].mxu0
      %5116 = vmatprep.mubr.bf16.mxu0 0
      %5117 = vmatmul.mubr.bf16.gmra.mrb[0].mxu0 %v2970
      %v5118 = vpop.f32.mrb[0].mxu0
      %v5119 = vadd.f32 0.0, %v5118
      %v5120 = vpop.f32.mrb[0].mxu0
      %v5121 = vpop.f32.mrb[0].mxu0
      %v5122 = vadd.f32 0.0, %v5121
      %v5123 = vpop.f32.mrb[0].mxu0
      %5124 = vmatprep.mubr.bf16.mxu0 0
      %5125 = vmatmul.mubr.bf16.gmra.mrb[0].mxu0 %v2972
      %v5126 = vpop.f32.mrb[0].mxu0
      %v5127 = vadd.f32 0.0, %v5126
      %v5128 = vpop.f32.mrb[0].mxu0
      %v5129 = vpop.f32.mrb[0].mxu0
      %v5130 = vadd.f32 0.0, %v5129
      %v5131 = vpop.f32.mrb[0].mxu0
      %5132 = vmatprep.mubr.bf16.mxu0 0
      %5133 = vmatmul.mubr.bf16.gmra.mrb[0].mxu0 %v2974
      %v5134 = vpop.f32.mrb[0].mxu0
      %v5135 = vadd.f32 0.0, %v5134
      %v5136 = vpop.f32.mrb[0].mxu0
      %v5137 = vpop.f32.mrb[0].mxu0
      %v5138 = vadd.f32 0.0, %v5137
      %v5139 = vpop.f32.mrb[0].mxu0
      %5140 = vmatprep.mubr.bf16.mxu0 0
      %5141 = vmatmul.mubr.bf16.gmra.mrb[0].mxu0 %v2976
      %v5142 = vpop.f32.mrb[0].mxu0
      %v5143 = vadd.f32 0.0, %v5142
      %v5144 = vpop.f32.mrb[0].mxu0
      %v5145 = vpop.f32.mrb[0].mxu0
      %v5146 = vadd.f32 0.0, %v5145
      %v5147 = vpop.f32.mrb[0].mxu0
      %5148 = vmatprep.mubr.bf16.mxu0 0
      %5149 = vmatmul.mubr.bf16.gmra.mrb[0].mxu0 %v2978
      %v5150 = vpop.f32.mrb[0].mxu0
      %v5151 = vadd.f32 0.0, %v5150
      %v5152 = vpop.f32.mrb[0].mxu0
      %v5153 = vpop.f32.mrb[0].mxu0
      %v5154 = vadd.f32 0.0, %v5153
      %v5155 = vpop.f32.mrb[0].mxu0
      %5156 = vmatprep.mubr.bf16.mxu0 0
      %5157 = vmatmul.mubr.bf16.gmra.mrb[0].mxu0 %v2980
      %v5158 = vpop.f32.mrb[0].mxu0
      %v5159 = vadd.f32 0.0, %v5158
      %v5160 = vpop.f32.mrb[0].mxu0
      %v5161 = vpop.f32.mrb[0].mxu0
      %v5162 = vadd.f32 0.0, %v5161
      %v5163 = vpop.f32.mrb[0].mxu0
      %5164 = vmatprep.mubr.bf16.mxu0 0
      %5165 = vmatmul.mubr.bf16.gmra.mrb[0].mxu0 %v2982
      %v5166 = vpop.f32.mrb[0].mxu0
      %v5167 = vadd.f32 0.0, %v5166
      %v5168 = vpop.f32.mrb[0].mxu0
      %v5169 = vpop.f32.mrb[0].mxu0
      %v5170 = vadd.f32 0.0, %v5169
      %v5171 = vpop.f32.mrb[0].mxu0
      %5172 = vmatprep.mubr.bf16.mxu0 0
      %5173 = vmatmul.mubr.bf16.gmra.mrb[0].mxu0 %v2984
      %v5174 = vpop.f32.mrb[0].mxu0
      %v5175 = vadd.f32 0.0, %v5174
      %v5176 = vpop.f32.mrb[0].mxu0
      %v5177 = vpop.f32.mrb[0].mxu0
      %v5178 = vadd.f32 0.0, %v5177
      %v5179 = vpop.f32.mrb[0].mxu0
      %5180 = vmatprep.mubr.bf16.mxu0 0
      %5181 = vmatmul.mubr.bf16.gmra.mrb[0].mxu0 %v2986
      %v5182 = vpop.f32.mrb[0].mxu0
      %v5183 = vadd.f32 0.0, %v5182
      %v5184 = vpop.f32.mrb[0].mxu0
      %v5185 = vpop.f32.mrb[0].mxu0
      %v5186 = vadd.f32 0.0, %v5185
      %v5187 = vpop.f32.mrb[0].mxu0
      %5188 = vmatprep.mubr.bf16.mxu0 0
      %5189 = vmatmul.mubr.bf16.gmra.mrb[0].mxu0 %v2988
      %v5190 = vpop.f32.mrb[0].mxu0
      %v5191 = vadd.f32 0.0, %v5190
      %v5192 = vpop.f32.mrb[0].mxu0
      %v5193 = vpop.f32.mrb[0].mxu0
      %v5194 = vadd.f32 0.0, %v5193
      %v5195 = vpop.f32.mrb[0].mxu0
      %5196 = vmatprep.mubr.bf16.mxu0 0
      %5197 = vmatmul.mubr.bf16.gmra.mrb[0].mxu0 %v2990
      %v5198 = vpop.f32.mrb[0].mxu0
      %v5199 = vadd.f32 0.0, %v5198
      %v5200 = vpop.f32.mrb[0].mxu0
      %v5201 = vpop.f32.mrb[0].mxu0
      %v5202 = vadd.f32 0.0, %v5201
      %v5203 = vpop.f32.mrb[0].mxu0
      %5204 = vmatprep.mubr.bf16.mxu0 0
      %5205 = vmatmul.mubr.bf16.gmra.mrb[0].mxu0 %v4668
      %v5206 = vpop.f32.mrb[0].mxu0
      %v5207 = vadd.f32 0.0, %v5206
      %v5208 = vpop.f32.mrb[0].mxu0
      %v5209 = vpop.f32.mrb[0].mxu0
      %v5210 = vadd.f32 0.0, %v5209
      %v5211 = vpop.f32.mrb[0].mxu0
      %5212 = vmatprep.mubr.bf16.mxu0 0
      %5213 = vmatmul.mubr.bf16.gmra.mrb[0].mxu0 %v4671
      %v5214 = vpop.f32.mrb[0].mxu0
      %v5215 = vadd.f32 0.0, %v5214
      %v5216 = vpop.f32.mrb[0].mxu0
      %v5217 = vpop.f32.mrb[0].mxu0
      %v5218 = vadd.f32 0.0, %v5217
      %v5219 = vpop.f32.mrb[0].mxu0
      %5220 = vdwg.mxu0
      %v5221 = vadd.f32 %v4522, %v4711
      %v5222 = vadd.f32 %v4523, %v4714
      %v5223 = vadd.f32 %v4524, %v4719
      %v5224 = vadd.f32 %v4525, %v4722
      %v5225 = vadd.f32 %v4526, %v4727
      %v5226 = vadd.f32 %v4527, %v4730
      %v5227 = vadd.f32 %v4528, %v4735
      %v5228 = vadd.f32 %v4529, %v4738
      %v5229 = vadd.f32 %v4530, %v4743
      %v5230 = vadd.f32 %v4531, %v4746
      %v5231 = vadd.f32 %v4532, %v4751
      %v5232 = vadd.f32 %v4533, %v4754
      %v5233 = vadd.f32 %v4534, %v4759
      %v5234 = vadd.f32 %v4535, %v4762
      %v5235 = vadd.f32 %v4536, %v4767
      %v5236 = vadd.f32 %v4537, %v4770
      %v5237 = vadd.f32 %v4538, %v4775
      %v5238 = vadd.f32 %v4539, %v4778
      %v5239 = vadd.f32 %v4540, %v4783
      %v5240 = vadd.f32 %v4541, %v4786
      %v5241 = vadd.f32 %v4542, %v4791
      %v5242 = vadd.f32 %v4543, %v4794
      %v5243 = vadd.f32 %v4544, %v4799
      %v5244 = vadd.f32 %v4545, %v4802
      %v5245 = vadd.f32 %v4546, %v4807
      %v5246 = vadd.f32 %v4547, %v4810
      %v5247 = vadd.f32 %v4548, %v4815
      %v5248 = vadd.f32 %v4549, %v4818
      %v5249 = vadd.f32 %v4550, %v4823
      %v5250 = vadd.f32 %v4551, %v4826
      %v5251 = vadd.f32 %v4552, %v4831
      %v5252 = vadd.f32 %v4553, %v4834
      %v5253 = vadd.f32 %v4554, %v4839
      %v5254 = vadd.f32 %v4555, %v4842
      %v5255 = vadd.f32 %v4556, %v4847
      %v5256 = vadd.f32 %v4557, %v4850
      %v5257 = vadd.f32 %v4558, %v4855
      %v5258 = vadd.f32 %v4559, %v4858
      %v5259 = vadd.f32 %v4560, %v4863
      %v5260 = vadd.f32 %v4561, %v4866
      %v5261 = vadd.f32 %v4562, %v4871
      %v5262 = vadd.f32 %v4563, %v4874
      %v5263 = vadd.f32 %v4564, %v4879
      %v5264 = vadd.f32 %v4565, %v4882
      %v5265 = vadd.f32 %v4566, %v4887
      %v5266 = vadd.f32 %v4567, %v4890
      %v5267 = vadd.f32 %v4568, %v4895
      %v5268 = vadd.f32 %v4569, %v4898
      %v5269 = vadd.f32 %v4570, %v4903
      %v5270 = vadd.f32 %v4571, %v4906
      %v5271 = vadd.f32 %v4572, %v4911
      %v5272 = vadd.f32 %v4573, %v4914
      %v5273 = vadd.f32 %v4574, %v4919
      %v5274 = vadd.f32 %v4575, %v4922
      %v5275 = vadd.f32 %v4576, %v4927
      %v5276 = vadd.f32 %v4577, %v4930
      %v5277 = vadd.f32 %v4578, %v4935
      %v5278 = vadd.f32 %v4579, %v4938
      %v5279 = vadd.f32 %v4580, %v4943
      %v5280 = vadd.f32 %v4581, %v4946
      %v5281 = vadd.f32 %v4582, %v4951
      %v5282 = vadd.f32 %v4583, %v4954
      %v5283 = vadd.f32 %v4584, %v4959
      %v5284 = vadd.f32 %v4585, %v4962
      %v5285 = vadd.f32 %v4586, %v4967
      %v5286 = vadd.f32 %v4587, %v4970
      %v5287 = vadd.f32 %v4588, %v4975
      %v5288 = vadd.f32 %v4589, %v4978
      %v5289 = vadd.f32 %v4590, %v4983
      %v5290 = vadd.f32 %v4591, %v4986
      %v5291 = vadd.f32 %v4592, %v4991
      %v5292 = vadd.f32 %v4593, %v4994
      %v5293 = vadd.f32 %v4594, %v4999
      %v5294 = vadd.f32 %v4595, %v5002
      %v5295 = vadd.f32 %v4596, %v5007
      %v5296 = vadd.f32 %v4597, %v5010
      %v5297 = vadd.f32 %v4598, %v5015
      %v5298 = vadd.f32 %v4599, %v5018
      %v5299 = vadd.f32 %v4600, %v5023
      %v5300 = vadd.f32 %v4601, %v5026
      %v5301 = vadd.f32 %v4602, %v5031
      %v5302 = vadd.f32 %v4603, %v5034
      %v5303 = vadd.f32 %v4604, %v5039
      %v5304 = vadd.f32 %v4605, %v5042
      %v5305 = vadd.f32 %v4606, %v5047
      %v5306 = vadd.f32 %v4607, %v5050
      %v5307 = vadd.f32 %v4608, %v5055
      %v5308 = vadd.f32 %v4609, %v5058
      %v5309 = vadd.f32 %v4610, %v5063
      %v5310 = vadd.f32 %v4611, %v5066
      %v5311 = vadd.f32 %v4612, %v5071
      %v5312 = vadd.f32 %v4613, %v5074
      %v5313 = vadd.f32 %v4614, %v5079
      %v5314 = vadd.f32 %v4615, %v5082
      %v5315 = vadd.f32 %v4616, %v5087
      %v5316 = vadd.f32 %v4617, %v5090
      %v5317 = vadd.f32 %v4618, %v5095
      %v5318 = vadd.f32 %v4619, %v5098
      %v5319 = vadd.f32 %v4620, %v5103
      %v5320 = vadd.f32 %v4621, %v5106
      %v5321 = vadd.f32 %v4622, %v5111
      %v5322 = vadd.f32 %v4623, %v5114
      %v5323 = vadd.f32 %v4624, %v5119
      %v5324 = vadd.f32 %v4625, %v5122
      %v5325 = vadd.f32 %v4626, %v5127
      %v5326 = vadd.f32 %v4627, %v5130
      %v5327 = vadd.f32 %v4628, %v5135
      %v5328 = vadd.f32 %v4629, %v5138
      %v5329 = vadd.f32 %v4630, %v5143
      %v5330 = vadd.f32 %v4631, %v5146
      %v5331 = vadd.f32 %v4632, %v5151
      %v5332 = vadd.f32 %v4633, %v5154
      %v5333 = vadd.f32 %v4634, %v5159
      %v5334 = vadd.f32 %v4635, %v5162
      %v5335 = vadd.f32 %v4636, %v5167
      %v5336 = vadd.f32 %v4637, %v5170
      %v5337 = vadd.f32 %v4638, %v5175
      %v5338 = vadd.f32 %v4639, %v5178
      %v5339 = vadd.f32 %v4640, %v5183
      %v5340 = vadd.f32 %v4641, %v5186
      %v5341 = vadd.f32 %v4642, %v5191
      %v5342 = vadd.f32 %v4643, %v5194
      %v5343 = vadd.f32 %v4644, %v5199
      %v5344 = vadd.f32 %v4645, %v5202
      %v5345 = vadd.f32 %v4646, %v5207
      %v5346 = vadd.f32 %v4647, %v5210
      %v5347 = vadd.f32 %v4648, %v5215
      %v5348 = vadd.f32 %v4649, %v5218
      %v5349 = vshrl.u32 %v1263, 16
      %v5351 = vshll.u32 %v1263, 16
      %v5353 = vrot.slane %v5351, 1
      %v5354 = vor.u32 %v5349, %v5353
      %v5355 = vshll.u32 %v1162, 16
      %v5357 = vrot.slane %v5355, 1
      %v5358 = vsel %vm1444, %v5354, %v5357
      %v5359 = vshrl.u32 %v1162, 16
      %v5361 = vor.u32 %v5359, %v5357
      %v5363 = vshll.u32 %v1296, 16
      %v5365 = vrot.slane %v5363, 1
      %v5366 = vsel %vm1444, %v5361, %v5365
      %v5367 = vpack.i.b16 %v1430, %v1429
      %v5369 = vcombine.low %v5367, %v1431
      %v5371 = vunpack.c.l.s4 1966171168
      %v5372 = vunpack.c.0.s8 %v5371
      %v5373 = vlaneseq
      %v5374 = vshrl.u32 %v5373, 7
      %v5375 = vsub.s32 %v5372, %v5374
      %v5376 = vrot.slane %v5369, %v5375
      %v5378 = vunpack.c.l.s4 1966171168
      %v5379 = vunpack.c.0.s8 %v5378
      %v5380 = vlaneseq
      %v5381 = vshrl.u32 %v5380, 7
      %v5382 = vsub.s32 %v5379, %v5381
      %v5383 = vrot.slane %v5376, %v5382
      %v5385 = vsel %vm2102, %v5358, 0
      %v5388 = vsel %vm2102, %v5366, 0
      %v5391 = vand.u32 %v5383, %v2298
      %5393 = vmatprep.subr.bf16.mxu0 0
      %5394 = vmatpush1.bf16.msra.mxu0 %v5391
      %5395 = vmatprep.subr.bf16.mxu0 0
      %5396 = vmatpush1.bf16.msra.mxu0 0
      %5397 = vmatprep.subr.bf16.mxu0 0
      %5398 = vmatpush1.bf16.msra.mxu0 0
      %5399 = vmatprep.subr.bf16.mxu0 0
      %5400 = vmatpush1.bf16.msra.mxu0 0
      %5401 = vmatprep.subr.bf16.mxu0 0
      %5402 = vmatpush1.bf16.msra.mxu0 0
      %5403 = vmatprep.subr.bf16.mxu0 0
      %5404 = vmatpush1.bf16.msra.mxu0 0
      %5405 = vmatprep.subr.bf16.mxu0 0
      %5406 = vmatpush1.bf16.msra.mxu0 0
      %5407 = vmatprep.subr.bf16.mxu0 0
      %5408 = vmatpush1.bf16.msra.mxu0 0
      %5409 = vmatprep.subr.bf16.mxu0 0
      %5410 = vmatpush1.bf16.msra.mxu0 0
      %5411 = vmatprep.subr.bf16.mxu0 0
      %5412 = vmatpush1.bf16.msra.mxu0 0
      %5413 = vmatprep.subr.bf16.mxu0 0
      %5414 = vmatpush1.bf16.msra.mxu0 0
      %5415 = vmatprep.subr.bf16.mxu0 0
      %5416 = vmatpush1.bf16.msra.mxu0 0
      %5417 = vmatprep.subr.bf16.mxu0 0
      %5418 = vmatpush1.bf16.msra.mxu0 0
      %5419 = vmatprep.subr.bf16.mxu0 0
      %5420 = vmatpush1.bf16.msra.mxu0 0
      %5421 = vmatprep.subr.bf16.mxu0 0
      %5422 = vmatpush1.bf16.msra.mxu0 0
      %5423 = vmatprep.subr.bf16.mxu0 0
      %5424 = vmatpush1.bf16.msra.mxu0 0
      %5425 = vmatprep.mubr.bf16.mxu0 0
      %5426 = vmatmul.mubr.bf16.gmra.mrb[0].mxu0 %v2110
      %v5427 = vpop.f32.mrb[0].mxu0
      %v5428 = vadd.f32 0.0, %v5427
      %v5429 = vpop.f32.mrb[0].mxu0
      %v5430 = vpop.f32.mrb[0].mxu0
      %v5431 = vadd.f32 0.0, %v5430
      %v5432 = vpop.f32.mrb[0].mxu0
      %5433 = vmatprep.mubr.bf16.mxu0 0
      %5434 = vmatmul.mubr.bf16.gmra.mrb[0].mxu0 %v2113
      %v5435 = vpop.f32.mrb[0].mxu0
      %v5436 = vadd.f32 0.0, %v5435
      %v5437 = vpop.f32.mrb[0].mxu0
      %v5438 = vpop.f32.mrb[0].mxu0
      %v5439 = vadd.f32 0.0, %v5438
      %v5440 = vpop.f32.mrb[0].mxu0
      %5441 = vmatprep.mubr.bf16.mxu0 0
      %5442 = vmatmul.mubr.bf16.gmra.mrb[0].mxu0 %v2116
      %v5443 = vpop.f32.mrb[0].mxu0
      %v5444 = vadd.f32 0.0, %v5443
      %v5445 = vpop.f32.mrb[0].mxu0
      %v5446 = vpop.f32.mrb[0].mxu0
      %v5447 = vadd.f32 0.0, %v5446
      %v5448 = vpop.f32.mrb[0].mxu0
      %5449 = vmatprep.mubr.bf16.mxu0 0
      %5450 = vmatmul.mubr.bf16.gmra.mrb[0].mxu0 %v2119
      %v5451 = vpop.f32.mrb[0].mxu0
      %v5452 = vadd.f32 0.0, %v5451
      %v5453 = vpop.f32.mrb[0].mxu0
      %v5454 = vpop.f32.mrb[0].mxu0
      %v5455 = vadd.f32 0.0, %v5454
      %v5456 = vpop.f32.mrb[0].mxu0
      %5457 = vmatprep.mubr.bf16.mxu0 0
      %5458 = vmatmul.mubr.bf16.gmra.mrb[0].mxu0 %v2122
      %v5459 = vpop.f32.mrb[0].mxu0
      %v5460 = vadd.f32 0.0, %v5459
      %v5461 = vpop.f32.mrb[0].mxu0
      %v5462 = vpop.f32.mrb[0].mxu0
      %v5463 = vadd.f32 0.0, %v5462
      %v5464 = vpop.f32.mrb[0].mxu0
      %5465 = vmatprep.mubr.bf16.mxu0 0
      %5466 = vmatmul.mubr.bf16.gmra.mrb[0].mxu0 %v2125
      %v5467 = vpop.f32.mrb[0].mxu0
      %v5468 = vadd.f32 0.0, %v5467
      %v5469 = vpop.f32.mrb[0].mxu0
      %v5470 = vpop.f32.mrb[0].mxu0
      %v5471 = vadd.f32 0.0, %v5470
      %v5472 = vpop.f32.mrb[0].mxu0
      %5473 = vmatprep.mubr.bf16.mxu0 0
      %5474 = vmatmul.mubr.bf16.gmra.mrb[0].mxu0 %v2128
      %v5475 = vpop.f32.mrb[0].mxu0
      %v5476 = vadd.f32 0.0, %v5475
      %v5477 = vpop.f32.mrb[0].mxu0
      %v5478 = vpop.f32.mrb[0].mxu0
      %v5479 = vadd.f32 0.0, %v5478
      %v5480 = vpop.f32.mrb[0].mxu0
      %5481 = vmatprep.mubr.bf16.mxu0 0
      %5482 = vmatmul.mubr.bf16.gmra.mrb[0].mxu0 %v2131
      %v5483 = vpop.f32.mrb[0].mxu0
      %v5484 = vadd.f32 0.0, %v5483
      %v5485 = vpop.f32.mrb[0].mxu0
      %v5486 = vpop.f32.mrb[0].mxu0
      %v5487 = vadd.f32 0.0, %v5486
      %v5488 = vpop.f32.mrb[0].mxu0
      %5489 = vmatprep.mubr.bf16.mxu0 0
      %5490 = vmatmul.mubr.bf16.gmra.mrb[0].mxu0 %v2134
      %v5491 = vpop.f32.mrb[0].mxu0
      %v5492 = vadd.f32 0.0, %v5491
      %v5493 = vpop.f32.mrb[0].mxu0
      %v5494 = vpop.f32.mrb[0].mxu0
      %v5495 = vadd.f32 0.0, %v5494
      %v5496 = vpop.f32.mrb[0].mxu0
      %5497 = vmatprep.mubr.bf16.mxu0 0
      %5498 = vmatmul.mubr.bf16.gmra.mrb[0].mxu0 %v2137
      %v5499 = vpop.f32.mrb[0].mxu0
      %v5500 = vadd.f32 0.0, %v5499
      %v5501 = vpop.f32.mrb[0].mxu0
      %v5502 = vpop.f32.mrb[0].mxu0
      %v5503 = vadd.f32 0.0, %v5502
      %v5504 = vpop.f32.mrb[0].mxu0
      %5505 = vmatprep.mubr.bf16.mxu0 0
      %5506 = vmatmul.mubr.bf16.gmra.mrb[0].mxu0 %v2140
      %v5507 = vpop.f32.mrb[0].mxu0
      %v5508 = vadd.f32 0.0, %v5507
      %v5509 = vpop.f32.mrb[0].mxu0
      %v5510 = vpop.f32.mrb[0].mxu0
      %v5511 = vadd.f32 0.0, %v5510
      %v5512 = vpop.f32.mrb[0].mxu0
      %5513 = vmatprep.mubr.bf16.mxu0 0
      %5514 = vmatmul.mubr.bf16.gmra.mrb[0].mxu0 %v2143
      %v5515 = vpop.f32.mrb[0].mxu0
      %v5516 = vadd.f32 0.0, %v5515
      %v5517 = vpop.f32.mrb[0].mxu0
      %v5518 = vpop.f32.mrb[0].mxu0
      %v5519 = vadd.f32 0.0, %v5518
      %v5520 = vpop.f32.mrb[0].mxu0
      %5521 = vmatprep.mubr.bf16.mxu0 0
      %5522 = vmatmul.mubr.bf16.gmra.mrb[0].mxu0 %v2146
      %v5523 = vpop.f32.mrb[0].mxu0
      %v5524 = vadd.f32 0.0, %v5523
      %v5525 = vpop.f32.mrb[0].mxu0
      %v5526 = vpop.f32.mrb[0].mxu0
      %v5527 = vadd.f32 0.0, %v5526
      %v5528 = vpop.f32.mrb[0].mxu0
      %5529 = vmatprep.mubr.bf16.mxu0 0
      %5530 = vmatmul.mubr.bf16.gmra.mrb[0].mxu0 %v2149
      %v5531 = vpop.f32.mrb[0].mxu0
      %v5532 = vadd.f32 0.0, %v5531
      %v5533 = vpop.f32.mrb[0].mxu0
      %v5534 = vpop.f32.mrb[0].mxu0
      %v5535 = vadd.f32 0.0, %v5534
      %v5536 = vpop.f32.mrb[0].mxu0
      %5537 = vmatprep.mubr.bf16.mxu0 0
      %5538 = vmatmul.mubr.bf16.gmra.mrb[0].mxu0 %v2152
      %v5539 = vpop.f32.mrb[0].mxu0
      %v5540 = vadd.f32 0.0, %v5539
      %v5541 = vpop.f32.mrb[0].mxu0
      %v5542 = vpop.f32.mrb[0].mxu0
      %v5543 = vadd.f32 0.0, %v5542
      %v5544 = vpop.f32.mrb[0].mxu0
      %5545 = vmatprep.mubr.bf16.mxu0 0
      %5546 = vmatmul.mubr.bf16.gmra.mrb[0].mxu0 %v2155
      %v5547 = vpop.f32.mrb[0].mxu0
      %v5548 = vadd.f32 0.0, %v5547
      %v5549 = vpop.f32.mrb[0].mxu0
      %v5550 = vpop.f32.mrb[0].mxu0
      %v5551 = vadd.f32 0.0, %v5550
      %v5552 = vpop.f32.mrb[0].mxu0
      %5553 = vmatprep.mubr.bf16.mxu0 0
      %5554 = vmatmul.mubr.bf16.gmra.mrb[0].mxu0 %v2158
      %v5555 = vpop.f32.mrb[0].mxu0
      %v5556 = vadd.f32 0.0, %v5555
      %v5557 = vpop.f32.mrb[0].mxu0
      %v5558 = vpop.f32.mrb[0].mxu0
      %v5559 = vadd.f32 0.0, %v5558
      %v5560 = vpop.f32.mrb[0].mxu0
      %5561 = vmatprep.mubr.bf16.mxu0 0
      %5562 = vmatmul.mubr.bf16.gmra.mrb[0].mxu0 %v2161
      %v5563 = vpop.f32.mrb[0].mxu0
      %v5564 = vadd.f32 0.0, %v5563
      %v5565 = vpop.f32.mrb[0].mxu0
      %v5566 = vpop.f32.mrb[0].mxu0
      %v5567 = vadd.f32 0.0, %v5566
      %v5568 = vpop.f32.mrb[0].mxu0
      %5569 = vmatprep.mubr.bf16.mxu0 0
      %5570 = vmatmul.mubr.bf16.gmra.mrb[0].mxu0 %v2164
      %v5571 = vpop.f32.mrb[0].mxu0
      %v5572 = vadd.f32 0.0, %v5571
      %v5573 = vpop.f32.mrb[0].mxu0
      %v5574 = vpop.f32.mrb[0].mxu0
      %v5575 = vadd.f32 0.0, %v5574
      %v5576 = vpop.f32.mrb[0].mxu0
      %5577 = vmatprep.mubr.bf16.mxu0 0
      %5578 = vmatmul.mubr.bf16.gmra.mrb[0].mxu0 %v2167
      %v5579 = vpop.f32.mrb[0].mxu0
      %v5580 = vadd.f32 0.0, %v5579
      %v5581 = vpop.f32.mrb[0].mxu0
      %v5582 = vpop.f32.mrb[0].mxu0
      %v5583 = vadd.f32 0.0, %v5582
      %v5584 = vpop.f32.mrb[0].mxu0
      %5585 = vmatprep.mubr.bf16.mxu0 0
      %5586 = vmatmul.mubr.bf16.gmra.mrb[0].mxu0 %v2170
      %v5587 = vpop.f32.mrb[0].mxu0
      %v5588 = vadd.f32 0.0, %v5587
      %v5589 = vpop.f32.mrb[0].mxu0
      %v5590 = vpop.f32.mrb[0].mxu0
      %v5591 = vadd.f32 0.0, %v5590
      %v5592 = vpop.f32.mrb[0].mxu0
      %5593 = vmatprep.mubr.bf16.mxu0 0
      %5594 = vmatmul.mubr.bf16.gmra.mrb[0].mxu0 %v2173
      %v5595 = vpop.f32.mrb[0].mxu0
      %v5596 = vadd.f32 0.0, %v5595
      %v5597 = vpop.f32.mrb[0].mxu0
      %v5598 = vpop.f32.mrb[0].mxu0
      %v5599 = vadd.f32 0.0, %v5598
      %v5600 = vpop.f32.mrb[0].mxu0
      %5601 = vmatprep.mubr.bf16.mxu0 0
      %5602 = vmatmul.mubr.bf16.gmra.mrb[0].mxu0 %v2176
      %v5603 = vpop.f32.mrb[0].mxu0
      %v5604 = vadd.f32 0.0, %v5603
      %v5605 = vpop.f32.mrb[0].mxu0
      %v5606 = vpop.f32.mrb[0].mxu0
      %v5607 = vadd.f32 0.0, %v5606
      %v5608 = vpop.f32.mrb[0].mxu0
      %5609 = vmatprep.mubr.bf16.mxu0 0
      %5610 = vmatmul.mubr.bf16.gmra.mrb[0].mxu0 %v2179
      %v5611 = vpop.f32.mrb[0].mxu0
      %v5612 = vadd.f32 0.0, %v5611
      %v5613 = vpop.f32.mrb[0].mxu0
      %v5614 = vpop.f32.mrb[0].mxu0
      %v5615 = vadd.f32 0.0, %v5614
      %v5616 = vpop.f32.mrb[0].mxu0
      %5617 = vmatprep.mubr.bf16.mxu0 0
      %5618 = vmatmul.mubr.bf16.gmra.mrb[0].mxu0 %v2182
      %v5619 = vpop.f32.mrb[0].mxu0
      %v5620 = vadd.f32 0.0, %v5619
      %v5621 = vpop.f32.mrb[0].mxu0
      %v5622 = vpop.f32.mrb[0].mxu0
      %v5623 = vadd.f32 0.0, %v5622
      %v5624 = vpop.f32.mrb[0].mxu0
      %5625 = vmatprep.mubr.bf16.mxu0 0
      %5626 = vmatmul.mubr.bf16.gmra.mrb[0].mxu0 %v2185
      %v5627 = vpop.f32.mrb[0].mxu0
      %v5628 = vadd.f32 0.0, %v5627
      %v5629 = vpop.f32.mrb[0].mxu0
      %v5630 = vpop.f32.mrb[0].mxu0
      %v5631 = vadd.f32 0.0, %v5630
      %v5632 = vpop.f32.mrb[0].mxu0
      %5633 = vmatprep.mubr.bf16.mxu0 0
      %5634 = vmatmul.mubr.bf16.gmra.mrb[0].mxu0 %v2188
      %v5635 = vpop.f32.mrb[0].mxu0
      %v5636 = vadd.f32 0.0, %v5635
      %v5637 = vpop.f32.mrb[0].mxu0
      %v5638 = vpop.f32.mrb[0].mxu0
      %v5639 = vadd.f32 0.0, %v5638
      %v5640 = vpop.f32.mrb[0].mxu0
      %5641 = vmatprep.mubr.bf16.mxu0 0
      %5642 = vmatmul.mubr.bf16.gmra.mrb[0].mxu0 %v2191
      %v5643 = vpop.f32.mrb[0].mxu0
      %v5644 = vadd.f32 0.0, %v5643
      %v5645 = vpop.f32.mrb[0].mxu0
      %v5646 = vpop.f32.mrb[0].mxu0
      %v5647 = vadd.f32 0.0, %v5646
      %v5648 = vpop.f32.mrb[0].mxu0
      %5649 = vmatprep.mubr.bf16.mxu0 0
      %5650 = vmatmul.mubr.bf16.gmra.mrb[0].mxu0 %v2194
      %v5651 = vpop.f32.mrb[0].mxu0
      %v5652 = vadd.f32 0.0, %v5651
      %v5653 = vpop.f32.mrb[0].mxu0
      %v5654 = vpop.f32.mrb[0].mxu0
      %v5655 = vadd.f32 0.0, %v5654
      %v5656 = vpop.f32.mrb[0].mxu0
      %5657 = vmatprep.mubr.bf16.mxu0 0
      %5658 = vmatmul.mubr.bf16.gmra.mrb[0].mxu0 %v2197
      %v5659 = vpop.f32.mrb[0].mxu0
      %v5660 = vadd.f32 0.0, %v5659
      %v5661 = vpop.f32.mrb[0].mxu0
      %v5662 = vpop.f32.mrb[0].mxu0
      %v5663 = vadd.f32 0.0, %v5662
      %v5664 = vpop.f32.mrb[0].mxu0
      %5665 = vmatprep.mubr.bf16.mxu0 0
      %5666 = vmatmul.mubr.bf16.gmra.mrb[0].mxu0 %v2200
      %v5667 = vpop.f32.mrb[0].mxu0
      %v5668 = vadd.f32 0.0, %v5667
      %v5669 = vpop.f32.mrb[0].mxu0
      %v5670 = vpop.f32.mrb[0].mxu0
      %v5671 = vadd.f32 0.0, %v5670
      %v5672 = vpop.f32.mrb[0].mxu0
      %5673 = vmatprep.mubr.bf16.mxu0 0
      %5674 = vmatmul.mubr.bf16.gmra.mrb[0].mxu0 %v2203
      %v5675 = vpop.f32.mrb[0].mxu0
      %v5676 = vadd.f32 0.0, %v5675
      %v5677 = vpop.f32.mrb[0].mxu0
      %v5678 = vpop.f32.mrb[0].mxu0
      %v5679 = vadd.f32 0.0, %v5678
      %v5680 = vpop.f32.mrb[0].mxu0
      %5681 = vmatprep.mubr.bf16.mxu0 0
      %5682 = vmatmul.mubr.bf16.gmra.mrb[0].mxu0 %v2206
      %v5683 = vpop.f32.mrb[0].mxu0
      %v5684 = vadd.f32 0.0, %v5683
      %v5685 = vpop.f32.mrb[0].mxu0
      %v5686 = vpop.f32.mrb[0].mxu0
      %v5687 = vadd.f32 0.0, %v5686
      %v5688 = vpop.f32.mrb[0].mxu0
      %5689 = vmatprep.mubr.bf16.mxu0 0
      %5690 = vmatmul.mubr.bf16.gmra.mrb[0].mxu0 %v2209
      %v5691 = vpop.f32.mrb[0].mxu0
      %v5692 = vadd.f32 0.0, %v5691
      %v5693 = vpop.f32.mrb[0].mxu0
      %v5694 = vpop.f32.mrb[0].mxu0
      %v5695 = vadd.f32 0.0, %v5694
      %v5696 = vpop.f32.mrb[0].mxu0
      %5697 = vmatprep.mubr.bf16.mxu0 0
      %5698 = vmatmul.mubr.bf16.gmra.mrb[0].mxu0 %v2212
      %v5699 = vpop.f32.mrb[0].mxu0
      %v5700 = vadd.f32 0.0, %v5699
      %v5701 = vpop.f32.mrb[0].mxu0
      %v5702 = vpop.f32.mrb[0].mxu0
      %v5703 = vadd.f32 0.0, %v5702
      %v5704 = vpop.f32.mrb[0].mxu0
      %5705 = vmatprep.mubr.bf16.mxu0 0
      %5706 = vmatmul.mubr.bf16.gmra.mrb[0].mxu0 %v2215
      %v5707 = vpop.f32.mrb[0].mxu0
      %v5708 = vadd.f32 0.0, %v5707
      %v5709 = vpop.f32.mrb[0].mxu0
      %v5710 = vpop.f32.mrb[0].mxu0
      %v5711 = vadd.f32 0.0, %v5710
      %v5712 = vpop.f32.mrb[0].mxu0
      %5713 = vmatprep.mubr.bf16.mxu0 0
      %5714 = vmatmul.mubr.bf16.gmra.mrb[0].mxu0 %v2218
      %v5715 = vpop.f32.mrb[0].mxu0
      %v5716 = vadd.f32 0.0, %v5715
      %v5717 = vpop.f32.mrb[0].mxu0
      %v5718 = vpop.f32.mrb[0].mxu0
      %v5719 = vadd.f32 0.0, %v5718
      %v5720 = vpop.f32.mrb[0].mxu0
      %5721 = vmatprep.mubr.bf16.mxu0 0
      %5722 = vmatmul.mubr.bf16.gmra.mrb[0].mxu0 %v2221
      %v5723 = vpop.f32.mrb[0].mxu0
      %v5724 = vadd.f32 0.0, %v5723
      %v5725 = vpop.f32.mrb[0].mxu0
      %v5726 = vpop.f32.mrb[0].mxu0
      %v5727 = vadd.f32 0.0, %v5726
      %v5728 = vpop.f32.mrb[0].mxu0
      %5729 = vmatprep.mubr.bf16.mxu0 0
      %5730 = vmatmul.mubr.bf16.gmra.mrb[0].mxu0 %v2224
      %v5731 = vpop.f32.mrb[0].mxu0
      %v5732 = vadd.f32 0.0, %v5731
      %v5733 = vpop.f32.mrb[0].mxu0
      %v5734 = vpop.f32.mrb[0].mxu0
      %v5735 = vadd.f32 0.0, %v5734
      %v5736 = vpop.f32.mrb[0].mxu0
      %5737 = vmatprep.mubr.bf16.mxu0 0
      %5738 = vmatmul.mubr.bf16.gmra.mrb[0].mxu0 %v2227
      %v5739 = vpop.f32.mrb[0].mxu0
      %v5740 = vadd.f32 0.0, %v5739
      %v5741 = vpop.f32.mrb[0].mxu0
      %v5742 = vpop.f32.mrb[0].mxu0
      %v5743 = vadd.f32 0.0, %v5742
      %v5744 = vpop.f32.mrb[0].mxu0
      %5745 = vmatprep.mubr.bf16.mxu0 0
      %5746 = vmatmul.mubr.bf16.gmra.mrb[0].mxu0 %v2230
      %v5747 = vpop.f32.mrb[0].mxu0
      %v5748 = vadd.f32 0.0, %v5747
      %v5749 = vpop.f32.mrb[0].mxu0
      %v5750 = vpop.f32.mrb[0].mxu0
      %v5751 = vadd.f32 0.0, %v5750
      %v5752 = vpop.f32.mrb[0].mxu0
      %5753 = vmatprep.mubr.bf16.mxu0 0
      %5754 = vmatmul.mubr.bf16.gmra.mrb[0].mxu0 %v2233
      %v5755 = vpop.f32.mrb[0].mxu0
      %v5756 = vadd.f32 0.0, %v5755
      %v5757 = vpop.f32.mrb[0].mxu0
      %v5758 = vpop.f32.mrb[0].mxu0
      %v5759 = vadd.f32 0.0, %v5758
      %v5760 = vpop.f32.mrb[0].mxu0
      %5761 = vmatprep.mubr.bf16.mxu0 0
      %5762 = vmatmul.mubr.bf16.gmra.mrb[0].mxu0 %v2236
      %v5763 = vpop.f32.mrb[0].mxu0
      %v5764 = vadd.f32 0.0, %v5763
      %v5765 = vpop.f32.mrb[0].mxu0
      %v5766 = vpop.f32.mrb[0].mxu0
      %v5767 = vadd.f32 0.0, %v5766
      %v5768 = vpop.f32.mrb[0].mxu0
      %5769 = vmatprep.mubr.bf16.mxu0 0
      %5770 = vmatmul.mubr.bf16.gmra.mrb[0].mxu0 %v2239
      %v5771 = vpop.f32.mrb[0].mxu0
      %v5772 = vadd.f32 0.0, %v5771
      %v5773 = vpop.f32.mrb[0].mxu0
      %v5774 = vpop.f32.mrb[0].mxu0
      %v5775 = vadd.f32 0.0, %v5774
      %v5776 = vpop.f32.mrb[0].mxu0
      %5777 = vmatprep.mubr.bf16.mxu0 0
      %5778 = vmatmul.mubr.bf16.gmra.mrb[0].mxu0 %v2242
      %v5779 = vpop.f32.mrb[0].mxu0
      %v5780 = vadd.f32 0.0, %v5779
      %v5781 = vpop.f32.mrb[0].mxu0
      %v5782 = vpop.f32.mrb[0].mxu0
      %v5783 = vadd.f32 0.0, %v5782
      %v5784 = vpop.f32.mrb[0].mxu0
      %5785 = vmatprep.mubr.bf16.mxu0 0
      %5786 = vmatmul.mubr.bf16.gmra.mrb[0].mxu0 %v2245
      %v5787 = vpop.f32.mrb[0].mxu0
      %v5788 = vadd.f32 0.0, %v5787
      %v5789 = vpop.f32.mrb[0].mxu0
      %v5790 = vpop.f32.mrb[0].mxu0
      %v5791 = vadd.f32 0.0, %v5790
      %v5792 = vpop.f32.mrb[0].mxu0
      %5793 = vmatprep.mubr.bf16.mxu0 0
      %5794 = vmatmul.mubr.bf16.gmra.mrb[0].mxu0 %v2248
      %v5795 = vpop.f32.mrb[0].mxu0
      %v5796 = vadd.f32 0.0, %v5795
      %v5797 = vpop.f32.mrb[0].mxu0
      %v5798 = vpop.f32.mrb[0].mxu0
      %v5799 = vadd.f32 0.0, %v5798
      %v5800 = vpop.f32.mrb[0].mxu0
      %5801 = vmatprep.mubr.bf16.mxu0 0
      %5802 = vmatmul.mubr.bf16.gmra.mrb[0].mxu0 %v2251
      %v5803 = vpop.f32.mrb[0].mxu0
      %v5804 = vadd.f32 0.0, %v5803
      %v5805 = vpop.f32.mrb[0].mxu0
      %v5806 = vpop.f32.mrb[0].mxu0
      %v5807 = vadd.f32 0.0, %v5806
      %v5808 = vpop.f32.mrb[0].mxu0
      %5809 = vmatprep.mubr.bf16.mxu0 0
      %5810 = vmatmul.mubr.bf16.gmra.mrb[0].mxu0 %v2254
      %v5811 = vpop.f32.mrb[0].mxu0
      %v5812 = vadd.f32 0.0, %v5811
      %v5813 = vpop.f32.mrb[0].mxu0
      %v5814 = vpop.f32.mrb[0].mxu0
      %v5815 = vadd.f32 0.0, %v5814
      %v5816 = vpop.f32.mrb[0].mxu0
      %5817 = vmatprep.mubr.bf16.mxu0 0
      %5818 = vmatmul.mubr.bf16.gmra.mrb[0].mxu0 %v2257
      %v5819 = vpop.f32.mrb[0].mxu0
      %v5820 = vadd.f32 0.0, %v5819
      %v5821 = vpop.f32.mrb[0].mxu0
      %v5822 = vpop.f32.mrb[0].mxu0
      %v5823 = vadd.f32 0.0, %v5822
      %v5824 = vpop.f32.mrb[0].mxu0
      %5825 = vmatprep.mubr.bf16.mxu0 0
      %5826 = vmatmul.mubr.bf16.gmra.mrb[0].mxu0 %v2260
      %v5827 = vpop.f32.mrb[0].mxu0
      %v5828 = vadd.f32 0.0, %v5827
      %v5829 = vpop.f32.mrb[0].mxu0
      %v5830 = vpop.f32.mrb[0].mxu0
      %v5831 = vadd.f32 0.0, %v5830
      %v5832 = vpop.f32.mrb[0].mxu0
      %5833 = vmatprep.mubr.bf16.mxu0 0
      %5834 = vmatmul.mubr.bf16.gmra.mrb[0].mxu0 %v2263
      %v5835 = vpop.f32.mrb[0].mxu0
      %v5836 = vadd.f32 0.0, %v5835
      %v5837 = vpop.f32.mrb[0].mxu0
      %v5838 = vpop.f32.mrb[0].mxu0
      %v5839 = vadd.f32 0.0, %v5838
      %v5840 = vpop.f32.mrb[0].mxu0
      %5841 = vmatprep.mubr.bf16.mxu0 0
      %5842 = vmatmul.mubr.bf16.gmra.mrb[0].mxu0 %v2266
      %v5843 = vpop.f32.mrb[0].mxu0
      %v5844 = vadd.f32 0.0, %v5843
      %v5845 = vpop.f32.mrb[0].mxu0
      %v5846 = vpop.f32.mrb[0].mxu0
      %v5847 = vadd.f32 0.0, %v5846
      %v5848 = vpop.f32.mrb[0].mxu0
      %5849 = vmatprep.mubr.bf16.mxu0 0
      %5850 = vmatmul.mubr.bf16.gmra.mrb[0].mxu0 %v2269
      %v5851 = vpop.f32.mrb[0].mxu0
      %v5852 = vadd.f32 0.0, %v5851
      %v5853 = vpop.f32.mrb[0].mxu0
      %v5854 = vpop.f32.mrb[0].mxu0
      %v5855 = vadd.f32 0.0, %v5854
      %v5856 = vpop.f32.mrb[0].mxu0
      %5857 = vmatprep.mubr.bf16.mxu0 0
      %5858 = vmatmul.mubr.bf16.gmra.mrb[0].mxu0 %v2272
      %v5859 = vpop.f32.mrb[0].mxu0
      %v5860 = vadd.f32 0.0, %v5859
      %v5861 = vpop.f32.mrb[0].mxu0
      %v5862 = vpop.f32.mrb[0].mxu0
      %v5863 = vadd.f32 0.0, %v5862
      %v5864 = vpop.f32.mrb[0].mxu0
      %5865 = vmatprep.mubr.bf16.mxu0 0
      %5866 = vmatmul.mubr.bf16.gmra.mrb[0].mxu0 %v2275
      %v5867 = vpop.f32.mrb[0].mxu0
      %v5868 = vadd.f32 0.0, %v5867
      %v5869 = vpop.f32.mrb[0].mxu0
      %v5870 = vpop.f32.mrb[0].mxu0
      %v5871 = vadd.f32 0.0, %v5870
      %v5872 = vpop.f32.mrb[0].mxu0
      %5873 = vmatprep.mubr.bf16.mxu0 0
      %5874 = vmatmul.mubr.bf16.gmra.mrb[0].mxu0 %v2278
      %v5875 = vpop.f32.mrb[0].mxu0
      %v5876 = vadd.f32 0.0, %v5875
      %v5877 = vpop.f32.mrb[0].mxu0
      %v5878 = vpop.f32.mrb[0].mxu0
      %v5879 = vadd.f32 0.0, %v5878
      %v5880 = vpop.f32.mrb[0].mxu0
      %5881 = vmatprep.mubr.bf16.mxu0 0
      %5882 = vmatmul.mubr.bf16.gmra.mrb[0].mxu0 %v2281
      %v5883 = vpop.f32.mrb[0].mxu0
      %v5884 = vadd.f32 0.0, %v5883
      %v5885 = vpop.f32.mrb[0].mxu0
      %v5886 = vpop.f32.mrb[0].mxu0
      %v5887 = vadd.f32 0.0, %v5886
      %v5888 = vpop.f32.mrb[0].mxu0
      %5889 = vmatprep.mubr.bf16.mxu0 0
      %5890 = vmatmul.mubr.bf16.gmra.mrb[0].mxu0 %v2284
      %v5891 = vpop.f32.mrb[0].mxu0
      %v5892 = vadd.f32 0.0, %v5891
      %v5893 = vpop.f32.mrb[0].mxu0
      %v5894 = vpop.f32.mrb[0].mxu0
      %v5895 = vadd.f32 0.0, %v5894
      %v5896 = vpop.f32.mrb[0].mxu0
      %5897 = vmatprep.mubr.bf16.mxu0 0
      %5898 = vmatmul.mubr.bf16.gmra.mrb[0].mxu0 %v2287
      %v5899 = vpop.f32.mrb[0].mxu0
      %v5900 = vadd.f32 0.0, %v5899
      %v5901 = vpop.f32.mrb[0].mxu0
      %v5902 = vpop.f32.mrb[0].mxu0
      %v5903 = vadd.f32 0.0, %v5902
      %v5904 = vpop.f32.mrb[0].mxu0
      %5905 = vmatprep.mubr.bf16.mxu0 0
      %5906 = vmatmul.mubr.bf16.gmra.mrb[0].mxu0 %v2290
      %v5907 = vpop.f32.mrb[0].mxu0
      %v5908 = vadd.f32 0.0, %v5907
      %v5909 = vpop.f32.mrb[0].mxu0
      %v5910 = vpop.f32.mrb[0].mxu0
      %v5911 = vadd.f32 0.0, %v5910
      %v5912 = vpop.f32.mrb[0].mxu0
      %5913 = vmatprep.mubr.bf16.mxu0 0
      %5914 = vmatmul.mubr.bf16.gmra.mrb[0].mxu0 %v2293
      %v5915 = vpop.f32.mrb[0].mxu0
      %v5916 = vadd.f32 0.0, %v5915
      %v5917 = vpop.f32.mrb[0].mxu0
      %v5918 = vpop.f32.mrb[0].mxu0
      %v5919 = vadd.f32 0.0, %v5918
      %v5920 = vpop.f32.mrb[0].mxu0
      %5921 = vmatprep.mubr.bf16.mxu0 0
      %5922 = vmatmul.mubr.bf16.gmra.mrb[0].mxu0 %v5385
      %v5923 = vpop.f32.mrb[0].mxu0
      %v5924 = vadd.f32 0.0, %v5923
      %v5925 = vpop.f32.mrb[0].mxu0
      %v5926 = vpop.f32.mrb[0].mxu0
      %v5927 = vadd.f32 0.0, %v5926
      %v5928 = vpop.f32.mrb[0].mxu0
      %5929 = vmatprep.mubr.bf16.mxu0 0
      %5930 = vmatmul.mubr.bf16.gmra.mrb[0].mxu0 %v5388
      %v5931 = vpop.f32.mrb[0].mxu0
      %v5932 = vadd.f32 0.0, %v5931
      %v5933 = vpop.f32.mrb[0].mxu0
      %v5934 = vpop.f32.mrb[0].mxu0
      %v5935 = vadd.f32 0.0, %v5934
      %v5936 = vpop.f32.mrb[0].mxu0
      %5937 = vdwg.mxu0
      %v5938 = vadd.f32 %v5221, %v5428
      %v5939 = vadd.f32 %v5222, %v5431
      %v5940 = vadd.f32 %v5223, %v5436
      %v5941 = vadd.f32 %v5224, %v5439
      %v5942 = vadd.f32 %v5225, %v5444
      %v5943 = vadd.f32 %v5226, %v5447
      %v5944 = vadd.f32 %v5227, %v5452
      %v5945 = vadd.f32 %v5228, %v5455
      %v5946 = vadd.f32 %v5229, %v5460
      %v5947 = vadd.f32 %v5230, %v5463
      %v5948 = vadd.f32 %v5231, %v5468
      %v5949 = vadd.f32 %v5232, %v5471
      %v5950 = vadd.f32 %v5233, %v5476
      %v5951 = vadd.f32 %v5234, %v5479
      %v5952 = vadd.f32 %v5235, %v5484
      %v5953 = vadd.f32 %v5236, %v5487
      %v5954 = vadd.f32 %v5237, %v5492
      %v5955 = vadd.f32 %v5238, %v5495
      %v5956 = vadd.f32 %v5239, %v5500
      %v5957 = vadd.f32 %v5240, %v5503
      %v5958 = vadd.f32 %v5241, %v5508
      %v5959 = vadd.f32 %v5242, %v5511
      %v5960 = vadd.f32 %v5243, %v5516
      %v5961 = vadd.f32 %v5244, %v5519
      %v5962 = vadd.f32 %v5245, %v5524
      %v5963 = vadd.f32 %v5246, %v5527
      %v5964 = vadd.f32 %v5247, %v5532
      %v5965 = vadd.f32 %v5248, %v5535
      %v5966 = vadd.f32 %v5249, %v5540
      %v5967 = vadd.f32 %v5250, %v5543
      %v5968 = vadd.f32 %v5251, %v5548
      %v5969 = vadd.f32 %v5252, %v5551
      %v5970 = vadd.f32 %v5253, %v5556
      %v5971 = vadd.f32 %v5254, %v5559
      %v5972 = vadd.f32 %v5255, %v5564
      %v5973 = vadd.f32 %v5256, %v5567
      %v5974 = vadd.f32 %v5257, %v5572
      %v5975 = vadd.f32 %v5258, %v5575
      %v5976 = vadd.f32 %v5259, %v5580
      %v5977 = vadd.f32 %v5260, %v5583
      %v5978 = vadd.f32 %v5261, %v5588
      %v5979 = vadd.f32 %v5262, %v5591
      %v5980 = vadd.f32 %v5263, %v5596
      %v5981 = vadd.f32 %v5264, %v5599
      %v5982 = vadd.f32 %v5265, %v5604
      %v5983 = vadd.f32 %v5266, %v5607
      %v5984 = vadd.f32 %v5267, %v5612
      %v5985 = vadd.f32 %v5268, %v5615
      %v5986 = vadd.f32 %v5269, %v5620
      %v5987 = vadd.f32 %v5270, %v5623
      %v5988 = vadd.f32 %v5271, %v5628
      %v5989 = vadd.f32 %v5272, %v5631
      %v5990 = vadd.f32 %v5273, %v5636
      %v5991 = vadd.f32 %v5274, %v5639
      %v5992 = vadd.f32 %v5275, %v5644
      %v5993 = vadd.f32 %v5276, %v5647
      %v5994 = vadd.f32 %v5277, %v5652
      %v5995 = vadd.f32 %v5278, %v5655
      %v5996 = vadd.f32 %v5279, %v5660
      %v5997 = vadd.f32 %v5280, %v5663
      %v5998 = vadd.f32 %v5281, %v5668
      %v5999 = vadd.f32 %v5282, %v5671
      %v6000 = vadd.f32 %v5283, %v5676
      %v6001 = vadd.f32 %v5284, %v5679
      %v6002 = vadd.f32 %v5285, %v5684
      %v6003 = vadd.f32 %v5286, %v5687
      %v6004 = vadd.f32 %v5287, %v5692
      %v6005 = vadd.f32 %v5288, %v5695
      %v6006 = vadd.f32 %v5289, %v5700
      %v6007 = vadd.f32 %v5290, %v5703
      %v6008 = vadd.f32 %v5291, %v5708
      %v6009 = vadd.f32 %v5292, %v5711
      %v6010 = vadd.f32 %v5293, %v5716
      %v6011 = vadd.f32 %v5294, %v5719
      %v6012 = vadd.f32 %v5295, %v5724
      %v6013 = vadd.f32 %v5296, %v5727
      %v6014 = vadd.f32 %v5297, %v5732
      %v6015 = vadd.f32 %v5298, %v5735
      %v6016 = vadd.f32 %v5299, %v5740
      %v6017 = vadd.f32 %v5300, %v5743
      %v6018 = vadd.f32 %v5301, %v5748
      %v6019 = vadd.f32 %v5302, %v5751
      %v6020 = vadd.f32 %v5303, %v5756
      %v6021 = vadd.f32 %v5304, %v5759
      %v6022 = vadd.f32 %v5305, %v5764
      %v6023 = vadd.f32 %v5306, %v5767
      %v6024 = vadd.f32 %v5307, %v5772
      %v6025 = vadd.f32 %v5308, %v5775
      %v6026 = vadd.f32 %v5309, %v5780
      %v6027 = vadd.f32 %v5310, %v5783
      %v6028 = vadd.f32 %v5311, %v5788
      %v6029 = vadd.f32 %v5312, %v5791
      %v6030 = vadd.f32 %v5313, %v5796
      %v6031 = vadd.f32 %v5314, %v5799
      %v6032 = vadd.f32 %v5315, %v5804
      %v6033 = vadd.f32 %v5316, %v5807
      %v6034 = vadd.f32 %v5317, %v5812
      %v6035 = vadd.f32 %v5318, %v5815
      %v6036 = vadd.f32 %v5319, %v5820
      %v6037 = vadd.f32 %v5320, %v5823
      %v6038 = vadd.f32 %v5321, %v5828
      %v6039 = vadd.f32 %v5322, %v5831
      %v6040 = vadd.f32 %v5323, %v5836
      %v6041 = vadd.f32 %v5324, %v5839
      %v6042 = vadd.f32 %v5325, %v5844
      %v6043 = vadd.f32 %v5326, %v5847
      %v6044 = vadd.f32 %v5327, %v5852
      %v6045 = vadd.f32 %v5328, %v5855
      %v6046 = vadd.f32 %v5329, %v5860
      %v6047 = vadd.f32 %v5330, %v5863
      %v6048 = vadd.f32 %v5331, %v5868
      %v6049 = vadd.f32 %v5332, %v5871
      %v6050 = vadd.f32 %v5333, %v5876
      %v6051 = vadd.f32 %v5334, %v5879
      %v6052 = vadd.f32 %v5335, %v5884
      %v6053 = vadd.f32 %v5336, %v5887
      %v6054 = vadd.f32 %v5337, %v5892
      %v6055 = vadd.f32 %v5338, %v5895
      %v6056 = vadd.f32 %v5339, %v5900
      %v6057 = vadd.f32 %v5340, %v5903
      %v6058 = vadd.f32 %v5341, %v5908
      %v6059 = vadd.f32 %v5342, %v5911
      %v6060 = vadd.f32 %v5343, %v5916
      %v6061 = vadd.f32 %v5344, %v5919
      %v6062 = vadd.f32 %v5345, %v5924
      %v6063 = vadd.f32 %v5346, %v5927
      %v6064 = vadd.f32 %v5347, %v5932
      %v6065 = vadd.f32 %v5348, %v5935
      %v6068 = vrot.slane %v1263, 1
      %v6069 = vrot.slane %v1162, 1
      %v6070 = vsel %vm3604, %v6068, %v6069
      %v6071 = vrot.slane %v1296, 1
      %v6072 = vsel %vm3604, %v6069, %v6071
      %v6073 = vpack.i.b16 %v1433, %v1432
      %v6075 = vcombine.low %v6073, %v1434
      %v6077 = vunpack.c.l.s4 1966171168
      %v6078 = vunpack.c.0.s8 %v6077
      %v6079 = vlaneseq
      %v6080 = vshrl.u32 %v6079, 7
      %v6081 = vsub.s32 %v6078, %v6080
      %v6082 = vrot.slane %v6075, %v6081
      %v6084 = vunpack.c.l.s4 1966171168
      %v6085 = vunpack.c.0.s8 %v6084
      %v6086 = vlaneseq
      %v6087 = vshrl.u32 %v6086, 7
      %v6088 = vsub.s32 %v6085, %v6087
      %v6089 = vrot.slane %v6082, %v6088
      %v6091 = vsel %vm2102, %v6070, 0
      %v6094 = vsel %vm2102, %v6072, 0
      %v6097 = vand.u32 %v6089, %v2298
      %6099 = vmatprep.subr.bf16.mxu0 0
      %6100 = vmatpush1.bf16.msra.mxu0 %v6097
      %6101 = vmatprep.subr.bf16.mxu0 0
      %6102 = vmatpush1.bf16.msra.mxu0 0
      %6103 = vmatprep.subr.bf16.mxu0 0
      %6104 = vmatpush1.bf16.msra.mxu0 0
      %6105 = vmatprep.subr.bf16.mxu0 0
      %6106 = vmatpush1.bf16.msra.mxu0 0
      %6107 = vmatprep.subr.bf16.mxu0 0
      %6108 = vmatpush1.bf16.msra.mxu0 0
      %6109 = vmatprep.subr.bf16.mxu0 0
      %6110 = vmatpush1.bf16.msra.mxu0 0
      %6111 = vmatprep.subr.bf16.mxu0 0
      %6112 = vmatpush1.bf16.msra.mxu0 0
      %6113 = vmatprep.subr.bf16.mxu0 0
      %6114 = vmatpush1.bf16.msra.mxu0 0
      %6115 = vmatprep.subr.bf16.mxu0 0
      %6116 = vmatpush1.bf16.msra.mxu0 0
      %6117 = vmatprep.subr.bf16.mxu0 0
      %6118 = vmatpush1.bf16.msra.mxu0 0
      %6119 = vmatprep.subr.bf16.mxu0 0
      %6120 = vmatpush1.bf16.msra.mxu0 0
      %6121 = vmatprep.subr.bf16.mxu0 0
      %6122 = vmatpush1.bf16.msra.mxu0 0
      %6123 = vmatprep.subr.bf16.mxu0 0
      %6124 = vmatpush1.bf16.msra.mxu0 0
      %6125 = vmatprep.subr.bf16.mxu0 0
      %6126 = vmatpush1.bf16.msra.mxu0 0
      %6127 = vmatprep.subr.bf16.mxu0 0
      %6128 = vmatpush1.bf16.msra.mxu0 0
      %6129 = vmatprep.subr.bf16.mxu0 0
      %6130 = vmatpush1.bf16.msra.mxu0 0
      %6131 = vmatprep.mubr.bf16.mxu0 0
      %6132 = vmatmul.mubr.bf16.gmra.mrb[0].mxu0 %v3789
      %v6133 = vpop.f32.mrb[0].mxu0
      %v6134 = vadd.f32 0.0, %v6133
      %v6135 = vpop.f32.mrb[0].mxu0
      %v6136 = vpop.f32.mrb[0].mxu0
      %v6137 = vadd.f32 0.0, %v6136
      %v6138 = vpop.f32.mrb[0].mxu0
      %6139 = vmatprep.mubr.bf16.mxu0 0
      %6140 = vmatmul.mubr.bf16.gmra.mrb[0].mxu0 %v3792
      %v6141 = vpop.f32.mrb[0].mxu0
      %v6142 = vadd.f32 0.0, %v6141
      %v6143 = vpop.f32.mrb[0].mxu0
      %v6144 = vpop.f32.mrb[0].mxu0
      %v6145 = vadd.f32 0.0, %v6144
      %v6146 = vpop.f32.mrb[0].mxu0
      %6147 = vmatprep.mubr.bf16.mxu0 0
      %6148 = vmatmul.mubr.bf16.gmra.mrb[0].mxu0 %v3795
      %v6149 = vpop.f32.mrb[0].mxu0
      %v6150 = vadd.f32 0.0, %v6149
      %v6151 = vpop.f32.mrb[0].mxu0
      %v6152 = vpop.f32.mrb[0].mxu0
      %v6153 = vadd.f32 0.0, %v6152
      %v6154 = vpop.f32.mrb[0].mxu0
      %6155 = vmatprep.mubr.bf16.mxu0 0
      %6156 = vmatmul.mubr.bf16.gmra.mrb[0].mxu0 %v3798
      %v6157 = vpop.f32.mrb[0].mxu0
      %v6158 = vadd.f32 0.0, %v6157
      %v6159 = vpop.f32.mrb[0].mxu0
      %v6160 = vpop.f32.mrb[0].mxu0
      %v6161 = vadd.f32 0.0, %v6160
      %v6162 = vpop.f32.mrb[0].mxu0
      %6163 = vmatprep.mubr.bf16.mxu0 0
      %6164 = vmatmul.mubr.bf16.gmra.mrb[0].mxu0 %v3801
      %v6165 = vpop.f32.mrb[0].mxu0
      %v6166 = vadd.f32 0.0, %v6165
      %v6167 = vpop.f32.mrb[0].mxu0
      %v6168 = vpop.f32.mrb[0].mxu0
      %v6169 = vadd.f32 0.0, %v6168
      %v6170 = vpop.f32.mrb[0].mxu0
      %6171 = vmatprep.mubr.bf16.mxu0 0
      %6172 = vmatmul.mubr.bf16.gmra.mrb[0].mxu0 %v3804
      %v6173 = vpop.f32.mrb[0].mxu0
      %v6174 = vadd.f32 0.0, %v6173
      %v6175 = vpop.f32.mrb[0].mxu0
      %v6176 = vpop.f32.mrb[0].mxu0
      %v6177 = vadd.f32 0.0, %v6176
      %v6178 = vpop.f32.mrb[0].mxu0
      %6179 = vmatprep.mubr.bf16.mxu0 0
      %6180 = vmatmul.mubr.bf16.gmra.mrb[0].mxu0 %v3807
      %v6181 = vpop.f32.mrb[0].mxu0
      %v6182 = vadd.f32 0.0, %v6181
      %v6183 = vpop.f32.mrb[0].mxu0
      %v6184 = vpop.f32.mrb[0].mxu0
      %v6185 = vadd.f32 0.0, %v6184
      %v6186 = vpop.f32.mrb[0].mxu0
      %6187 = vmatprep.mubr.bf16.mxu0 0
      %6188 = vmatmul.mubr.bf16.gmra.mrb[0].mxu0 %v3810
      %v6189 = vpop.f32.mrb[0].mxu0
      %v6190 = vadd.f32 0.0, %v6189
      %v6191 = vpop.f32.mrb[0].mxu0
      %v6192 = vpop.f32.mrb[0].mxu0
      %v6193 = vadd.f32 0.0, %v6192
      %v6194 = vpop.f32.mrb[0].mxu0
      %6195 = vmatprep.mubr.bf16.mxu0 0
      %6196 = vmatmul.mubr.bf16.gmra.mrb[0].mxu0 %v3813
      %v6197 = vpop.f32.mrb[0].mxu0
      %v6198 = vadd.f32 0.0, %v6197
      %v6199 = vpop.f32.mrb[0].mxu0
      %v6200 = vpop.f32.mrb[0].mxu0
      %v6201 = vadd.f32 0.0, %v6200
      %v6202 = vpop.f32.mrb[0].mxu0
      %6203 = vmatprep.mubr.bf16.mxu0 0
      %6204 = vmatmul.mubr.bf16.gmra.mrb[0].mxu0 %v3816
      %v6205 = vpop.f32.mrb[0].mxu0
      %v6206 = vadd.f32 0.0, %v6205
      %v6207 = vpop.f32.mrb[0].mxu0
      %v6208 = vpop.f32.mrb[0].mxu0
      %v6209 = vadd.f32 0.0, %v6208
      %v6210 = vpop.f32.mrb[0].mxu0
      %6211 = vmatprep.mubr.bf16.mxu0 0
      %6212 = vmatmul.mubr.bf16.gmra.mrb[0].mxu0 %v3819
      %v6213 = vpop.f32.mrb[0].mxu0
      %v6214 = vadd.f32 0.0, %v6213
      %v6215 = vpop.f32.mrb[0].mxu0
      %v6216 = vpop.f32.mrb[0].mxu0
      %v6217 = vadd.f32 0.0, %v6216
      %v6218 = vpop.f32.mrb[0].mxu0
      %6219 = vmatprep.mubr.bf16.mxu0 0
      %6220 = vmatmul.mubr.bf16.gmra.mrb[0].mxu0 %v3822
      %v6221 = vpop.f32.mrb[0].mxu0
      %v6222 = vadd.f32 0.0, %v6221
      %v6223 = vpop.f32.mrb[0].mxu0
      %v6224 = vpop.f32.mrb[0].mxu0
      %v6225 = vadd.f32 0.0, %v6224
      %v6226 = vpop.f32.mrb[0].mxu0
      %6227 = vmatprep.mubr.bf16.mxu0 0
      %6228 = vmatmul.mubr.bf16.gmra.mrb[0].mxu0 %v3825
      %v6229 = vpop.f32.mrb[0].mxu0
      %v6230 = vadd.f32 0.0, %v6229
      %v6231 = vpop.f32.mrb[0].mxu0
      %v6232 = vpop.f32.mrb[0].mxu0
      %v6233 = vadd.f32 0.0, %v6232
      %v6234 = vpop.f32.mrb[0].mxu0
      %6235 = vmatprep.mubr.bf16.mxu0 0
      %6236 = vmatmul.mubr.bf16.gmra.mrb[0].mxu0 %v3828
      %v6237 = vpop.f32.mrb[0].mxu0
      %v6238 = vadd.f32 0.0, %v6237
      %v6239 = vpop.f32.mrb[0].mxu0
      %v6240 = vpop.f32.mrb[0].mxu0
      %v6241 = vadd.f32 0.0, %v6240
      %v6242 = vpop.f32.mrb[0].mxu0
      %6243 = vmatprep.mubr.bf16.mxu0 0
      %6244 = vmatmul.mubr.bf16.gmra.mrb[0].mxu0 %v3831
      %v6245 = vpop.f32.mrb[0].mxu0
      %v6246 = vadd.f32 0.0, %v6245
      %v6247 = vpop.f32.mrb[0].mxu0
      %v6248 = vpop.f32.mrb[0].mxu0
      %v6249 = vadd.f32 0.0, %v6248
      %v6250 = vpop.f32.mrb[0].mxu0
      %6251 = vmatprep.mubr.bf16.mxu0 0
      %6252 = vmatmul.mubr.bf16.gmra.mrb[0].mxu0 %v3834
      %v6253 = vpop.f32.mrb[0].mxu0
      %v6254 = vadd.f32 0.0, %v6253
      %v6255 = vpop.f32.mrb[0].mxu0
      %v6256 = vpop.f32.mrb[0].mxu0
      %v6257 = vadd.f32 0.0, %v6256
      %v6258 = vpop.f32.mrb[0].mxu0
      %6259 = vmatprep.mubr.bf16.mxu0 0
      %6260 = vmatmul.mubr.bf16.gmra.mrb[0].mxu0 %v3837
      %v6261 = vpop.f32.mrb[0].mxu0
      %v6262 = vadd.f32 0.0, %v6261
      %v6263 = vpop.f32.mrb[0].mxu0
      %v6264 = vpop.f32.mrb[0].mxu0
      %v6265 = vadd.f32 0.0, %v6264
      %v6266 = vpop.f32.mrb[0].mxu0
      %6267 = vmatprep.mubr.bf16.mxu0 0
      %6268 = vmatmul.mubr.bf16.gmra.mrb[0].mxu0 %v3840
      %v6269 = vpop.f32.mrb[0].mxu0
      %v6270 = vadd.f32 0.0, %v6269
      %v6271 = vpop.f32.mrb[0].mxu0
      %v6272 = vpop.f32.mrb[0].mxu0
      %v6273 = vadd.f32 0.0, %v6272
      %v6274 = vpop.f32.mrb[0].mxu0
      %6275 = vmatprep.mubr.bf16.mxu0 0
      %6276 = vmatmul.mubr.bf16.gmra.mrb[0].mxu0 %v3843
      %v6277 = vpop.f32.mrb[0].mxu0
      %v6278 = vadd.f32 0.0, %v6277
      %v6279 = vpop.f32.mrb[0].mxu0
      %v6280 = vpop.f32.mrb[0].mxu0
      %v6281 = vadd.f32 0.0, %v6280
      %v6282 = vpop.f32.mrb[0].mxu0
      %6283 = vmatprep.mubr.bf16.mxu0 0
      %6284 = vmatmul.mubr.bf16.gmra.mrb[0].mxu0 %v3846
      %v6285 = vpop.f32.mrb[0].mxu0
      %v6286 = vadd.f32 0.0, %v6285
      %v6287 = vpop.f32.mrb[0].mxu0
      %v6288 = vpop.f32.mrb[0].mxu0
      %v6289 = vadd.f32 0.0, %v6288
      %v6290 = vpop.f32.mrb[0].mxu0
      %6291 = vmatprep.mubr.bf16.mxu0 0
      %6292 = vmatmul.mubr.bf16.gmra.mrb[0].mxu0 %v3849
      %v6293 = vpop.f32.mrb[0].mxu0
      %v6294 = vadd.f32 0.0, %v6293
      %v6295 = vpop.f32.mrb[0].mxu0
      %v6296 = vpop.f32.mrb[0].mxu0
      %v6297 = vadd.f32 0.0, %v6296
      %v6298 = vpop.f32.mrb[0].mxu0
      %6299 = vmatprep.mubr.bf16.mxu0 0
      %6300 = vmatmul.mubr.bf16.gmra.mrb[0].mxu0 %v3852
      %v6301 = vpop.f32.mrb[0].mxu0
      %v6302 = vadd.f32 0.0, %v6301
      %v6303 = vpop.f32.mrb[0].mxu0
      %v6304 = vpop.f32.mrb[0].mxu0
      %v6305 = vadd.f32 0.0, %v6304
      %v6306 = vpop.f32.mrb[0].mxu0
      %6307 = vmatprep.mubr.bf16.mxu0 0
      %6308 = vmatmul.mubr.bf16.gmra.mrb[0].mxu0 %v3855
      %v6309 = vpop.f32.mrb[0].mxu0
      %v6310 = vadd.f32 0.0, %v6309
      %v6311 = vpop.f32.mrb[0].mxu0
      %v6312 = vpop.f32.mrb[0].mxu0
      %v6313 = vadd.f32 0.0, %v6312
      %v6314 = vpop.f32.mrb[0].mxu0
      %6315 = vmatprep.mubr.bf16.mxu0 0
      %6316 = vmatmul.mubr.bf16.gmra.mrb[0].mxu0 %v3858
      %v6317 = vpop.f32.mrb[0].mxu0
      %v6318 = vadd.f32 0.0, %v6317
      %v6319 = vpop.f32.mrb[0].mxu0
      %v6320 = vpop.f32.mrb[0].mxu0
      %v6321 = vadd.f32 0.0, %v6320
      %v6322 = vpop.f32.mrb[0].mxu0
      %6323 = vmatprep.mubr.bf16.mxu0 0
      %6324 = vmatmul.mubr.bf16.gmra.mrb[0].mxu0 %v3861
      %v6325 = vpop.f32.mrb[0].mxu0
      %v6326 = vadd.f32 0.0, %v6325
      %v6327 = vpop.f32.mrb[0].mxu0
      %v6328 = vpop.f32.mrb[0].mxu0
      %v6329 = vadd.f32 0.0, %v6328
      %v6330 = vpop.f32.mrb[0].mxu0
      %6331 = vmatprep.mubr.bf16.mxu0 0
      %6332 = vmatmul.mubr.bf16.gmra.mrb[0].mxu0 %v3864
      %v6333 = vpop.f32.mrb[0].mxu0
      %v6334 = vadd.f32 0.0, %v6333
      %v6335 = vpop.f32.mrb[0].mxu0
      %v6336 = vpop.f32.mrb[0].mxu0
      %v6337 = vadd.f32 0.0, %v6336
      %v6338 = vpop.f32.mrb[0].mxu0
      %6339 = vmatprep.mubr.bf16.mxu0 0
      %6340 = vmatmul.mubr.bf16.gmra.mrb[0].mxu0 %v3867
      %v6341 = vpop.f32.mrb[0].mxu0
      %v6342 = vadd.f32 0.0, %v6341
      %v6343 = vpop.f32.mrb[0].mxu0
      %v6344 = vpop.f32.mrb[0].mxu0
      %v6345 = vadd.f32 0.0, %v6344
      %v6346 = vpop.f32.mrb[0].mxu0
      %6347 = vmatprep.mubr.bf16.mxu0 0
      %6348 = vmatmul.mubr.bf16.gmra.mrb[0].mxu0 %v3870
      %v6349 = vpop.f32.mrb[0].mxu0
      %v6350 = vadd.f32 0.0, %v6349
      %v6351 = vpop.f32.mrb[0].mxu0
      %v6352 = vpop.f32.mrb[0].mxu0
      %v6353 = vadd.f32 0.0, %v6352
      %v6354 = vpop.f32.mrb[0].mxu0
      %6355 = vmatprep.mubr.bf16.mxu0 0
      %6356 = vmatmul.mubr.bf16.gmra.mrb[0].mxu0 %v3873
      %v6357 = vpop.f32.mrb[0].mxu0
      %v6358 = vadd.f32 0.0, %v6357
      %v6359 = vpop.f32.mrb[0].mxu0
      %v6360 = vpop.f32.mrb[0].mxu0
      %v6361 = vadd.f32 0.0, %v6360
      %v6362 = vpop.f32.mrb[0].mxu0
      %6363 = vmatprep.mubr.bf16.mxu0 0
      %6364 = vmatmul.mubr.bf16.gmra.mrb[0].mxu0 %v3876
      %v6365 = vpop.f32.mrb[0].mxu0
      %v6366 = vadd.f32 0.0, %v6365
      %v6367 = vpop.f32.mrb[0].mxu0
      %v6368 = vpop.f32.mrb[0].mxu0
      %v6369 = vadd.f32 0.0, %v6368
      %v6370 = vpop.f32.mrb[0].mxu0
      %6371 = vmatprep.mubr.bf16.mxu0 0
      %6372 = vmatmul.mubr.bf16.gmra.mrb[0].mxu0 %v3879
      %v6373 = vpop.f32.mrb[0].mxu0
      %v6374 = vadd.f32 0.0, %v6373
      %v6375 = vpop.f32.mrb[0].mxu0
      %v6376 = vpop.f32.mrb[0].mxu0
      %v6377 = vadd.f32 0.0, %v6376
      %v6378 = vpop.f32.mrb[0].mxu0
      %6379 = vmatprep.mubr.bf16.mxu0 0
      %6380 = vmatmul.mubr.bf16.gmra.mrb[0].mxu0 %v3882
      %v6381 = vpop.f32.mrb[0].mxu0
      %v6382 = vadd.f32 0.0, %v6381
      %v6383 = vpop.f32.mrb[0].mxu0
      %v6384 = vpop.f32.mrb[0].mxu0
      %v6385 = vadd.f32 0.0, %v6384
      %v6386 = vpop.f32.mrb[0].mxu0
      %6387 = vmatprep.mubr.bf16.mxu0 0
      %6388 = vmatmul.mubr.bf16.gmra.mrb[0].mxu0 %v3885
      %v6389 = vpop.f32.mrb[0].mxu0
      %v6390 = vadd.f32 0.0, %v6389
      %v6391 = vpop.f32.mrb[0].mxu0
      %v6392 = vpop.f32.mrb[0].mxu0
      %v6393 = vadd.f32 0.0, %v6392
      %v6394 = vpop.f32.mrb[0].mxu0
      %6395 = vmatprep.mubr.bf16.mxu0 0
      %6396 = vmatmul.mubr.bf16.gmra.mrb[0].mxu0 %v3888
      %v6397 = vpop.f32.mrb[0].mxu0
      %v6398 = vadd.f32 0.0, %v6397
      %v6399 = vpop.f32.mrb[0].mxu0
      %v6400 = vpop.f32.mrb[0].mxu0
      %v6401 = vadd.f32 0.0, %v6400
      %v6402 = vpop.f32.mrb[0].mxu0
      %6403 = vmatprep.mubr.bf16.mxu0 0
      %6404 = vmatmul.mubr.bf16.gmra.mrb[0].mxu0 %v3891
      %v6405 = vpop.f32.mrb[0].mxu0
      %v6406 = vadd.f32 0.0, %v6405
      %v6407 = vpop.f32.mrb[0].mxu0
      %v6408 = vpop.f32.mrb[0].mxu0
      %v6409 = vadd.f32 0.0, %v6408
      %v6410 = vpop.f32.mrb[0].mxu0
      %6411 = vmatprep.mubr.bf16.mxu0 0
      %6412 = vmatmul.mubr.bf16.gmra.mrb[0].mxu0 %v3894
      %v6413 = vpop.f32.mrb[0].mxu0
      %v6414 = vadd.f32 0.0, %v6413
      %v6415 = vpop.f32.mrb[0].mxu0
      %v6416 = vpop.f32.mrb[0].mxu0
      %v6417 = vadd.f32 0.0, %v6416
      %v6418 = vpop.f32.mrb[0].mxu0
      %6419 = vmatprep.mubr.bf16.mxu0 0
      %6420 = vmatmul.mubr.bf16.gmra.mrb[0].mxu0 %v3897
      %v6421 = vpop.f32.mrb[0].mxu0
      %v6422 = vadd.f32 0.0, %v6421
      %v6423 = vpop.f32.mrb[0].mxu0
      %v6424 = vpop.f32.mrb[0].mxu0
      %v6425 = vadd.f32 0.0, %v6424
      %v6426 = vpop.f32.mrb[0].mxu0
      %6427 = vmatprep.mubr.bf16.mxu0 0
      %6428 = vmatmul.mubr.bf16.gmra.mrb[0].mxu0 %v3900
      %v6429 = vpop.f32.mrb[0].mxu0
      %v6430 = vadd.f32 0.0, %v6429
      %v6431 = vpop.f32.mrb[0].mxu0
      %v6432 = vpop.f32.mrb[0].mxu0
      %v6433 = vadd.f32 0.0, %v6432
      %v6434 = vpop.f32.mrb[0].mxu0
      %6435 = vmatprep.mubr.bf16.mxu0 0
      %6436 = vmatmul.mubr.bf16.gmra.mrb[0].mxu0 %v3903
      %v6437 = vpop.f32.mrb[0].mxu0
      %v6438 = vadd.f32 0.0, %v6437
      %v6439 = vpop.f32.mrb[0].mxu0
      %v6440 = vpop.f32.mrb[0].mxu0
      %v6441 = vadd.f32 0.0, %v6440
      %v6442 = vpop.f32.mrb[0].mxu0
      %6443 = vmatprep.mubr.bf16.mxu0 0
      %6444 = vmatmul.mubr.bf16.gmra.mrb[0].mxu0 %v3906
      %v6445 = vpop.f32.mrb[0].mxu0
      %v6446 = vadd.f32 0.0, %v6445
      %v6447 = vpop.f32.mrb[0].mxu0
      %v6448 = vpop.f32.mrb[0].mxu0
      %v6449 = vadd.f32 0.0, %v6448
      %v6450 = vpop.f32.mrb[0].mxu0
      %6451 = vmatprep.mubr.bf16.mxu0 0
      %6452 = vmatmul.mubr.bf16.gmra.mrb[0].mxu0 %v3909
      %v6453 = vpop.f32.mrb[0].mxu0
      %v6454 = vadd.f32 0.0, %v6453
      %v6455 = vpop.f32.mrb[0].mxu0
      %v6456 = vpop.f32.mrb[0].mxu0
      %v6457 = vadd.f32 0.0, %v6456
      %v6458 = vpop.f32.mrb[0].mxu0
      %6459 = vmatprep.mubr.bf16.mxu0 0
      %6460 = vmatmul.mubr.bf16.gmra.mrb[0].mxu0 %v3912
      %v6461 = vpop.f32.mrb[0].mxu0
      %v6462 = vadd.f32 0.0, %v6461
      %v6463 = vpop.f32.mrb[0].mxu0
      %v6464 = vpop.f32.mrb[0].mxu0
      %v6465 = vadd.f32 0.0, %v6464
      %v6466 = vpop.f32.mrb[0].mxu0
      %6467 = vmatprep.mubr.bf16.mxu0 0
      %6468 = vmatmul.mubr.bf16.gmra.mrb[0].mxu0 %v3915
      %v6469 = vpop.f32.mrb[0].mxu0
      %v6470 = vadd.f32 0.0, %v6469
      %v6471 = vpop.f32.mrb[0].mxu0
      %v6472 = vpop.f32.mrb[0].mxu0
      %v6473 = vadd.f32 0.0, %v6472
      %v6474 = vpop.f32.mrb[0].mxu0
      %6475 = vmatprep.mubr.bf16.mxu0 0
      %6476 = vmatmul.mubr.bf16.gmra.mrb[0].mxu0 %v3918
      %v6477 = vpop.f32.mrb[0].mxu0
      %v6478 = vadd.f32 0.0, %v6477
      %v6479 = vpop.f32.mrb[0].mxu0
      %v6480 = vpop.f32.mrb[0].mxu0
      %v6481 = vadd.f32 0.0, %v6480
      %v6482 = vpop.f32.mrb[0].mxu0
      %6483 = vmatprep.mubr.bf16.mxu0 0
      %6484 = vmatmul.mubr.bf16.gmra.mrb[0].mxu0 %v3921
      %v6485 = vpop.f32.mrb[0].mxu0
      %v6486 = vadd.f32 0.0, %v6485
      %v6487 = vpop.f32.mrb[0].mxu0
      %v6488 = vpop.f32.mrb[0].mxu0
      %v6489 = vadd.f32 0.0, %v6488
      %v6490 = vpop.f32.mrb[0].mxu0
      %6491 = vmatprep.mubr.bf16.mxu0 0
      %6492 = vmatmul.mubr.bf16.gmra.mrb[0].mxu0 %v3924
      %v6493 = vpop.f32.mrb[0].mxu0
      %v6494 = vadd.f32 0.0, %v6493
      %v6495 = vpop.f32.mrb[0].mxu0
      %v6496 = vpop.f32.mrb[0].mxu0
      %v6497 = vadd.f32 0.0, %v6496
      %v6498 = vpop.f32.mrb[0].mxu0
      %6499 = vmatprep.mubr.bf16.mxu0 0
      %6500 = vmatmul.mubr.bf16.gmra.mrb[0].mxu0 %v3927
      %v6501 = vpop.f32.mrb[0].mxu0
      %v6502 = vadd.f32 0.0, %v6501
      %v6503 = vpop.f32.mrb[0].mxu0
      %v6504 = vpop.f32.mrb[0].mxu0
      %v6505 = vadd.f32 0.0, %v6504
      %v6506 = vpop.f32.mrb[0].mxu0
      %6507 = vmatprep.mubr.bf16.mxu0 0
      %6508 = vmatmul.mubr.bf16.gmra.mrb[0].mxu0 %v3930
      %v6509 = vpop.f32.mrb[0].mxu0
      %v6510 = vadd.f32 0.0, %v6509
      %v6511 = vpop.f32.mrb[0].mxu0
      %v6512 = vpop.f32.mrb[0].mxu0
      %v6513 = vadd.f32 0.0, %v6512
      %v6514 = vpop.f32.mrb[0].mxu0
      %6515 = vmatprep.mubr.bf16.mxu0 0
      %6516 = vmatmul.mubr.bf16.gmra.mrb[0].mxu0 %v3933
      %v6517 = vpop.f32.mrb[0].mxu0
      %v6518 = vadd.f32 0.0, %v6517
      %v6519 = vpop.f32.mrb[0].mxu0
      %v6520 = vpop.f32.mrb[0].mxu0
      %v6521 = vadd.f32 0.0, %v6520
      %v6522 = vpop.f32.mrb[0].mxu0
      %6523 = vmatprep.mubr.bf16.mxu0 0
      %6524 = vmatmul.mubr.bf16.gmra.mrb[0].mxu0 %v3936
      %v6525 = vpop.f32.mrb[0].mxu0
      %v6526 = vadd.f32 0.0, %v6525
      %v6527 = vpop.f32.mrb[0].mxu0
      %v6528 = vpop.f32.mrb[0].mxu0
      %v6529 = vadd.f32 0.0, %v6528
      %v6530 = vpop.f32.mrb[0].mxu0
      %6531 = vmatprep.mubr.bf16.mxu0 0
      %6532 = vmatmul.mubr.bf16.gmra.mrb[0].mxu0 %v3939
      %v6533 = vpop.f32.mrb[0].mxu0
      %v6534 = vadd.f32 0.0, %v6533
      %v6535 = vpop.f32.mrb[0].mxu0
      %v6536 = vpop.f32.mrb[0].mxu0
      %v6537 = vadd.f32 0.0, %v6536
      %v6538 = vpop.f32.mrb[0].mxu0
      %6539 = vmatprep.mubr.bf16.mxu0 0
      %6540 = vmatmul.mubr.bf16.gmra.mrb[0].mxu0 %v3942
      %v6541 = vpop.f32.mrb[0].mxu0
      %v6542 = vadd.f32 0.0, %v6541
      %v6543 = vpop.f32.mrb[0].mxu0
      %v6544 = vpop.f32.mrb[0].mxu0
      %v6545 = vadd.f32 0.0, %v6544
      %v6546 = vpop.f32.mrb[0].mxu0
      %6547 = vmatprep.mubr.bf16.mxu0 0
      %6548 = vmatmul.mubr.bf16.gmra.mrb[0].mxu0 %v3945
      %v6549 = vpop.f32.mrb[0].mxu0
      %v6550 = vadd.f32 0.0, %v6549
      %v6551 = vpop.f32.mrb[0].mxu0
      %v6552 = vpop.f32.mrb[0].mxu0
      %v6553 = vadd.f32 0.0, %v6552
      %v6554 = vpop.f32.mrb[0].mxu0
      %6555 = vmatprep.mubr.bf16.mxu0 0
      %6556 = vmatmul.mubr.bf16.gmra.mrb[0].mxu0 %v3948
      %v6557 = vpop.f32.mrb[0].mxu0
      %v6558 = vadd.f32 0.0, %v6557
      %v6559 = vpop.f32.mrb[0].mxu0
      %v6560 = vpop.f32.mrb[0].mxu0
      %v6561 = vadd.f32 0.0, %v6560
      %v6562 = vpop.f32.mrb[0].mxu0
      %6563 = vmatprep.mubr.bf16.mxu0 0
      %6564 = vmatmul.mubr.bf16.gmra.mrb[0].mxu0 %v3951
      %v6565 = vpop.f32.mrb[0].mxu0
      %v6566 = vadd.f32 0.0, %v6565
      %v6567 = vpop.f32.mrb[0].mxu0
      %v6568 = vpop.f32.mrb[0].mxu0
      %v6569 = vadd.f32 0.0, %v6568
      %v6570 = vpop.f32.mrb[0].mxu0
      %6571 = vmatprep.mubr.bf16.mxu0 0
      %6572 = vmatmul.mubr.bf16.gmra.mrb[0].mxu0 %v3954
      %v6573 = vpop.f32.mrb[0].mxu0
      %v6574 = vadd.f32 0.0, %v6573
      %v6575 = vpop.f32.mrb[0].mxu0
      %v6576 = vpop.f32.mrb[0].mxu0
      %v6577 = vadd.f32 0.0, %v6576
      %v6578 = vpop.f32.mrb[0].mxu0
      %6579 = vmatprep.mubr.bf16.mxu0 0
      %6580 = vmatmul.mubr.bf16.gmra.mrb[0].mxu0 %v3957
      %v6581 = vpop.f32.mrb[0].mxu0
      %v6582 = vadd.f32 0.0, %v6581
      %v6583 = vpop.f32.mrb[0].mxu0
      %v6584 = vpop.f32.mrb[0].mxu0
      %v6585 = vadd.f32 0.0, %v6584
      %v6586 = vpop.f32.mrb[0].mxu0
      %6587 = vmatprep.mubr.bf16.mxu0 0
      %6588 = vmatmul.mubr.bf16.gmra.mrb[0].mxu0 %v3960
      %v6589 = vpop.f32.mrb[0].mxu0
      %v6590 = vadd.f32 0.0, %v6589
      %v6591 = vpop.f32.mrb[0].mxu0
      %v6592 = vpop.f32.mrb[0].mxu0
      %v6593 = vadd.f32 0.0, %v6592
      %v6594 = vpop.f32.mrb[0].mxu0
      %6595 = vmatprep.mubr.bf16.mxu0 0
      %6596 = vmatmul.mubr.bf16.gmra.mrb[0].mxu0 %v3963
      %v6597 = vpop.f32.mrb[0].mxu0
      %v6598 = vadd.f32 0.0, %v6597
      %v6599 = vpop.f32.mrb[0].mxu0
      %v6600 = vpop.f32.mrb[0].mxu0
      %v6601 = vadd.f32 0.0, %v6600
      %v6602 = vpop.f32.mrb[0].mxu0
      %6603 = vmatprep.mubr.bf16.mxu0 0
      %6604 = vmatmul.mubr.bf16.gmra.mrb[0].mxu0 %v3966
      %v6605 = vpop.f32.mrb[0].mxu0
      %v6606 = vadd.f32 0.0, %v6605
      %v6607 = vpop.f32.mrb[0].mxu0
      %v6608 = vpop.f32.mrb[0].mxu0
      %v6609 = vadd.f32 0.0, %v6608
      %v6610 = vpop.f32.mrb[0].mxu0
      %6611 = vmatprep.mubr.bf16.mxu0 0
      %6612 = vmatmul.mubr.bf16.gmra.mrb[0].mxu0 %v3969
      %v6613 = vpop.f32.mrb[0].mxu0
      %v6614 = vadd.f32 0.0, %v6613
      %v6615 = vpop.f32.mrb[0].mxu0
      %v6616 = vpop.f32.mrb[0].mxu0
      %v6617 = vadd.f32 0.0, %v6616
      %v6618 = vpop.f32.mrb[0].mxu0
      %6619 = vmatprep.mubr.bf16.mxu0 0
      %6620 = vmatmul.mubr.bf16.gmra.mrb[0].mxu0 %v3972
      %v6621 = vpop.f32.mrb[0].mxu0
      %v6622 = vadd.f32 0.0, %v6621
      %v6623 = vpop.f32.mrb[0].mxu0
      %v6624 = vpop.f32.mrb[0].mxu0
      %v6625 = vadd.f32 0.0, %v6624
      %v6626 = vpop.f32.mrb[0].mxu0
      %6627 = vmatprep.mubr.bf16.mxu0 0
      %6628 = vmatmul.mubr.bf16.gmra.mrb[0].mxu0 %v6091
      %v6629 = vpop.f32.mrb[0].mxu0
      %v6630 = vadd.f32 0.0, %v6629
      %v6631 = vpop.f32.mrb[0].mxu0
      %v6632 = vpop.f32.mrb[0].mxu0
      %v6633 = vadd.f32 0.0, %v6632
      %v6634 = vpop.f32.mrb[0].mxu0
      %6635 = vmatprep.mubr.bf16.mxu0 0
      %6636 = vmatmul.mubr.bf16.gmra.mrb[0].mxu0 %v6094
      %v6637 = vpop.f32.mrb[0].mxu0
      %v6638 = vadd.f32 0.0, %v6637
      %v6639 = vpop.f32.mrb[0].mxu0
      %v6640 = vpop.f32.mrb[0].mxu0
      %v6641 = vadd.f32 0.0, %v6640
      %v6642 = vpop.f32.mrb[0].mxu0
      %6643 = vdwg.mxu0
      %v6644 = vadd.f32 %v5938, %v6134
      %v6645 = vadd.f32 %v5939, %v6137
      %v6646 = vadd.f32 %v5940, %v6142
      %v6647 = vadd.f32 %v5941, %v6145
      %v6648 = vadd.f32 %v5942, %v6150
      %v6649 = vadd.f32 %v5943, %v6153
      %v6650 = vadd.f32 %v5944, %v6158
      %v6651 = vadd.f32 %v5945, %v6161
      %v6652 = vadd.f32 %v5946, %v6166
      %v6653 = vadd.f32 %v5947, %v6169
      %v6654 = vadd.f32 %v5948, %v6174
      %v6655 = vadd.f32 %v5949, %v6177
      %v6656 = vadd.f32 %v5950, %v6182
      %v6657 = vadd.f32 %v5951, %v6185
      %v6658 = vadd.f32 %v5952, %v6190
      %v6659 = vadd.f32 %v5953, %v6193
      %v6660 = vadd.f32 %v5954, %v6198
      %v6661 = vadd.f32 %v5955, %v6201
      %v6662 = vadd.f32 %v5956, %v6206
      %v6663 = vadd.f32 %v5957, %v6209
      %v6664 = vadd.f32 %v5958, %v6214
      %v6665 = vadd.f32 %v5959, %v6217
      %v6666 = vadd.f32 %v5960, %v6222
      %v6667 = vadd.f32 %v5961, %v6225
      %v6668 = vadd.f32 %v5962, %v6230
      %v6669 = vadd.f32 %v5963, %v6233
      %v6670 = vadd.f32 %v5964, %v6238
      %v6671 = vadd.f32 %v5965, %v6241
      %v6672 = vadd.f32 %v5966, %v6246
      %v6673 = vadd.f32 %v5967, %v6249
      %v6674 = vadd.f32 %v5968, %v6254
      %v6675 = vadd.f32 %v5969, %v6257
      %v6676 = vadd.f32 %v5970, %v6262
      %v6677 = vadd.f32 %v5971, %v6265
      %v6678 = vadd.f32 %v5972, %v6270
      %v6679 = vadd.f32 %v5973, %v6273
      %v6680 = vadd.f32 %v5974, %v6278
      %v6681 = vadd.f32 %v5975, %v6281
      %v6682 = vadd.f32 %v5976, %v6286
      %v6683 = vadd.f32 %v5977, %v6289
      %v6684 = vadd.f32 %v5978, %v6294
      %v6685 = vadd.f32 %v5979, %v6297
      %v6686 = vadd.f32 %v5980, %v6302
      %v6687 = vadd.f32 %v5981, %v6305
      %v6688 = vadd.f32 %v5982, %v6310
      %v6689 = vadd.f32 %v5983, %v6313
      %v6690 = vadd.f32 %v5984, %v6318
      %v6691 = vadd.f32 %v5985, %v6321
      %v6692 = vadd.f32 %v5986, %v6326
      %v6693 = vadd.f32 %v5987, %v6329
      %v6694 = vadd.f32 %v5988, %v6334
      %v6695 = vadd.f32 %v5989, %v6337
      %v6696 = vadd.f32 %v5990, %v6342
      %v6697 = vadd.f32 %v5991, %v6345
      %v6698 = vadd.f32 %v5992, %v6350
      %v6699 = vadd.f32 %v5993, %v6353
      %v6700 = vadd.f32 %v5994, %v6358
      %v6701 = vadd.f32 %v5995, %v6361
      %v6702 = vadd.f32 %v5996, %v6366
      %v6703 = vadd.f32 %v5997, %v6369
      %v6704 = vadd.f32 %v5998, %v6374
      %v6705 = vadd.f32 %v5999, %v6377
      %v6706 = vadd.f32 %v6000, %v6382
      %v6707 = vadd.f32 %v6001, %v6385
      %v6708 = vadd.f32 %v6002, %v6390
      %v6709 = vadd.f32 %v6003, %v6393
      %v6710 = vadd.f32 %v6004, %v6398
      %v6711 = vadd.f32 %v6005, %v6401
      %v6712 = vadd.f32 %v6006, %v6406
      %v6713 = vadd.f32 %v6007, %v6409
      %v6714 = vadd.f32 %v6008, %v6414
      %v6715 = vadd.f32 %v6009, %v6417
      %v6716 = vadd.f32 %v6010, %v6422
      %v6717 = vadd.f32 %v6011, %v6425
      %v6718 = vadd.f32 %v6012, %v6430
      %v6719 = vadd.f32 %v6013, %v6433
      %v6720 = vadd.f32 %v6014, %v6438
      %v6721 = vadd.f32 %v6015, %v6441
      %v6722 = vadd.f32 %v6016, %v6446
      %v6723 = vadd.f32 %v6017, %v6449
      %v6724 = vadd.f32 %v6018, %v6454
      %v6725 = vadd.f32 %v6019, %v6457
      %v6726 = vadd.f32 %v6020, %v6462
      %v6727 = vadd.f32 %v6021, %v6465
      %v6728 = vadd.f32 %v6022, %v6470
      %v6729 = vadd.f32 %v6023, %v6473
      %v6730 = vadd.f32 %v6024, %v6478
      %v6731 = vadd.f32 %v6025, %v6481
      %v6732 = vadd.f32 %v6026, %v6486
      %v6733 = vadd.f32 %v6027, %v6489
      %v6734 = vadd.f32 %v6028, %v6494
      %v6735 = vadd.f32 %v6029, %v6497
      %v6736 = vadd.f32 %v6030, %v6502
      %v6737 = vadd.f32 %v6031, %v6505
      %v6738 = vadd.f32 %v6032, %v6510
      %v6739 = vadd.f32 %v6033, %v6513
      %v6740 = vadd.f32 %v6034, %v6518
      %v6741 = vadd.f32 %v6035, %v6521
      %v6742 = vadd.f32 %v6036, %v6526
      %v6743 = vadd.f32 %v6037, %v6529
      %v6744 = vadd.f32 %v6038, %v6534
      %v6745 = vadd.f32 %v6039, %v6537
      %v6746 = vadd.f32 %v6040, %v6542
      %v6747 = vadd.f32 %v6041, %v6545
      %v6748 = vadd.f32 %v6042, %v6550
      %v6749 = vadd.f32 %v6043, %v6553
      %v6750 = vadd.f32 %v6044, %v6558
      %v6751 = vadd.f32 %v6045, %v6561
      %v6752 = vadd.f32 %v6046, %v6566
      %v6753 = vadd.f32 %v6047, %v6569
      %v6754 = vadd.f32 %v6048, %v6574
      %v6755 = vadd.f32 %v6049, %v6577
      %v6756 = vadd.f32 %v6050, %v6582
      %v6757 = vadd.f32 %v6051, %v6585
      %v6758 = vadd.f32 %v6052, %v6590
      %v6759 = vadd.f32 %v6053, %v6593
      %v6760 = vadd.f32 %v6054, %v6598
      %v6761 = vadd.f32 %v6055, %v6601
      %v6762 = vadd.f32 %v6056, %v6606
      %v6763 = vadd.f32 %v6057, %v6609
      %v6764 = vadd.f32 %v6058, %v6614
      %v6765 = vadd.f32 %v6059, %v6617
      %v6766 = vadd.f32 %v6060, %v6622
      %v6767 = vadd.f32 %v6061, %v6625
      %v6768 = vadd.f32 %v6062, %v6630
      %v6769 = vadd.f32 %v6063, %v6633
      %v6770 = vadd.f32 %v6064, %v6638
      %v6771 = vadd.f32 %v6065, %v6641
      %v6772 = vpack.i.b16 %v1436, %v1435
      %v6774 = vcombine.low %v6772, %v1437
      %v6776 = vunpack.c.l.s4 1966171168
      %v6777 = vunpack.c.0.s8 %v6776
      %v6778 = vlaneseq
      %v6779 = vshrl.u32 %v6778, 7
      %v6780 = vsub.s32 %v6777, %v6779
      %v6781 = vrot.slane %v6774, %v6780
      %v6783 = vunpack.c.l.s4 1966171168
      %v6784 = vunpack.c.0.s8 %v6783
      %v6785 = vlaneseq
      %v6786 = vshrl.u32 %v6785, 7
      %v6787 = vsub.s32 %v6784, %v6786
      %v6788 = vrot.slane %v6781, %v6787
      %v6790 = vand.u32 %v6788, %v2298
      %6792 = vmatprep.subr.bf16.mxu0 0
      %6793 = vmatpush1.bf16.msra.mxu0 %v6790
      %6794 = vmatprep.subr.bf16.mxu0 0
      %6795 = vmatpush1.bf16.msra.mxu0 0
      %6796 = vmatprep.subr.bf16.mxu0 0
      %6797 = vmatpush1.bf16.msra.mxu0 0
      %6798 = vmatprep.subr.bf16.mxu0 0
      %6799 = vmatpush1.bf16.msra.mxu0 0
      %6800 = vmatprep.subr.bf16.mxu0 0
      %6801 = vmatpush1.bf16.msra.mxu0 0
      %6802 = vmatprep.subr.bf16.mxu0 0
      %6803 = vmatpush1.bf16.msra.mxu0 0
      %6804 = vmatprep.subr.bf16.mxu0 0
      %6805 = vmatpush1.bf16.msra.mxu0 0
      %6806 = vmatprep.subr.bf16.mxu0 0
      %6807 = vmatpush1.bf16.msra.mxu0 0
      %6808 = vmatprep.subr.bf16.mxu0 0
      %6809 = vmatpush1.bf16.msra.mxu0 0
      %6810 = vmatprep.subr.bf16.mxu0 0
      %6811 = vmatpush1.bf16.msra.mxu0 0
      %6812 = vmatprep.subr.bf16.mxu0 0
      %6813 = vmatpush1.bf16.msra.mxu0 0
      %6814 = vmatprep.subr.bf16.mxu0 0
      %6815 = vmatpush1.bf16.msra.mxu0 0
      %6816 = vmatprep.subr.bf16.mxu0 0
      %6817 = vmatpush1.bf16.msra.mxu0 0
      %6818 = vmatprep.subr.bf16.mxu0 0
      %6819 = vmatpush1.bf16.msra.mxu0 0
      %6820 = vmatprep.subr.bf16.mxu0 0
      %6821 = vmatpush1.bf16.msra.mxu0 0
      %6822 = vmatprep.subr.bf16.mxu0 0
      %6823 = vmatpush1.bf16.msra.mxu0 0
      %6824 = vmatprep.mubr.bf16.mxu0 0
      %6825 = vmatmul.mubr.bf16.gmra.mrb[0].mxu0 %v2872
      %v6826 = vpop.f32.mrb[0].mxu0
      %v6827 = vadd.f32 0.0, %v6826
      %v6828 = vpop.f32.mrb[0].mxu0
      %v6829 = vpop.f32.mrb[0].mxu0
      %v6830 = vadd.f32 0.0, %v6829
      %v6831 = vpop.f32.mrb[0].mxu0
      %6832 = vmatprep.mubr.bf16.mxu0 0
      %6833 = vmatmul.mubr.bf16.gmra.mrb[0].mxu0 %v2874
      %v6834 = vpop.f32.mrb[0].mxu0
      %v6835 = vadd.f32 0.0, %v6834
      %v6836 = vpop.f32.mrb[0].mxu0
      %v6837 = vpop.f32.mrb[0].mxu0
      %v6838 = vadd.f32 0.0, %v6837
      %v6839 = vpop.f32.mrb[0].mxu0
      %6840 = vmatprep.mubr.bf16.mxu0 0
      %6841 = vmatmul.mubr.bf16.gmra.mrb[0].mxu0 %v2876
      %v6842 = vpop.f32.mrb[0].mxu0
      %v6843 = vadd.f32 0.0, %v6842
      %v6844 = vpop.f32.mrb[0].mxu0
      %v6845 = vpop.f32.mrb[0].mxu0
      %v6846 = vadd.f32 0.0, %v6845
      %v6847 = vpop.f32.mrb[0].mxu0
      %6848 = vmatprep.mubr.bf16.mxu0 0
      %6849 = vmatmul.mubr.bf16.gmra.mrb[0].mxu0 %v2878
      %v6850 = vpop.f32.mrb[0].mxu0
      %v6851 = vadd.f32 0.0, %v6850
      %v6852 = vpop.f32.mrb[0].mxu0
      %v6853 = vpop.f32.mrb[0].mxu0
      %v6854 = vadd.f32 0.0, %v6853
      %v6855 = vpop.f32.mrb[0].mxu0
      %6856 = vmatprep.mubr.bf16.mxu0 0
      %6857 = vmatmul.mubr.bf16.gmra.mrb[0].mxu0 %v2880
      %v6858 = vpop.f32.mrb[0].mxu0
      %v6859 = vadd.f32 0.0, %v6858
      %v6860 = vpop.f32.mrb[0].mxu0
      %v6861 = vpop.f32.mrb[0].mxu0
      %v6862 = vadd.f32 0.0, %v6861
      %v6863 = vpop.f32.mrb[0].mxu0
      %6864 = vmatprep.mubr.bf16.mxu0 0
      %6865 = vmatmul.mubr.bf16.gmra.mrb[0].mxu0 %v2882
      %v6866 = vpop.f32.mrb[0].mxu0
      %v6867 = vadd.f32 0.0, %v6866
      %v6868 = vpop.f32.mrb[0].mxu0
      %v6869 = vpop.f32.mrb[0].mxu0
      %v6870 = vadd.f32 0.0, %v6869
      %v6871 = vpop.f32.mrb[0].mxu0
      %6872 = vmatprep.mubr.bf16.mxu0 0
      %6873 = vmatmul.mubr.bf16.gmra.mrb[0].mxu0 %v2884
      %v6874 = vpop.f32.mrb[0].mxu0
      %v6875 = vadd.f32 0.0, %v6874
      %v6876 = vpop.f32.mrb[0].mxu0
      %v6877 = vpop.f32.mrb[0].mxu0
      %v6878 = vadd.f32 0.0, %v6877
      %v6879 = vpop.f32.mrb[0].mxu0
      %6880 = vmatprep.mubr.bf16.mxu0 0
      %6881 = vmatmul.mubr.bf16.gmra.mrb[0].mxu0 %v2886
      %v6882 = vpop.f32.mrb[0].mxu0
      %v6883 = vadd.f32 0.0, %v6882
      %v6884 = vpop.f32.mrb[0].mxu0
      %v6885 = vpop.f32.mrb[0].mxu0
      %v6886 = vadd.f32 0.0, %v6885
      %v6887 = vpop.f32.mrb[0].mxu0
      %6888 = vmatprep.mubr.bf16.mxu0 0
      %6889 = vmatmul.mubr.bf16.gmra.mrb[0].mxu0 %v2888
      %v6890 = vpop.f32.mrb[0].mxu0
      %v6891 = vadd.f32 0.0, %v6890
      %v6892 = vpop.f32.mrb[0].mxu0
      %v6893 = vpop.f32.mrb[0].mxu0
      %v6894 = vadd.f32 0.0, %v6893
      %v6895 = vpop.f32.mrb[0].mxu0
      %6896 = vmatprep.mubr.bf16.mxu0 0
      %6897 = vmatmul.mubr.bf16.gmra.mrb[0].mxu0 %v2890
      %v6898 = vpop.f32.mrb[0].mxu0
      %v6899 = vadd.f32 0.0, %v6898
      %v6900 = vpop.f32.mrb[0].mxu0
      %v6901 = vpop.f32.mrb[0].mxu0
      %v6902 = vadd.f32 0.0, %v6901
      %v6903 = vpop.f32.mrb[0].mxu0
      %6904 = vmatprep.mubr.bf16.mxu0 0
      %6905 = vmatmul.mubr.bf16.gmra.mrb[0].mxu0 %v2892
      %v6906 = vpop.f32.mrb[0].mxu0
      %v6907 = vadd.f32 0.0, %v6906
      %v6908 = vpop.f32.mrb[0].mxu0
      %v6909 = vpop.f32.mrb[0].mxu0
      %v6910 = vadd.f32 0.0, %v6909
      %v6911 = vpop.f32.mrb[0].mxu0
      %6912 = vmatprep.mubr.bf16.mxu0 0
      %6913 = vmatmul.mubr.bf16.gmra.mrb[0].mxu0 %v2894
      %v6914 = vpop.f32.mrb[0].mxu0
      %v6915 = vadd.f32 0.0, %v6914
      %v6916 = vpop.f32.mrb[0].mxu0
      %v6917 = vpop.f32.mrb[0].mxu0
      %v6918 = vadd.f32 0.0, %v6917
      %v6919 = vpop.f32.mrb[0].mxu0
      %6920 = vmatprep.mubr.bf16.mxu0 0
      %6921 = vmatmul.mubr.bf16.gmra.mrb[0].mxu0 %v2896
      %v6922 = vpop.f32.mrb[0].mxu0
      %v6923 = vadd.f32 0.0, %v6922
      %v6924 = vpop.f32.mrb[0].mxu0
      %v6925 = vpop.f32.mrb[0].mxu0
      %v6926 = vadd.f32 0.0, %v6925
      %v6927 = vpop.f32.mrb[0].mxu0
      %6928 = vmatprep.mubr.bf16.mxu0 0
      %6929 = vmatmul.mubr.bf16.gmra.mrb[0].mxu0 %v2898
      %v6930 = vpop.f32.mrb[0].mxu0
      %v6931 = vadd.f32 0.0, %v6930
      %v6932 = vpop.f32.mrb[0].mxu0
      %v6933 = vpop.f32.mrb[0].mxu0
      %v6934 = vadd.f32 0.0, %v6933
      %v6935 = vpop.f32.mrb[0].mxu0
      %6936 = vmatprep.mubr.bf16.mxu0 0
      %6937 = vmatmul.mubr.bf16.gmra.mrb[0].mxu0 %v2900
      %v6938 = vpop.f32.mrb[0].mxu0
      %v6939 = vadd.f32 0.0, %v6938
      %v6940 = vpop.f32.mrb[0].mxu0
      %v6941 = vpop.f32.mrb[0].mxu0
      %v6942 = vadd.f32 0.0, %v6941
      %v6943 = vpop.f32.mrb[0].mxu0
      %6944 = vmatprep.mubr.bf16.mxu0 0
      %6945 = vmatmul.mubr.bf16.gmra.mrb[0].mxu0 %v2902
      %v6946 = vpop.f32.mrb[0].mxu0
      %v6947 = vadd.f32 0.0, %v6946
      %v6948 = vpop.f32.mrb[0].mxu0
      %v6949 = vpop.f32.mrb[0].mxu0
      %v6950 = vadd.f32 0.0, %v6949
      %v6951 = vpop.f32.mrb[0].mxu0
      %6952 = vmatprep.mubr.bf16.mxu0 0
      %6953 = vmatmul.mubr.bf16.gmra.mrb[0].mxu0 %v2904
      %v6954 = vpop.f32.mrb[0].mxu0
      %v6955 = vadd.f32 0.0, %v6954
      %v6956 = vpop.f32.mrb[0].mxu0
      %v6957 = vpop.f32.mrb[0].mxu0
      %v6958 = vadd.f32 0.0, %v6957
      %v6959 = vpop.f32.mrb[0].mxu0
      %6960 = vmatprep.mubr.bf16.mxu0 0
      %6961 = vmatmul.mubr.bf16.gmra.mrb[0].mxu0 %v2906
      %v6962 = vpop.f32.mrb[0].mxu0
      %v6963 = vadd.f32 0.0, %v6962
      %v6964 = vpop.f32.mrb[0].mxu0
      %v6965 = vpop.f32.mrb[0].mxu0
      %v6966 = vadd.f32 0.0, %v6965
      %v6967 = vpop.f32.mrb[0].mxu0
      %6968 = vmatprep.mubr.bf16.mxu0 0
      %6969 = vmatmul.mubr.bf16.gmra.mrb[0].mxu0 %v2908
      %v6970 = vpop.f32.mrb[0].mxu0
      %v6971 = vadd.f32 0.0, %v6970
      %v6972 = vpop.f32.mrb[0].mxu0
      %v6973 = vpop.f32.mrb[0].mxu0
      %v6974 = vadd.f32 0.0, %v6973
      %v6975 = vpop.f32.mrb[0].mxu0
      %6976 = vmatprep.mubr.bf16.mxu0 0
      %6977 = vmatmul.mubr.bf16.gmra.mrb[0].mxu0 %v2910
      %v6978 = vpop.f32.mrb[0].mxu0
      %v6979 = vadd.f32 0.0, %v6978
      %v6980 = vpop.f32.mrb[0].mxu0
      %v6981 = vpop.f32.mrb[0].mxu0
      %v6982 = vadd.f32 0.0, %v6981
      %v6983 = vpop.f32.mrb[0].mxu0
      %6984 = vmatprep.mubr.bf16.mxu0 0
      %6985 = vmatmul.mubr.bf16.gmra.mrb[0].mxu0 %v2912
      %v6986 = vpop.f32.mrb[0].mxu0
      %v6987 = vadd.f32 0.0, %v6986
      %v6988 = vpop.f32.mrb[0].mxu0
      %v6989 = vpop.f32.mrb[0].mxu0
      %v6990 = vadd.f32 0.0, %v6989
      %v6991 = vpop.f32.mrb[0].mxu0
      %6992 = vmatprep.mubr.bf16.mxu0 0
      %6993 = vmatmul.mubr.bf16.gmra.mrb[0].mxu0 %v2914
      %v6994 = vpop.f32.mrb[0].mxu0
      %v6995 = vadd.f32 0.0, %v6994
      %v6996 = vpop.f32.mrb[0].mxu0
      %v6997 = vpop.f32.mrb[0].mxu0
      %v6998 = vadd.f32 0.0, %v6997
      %v6999 = vpop.f32.mrb[0].mxu0
      %7000 = vmatprep.mubr.bf16.mxu0 0
      %7001 = vmatmul.mubr.bf16.gmra.mrb[0].mxu0 %v2916
      %v7002 = vpop.f32.mrb[0].mxu0
      %v7003 = vadd.f32 0.0, %v7002
      %v7004 = vpop.f32.mrb[0].mxu0
      %v7005 = vpop.f32.mrb[0].mxu0
      %v7006 = vadd.f32 0.0, %v7005
      %v7007 = vpop.f32.mrb[0].mxu0
      %7008 = vmatprep.mubr.bf16.mxu0 0
      %7009 = vmatmul.mubr.bf16.gmra.mrb[0].mxu0 %v2918
      %v7010 = vpop.f32.mrb[0].mxu0
      %v7011 = vadd.f32 0.0, %v7010
      %v7012 = vpop.f32.mrb[0].mxu0
      %v7013 = vpop.f32.mrb[0].mxu0
      %v7014 = vadd.f32 0.0, %v7013
      %v7015 = vpop.f32.mrb[0].mxu0
      %7016 = vmatprep.mubr.bf16.mxu0 0
      %7017 = vmatmul.mubr.bf16.gmra.mrb[0].mxu0 %v2920
      %v7018 = vpop.f32.mrb[0].mxu0
      %v7019 = vadd.f32 0.0, %v7018
      %v7020 = vpop.f32.mrb[0].mxu0
      %v7021 = vpop.f32.mrb[0].mxu0
      %v7022 = vadd.f32 0.0, %v7021
      %v7023 = vpop.f32.mrb[0].mxu0
      %7024 = vmatprep.mubr.bf16.mxu0 0
      %7025 = vmatmul.mubr.bf16.gmra.mrb[0].mxu0 %v2922
      %v7026 = vpop.f32.mrb[0].mxu0
      %v7027 = vadd.f32 0.0, %v7026
      %v7028 = vpop.f32.mrb[0].mxu0
      %v7029 = vpop.f32.mrb[0].mxu0
      %v7030 = vadd.f32 0.0, %v7029
      %v7031 = vpop.f32.mrb[0].mxu0
      %7032 = vmatprep.mubr.bf16.mxu0 0
      %7033 = vmatmul.mubr.bf16.gmra.mrb[0].mxu0 %v2924
      %v7034 = vpop.f32.mrb[0].mxu0
      %v7035 = vadd.f32 0.0, %v7034
      %v7036 = vpop.f32.mrb[0].mxu0
      %v7037 = vpop.f32.mrb[0].mxu0
      %v7038 = vadd.f32 0.0, %v7037
      %v7039 = vpop.f32.mrb[0].mxu0
      %7040 = vmatprep.mubr.bf16.mxu0 0
      %7041 = vmatmul.mubr.bf16.gmra.mrb[0].mxu0 %v2926
      %v7042 = vpop.f32.mrb[0].mxu0
      %v7043 = vadd.f32 0.0, %v7042
      %v7044 = vpop.f32.mrb[0].mxu0
      %v7045 = vpop.f32.mrb[0].mxu0
      %v7046 = vadd.f32 0.0, %v7045
      %v7047 = vpop.f32.mrb[0].mxu0
      %7048 = vmatprep.mubr.bf16.mxu0 0
      %7049 = vmatmul.mubr.bf16.gmra.mrb[0].mxu0 %v2928
      %v7050 = vpop.f32.mrb[0].mxu0
      %v7051 = vadd.f32 0.0, %v7050
      %v7052 = vpop.f32.mrb[0].mxu0
      %v7053 = vpop.f32.mrb[0].mxu0
      %v7054 = vadd.f32 0.0, %v7053
      %v7055 = vpop.f32.mrb[0].mxu0
      %7056 = vmatprep.mubr.bf16.mxu0 0
      %7057 = vmatmul.mubr.bf16.gmra.mrb[0].mxu0 %v2930
      %v7058 = vpop.f32.mrb[0].mxu0
      %v7059 = vadd.f32 0.0, %v7058
      %v7060 = vpop.f32.mrb[0].mxu0
      %v7061 = vpop.f32.mrb[0].mxu0
      %v7062 = vadd.f32 0.0, %v7061
      %v7063 = vpop.f32.mrb[0].mxu0
      %7064 = vmatprep.mubr.bf16.mxu0 0
      %7065 = vmatmul.mubr.bf16.gmra.mrb[0].mxu0 %v2932
      %v7066 = vpop.f32.mrb[0].mxu0
      %v7067 = vadd.f32 0.0, %v7066
      %v7068 = vpop.f32.mrb[0].mxu0
      %v7069 = vpop.f32.mrb[0].mxu0
      %v7070 = vadd.f32 0.0, %v7069
      %v7071 = vpop.f32.mrb[0].mxu0
      %7072 = vmatprep.mubr.bf16.mxu0 0
      %7073 = vmatmul.mubr.bf16.gmra.mrb[0].mxu0 %v2934
      %v7074 = vpop.f32.mrb[0].mxu0
      %v7075 = vadd.f32 0.0, %v7074
      %v7076 = vpop.f32.mrb[0].mxu0
      %v7077 = vpop.f32.mrb[0].mxu0
      %v7078 = vadd.f32 0.0, %v7077
      %v7079 = vpop.f32.mrb[0].mxu0
      %7080 = vmatprep.mubr.bf16.mxu0 0
      %7081 = vmatmul.mubr.bf16.gmra.mrb[0].mxu0 %v2936
      %v7082 = vpop.f32.mrb[0].mxu0
      %v7083 = vadd.f32 0.0, %v7082
      %v7084 = vpop.f32.mrb[0].mxu0
      %v7085 = vpop.f32.mrb[0].mxu0
      %v7086 = vadd.f32 0.0, %v7085
      %v7087 = vpop.f32.mrb[0].mxu0
      %7088 = vmatprep.mubr.bf16.mxu0 0
      %7089 = vmatmul.mubr.bf16.gmra.mrb[0].mxu0 %v2938
      %v7090 = vpop.f32.mrb[0].mxu0
      %v7091 = vadd.f32 0.0, %v7090
      %v7092 = vpop.f32.mrb[0].mxu0
      %v7093 = vpop.f32.mrb[0].mxu0
      %v7094 = vadd.f32 0.0, %v7093
      %v7095 = vpop.f32.mrb[0].mxu0
      %7096 = vmatprep.mubr.bf16.mxu0 0
      %7097 = vmatmul.mubr.bf16.gmra.mrb[0].mxu0 %v2940
      %v7098 = vpop.f32.mrb[0].mxu0
      %v7099 = vadd.f32 0.0, %v7098
      %v7100 = vpop.f32.mrb[0].mxu0
      %v7101 = vpop.f32.mrb[0].mxu0
      %v7102 = vadd.f32 0.0, %v7101
      %v7103 = vpop.f32.mrb[0].mxu0
      %7104 = vmatprep.mubr.bf16.mxu0 0
      %7105 = vmatmul.mubr.bf16.gmra.mrb[0].mxu0 %v2942
      %v7106 = vpop.f32.mrb[0].mxu0
      %v7107 = vadd.f32 0.0, %v7106
      %v7108 = vpop.f32.mrb[0].mxu0
      %v7109 = vpop.f32.mrb[0].mxu0
      %v7110 = vadd.f32 0.0, %v7109
      %v7111 = vpop.f32.mrb[0].mxu0
      %7112 = vmatprep.mubr.bf16.mxu0 0
      %7113 = vmatmul.mubr.bf16.gmra.mrb[0].mxu0 %v2944
      %v7114 = vpop.f32.mrb[0].mxu0
      %v7115 = vadd.f32 0.0, %v7114
      %v7116 = vpop.f32.mrb[0].mxu0
      %v7117 = vpop.f32.mrb[0].mxu0
      %v7118 = vadd.f32 0.0, %v7117
      %v7119 = vpop.f32.mrb[0].mxu0
      %7120 = vmatprep.mubr.bf16.mxu0 0
      %7121 = vmatmul.mubr.bf16.gmra.mrb[0].mxu0 %v2946
      %v7122 = vpop.f32.mrb[0].mxu0
      %v7123 = vadd.f32 0.0, %v7122
      %v7124 = vpop.f32.mrb[0].mxu0
      %v7125 = vpop.f32.mrb[0].mxu0
      %v7126 = vadd.f32 0.0, %v7125
      %v7127 = vpop.f32.mrb[0].mxu0
      %7128 = vmatprep.mubr.bf16.mxu0 0
      %7129 = vmatmul.mubr.bf16.gmra.mrb[0].mxu0 %v2948
      %v7130 = vpop.f32.mrb[0].mxu0
      %v7131 = vadd.f32 0.0, %v7130
      %v7132 = vpop.f32.mrb[0].mxu0
      %v7133 = vpop.f32.mrb[0].mxu0
      %v7134 = vadd.f32 0.0, %v7133
      %v7135 = vpop.f32.mrb[0].mxu0
      %7136 = vmatprep.mubr.bf16.mxu0 0
      %7137 = vmatmul.mubr.bf16.gmra.mrb[0].mxu0 %v2950
      %v7138 = vpop.f32.mrb[0].mxu0
      %v7139 = vadd.f32 0.0, %v7138
      %v7140 = vpop.f32.mrb[0].mxu0
      %v7141 = vpop.f32.mrb[0].mxu0
      %v7142 = vadd.f32 0.0, %v7141
      %v7143 = vpop.f32.mrb[0].mxu0
      %7144 = vmatprep.mubr.bf16.mxu0 0
      %7145 = vmatmul.mubr.bf16.gmra.mrb[0].mxu0 %v2952
      %v7146 = vpop.f32.mrb[0].mxu0
      %v7147 = vadd.f32 0.0, %v7146
      %v7148 = vpop.f32.mrb[0].mxu0
      %v7149 = vpop.f32.mrb[0].mxu0
      %v7150 = vadd.f32 0.0, %v7149
      %v7151 = vpop.f32.mrb[0].mxu0
      %7152 = vmatprep.mubr.bf16.mxu0 0
      %7153 = vmatmul.mubr.bf16.gmra.mrb[0].mxu0 %v2954
      %v7154 = vpop.f32.mrb[0].mxu0
      %v7155 = vadd.f32 0.0, %v7154
      %v7156 = vpop.f32.mrb[0].mxu0
      %v7157 = vpop.f32.mrb[0].mxu0
      %v7158 = vadd.f32 0.0, %v7157
      %v7159 = vpop.f32.mrb[0].mxu0
      %7160 = vmatprep.mubr.bf16.mxu0 0
      %7161 = vmatmul.mubr.bf16.gmra.mrb[0].mxu0 %v2956
      %v7162 = vpop.f32.mrb[0].mxu0
      %v7163 = vadd.f32 0.0, %v7162
      %v7164 = vpop.f32.mrb[0].mxu0
      %v7165 = vpop.f32.mrb[0].mxu0
      %v7166 = vadd.f32 0.0, %v7165
      %v7167 = vpop.f32.mrb[0].mxu0
      %7168 = vmatprep.mubr.bf16.mxu0 0
      %7169 = vmatmul.mubr.bf16.gmra.mrb[0].mxu0 %v2958
      %v7170 = vpop.f32.mrb[0].mxu0
      %v7171 = vadd.f32 0.0, %v7170
      %v7172 = vpop.f32.mrb[0].mxu0
      %v7173 = vpop.f32.mrb[0].mxu0
      %v7174 = vadd.f32 0.0, %v7173
      %v7175 = vpop.f32.mrb[0].mxu0
      %7176 = vmatprep.mubr.bf16.mxu0 0
      %7177 = vmatmul.mubr.bf16.gmra.mrb[0].mxu0 %v2960
      %v7178 = vpop.f32.mrb[0].mxu0
      %v7179 = vadd.f32 0.0, %v7178
      %v7180 = vpop.f32.mrb[0].mxu0
      %v7181 = vpop.f32.mrb[0].mxu0
      %v7182 = vadd.f32 0.0, %v7181
      %v7183 = vpop.f32.mrb[0].mxu0
      %7184 = vmatprep.mubr.bf16.mxu0 0
      %7185 = vmatmul.mubr.bf16.gmra.mrb[0].mxu0 %v2962
      %v7186 = vpop.f32.mrb[0].mxu0
      %v7187 = vadd.f32 0.0, %v7186
      %v7188 = vpop.f32.mrb[0].mxu0
      %v7189 = vpop.f32.mrb[0].mxu0
      %v7190 = vadd.f32 0.0, %v7189
      %v7191 = vpop.f32.mrb[0].mxu0
      %7192 = vmatprep.mubr.bf16.mxu0 0
      %7193 = vmatmul.mubr.bf16.gmra.mrb[0].mxu0 %v2964
      %v7194 = vpop.f32.mrb[0].mxu0
      %v7195 = vadd.f32 0.0, %v7194
      %v7196 = vpop.f32.mrb[0].mxu0
      %v7197 = vpop.f32.mrb[0].mxu0
      %v7198 = vadd.f32 0.0, %v7197
      %v7199 = vpop.f32.mrb[0].mxu0
      %7200 = vmatprep.mubr.bf16.mxu0 0
      %7201 = vmatmul.mubr.bf16.gmra.mrb[0].mxu0 %v2966
      %v7202 = vpop.f32.mrb[0].mxu0
      %v7203 = vadd.f32 0.0, %v7202
      %v7204 = vpop.f32.mrb[0].mxu0
      %v7205 = vpop.f32.mrb[0].mxu0
      %v7206 = vadd.f32 0.0, %v7205
      %v7207 = vpop.f32.mrb[0].mxu0
      %7208 = vmatprep.mubr.bf16.mxu0 0
      %7209 = vmatmul.mubr.bf16.gmra.mrb[0].mxu0 %v2968
      %v7210 = vpop.f32.mrb[0].mxu0
      %v7211 = vadd.f32 0.0, %v7210
      %v7212 = vpop.f32.mrb[0].mxu0
      %v7213 = vpop.f32.mrb[0].mxu0
      %v7214 = vadd.f32 0.0, %v7213
      %v7215 = vpop.f32.mrb[0].mxu0
      %7216 = vmatprep.mubr.bf16.mxu0 0
      %7217 = vmatmul.mubr.bf16.gmra.mrb[0].mxu0 %v2970
      %v7218 = vpop.f32.mrb[0].mxu0
      %v7219 = vadd.f32 0.0, %v7218
      %v7220 = vpop.f32.mrb[0].mxu0
      %v7221 = vpop.f32.mrb[0].mxu0
      %v7222 = vadd.f32 0.0, %v7221
      %v7223 = vpop.f32.mrb[0].mxu0
      %7224 = vmatprep.mubr.bf16.mxu0 0
      %7225 = vmatmul.mubr.bf16.gmra.mrb[0].mxu0 %v2972
      %v7226 = vpop.f32.mrb[0].mxu0
      %v7227 = vadd.f32 0.0, %v7226
      %v7228 = vpop.f32.mrb[0].mxu0
      %v7229 = vpop.f32.mrb[0].mxu0
      %v7230 = vadd.f32 0.0, %v7229
      %v7231 = vpop.f32.mrb[0].mxu0
      %7232 = vmatprep.mubr.bf16.mxu0 0
      %7233 = vmatmul.mubr.bf16.gmra.mrb[0].mxu0 %v2974
      %v7234 = vpop.f32.mrb[0].mxu0
      %v7235 = vadd.f32 0.0, %v7234
      %v7236 = vpop.f32.mrb[0].mxu0
      %v7237 = vpop.f32.mrb[0].mxu0
      %v7238 = vadd.f32 0.0, %v7237
      %v7239 = vpop.f32.mrb[0].mxu0
      %7240 = vmatprep.mubr.bf16.mxu0 0
      %7241 = vmatmul.mubr.bf16.gmra.mrb[0].mxu0 %v2976
      %v7242 = vpop.f32.mrb[0].mxu0
      %v7243 = vadd.f32 0.0, %v7242
      %v7244 = vpop.f32.mrb[0].mxu0
      %v7245 = vpop.f32.mrb[0].mxu0
      %v7246 = vadd.f32 0.0, %v7245
      %v7247 = vpop.f32.mrb[0].mxu0
      %7248 = vmatprep.mubr.bf16.mxu0 0
      %7249 = vmatmul.mubr.bf16.gmra.mrb[0].mxu0 %v2978
      %v7250 = vpop.f32.mrb[0].mxu0
      %v7251 = vadd.f32 0.0, %v7250
      %v7252 = vpop.f32.mrb[0].mxu0
      %v7253 = vpop.f32.mrb[0].mxu0
      %v7254 = vadd.f32 0.0, %v7253
      %v7255 = vpop.f32.mrb[0].mxu0
      %7256 = vmatprep.mubr.bf16.mxu0 0
      %7257 = vmatmul.mubr.bf16.gmra.mrb[0].mxu0 %v2980
      %v7258 = vpop.f32.mrb[0].mxu0
      %v7259 = vadd.f32 0.0, %v7258
      %v7260 = vpop.f32.mrb[0].mxu0
      %v7261 = vpop.f32.mrb[0].mxu0
      %v7262 = vadd.f32 0.0, %v7261
      %v7263 = vpop.f32.mrb[0].mxu0
      %7264 = vmatprep.mubr.bf16.mxu0 0
      %7265 = vmatmul.mubr.bf16.gmra.mrb[0].mxu0 %v2982
      %v7266 = vpop.f32.mrb[0].mxu0
      %v7267 = vadd.f32 0.0, %v7266
      %v7268 = vpop.f32.mrb[0].mxu0
      %v7269 = vpop.f32.mrb[0].mxu0
      %v7270 = vadd.f32 0.0, %v7269
      %v7271 = vpop.f32.mrb[0].mxu0
      %7272 = vmatprep.mubr.bf16.mxu0 0
      %7273 = vmatmul.mubr.bf16.gmra.mrb[0].mxu0 %v2984
      %v7274 = vpop.f32.mrb[0].mxu0
      %v7275 = vadd.f32 0.0, %v7274
      %v7276 = vpop.f32.mrb[0].mxu0
      %v7277 = vpop.f32.mrb[0].mxu0
      %v7278 = vadd.f32 0.0, %v7277
      %v7279 = vpop.f32.mrb[0].mxu0
      %7280 = vmatprep.mubr.bf16.mxu0 0
      %7281 = vmatmul.mubr.bf16.gmra.mrb[0].mxu0 %v2986
      %v7282 = vpop.f32.mrb[0].mxu0
      %v7283 = vadd.f32 0.0, %v7282
      %v7284 = vpop.f32.mrb[0].mxu0
      %v7285 = vpop.f32.mrb[0].mxu0
      %v7286 = vadd.f32 0.0, %v7285
      %v7287 = vpop.f32.mrb[0].mxu0
      %7288 = vmatprep.mubr.bf16.mxu0 0
      %7289 = vmatmul.mubr.bf16.gmra.mrb[0].mxu0 %v2988
      %v7290 = vpop.f32.mrb[0].mxu0
      %v7291 = vadd.f32 0.0, %v7290
      %v7292 = vpop.f32.mrb[0].mxu0
      %v7293 = vpop.f32.mrb[0].mxu0
      %v7294 = vadd.f32 0.0, %v7293
      %v7295 = vpop.f32.mrb[0].mxu0
      %7296 = vmatprep.mubr.bf16.mxu0 0
      %7297 = vmatmul.mubr.bf16.gmra.mrb[0].mxu0 %v2990
      %v7298 = vpop.f32.mrb[0].mxu0
      %v7299 = vadd.f32 0.0, %v7298
      %v7300 = vpop.f32.mrb[0].mxu0
      %v7301 = vpop.f32.mrb[0].mxu0
      %v7302 = vadd.f32 0.0, %v7301
      %v7303 = vpop.f32.mrb[0].mxu0
      %7304 = vmatprep.mubr.bf16.mxu0 0
      %7305 = vmatmul.mubr.bf16.gmra.mrb[0].mxu0 %v4668
      %v7306 = vpop.f32.mrb[0].mxu0
      %v7307 = vadd.f32 0.0, %v7306
      %v7308 = vpop.f32.mrb[0].mxu0
      %v7309 = vpop.f32.mrb[0].mxu0
      %v7310 = vadd.f32 0.0, %v7309
      %v7311 = vpop.f32.mrb[0].mxu0
      %7312 = vmatprep.mubr.bf16.mxu0 0
      %7313 = vmatmul.mubr.bf16.gmra.mrb[0].mxu0 %v4671
      %v7314 = vpop.f32.mrb[0].mxu0
      %v7315 = vadd.f32 0.0, %v7314
      %v7316 = vpop.f32.mrb[0].mxu0
      %v7317 = vpop.f32.mrb[0].mxu0
      %v7318 = vadd.f32 0.0, %v7317
      %v7319 = vpop.f32.mrb[0].mxu0
      %7320 = vmatprep.mubr.bf16.mxu0 0
      %7321 = vmatmul.mubr.bf16.gmra.mrb[0].mxu0 %v2864
      %v7322 = vpop.f32.mrb[0].mxu0
      %v7323 = vadd.f32 0.0, %v7322
      %v7324 = vpop.f32.mrb[0].mxu0
      %v7325 = vpop.f32.mrb[0].mxu0
      %v7326 = vadd.f32 0.0, %v7325
      %v7327 = vpop.f32.mrb[0].mxu0
      %7328 = vmatprep.mubr.bf16.mxu0 0
      %7329 = vmatmul.mubr.bf16.gmra.mrb[0].mxu0 %v2866
      %v7330 = vpop.f32.mrb[0].mxu0
      %v7331 = vadd.f32 0.0, %v7330
      %v7332 = vpop.f32.mrb[0].mxu0
      %v7333 = vpop.f32.mrb[0].mxu0
      %v7334 = vadd.f32 0.0, %v7333
      %v7335 = vpop.f32.mrb[0].mxu0
      %7336 = vdwg.mxu0
      %v7337 = vadd.f32 %v6644, %v6827
      %v7338 = vadd.f32 %v6645, %v6830
      %v7339 = vadd.f32 %v6646, %v6835
      %v7340 = vadd.f32 %v6647, %v6838
      %v7341 = vadd.f32 %v6648, %v6843
      %v7342 = vadd.f32 %v6649, %v6846
      %v7343 = vadd.f32 %v6650, %v6851
      %v7344 = vadd.f32 %v6651, %v6854
      %v7345 = vadd.f32 %v6652, %v6859
      %v7346 = vadd.f32 %v6653, %v6862
      %v7347 = vadd.f32 %v6654, %v6867
      %v7348 = vadd.f32 %v6655, %v6870
      %v7349 = vadd.f32 %v6656, %v6875
      %v7350 = vadd.f32 %v6657, %v6878
      %v7351 = vadd.f32 %v6658, %v6883
      %v7352 = vadd.f32 %v6659, %v6886
      %v7353 = vadd.f32 %v6660, %v6891
      %v7354 = vadd.f32 %v6661, %v6894
      %v7355 = vadd.f32 %v6662, %v6899
      %v7356 = vadd.f32 %v6663, %v6902
      %v7357 = vadd.f32 %v6664, %v6907
      %v7358 = vadd.f32 %v6665, %v6910
      %v7359 = vadd.f32 %v6666, %v6915
      %v7360 = vadd.f32 %v6667, %v6918
      %v7361 = vadd.f32 %v6668, %v6923
      %v7362 = vadd.f32 %v6669, %v6926
      %v7363 = vadd.f32 %v6670, %v6931
      %v7364 = vadd.f32 %v6671, %v6934
      %v7365 = vadd.f32 %v6672, %v6939
      %v7366 = vadd.f32 %v6673, %v6942
      %v7367 = vadd.f32 %v6674, %v6947
      %v7368 = vadd.f32 %v6675, %v6950
      %v7369 = vadd.f32 %v6676, %v6955
      %v7370 = vadd.f32 %v6677, %v6958
      %v7371 = vadd.f32 %v6678, %v6963
      %v7372 = vadd.f32 %v6679, %v6966
      %v7373 = vadd.f32 %v6680, %v6971
      %v7374 = vadd.f32 %v6681, %v6974
      %v7375 = vadd.f32 %v6682, %v6979
      %v7376 = vadd.f32 %v6683, %v6982
      %v7377 = vadd.f32 %v6684, %v6987
      %v7378 = vadd.f32 %v6685, %v6990
      %v7379 = vadd.f32 %v6686, %v6995
      %v7380 = vadd.f32 %v6687, %v6998
      %v7381 = vadd.f32 %v6688, %v7003
      %v7382 = vadd.f32 %v6689, %v7006
      %v7383 = vadd.f32 %v6690, %v7011
      %v7384 = vadd.f32 %v6691, %v7014
      %v7385 = vadd.f32 %v6692, %v7019
      %v7386 = vadd.f32 %v6693, %v7022
      %v7387 = vadd.f32 %v6694, %v7027
      %v7388 = vadd.f32 %v6695, %v7030
      %v7389 = vadd.f32 %v6696, %v7035
      %v7390 = vadd.f32 %v6697, %v7038
      %v7391 = vadd.f32 %v6698, %v7043
      %v7392 = vadd.f32 %v6699, %v7046
      %v7393 = vadd.f32 %v6700, %v7051
      %v7394 = vadd.f32 %v6701, %v7054
      %v7395 = vadd.f32 %v6702, %v7059
      %v7396 = vadd.f32 %v6703, %v7062
      %v7397 = vadd.f32 %v6704, %v7067
      %v7398 = vadd.f32 %v6705, %v7070
      %v7399 = vadd.f32 %v6706, %v7075
      %v7400 = vadd.f32 %v6707, %v7078
      %v7401 = vadd.f32 %v6708, %v7083
      %v7402 = vadd.f32 %v6709, %v7086
      %v7403 = vadd.f32 %v6710, %v7091
      %v7404 = vadd.f32 %v6711, %v7094
      %v7405 = vadd.f32 %v6712, %v7099
      %v7406 = vadd.f32 %v6713, %v7102
      %v7407 = vadd.f32 %v6714, %v7107
      %v7408 = vadd.f32 %v6715, %v7110
      %v7409 = vadd.f32 %v6716, %v7115
      %v7410 = vadd.f32 %v6717, %v7118
      %v7411 = vadd.f32 %v6718, %v7123
      %v7412 = vadd.f32 %v6719, %v7126
      %v7413 = vadd.f32 %v6720, %v7131
      %v7414 = vadd.f32 %v6721, %v7134
      %v7415 = vadd.f32 %v6722, %v7139
      %v7416 = vadd.f32 %v6723, %v7142
      %v7417 = vadd.f32 %v6724, %v7147
      %v7418 = vadd.f32 %v6725, %v7150
      %v7419 = vadd.f32 %v6726, %v7155
      %v7420 = vadd.f32 %v6727, %v7158
      %v7421 = vadd.f32 %v6728, %v7163
      %v7422 = vadd.f32 %v6729, %v7166
      %v7423 = vadd.f32 %v6730, %v7171
      %v7424 = vadd.f32 %v6731, %v7174
      %v7425 = vadd.f32 %v6732, %v7179
      %v7426 = vadd.f32 %v6733, %v7182
      %v7427 = vadd.f32 %v6734, %v7187
      %v7428 = vadd.f32 %v6735, %v7190
      %v7429 = vadd.f32 %v6736, %v7195
      %v7430 = vadd.f32 %v6737, %v7198
      %v7431 = vadd.f32 %v6738, %v7203
      %v7432 = vadd.f32 %v6739, %v7206
      %v7433 = vadd.f32 %v6740, %v7211
      %v7434 = vadd.f32 %v6741, %v7214
      %v7435 = vadd.f32 %v6742, %v7219
      %v7436 = vadd.f32 %v6743, %v7222
      %v7437 = vadd.f32 %v6744, %v7227
      %v7438 = vadd.f32 %v6745, %v7230
      %v7439 = vadd.f32 %v6746, %v7235
      %v7440 = vadd.f32 %v6747, %v7238
      %v7441 = vadd.f32 %v6748, %v7243
      %v7442 = vadd.f32 %v6749, %v7246
      %v7443 = vadd.f32 %v6750, %v7251
      %v7444 = vadd.f32 %v6751, %v7254
      %v7445 = vadd.f32 %v6752, %v7259
      %v7446 = vadd.f32 %v6753, %v7262
      %v7447 = vadd.f32 %v6754, %v7267
      %v7448 = vadd.f32 %v6755, %v7270
      %v7449 = vadd.f32 %v6756, %v7275
      %v7450 = vadd.f32 %v6757, %v7278
      %v7451 = vadd.f32 %v6758, %v7283
      %v7452 = vadd.f32 %v6759, %v7286
      %v7453 = vadd.f32 %v6760, %v7291
      %v7454 = vadd.f32 %v6761, %v7294
      %v7455 = vadd.f32 %v6762, %v7299
      %v7456 = vadd.f32 %v6763, %v7302
      %v7457 = vadd.f32 %v6764, %v7307
      %v7458 = vadd.f32 %v6765, %v7310
      %v7459 = vadd.f32 %v6766, %v7315
      %v7460 = vadd.f32 %v6767, %v7318
      %v7461 = vadd.f32 %v6768, %v7323
      %v7462 = vadd.f32 %v6769, %v7326
      %v7463 = vadd.f32 %v6770, %v7331
      %v7464 = vadd.f32 %v6771, %v7334
      %v7465 = vpack.i.b16 %v1439, %v1438
      %v7467 = vcombine.low %v7465, %v1440
      %v7469 = vunpack.c.l.s4 1966171168
      %v7470 = vunpack.c.0.s8 %v7469
      %v7471 = vlaneseq
      %v7472 = vshrl.u32 %v7471, 7
      %v7473 = vsub.s32 %v7470, %v7472
      %v7474 = vrot.slane %v7467, %v7473
      %v7476 = vunpack.c.l.s4 1966171168
      %v7477 = vunpack.c.0.s8 %v7476
      %v7478 = vlaneseq
      %v7479 = vshrl.u32 %v7478, 7
      %v7480 = vsub.s32 %v7477, %v7479
      %v7481 = vrot.slane %v7474, %v7480
      %v7483 = vand.u32 %v7481, %v2298
      %7485 = vmatprep.subr.bf16.mxu0 0
      %7486 = vmatpush1.bf16.msra.mxu0 %v7483
      %7487 = vmatprep.subr.bf16.mxu0 0
      %7488 = vmatpush1.bf16.msra.mxu0 0
      %7489 = vmatprep.subr.bf16.mxu0 0
      %7490 = vmatpush1.bf16.msra.mxu0 0
      %7491 = vmatprep.subr.bf16.mxu0 0
      %7492 = vmatpush1.bf16.msra.mxu0 0
      %7493 = vmatprep.subr.bf16.mxu0 0
      %7494 = vmatpush1.bf16.msra.mxu0 0
      %7495 = vmatprep.subr.bf16.mxu0 0
      %7496 = vmatpush1.bf16.msra.mxu0 0
      %7497 = vmatprep.subr.bf16.mxu0 0
      %7498 = vmatpush1.bf16.msra.mxu0 0
      %7499 = vmatprep.subr.bf16.mxu0 0
      %7500 = vmatpush1.bf16.msra.mxu0 0
      %7501 = vmatprep.subr.bf16.mxu0 0
      %7502 = vmatpush1.bf16.msra.mxu0 0
      %7503 = vmatprep.subr.bf16.mxu0 0
      %7504 = vmatpush1.bf16.msra.mxu0 0
      %7505 = vmatprep.subr.bf16.mxu0 0
      %7506 = vmatpush1.bf16.msra.mxu0 0
      %7507 = vmatprep.subr.bf16.mxu0 0
      %7508 = vmatpush1.bf16.msra.mxu0 0
      %7509 = vmatprep.subr.bf16.mxu0 0
      %7510 = vmatpush1.bf16.msra.mxu0 0
      %7511 = vmatprep.subr.bf16.mxu0 0
      %7512 = vmatpush1.bf16.msra.mxu0 0
      %7513 = vmatprep.subr.bf16.mxu0 0
      %7514 = vmatpush1.bf16.msra.mxu0 0
      %7515 = vmatprep.subr.bf16.mxu0 0
      %7516 = vmatpush1.bf16.msra.mxu0 0
      %7517 = vmatprep.mubr.bf16.mxu0 0
      %7518 = vmatmul.mubr.bf16.gmra.mrb[0].mxu0 %v2116
      %v7519 = vpop.f32.mrb[0].mxu0
      %v7520 = vadd.f32 0.0, %v7519
      %v7521 = vpop.f32.mrb[0].mxu0
      %v7522 = vpop.f32.mrb[0].mxu0
      %v7523 = vadd.f32 0.0, %v7522
      %v7524 = vpop.f32.mrb[0].mxu0
      %7525 = vmatprep.mubr.bf16.mxu0 0
      %7526 = vmatmul.mubr.bf16.gmra.mrb[0].mxu0 %v2119
      %v7527 = vpop.f32.mrb[0].mxu0
      %v7528 = vadd.f32 0.0, %v7527
      %v7529 = vpop.f32.mrb[0].mxu0
      %v7530 = vpop.f32.mrb[0].mxu0
      %v7531 = vadd.f32 0.0, %v7530
      %v7532 = vpop.f32.mrb[0].mxu0
      %7533 = vmatprep.mubr.bf16.mxu0 0
      %7534 = vmatmul.mubr.bf16.gmra.mrb[0].mxu0 %v2122
      %v7535 = vpop.f32.mrb[0].mxu0
      %v7536 = vadd.f32 0.0, %v7535
      %v7537 = vpop.f32.mrb[0].mxu0
      %v7538 = vpop.f32.mrb[0].mxu0
      %v7539 = vadd.f32 0.0, %v7538
      %v7540 = vpop.f32.mrb[0].mxu0
      %7541 = vmatprep.mubr.bf16.mxu0 0
      %7542 = vmatmul.mubr.bf16.gmra.mrb[0].mxu0 %v2125
      %v7543 = vpop.f32.mrb[0].mxu0
      %v7544 = vadd.f32 0.0, %v7543
      %v7545 = vpop.f32.mrb[0].mxu0
      %v7546 = vpop.f32.mrb[0].mxu0
      %v7547 = vadd.f32 0.0, %v7546
      %v7548 = vpop.f32.mrb[0].mxu0
      %7549 = vmatprep.mubr.bf16.mxu0 0
      %7550 = vmatmul.mubr.bf16.gmra.mrb[0].mxu0 %v2128
      %v7551 = vpop.f32.mrb[0].mxu0
      %v7552 = vadd.f32 0.0, %v7551
      %v7553 = vpop.f32.mrb[0].mxu0
      %v7554 = vpop.f32.mrb[0].mxu0
      %v7555 = vadd.f32 0.0, %v7554
      %v7556 = vpop.f32.mrb[0].mxu0
      %7557 = vmatprep.mubr.bf16.mxu0 0
      %7558 = vmatmul.mubr.bf16.gmra.mrb[0].mxu0 %v2131
      %v7559 = vpop.f32.mrb[0].mxu0
      %v7560 = vadd.f32 0.0, %v7559
      %v7561 = vpop.f32.mrb[0].mxu0
      %v7562 = vpop.f32.mrb[0].mxu0
      %v7563 = vadd.f32 0.0, %v7562
      %v7564 = vpop.f32.mrb[0].mxu0
      %7565 = vmatprep.mubr.bf16.mxu0 0
      %7566 = vmatmul.mubr.bf16.gmra.mrb[0].mxu0 %v2134
      %v7567 = vpop.f32.mrb[0].mxu0
      %v7568 = vadd.f32 0.0, %v7567
      %v7569 = vpop.f32.mrb[0].mxu0
      %v7570 = vpop.f32.mrb[0].mxu0
      %v7571 = vadd.f32 0.0, %v7570
      %v7572 = vpop.f32.mrb[0].mxu0
      %7573 = vmatprep.mubr.bf16.mxu0 0
      %7574 = vmatmul.mubr.bf16.gmra.mrb[0].mxu0 %v2137
      %v7575 = vpop.f32.mrb[0].mxu0
      %v7576 = vadd.f32 0.0, %v7575
      %v7577 = vpop.f32.mrb[0].mxu0
      %v7578 = vpop.f32.mrb[0].mxu0
      %v7579 = vadd.f32 0.0, %v7578
      %v7580 = vpop.f32.mrb[0].mxu0
      %7581 = vmatprep.mubr.bf16.mxu0 0
      %7582 = vmatmul.mubr.bf16.gmra.mrb[0].mxu0 %v2140
      %v7583 = vpop.f32.mrb[0].mxu0
      %v7584 = vadd.f32 0.0, %v7583
      %v7585 = vpop.f32.mrb[0].mxu0
      %v7586 = vpop.f32.mrb[0].mxu0
      %v7587 = vadd.f32 0.0, %v7586
      %v7588 = vpop.f32.mrb[0].mxu0
      %7589 = vmatprep.mubr.bf16.mxu0 0
      %7590 = vmatmul.mubr.bf16.gmra.mrb[0].mxu0 %v2143
      %v7591 = vpop.f32.mrb[0].mxu0
      %v7592 = vadd.f32 0.0, %v7591
      %v7593 = vpop.f32.mrb[0].mxu0
      %v7594 = vpop.f32.mrb[0].mxu0
      %v7595 = vadd.f32 0.0, %v7594
      %v7596 = vpop.f32.mrb[0].mxu0
      %7597 = vmatprep.mubr.bf16.mxu0 0
      %7598 = vmatmul.mubr.bf16.gmra.mrb[0].mxu0 %v2146
      %v7599 = vpop.f32.mrb[0].mxu0
      %v7600 = vadd.f32 0.0, %v7599
      %v7601 = vpop.f32.mrb[0].mxu0
      %v7602 = vpop.f32.mrb[0].mxu0
      %v7603 = vadd.f32 0.0, %v7602
      %v7604 = vpop.f32.mrb[0].mxu0
      %7605 = vmatprep.mubr.bf16.mxu0 0
      %7606 = vmatmul.mubr.bf16.gmra.mrb[0].mxu0 %v2149
      %v7607 = vpop.f32.mrb[0].mxu0
      %v7608 = vadd.f32 0.0, %v7607
      %v7609 = vpop.f32.mrb[0].mxu0
      %v7610 = vpop.f32.mrb[0].mxu0
      %v7611 = vadd.f32 0.0, %v7610
      %v7612 = vpop.f32.mrb[0].mxu0
      %7613 = vmatprep.mubr.bf16.mxu0 0
      %7614 = vmatmul.mubr.bf16.gmra.mrb[0].mxu0 %v2152
      %v7615 = vpop.f32.mrb[0].mxu0
      %v7616 = vadd.f32 0.0, %v7615
      %v7617 = vpop.f32.mrb[0].mxu0
      %v7618 = vpop.f32.mrb[0].mxu0
      %v7619 = vadd.f32 0.0, %v7618
      %v7620 = vpop.f32.mrb[0].mxu0
      %7621 = vmatprep.mubr.bf16.mxu0 0
      %7622 = vmatmul.mubr.bf16.gmra.mrb[0].mxu0 %v2155
      %v7623 = vpop.f32.mrb[0].mxu0
      %v7624 = vadd.f32 0.0, %v7623
      %v7625 = vpop.f32.mrb[0].mxu0
      %v7626 = vpop.f32.mrb[0].mxu0
      %v7627 = vadd.f32 0.0, %v7626
      %v7628 = vpop.f32.mrb[0].mxu0
      %7629 = vmatprep.mubr.bf16.mxu0 0
      %7630 = vmatmul.mubr.bf16.gmra.mrb[0].mxu0 %v2158
      %v7631 = vpop.f32.mrb[0].mxu0
      %v7632 = vadd.f32 0.0, %v7631
      %v7633 = vpop.f32.mrb[0].mxu0
      %v7634 = vpop.f32.mrb[0].mxu0
      %v7635 = vadd.f32 0.0, %v7634
      %v7636 = vpop.f32.mrb[0].mxu0
      %7637 = vmatprep.mubr.bf16.mxu0 0
      %7638 = vmatmul.mubr.bf16.gmra.mrb[0].mxu0 %v2161
      %v7639 = vpop.f32.mrb[0].mxu0
      %v7640 = vadd.f32 0.0, %v7639
      %v7641 = vpop.f32.mrb[0].mxu0
      %v7642 = vpop.f32.mrb[0].mxu0
      %v7643 = vadd.f32 0.0, %v7642
      %v7644 = vpop.f32.mrb[0].mxu0
      %7645 = vmatprep.mubr.bf16.mxu0 0
      %7646 = vmatmul.mubr.bf16.gmra.mrb[0].mxu0 %v2164
      %v7647 = vpop.f32.mrb[0].mxu0
      %v7648 = vadd.f32 0.0, %v7647
      %v7649 = vpop.f32.mrb[0].mxu0
      %v7650 = vpop.f32.mrb[0].mxu0
      %v7651 = vadd.f32 0.0, %v7650
      %v7652 = vpop.f32.mrb[0].mxu0
      %7653 = vmatprep.mubr.bf16.mxu0 0
      %7654 = vmatmul.mubr.bf16.gmra.mrb[0].mxu0 %v2167
      %v7655 = vpop.f32.mrb[0].mxu0
      %v7656 = vadd.f32 0.0, %v7655
      %v7657 = vpop.f32.mrb[0].mxu0
      %v7658 = vpop.f32.mrb[0].mxu0
      %v7659 = vadd.f32 0.0, %v7658
      %v7660 = vpop.f32.mrb[0].mxu0
      %7661 = vmatprep.mubr.bf16.mxu0 0
      %7662 = vmatmul.mubr.bf16.gmra.mrb[0].mxu0 %v2170
      %v7663 = vpop.f32.mrb[0].mxu0
      %v7664 = vadd.f32 0.0, %v7663
      %v7665 = vpop.f32.mrb[0].mxu0
      %v7666 = vpop.f32.mrb[0].mxu0
      %v7667 = vadd.f32 0.0, %v7666
      %v7668 = vpop.f32.mrb[0].mxu0
      %7669 = vmatprep.mubr.bf16.mxu0 0
      %7670 = vmatmul.mubr.bf16.gmra.mrb[0].mxu0 %v2173
      %v7671 = vpop.f32.mrb[0].mxu0
      %v7672 = vadd.f32 0.0, %v7671
      %v7673 = vpop.f32.mrb[0].mxu0
      %v7674 = vpop.f32.mrb[0].mxu0
      %v7675 = vadd.f32 0.0, %v7674
      %v7676 = vpop.f32.mrb[0].mxu0
      %7677 = vmatprep.mubr.bf16.mxu0 0
      %7678 = vmatmul.mubr.bf16.gmra.mrb[0].mxu0 %v2176
      %v7679 = vpop.f32.mrb[0].mxu0
      %v7680 = vadd.f32 0.0, %v7679
      %v7681 = vpop.f32.mrb[0].mxu0
      %v7682 = vpop.f32.mrb[0].mxu0
      %v7683 = vadd.f32 0.0, %v7682
      %v7684 = vpop.f32.mrb[0].mxu0
      %7685 = vmatprep.mubr.bf16.mxu0 0
      %7686 = vmatmul.mubr.bf16.gmra.mrb[0].mxu0 %v2179
      %v7687 = vpop.f32.mrb[0].mxu0
      %v7688 = vadd.f32 0.0, %v7687
      %v7689 = vpop.f32.mrb[0].mxu0
      %v7690 = vpop.f32.mrb[0].mxu0
      %v7691 = vadd.f32 0.0, %v7690
      %v7692 = vpop.f32.mrb[0].mxu0
      %7693 = vmatprep.mubr.bf16.mxu0 0
      %7694 = vmatmul.mubr.bf16.gmra.mrb[0].mxu0 %v2182
      %v7695 = vpop.f32.mrb[0].mxu0
      %v7696 = vadd.f32 0.0, %v7695
      %v7697 = vpop.f32.mrb[0].mxu0
      %v7698 = vpop.f32.mrb[0].mxu0
      %v7699 = vadd.f32 0.0, %v7698
      %v7700 = vpop.f32.mrb[0].mxu0
      %7701 = vmatprep.mubr.bf16.mxu0 0
      %7702 = vmatmul.mubr.bf16.gmra.mrb[0].mxu0 %v2185
      %v7703 = vpop.f32.mrb[0].mxu0
      %v7704 = vadd.f32 0.0, %v7703
      %v7705 = vpop.f32.mrb[0].mxu0
      %v7706 = vpop.f32.mrb[0].mxu0
      %v7707 = vadd.f32 0.0, %v7706
      %v7708 = vpop.f32.mrb[0].mxu0
      %7709 = vmatprep.mubr.bf16.mxu0 0
      %7710 = vmatmul.mubr.bf16.gmra.mrb[0].mxu0 %v2188
      %v7711 = vpop.f32.mrb[0].mxu0
      %v7712 = vadd.f32 0.0, %v7711
      %v7713 = vpop.f32.mrb[0].mxu0
      %v7714 = vpop.f32.mrb[0].mxu0
      %v7715 = vadd.f32 0.0, %v7714
      %v7716 = vpop.f32.mrb[0].mxu0
      %7717 = vmatprep.mubr.bf16.mxu0 0
      %7718 = vmatmul.mubr.bf16.gmra.mrb[0].mxu0 %v2191
      %v7719 = vpop.f32.mrb[0].mxu0
      %v7720 = vadd.f32 0.0, %v7719
      %v7721 = vpop.f32.mrb[0].mxu0
      %v7722 = vpop.f32.mrb[0].mxu0
      %v7723 = vadd.f32 0.0, %v7722
      %v7724 = vpop.f32.mrb[0].mxu0
      %7725 = vmatprep.mubr.bf16.mxu0 0
      %7726 = vmatmul.mubr.bf16.gmra.mrb[0].mxu0 %v2194
      %v7727 = vpop.f32.mrb[0].mxu0
      %v7728 = vadd.f32 0.0, %v7727
      %v7729 = vpop.f32.mrb[0].mxu0
      %v7730 = vpop.f32.mrb[0].mxu0
      %v7731 = vadd.f32 0.0, %v7730
      %v7732 = vpop.f32.mrb[0].mxu0
      %7733 = vmatprep.mubr.bf16.mxu0 0
      %7734 = vmatmul.mubr.bf16.gmra.mrb[0].mxu0 %v2197
      %v7735 = vpop.f32.mrb[0].mxu0
      %v7736 = vadd.f32 0.0, %v7735
      %v7737 = vpop.f32.mrb[0].mxu0
      %v7738 = vpop.f32.mrb[0].mxu0
      %v7739 = vadd.f32 0.0, %v7738
      %v7740 = vpop.f32.mrb[0].mxu0
      %7741 = vmatprep.mubr.bf16.mxu0 0
      %7742 = vmatmul.mubr.bf16.gmra.mrb[0].mxu0 %v2200
      %v7743 = vpop.f32.mrb[0].mxu0
      %v7744 = vadd.f32 0.0, %v7743
      %v7745 = vpop.f32.mrb[0].mxu0
      %v7746 = vpop.f32.mrb[0].mxu0
      %v7747 = vadd.f32 0.0, %v7746
      %v7748 = vpop.f32.mrb[0].mxu0
      %7749 = vmatprep.mubr.bf16.mxu0 0
      %7750 = vmatmul.mubr.bf16.gmra.mrb[0].mxu0 %v2203
      %v7751 = vpop.f32.mrb[0].mxu0
      %v7752 = vadd.f32 0.0, %v7751
      %v7753 = vpop.f32.mrb[0].mxu0
      %v7754 = vpop.f32.mrb[0].mxu0
      %v7755 = vadd.f32 0.0, %v7754
      %v7756 = vpop.f32.mrb[0].mxu0
      %7757 = vmatprep.mubr.bf16.mxu0 0
      %7758 = vmatmul.mubr.bf16.gmra.mrb[0].mxu0 %v2206
      %v7759 = vpop.f32.mrb[0].mxu0
      %v7760 = vadd.f32 0.0, %v7759
      %v7761 = vpop.f32.mrb[0].mxu0
      %v7762 = vpop.f32.mrb[0].mxu0
      %v7763 = vadd.f32 0.0, %v7762
      %v7764 = vpop.f32.mrb[0].mxu0
      %7765 = vmatprep.mubr.bf16.mxu0 0
      %7766 = vmatmul.mubr.bf16.gmra.mrb[0].mxu0 %v2209
      %v7767 = vpop.f32.mrb[0].mxu0
      %v7768 = vadd.f32 0.0, %v7767
      %v7769 = vpop.f32.mrb[0].mxu0
      %v7770 = vpop.f32.mrb[0].mxu0
      %v7771 = vadd.f32 0.0, %v7770
      %v7772 = vpop.f32.mrb[0].mxu0
      %7773 = vmatprep.mubr.bf16.mxu0 0
      %7774 = vmatmul.mubr.bf16.gmra.mrb[0].mxu0 %v2212
      %v7775 = vpop.f32.mrb[0].mxu0
      %v7776 = vadd.f32 0.0, %v7775
      %v7777 = vpop.f32.mrb[0].mxu0
      %v7778 = vpop.f32.mrb[0].mxu0
      %v7779 = vadd.f32 0.0, %v7778
      %v7780 = vpop.f32.mrb[0].mxu0
      %7781 = vmatprep.mubr.bf16.mxu0 0
      %7782 = vmatmul.mubr.bf16.gmra.mrb[0].mxu0 %v2215
      %v7783 = vpop.f32.mrb[0].mxu0
      %v7784 = vadd.f32 0.0, %v7783
      %v7785 = vpop.f32.mrb[0].mxu0
      %v7786 = vpop.f32.mrb[0].mxu0
      %v7787 = vadd.f32 0.0, %v7786
      %v7788 = vpop.f32.mrb[0].mxu0
      %7789 = vmatprep.mubr.bf16.mxu0 0
      %7790 = vmatmul.mubr.bf16.gmra.mrb[0].mxu0 %v2218
      %v7791 = vpop.f32.mrb[0].mxu0
      %v7792 = vadd.f32 0.0, %v7791
      %v7793 = vpop.f32.mrb[0].mxu0
      %v7794 = vpop.f32.mrb[0].mxu0
      %v7795 = vadd.f32 0.0, %v7794
      %v7796 = vpop.f32.mrb[0].mxu0
      %7797 = vmatprep.mubr.bf16.mxu0 0
      %7798 = vmatmul.mubr.bf16.gmra.mrb[0].mxu0 %v2221
      %v7799 = vpop.f32.mrb[0].mxu0
      %v7800 = vadd.f32 0.0, %v7799
      %v7801 = vpop.f32.mrb[0].mxu0
      %v7802 = vpop.f32.mrb[0].mxu0
      %v7803 = vadd.f32 0.0, %v7802
      %v7804 = vpop.f32.mrb[0].mxu0
      %7805 = vmatprep.mubr.bf16.mxu0 0
      %7806 = vmatmul.mubr.bf16.gmra.mrb[0].mxu0 %v2224
      %v7807 = vpop.f32.mrb[0].mxu0
      %v7808 = vadd.f32 0.0, %v7807
      %v7809 = vpop.f32.mrb[0].mxu0
      %v7810 = vpop.f32.mrb[0].mxu0
      %v7811 = vadd.f32 0.0, %v7810
      %v7812 = vpop.f32.mrb[0].mxu0
      %7813 = vmatprep.mubr.bf16.mxu0 0
      %7814 = vmatmul.mubr.bf16.gmra.mrb[0].mxu0 %v2227
      %v7815 = vpop.f32.mrb[0].mxu0
      %v7816 = vadd.f32 0.0, %v7815
      %v7817 = vpop.f32.mrb[0].mxu0
      %v7818 = vpop.f32.mrb[0].mxu0
      %v7819 = vadd.f32 0.0, %v7818
      %v7820 = vpop.f32.mrb[0].mxu0
      %7821 = vmatprep.mubr.bf16.mxu0 0
      %7822 = vmatmul.mubr.bf16.gmra.mrb[0].mxu0 %v2230
      %v7823 = vpop.f32.mrb[0].mxu0
      %v7824 = vadd.f32 0.0, %v7823
      %v7825 = vpop.f32.mrb[0].mxu0
      %v7826 = vpop.f32.mrb[0].mxu0
      %v7827 = vadd.f32 0.0, %v7826
      %v7828 = vpop.f32.mrb[0].mxu0
      %7829 = vmatprep.mubr.bf16.mxu0 0
      %7830 = vmatmul.mubr.bf16.gmra.mrb[0].mxu0 %v2233
      %v7831 = vpop.f32.mrb[0].mxu0
      %v7832 = vadd.f32 0.0, %v7831
      %v7833 = vpop.f32.mrb[0].mxu0
      %v7834 = vpop.f32.mrb[0].mxu0
      %v7835 = vadd.f32 0.0, %v7834
      %v7836 = vpop.f32.mrb[0].mxu0
      %7837 = vmatprep.mubr.bf16.mxu0 0
      %7838 = vmatmul.mubr.bf16.gmra.mrb[0].mxu0 %v2236
      %v7839 = vpop.f32.mrb[0].mxu0
      %v7840 = vadd.f32 0.0, %v7839
      %v7841 = vpop.f32.mrb[0].mxu0
      %v7842 = vpop.f32.mrb[0].mxu0
      %v7843 = vadd.f32 0.0, %v7842
      %v7844 = vpop.f32.mrb[0].mxu0
      %7845 = vmatprep.mubr.bf16.mxu0 0
      %7846 = vmatmul.mubr.bf16.gmra.mrb[0].mxu0 %v2239
      %v7847 = vpop.f32.mrb[0].mxu0
      %v7848 = vadd.f32 0.0, %v7847
      %v7849 = vpop.f32.mrb[0].mxu0
      %v7850 = vpop.f32.mrb[0].mxu0
      %v7851 = vadd.f32 0.0, %v7850
      %v7852 = vpop.f32.mrb[0].mxu0
      %7853 = vmatprep.mubr.bf16.mxu0 0
      %7854 = vmatmul.mubr.bf16.gmra.mrb[0].mxu0 %v2242
      %v7855 = vpop.f32.mrb[0].mxu0
      %v7856 = vadd.f32 0.0, %v7855
      %v7857 = vpop.f32.mrb[0].mxu0
      %v7858 = vpop.f32.mrb[0].mxu0
      %v7859 = vadd.f32 0.0, %v7858
      %v7860 = vpop.f32.mrb[0].mxu0
      %7861 = vmatprep.mubr.bf16.mxu0 0
      %7862 = vmatmul.mubr.bf16.gmra.mrb[0].mxu0 %v2245
      %v7863 = vpop.f32.mrb[0].mxu0
      %v7864 = vadd.f32 0.0, %v7863
      %v7865 = vpop.f32.mrb[0].mxu0
      %v7866 = vpop.f32.mrb[0].mxu0
      %v7867 = vadd.f32 0.0, %v7866
      %v7868 = vpop.f32.mrb[0].mxu0
      %7869 = vmatprep.mubr.bf16.mxu0 0
      %7870 = vmatmul.mubr.bf16.gmra.mrb[0].mxu0 %v2248
      %v7871 = vpop.f32.mrb[0].mxu0
      %v7872 = vadd.f32 0.0, %v7871
      %v7873 = vpop.f32.mrb[0].mxu0
      %v7874 = vpop.f32.mrb[0].mxu0
      %v7875 = vadd.f32 0.0, %v7874
      %v7876 = vpop.f32.mrb[0].mxu0
      %7877 = vmatprep.mubr.bf16.mxu0 0
      %7878 = vmatmul.mubr.bf16.gmra.mrb[0].mxu0 %v2251
      %v7879 = vpop.f32.mrb[0].mxu0
      %v7880 = vadd.f32 0.0, %v7879
      %v7881 = vpop.f32.mrb[0].mxu0
      %v7882 = vpop.f32.mrb[0].mxu0
      %v7883 = vadd.f32 0.0, %v7882
      %v7884 = vpop.f32.mrb[0].mxu0
      %7885 = vmatprep.mubr.bf16.mxu0 0
      %7886 = vmatmul.mubr.bf16.gmra.mrb[0].mxu0 %v2254
      %v7887 = vpop.f32.mrb[0].mxu0
      %v7888 = vadd.f32 0.0, %v7887
      %v7889 = vpop.f32.mrb[0].mxu0
      %v7890 = vpop.f32.mrb[0].mxu0
      %v7891 = vadd.f32 0.0, %v7890
      %v7892 = vpop.f32.mrb[0].mxu0
      %7893 = vmatprep.mubr.bf16.mxu0 0
      %7894 = vmatmul.mubr.bf16.gmra.mrb[0].mxu0 %v2257
      %v7895 = vpop.f32.mrb[0].mxu0
      %v7896 = vadd.f32 0.0, %v7895
      %v7897 = vpop.f32.mrb[0].mxu0
      %v7898 = vpop.f32.mrb[0].mxu0
      %v7899 = vadd.f32 0.0, %v7898
      %v7900 = vpop.f32.mrb[0].mxu0
      %7901 = vmatprep.mubr.bf16.mxu0 0
      %7902 = vmatmul.mubr.bf16.gmra.mrb[0].mxu0 %v2260
      %v7903 = vpop.f32.mrb[0].mxu0
      %v7904 = vadd.f32 0.0, %v7903
      %v7905 = vpop.f32.mrb[0].mxu0
      %v7906 = vpop.f32.mrb[0].mxu0
      %v7907 = vadd.f32 0.0, %v7906
      %v7908 = vpop.f32.mrb[0].mxu0
      %7909 = vmatprep.mubr.bf16.mxu0 0
      %7910 = vmatmul.mubr.bf16.gmra.mrb[0].mxu0 %v2263
      %v7911 = vpop.f32.mrb[0].mxu0
      %v7912 = vadd.f32 0.0, %v7911
      %v7913 = vpop.f32.mrb[0].mxu0
      %v7914 = vpop.f32.mrb[0].mxu0
      %v7915 = vadd.f32 0.0, %v7914
      %v7916 = vpop.f32.mrb[0].mxu0
      %7917 = vmatprep.mubr.bf16.mxu0 0
      %7918 = vmatmul.mubr.bf16.gmra.mrb[0].mxu0 %v2266
      %v7919 = vpop.f32.mrb[0].mxu0
      %v7920 = vadd.f32 0.0, %v7919
      %v7921 = vpop.f32.mrb[0].mxu0
      %v7922 = vpop.f32.mrb[0].mxu0
      %v7923 = vadd.f32 0.0, %v7922
      %v7924 = vpop.f32.mrb[0].mxu0
      %7925 = vmatprep.mubr.bf16.mxu0 0
      %7926 = vmatmul.mubr.bf16.gmra.mrb[0].mxu0 %v2269
      %v7927 = vpop.f32.mrb[0].mxu0
      %v7928 = vadd.f32 0.0, %v7927
      %v7929 = vpop.f32.mrb[0].mxu0
      %v7930 = vpop.f32.mrb[0].mxu0
      %v7931 = vadd.f32 0.0, %v7930
      %v7932 = vpop.f32.mrb[0].mxu0
      %7933 = vmatprep.mubr.bf16.mxu0 0
      %7934 = vmatmul.mubr.bf16.gmra.mrb[0].mxu0 %v2272
      %v7935 = vpop.f32.mrb[0].mxu0
      %v7936 = vadd.f32 0.0, %v7935
      %v7937 = vpop.f32.mrb[0].mxu0
      %v7938 = vpop.f32.mrb[0].mxu0
      %v7939 = vadd.f32 0.0, %v7938
      %v7940 = vpop.f32.mrb[0].mxu0
      %7941 = vmatprep.mubr.bf16.mxu0 0
      %7942 = vmatmul.mubr.bf16.gmra.mrb[0].mxu0 %v2275
      %v7943 = vpop.f32.mrb[0].mxu0
      %v7944 = vadd.f32 0.0, %v7943
      %v7945 = vpop.f32.mrb[0].mxu0
      %v7946 = vpop.f32.mrb[0].mxu0
      %v7947 = vadd.f32 0.0, %v7946
      %v7948 = vpop.f32.mrb[0].mxu0
      %7949 = vmatprep.mubr.bf16.mxu0 0
      %7950 = vmatmul.mubr.bf16.gmra.mrb[0].mxu0 %v2278
      %v7951 = vpop.f32.mrb[0].mxu0
      %v7952 = vadd.f32 0.0, %v7951
      %v7953 = vpop.f32.mrb[0].mxu0
      %v7954 = vpop.f32.mrb[0].mxu0
      %v7955 = vadd.f32 0.0, %v7954
      %v7956 = vpop.f32.mrb[0].mxu0
      %7957 = vmatprep.mubr.bf16.mxu0 0
      %7958 = vmatmul.mubr.bf16.gmra.mrb[0].mxu0 %v2281
      %v7959 = vpop.f32.mrb[0].mxu0
      %v7960 = vadd.f32 0.0, %v7959
      %v7961 = vpop.f32.mrb[0].mxu0
      %v7962 = vpop.f32.mrb[0].mxu0
      %v7963 = vadd.f32 0.0, %v7962
      %v7964 = vpop.f32.mrb[0].mxu0
      %7965 = vmatprep.mubr.bf16.mxu0 0
      %7966 = vmatmul.mubr.bf16.gmra.mrb[0].mxu0 %v2284
      %v7967 = vpop.f32.mrb[0].mxu0
      %v7968 = vadd.f32 0.0, %v7967
      %v7969 = vpop.f32.mrb[0].mxu0
      %v7970 = vpop.f32.mrb[0].mxu0
      %v7971 = vadd.f32 0.0, %v7970
      %v7972 = vpop.f32.mrb[0].mxu0
      %7973 = vmatprep.mubr.bf16.mxu0 0
      %7974 = vmatmul.mubr.bf16.gmra.mrb[0].mxu0 %v2287
      %v7975 = vpop.f32.mrb[0].mxu0
      %v7976 = vadd.f32 0.0, %v7975
      %v7977 = vpop.f32.mrb[0].mxu0
      %v7978 = vpop.f32.mrb[0].mxu0
      %v7979 = vadd.f32 0.0, %v7978
      %v7980 = vpop.f32.mrb[0].mxu0
      %7981 = vmatprep.mubr.bf16.mxu0 0
      %7982 = vmatmul.mubr.bf16.gmra.mrb[0].mxu0 %v2290
      %v7983 = vpop.f32.mrb[0].mxu0
      %v7984 = vadd.f32 0.0, %v7983
      %v7985 = vpop.f32.mrb[0].mxu0
      %v7986 = vpop.f32.mrb[0].mxu0
      %v7987 = vadd.f32 0.0, %v7986
      %v7988 = vpop.f32.mrb[0].mxu0
      %7989 = vmatprep.mubr.bf16.mxu0 0
      %7990 = vmatmul.mubr.bf16.gmra.mrb[0].mxu0 %v2293
      %v7991 = vpop.f32.mrb[0].mxu0
      %v7992 = vadd.f32 0.0, %v7991
      %v7993 = vpop.f32.mrb[0].mxu0
      %v7994 = vpop.f32.mrb[0].mxu0
      %v7995 = vadd.f32 0.0, %v7994
      %v7996 = vpop.f32.mrb[0].mxu0
      %7997 = vmatprep.mubr.bf16.mxu0 0
      %7998 = vmatmul.mubr.bf16.gmra.mrb[0].mxu0 %v5385
      %v7999 = vpop.f32.mrb[0].mxu0
      %v8000 = vadd.f32 0.0, %v7999
      %v8001 = vpop.f32.mrb[0].mxu0
      %v8002 = vpop.f32.mrb[0].mxu0
      %v8003 = vadd.f32 0.0, %v8002
      %v8004 = vpop.f32.mrb[0].mxu0
      %8005 = vmatprep.mubr.bf16.mxu0 0
      %8006 = vmatmul.mubr.bf16.gmra.mrb[0].mxu0 %v5388
      %v8007 = vpop.f32.mrb[0].mxu0
      %v8008 = vadd.f32 0.0, %v8007
      %v8009 = vpop.f32.mrb[0].mxu0
      %v8010 = vpop.f32.mrb[0].mxu0
      %v8011 = vadd.f32 0.0, %v8010
      %v8012 = vpop.f32.mrb[0].mxu0
      %8013 = vmatprep.mubr.bf16.mxu0 0
      %8014 = vmatmul.mubr.bf16.gmra.mrb[0].mxu0 %v2104
      %v8015 = vpop.f32.mrb[0].mxu0
      %v8016 = vadd.f32 0.0, %v8015
      %v8017 = vpop.f32.mrb[0].mxu0
      %v8018 = vpop.f32.mrb[0].mxu0
      %v8019 = vadd.f32 0.0, %v8018
      %v8020 = vpop.f32.mrb[0].mxu0
      %8021 = vmatprep.mubr.bf16.mxu0 0
      %8022 = vmatmul.mubr.bf16.gmra.mrb[0].mxu0 %v2107
      %v8023 = vpop.f32.mrb[0].mxu0
      %v8024 = vadd.f32 0.0, %v8023
      %v8025 = vpop.f32.mrb[0].mxu0
      %v8026 = vpop.f32.mrb[0].mxu0
      %v8027 = vadd.f32 0.0, %v8026
      %v8028 = vpop.f32.mrb[0].mxu0
      %8029 = vdwg.mxu0
      %v8030 = vadd.f32 %v7337, %v7520
      %v8031 = vadd.f32 %v7338, %v7523
      %v8032 = vadd.f32 %v7339, %v7528
      %v8033 = vadd.f32 %v7340, %v7531
      %v8034 = vadd.f32 %v7341, %v7536
      %v8035 = vadd.f32 %v7342, %v7539
      %v8036 = vadd.f32 %v7343, %v7544
      %v8037 = vadd.f32 %v7344, %v7547
      %v8038 = vadd.f32 %v7345, %v7552
      %v8039 = vadd.f32 %v7346, %v7555
      %v8040 = vadd.f32 %v7347, %v7560
      %v8041 = vadd.f32 %v7348, %v7563
      %v8042 = vadd.f32 %v7349, %v7568
      %v8043 = vadd.f32 %v7350, %v7571
      %v8044 = vadd.f32 %v7351, %v7576
      %v8045 = vadd.f32 %v7352, %v7579
      %v8046 = vadd.f32 %v7353, %v7584
      %v8047 = vadd.f32 %v7354, %v7587
      %v8048 = vadd.f32 %v7355, %v7592
      %v8049 = vadd.f32 %v7356, %v7595
      %v8050 = vadd.f32 %v7357, %v7600
      %v8051 = vadd.f32 %v7358, %v7603
      %v8052 = vadd.f32 %v7359, %v7608
      %v8053 = vadd.f32 %v7360, %v7611
      %v8054 = vadd.f32 %v7361, %v7616
      %v8055 = vadd.f32 %v7362, %v7619
      %v8056 = vadd.f32 %v7363, %v7624
      %v8057 = vadd.f32 %v7364, %v7627
      %v8058 = vadd.f32 %v7365, %v7632
      %v8059 = vadd.f32 %v7366, %v7635
      %v8060 = vadd.f32 %v7367, %v7640
      %v8061 = vadd.f32 %v7368, %v7643
      %v8062 = vadd.f32 %v7369, %v7648
      %v8063 = vadd.f32 %v7370, %v7651
      %v8064 = vadd.f32 %v7371, %v7656
      %v8065 = vadd.f32 %v7372, %v7659
      %v8066 = vadd.f32 %v7373, %v7664
      %v8067 = vadd.f32 %v7374, %v7667
      %v8068 = vadd.f32 %v7375, %v7672
      %v8069 = vadd.f32 %v7376, %v7675
      %v8070 = vadd.f32 %v7377, %v7680
      %v8071 = vadd.f32 %v7378, %v7683
      %v8072 = vadd.f32 %v7379, %v7688
      %v8073 = vadd.f32 %v7380, %v7691
      %v8074 = vadd.f32 %v7381, %v7696
      %v8075 = vadd.f32 %v7382, %v7699
      %v8076 = vadd.f32 %v7383, %v7704
      %v8077 = vadd.f32 %v7384, %v7707
      %v8078 = vadd.f32 %v7385, %v7712
      %v8079 = vadd.f32 %v7386, %v7715
      %v8080 = vadd.f32 %v7387, %v7720
      %v8081 = vadd.f32 %v7388, %v7723
      %v8082 = vadd.f32 %v7389, %v7728
      %v8083 = vadd.f32 %v7390, %v7731
      %v8084 = vadd.f32 %v7391, %v7736
      %v8085 = vadd.f32 %v7392, %v7739
      %v8086 = vadd.f32 %v7393, %v7744
      %v8087 = vadd.f32 %v7394, %v7747
      %v8088 = vadd.f32 %v7395, %v7752
      %v8089 = vadd.f32 %v7396, %v7755
      %v8090 = vadd.f32 %v7397, %v7760
      %v8091 = vadd.f32 %v7398, %v7763
      %v8092 = vadd.f32 %v7399, %v7768
      %v8093 = vadd.f32 %v7400, %v7771
      %v8094 = vadd.f32 %v7401, %v7776
      %v8095 = vadd.f32 %v7402, %v7779
      %v8096 = vadd.f32 %v7403, %v7784
      %v8097 = vadd.f32 %v7404, %v7787
      %v8098 = vadd.f32 %v7405, %v7792
      %v8099 = vadd.f32 %v7406, %v7795
      %v8100 = vadd.f32 %v7407, %v7800
      %v8101 = vadd.f32 %v7408, %v7803
      %v8102 = vadd.f32 %v7409, %v7808
      %v8103 = vadd.f32 %v7410, %v7811
      %v8104 = vadd.f32 %v7411, %v7816
      %v8105 = vadd.f32 %v7412, %v7819
      %v8106 = vadd.f32 %v7413, %v7824
      %v8107 = vadd.f32 %v7414, %v7827
      %v8108 = vadd.f32 %v7415, %v7832
      %v8109 = vadd.f32 %v7416, %v7835
      %v8110 = vadd.f32 %v7417, %v7840
      %v8111 = vadd.f32 %v7418, %v7843
      %v8112 = vadd.f32 %v7419, %v7848
      %v8113 = vadd.f32 %v7420, %v7851
      %v8114 = vadd.f32 %v7421, %v7856
      %v8115 = vadd.f32 %v7422, %v7859
      %v8116 = vadd.f32 %v7423, %v7864
      %v8117 = vadd.f32 %v7424, %v7867
      %v8118 = vadd.f32 %v7425, %v7872
      %v8119 = vadd.f32 %v7426, %v7875
      %v8120 = vadd.f32 %v7427, %v7880
      %v8121 = vadd.f32 %v7428, %v7883
      %v8122 = vadd.f32 %v7429, %v7888
      %v8123 = vadd.f32 %v7430, %v7891
      %v8124 = vadd.f32 %v7431, %v7896
      %v8125 = vadd.f32 %v7432, %v7899
      %v8126 = vadd.f32 %v7433, %v7904
      %v8127 = vadd.f32 %v7434, %v7907
      %v8128 = vadd.f32 %v7435, %v7912
      %v8129 = vadd.f32 %v7436, %v7915
      %v8130 = vadd.f32 %v7437, %v7920
      %v8131 = vadd.f32 %v7438, %v7923
      %v8132 = vadd.f32 %v7439, %v7928
      %v8133 = vadd.f32 %v7440, %v7931
      %v8134 = vadd.f32 %v7441, %v7936
      %v8135 = vadd.f32 %v7442, %v7939
      %v8136 = vadd.f32 %v7443, %v7944
      %v8137 = vadd.f32 %v7444, %v7947
      %v8138 = vadd.f32 %v7445, %v7952
      %v8139 = vadd.f32 %v7446, %v7955
      %v8140 = vadd.f32 %v7447, %v7960
      %v8141 = vadd.f32 %v7448, %v7963
      %v8142 = vadd.f32 %v7449, %v7968
      %v8143 = vadd.f32 %v7450, %v7971
      %v8144 = vadd.f32 %v7451, %v7976
      %v8145 = vadd.f32 %v7452, %v7979
      %v8146 = vadd.f32 %v7453, %v7984
      %v8147 = vadd.f32 %v7454, %v7987
      %v8148 = vadd.f32 %v7455, %v7992
      %v8149 = vadd.f32 %v7456, %v7995
      %v8150 = vadd.f32 %v7457, %v8000
      %v8151 = vadd.f32 %v7458, %v8003
      %v8152 = vadd.f32 %v7459, %v8008
      %v8153 = vadd.f32 %v7460, %v8011
      %v8154 = vadd.f32 %v7461, %v8016
      %v8155 = vadd.f32 %v7462, %v8019
      %v8156 = vadd.f32 %v7463, %v8024
      %v8157 = vadd.f32 %v7464, %v8027
      %v8158 = vpack.i.b16 %v1442, %v1441
      %v8160 = vcombine.low %v8158, %v1443
      %v8162 = vunpack.c.l.s4 1966171168
      %v8163 = vunpack.c.0.s8 %v8162
      %v8164 = vlaneseq
      %v8165 = vshrl.u32 %v8164, 7
      %v8166 = vsub.s32 %v8163, %v8165
      %v8167 = vrot.slane %v8160, %v8166
      %v8169 = vunpack.c.l.s4 1966171168
      %v8170 = vunpack.c.0.s8 %v8169
      %v8171 = vlaneseq
      %v8172 = vshrl.u32 %v8171, 7
      %v8173 = vsub.s32 %v8170, %v8172
      %v8174 = vrot.slane %v8167, %v8173
      %v8176 = vand.u32 %v8174, %v2298
      %8178 = vmatprep.subr.bf16.mxu0 0
      %8179 = vmatpush1.bf16.msra.mxu0 %v8176
      %8180 = vmatprep.subr.bf16.mxu0 0
      %8181 = vmatpush1.bf16.msra.mxu0 0
      %8182 = vmatprep.subr.bf16.mxu0 0
      %8183 = vmatpush1.bf16.msra.mxu0 0
      %8184 = vmatprep.subr.bf16.mxu0 0
      %8185 = vmatpush1.bf16.msra.mxu0 0
      %8186 = vmatprep.subr.bf16.mxu0 0
      %8187 = vmatpush1.bf16.msra.mxu0 0
      %8188 = vmatprep.subr.bf16.mxu0 0
      %8189 = vmatpush1.bf16.msra.mxu0 0
      %8190 = vmatprep.subr.bf16.mxu0 0
      %8191 = vmatpush1.bf16.msra.mxu0 0
      %8192 = vmatprep.subr.bf16.mxu0 0
      %8193 = vmatpush1.bf16.msra.mxu0 0
      %8194 = vmatprep.subr.bf16.mxu0 0
      %8195 = vmatpush1.bf16.msra.mxu0 0
      %8196 = vmatprep.subr.bf16.mxu0 0
      %8197 = vmatpush1.bf16.msra.mxu0 0
      %8198 = vmatprep.subr.bf16.mxu0 0
      %8199 = vmatpush1.bf16.msra.mxu0 0
      %8200 = vmatprep.subr.bf16.mxu0 0
      %8201 = vmatpush1.bf16.msra.mxu0 0
      %8202 = vmatprep.subr.bf16.mxu0 0
      %8203 = vmatpush1.bf16.msra.mxu0 0
      %8204 = vmatprep.subr.bf16.mxu0 0
      %8205 = vmatpush1.bf16.msra.mxu0 0
      %8206 = vmatprep.subr.bf16.mxu0 0
      %8207 = vmatpush1.bf16.msra.mxu0 0
      %8208 = vmatprep.subr.bf16.mxu0 0
      %8209 = vmatpush1.bf16.msra.mxu0 0
      %8210 = vmatprep.mubr.bf16.mxu0 0
      %8211 = vmatmul.mubr.bf16.gmra.mrb[0].mxu0 %v3795
      %v8212 = vpop.f32.mrb[0].mxu0
      %v8213 = vadd.f32 0.0, %v8212
      %v8214 = vpop.f32.mrb[0].mxu0
      %v8215 = vpop.f32.mrb[0].mxu0
      %v8216 = vadd.f32 0.0, %v8215
      %v8217 = vpop.f32.mrb[0].mxu0
      %8218 = vmatprep.mubr.bf16.mxu0 0
      %8219 = vmatmul.mubr.bf16.gmra.mrb[0].mxu0 %v3798
      %v8220 = vpop.f32.mrb[0].mxu0
      %v8221 = vadd.f32 0.0, %v8220
      %v8222 = vpop.f32.mrb[0].mxu0
      %v8223 = vpop.f32.mrb[0].mxu0
      %v8224 = vadd.f32 0.0, %v8223
      %v8225 = vpop.f32.mrb[0].mxu0
      %8226 = vmatprep.mubr.bf16.mxu0 0
      %8227 = vmatmul.mubr.bf16.gmra.mrb[0].mxu0 %v3801
      %v8228 = vpop.f32.mrb[0].mxu0
      %v8229 = vadd.f32 0.0, %v8228
      %v8230 = vpop.f32.mrb[0].mxu0
      %v8231 = vpop.f32.mrb[0].mxu0
      %v8232 = vadd.f32 0.0, %v8231
      %v8233 = vpop.f32.mrb[0].mxu0
      %8234 = vmatprep.mubr.bf16.mxu0 0
      %8235 = vmatmul.mubr.bf16.gmra.mrb[0].mxu0 %v3804
      %v8236 = vpop.f32.mrb[0].mxu0
      %v8237 = vadd.f32 0.0, %v8236
      %v8238 = vpop.f32.mrb[0].mxu0
      %v8239 = vpop.f32.mrb[0].mxu0
      %v8240 = vadd.f32 0.0, %v8239
      %v8241 = vpop.f32.mrb[0].mxu0
      %8242 = vmatprep.mubr.bf16.mxu0 0
      %8243 = vmatmul.mubr.bf16.gmra.mrb[0].mxu0 %v3807
      %v8244 = vpop.f32.mrb[0].mxu0
      %v8245 = vadd.f32 0.0, %v8244
      %v8246 = vpop.f32.mrb[0].mxu0
      %v8247 = vpop.f32.mrb[0].mxu0
      %v8248 = vadd.f32 0.0, %v8247
      %v8249 = vpop.f32.mrb[0].mxu0
      %8250 = vmatprep.mubr.bf16.mxu0 0
      %8251 = vmatmul.mubr.bf16.gmra.mrb[0].mxu0 %v3810
      %v8252 = vpop.f32.mrb[0].mxu0
      %v8253 = vadd.f32 0.0, %v8252
      %v8254 = vpop.f32.mrb[0].mxu0
      %v8255 = vpop.f32.mrb[0].mxu0
      %v8256 = vadd.f32 0.0, %v8255
      %v8257 = vpop.f32.mrb[0].mxu0
      %8258 = vmatprep.mubr.bf16.mxu0 0
      %8259 = vmatmul.mubr.bf16.gmra.mrb[0].mxu0 %v3813
      %v8260 = vpop.f32.mrb[0].mxu0
      %v8261 = vadd.f32 0.0, %v8260
      %v8262 = vpop.f32.mrb[0].mxu0
      %v8263 = vpop.f32.mrb[0].mxu0
      %v8264 = vadd.f32 0.0, %v8263
      %v8265 = vpop.f32.mrb[0].mxu0
      %8266 = vmatprep.mubr.bf16.mxu0 0
      %8267 = vmatmul.mubr.bf16.gmra.mrb[0].mxu0 %v3816
      %v8268 = vpop.f32.mrb[0].mxu0
      %v8269 = vadd.f32 0.0, %v8268
      %v8270 = vpop.f32.mrb[0].mxu0
      %v8271 = vpop.f32.mrb[0].mxu0
      %v8272 = vadd.f32 0.0, %v8271
      %v8273 = vpop.f32.mrb[0].mxu0
      %8274 = vmatprep.mubr.bf16.mxu0 0
      %8275 = vmatmul.mubr.bf16.gmra.mrb[0].mxu0 %v3819
      %v8276 = vpop.f32.mrb[0].mxu0
      %v8277 = vadd.f32 0.0, %v8276
      %v8278 = vpop.f32.mrb[0].mxu0
      %v8279 = vpop.f32.mrb[0].mxu0
      %v8280 = vadd.f32 0.0, %v8279
      %v8281 = vpop.f32.mrb[0].mxu0
      %8282 = vmatprep.mubr.bf16.mxu0 0
      %8283 = vmatmul.mubr.bf16.gmra.mrb[0].mxu0 %v3822
      %v8284 = vpop.f32.mrb[0].mxu0
      %v8285 = vadd.f32 0.0, %v8284
      %v8286 = vpop.f32.mrb[0].mxu0
      %v8287 = vpop.f32.mrb[0].mxu0
      %v8288 = vadd.f32 0.0, %v8287
      %v8289 = vpop.f32.mrb[0].mxu0
      %8290 = vmatprep.mubr.bf16.mxu0 0
      %8291 = vmatmul.mubr.bf16.gmra.mrb[0].mxu0 %v3825
      %v8292 = vpop.f32.mrb[0].mxu0
      %v8293 = vadd.f32 0.0, %v8292
      %v8294 = vpop.f32.mrb[0].mxu0
      %v8295 = vpop.f32.mrb[0].mxu0
      %v8296 = vadd.f32 0.0, %v8295
      %v8297 = vpop.f32.mrb[0].mxu0
      %8298 = vmatprep.mubr.bf16.mxu0 0
      %8299 = vmatmul.mubr.bf16.gmra.mrb[0].mxu0 %v3828
      %v8300 = vpop.f32.mrb[0].mxu0
      %v8301 = vadd.f32 0.0, %v8300
      %v8302 = vpop.f32.mrb[0].mxu0
      %v8303 = vpop.f32.mrb[0].mxu0
      %v8304 = vadd.f32 0.0, %v8303
      %v8305 = vpop.f32.mrb[0].mxu0
      %8306 = vmatprep.mubr.bf16.mxu0 0
      %8307 = vmatmul.mubr.bf16.gmra.mrb[0].mxu0 %v3831
      %v8308 = vpop.f32.mrb[0].mxu0
      %v8309 = vadd.f32 0.0, %v8308
      %v8310 = vpop.f32.mrb[0].mxu0
      %v8311 = vpop.f32.mrb[0].mxu0
      %v8312 = vadd.f32 0.0, %v8311
      %v8313 = vpop.f32.mrb[0].mxu0
      %8314 = vmatprep.mubr.bf16.mxu0 0
      %8315 = vmatmul.mubr.bf16.gmra.mrb[0].mxu0 %v3834
      %v8316 = vpop.f32.mrb[0].mxu0
      %v8317 = vadd.f32 0.0, %v8316
      %v8318 = vpop.f32.mrb[0].mxu0
      %v8319 = vpop.f32.mrb[0].mxu0
      %v8320 = vadd.f32 0.0, %v8319
      %v8321 = vpop.f32.mrb[0].mxu0
      %8322 = vmatprep.mubr.bf16.mxu0 0
      %8323 = vmatmul.mubr.bf16.gmra.mrb[0].mxu0 %v3837
      %v8324 = vpop.f32.mrb[0].mxu0
      %v8325 = vadd.f32 0.0, %v8324
      %v8326 = vpop.f32.mrb[0].mxu0
      %v8327 = vpop.f32.mrb[0].mxu0
      %v8328 = vadd.f32 0.0, %v8327
      %v8329 = vpop.f32.mrb[0].mxu0
      %8330 = vmatprep.mubr.bf16.mxu0 0
      %8331 = vmatmul.mubr.bf16.gmra.mrb[0].mxu0 %v3840
      %v8332 = vpop.f32.mrb[0].mxu0
      %v8333 = vadd.f32 0.0, %v8332
      %v8334 = vpop.f32.mrb[0].mxu0
      %v8335 = vpop.f32.mrb[0].mxu0
      %v8336 = vadd.f32 0.0, %v8335
      %v8337 = vpop.f32.mrb[0].mxu0
      %8338 = vmatprep.mubr.bf16.mxu0 0
      %8339 = vmatmul.mubr.bf16.gmra.mrb[0].mxu0 %v3843
      %v8340 = vpop.f32.mrb[0].mxu0
      %v8341 = vadd.f32 0.0, %v8340
      %v8342 = vpop.f32.mrb[0].mxu0
      %v8343 = vpop.f32.mrb[0].mxu0
      %v8344 = vadd.f32 0.0, %v8343
      %v8345 = vpop.f32.mrb[0].mxu0
      %8346 = vmatprep.mubr.bf16.mxu0 0
      %8347 = vmatmul.mubr.bf16.gmra.mrb[0].mxu0 %v3846
      %v8348 = vpop.f32.mrb[0].mxu0
      %v8349 = vadd.f32 0.0, %v8348
      %v8350 = vpop.f32.mrb[0].mxu0
      %v8351 = vpop.f32.mrb[0].mxu0
      %v8352 = vadd.f32 0.0, %v8351
      %v8353 = vpop.f32.mrb[0].mxu0
      %8354 = vmatprep.mubr.bf16.mxu0 0
      %8355 = vmatmul.mubr.bf16.gmra.mrb[0].mxu0 %v3849
      %v8356 = vpop.f32.mrb[0].mxu0
      %v8357 = vadd.f32 0.0, %v8356
      %v8358 = vpop.f32.mrb[0].mxu0
      %v8359 = vpop.f32.mrb[0].mxu0
      %v8360 = vadd.f32 0.0, %v8359
      %v8361 = vpop.f32.mrb[0].mxu0
      %8362 = vmatprep.mubr.bf16.mxu0 0
      %8363 = vmatmul.mubr.bf16.gmra.mrb[0].mxu0 %v3852
      %v8364 = vpop.f32.mrb[0].mxu0
      %v8365 = vadd.f32 0.0, %v8364
      %v8366 = vpop.f32.mrb[0].mxu0
      %v8367 = vpop.f32.mrb[0].mxu0
      %v8368 = vadd.f32 0.0, %v8367
      %v8369 = vpop.f32.mrb[0].mxu0
      %8370 = vmatprep.mubr.bf16.mxu0 0
      %8371 = vmatmul.mubr.bf16.gmra.mrb[0].mxu0 %v3855
      %v8372 = vpop.f32.mrb[0].mxu0
      %v8373 = vadd.f32 0.0, %v8372
      %v8374 = vpop.f32.mrb[0].mxu0
      %v8375 = vpop.f32.mrb[0].mxu0
      %v8376 = vadd.f32 0.0, %v8375
      %v8377 = vpop.f32.mrb[0].mxu0
      %8378 = vmatprep.mubr.bf16.mxu0 0
      %8379 = vmatmul.mubr.bf16.gmra.mrb[0].mxu0 %v3858
      %v8380 = vpop.f32.mrb[0].mxu0
      %v8381 = vadd.f32 0.0, %v8380
      %v8382 = vpop.f32.mrb[0].mxu0
      %v8383 = vpop.f32.mrb[0].mxu0
      %v8384 = vadd.f32 0.0, %v8383
      %v8385 = vpop.f32.mrb[0].mxu0
      %8386 = vmatprep.mubr.bf16.mxu0 0
      %8387 = vmatmul.mubr.bf16.gmra.mrb[0].mxu0 %v3861
      %v8388 = vpop.f32.mrb[0].mxu0
      %v8389 = vadd.f32 0.0, %v8388
      %v8390 = vpop.f32.mrb[0].mxu0
      %v8391 = vpop.f32.mrb[0].mxu0
      %v8392 = vadd.f32 0.0, %v8391
      %v8393 = vpop.f32.mrb[0].mxu0
      %8394 = vmatprep.mubr.bf16.mxu0 0
      %8395 = vmatmul.mubr.bf16.gmra.mrb[0].mxu0 %v3864
      %v8396 = vpop.f32.mrb[0].mxu0
      %v8397 = vadd.f32 0.0, %v8396
      %v8398 = vpop.f32.mrb[0].mxu0
      %v8399 = vpop.f32.mrb[0].mxu0
      %v8400 = vadd.f32 0.0, %v8399
      %v8401 = vpop.f32.mrb[0].mxu0
      %8402 = vmatprep.mubr.bf16.mxu0 0
      %8403 = vmatmul.mubr.bf16.gmra.mrb[0].mxu0 %v3867
      %v8404 = vpop.f32.mrb[0].mxu0
      %v8405 = vadd.f32 0.0, %v8404
      %v8406 = vpop.f32.mrb[0].mxu0
      %v8407 = vpop.f32.mrb[0].mxu0
      %v8408 = vadd.f32 0.0, %v8407
      %v8409 = vpop.f32.mrb[0].mxu0
      %8410 = vmatprep.mubr.bf16.mxu0 0
      %8411 = vmatmul.mubr.bf16.gmra.mrb[0].mxu0 %v3870
      %v8412 = vpop.f32.mrb[0].mxu0
      %v8413 = vadd.f32 0.0, %v8412
      %v8414 = vpop.f32.mrb[0].mxu0
      %v8415 = vpop.f32.mrb[0].mxu0
      %v8416 = vadd.f32 0.0, %v8415
      %v8417 = vpop.f32.mrb[0].mxu0
      %8418 = vmatprep.mubr.bf16.mxu0 0
      %8419 = vmatmul.mubr.bf16.gmra.mrb[0].mxu0 %v3873
      %v8420 = vpop.f32.mrb[0].mxu0
      %v8421 = vadd.f32 0.0, %v8420
      %v8422 = vpop.f32.mrb[0].mxu0
      %v8423 = vpop.f32.mrb[0].mxu0
      %v8424 = vadd.f32 0.0, %v8423
      %v8425 = vpop.f32.mrb[0].mxu0
      %8426 = vmatprep.mubr.bf16.mxu0 0
      %8427 = vmatmul.mubr.bf16.gmra.mrb[0].mxu0 %v3876
      %v8428 = vpop.f32.mrb[0].mxu0
      %v8429 = vadd.f32 0.0, %v8428
      %v8430 = vpop.f32.mrb[0].mxu0
      %v8431 = vpop.f32.mrb[0].mxu0
      %v8432 = vadd.f32 0.0, %v8431
      %v8433 = vpop.f32.mrb[0].mxu0
      %8434 = vmatprep.mubr.bf16.mxu0 0
      %8435 = vmatmul.mubr.bf16.gmra.mrb[0].mxu0 %v3879
      %v8436 = vpop.f32.mrb[0].mxu0
      %v8437 = vadd.f32 0.0, %v8436
      %v8438 = vpop.f32.mrb[0].mxu0
      %v8439 = vpop.f32.mrb[0].mxu0
      %v8440 = vadd.f32 0.0, %v8439
      %v8441 = vpop.f32.mrb[0].mxu0
      %8442 = vmatprep.mubr.bf16.mxu0 0
      %8443 = vmatmul.mubr.bf16.gmra.mrb[0].mxu0 %v3882
      %v8444 = vpop.f32.mrb[0].mxu0
      %v8445 = vadd.f32 0.0, %v8444
      %v8446 = vpop.f32.mrb[0].mxu0
      %v8447 = vpop.f32.mrb[0].mxu0
      %v8448 = vadd.f32 0.0, %v8447
      %v8449 = vpop.f32.mrb[0].mxu0
      %8450 = vmatprep.mubr.bf16.mxu0 0
      %8451 = vmatmul.mubr.bf16.gmra.mrb[0].mxu0 %v3885
      %v8452 = vpop.f32.mrb[0].mxu0
      %v8453 = vadd.f32 0.0, %v8452
      %v8454 = vpop.f32.mrb[0].mxu0
      %v8455 = vpop.f32.mrb[0].mxu0
      %v8456 = vadd.f32 0.0, %v8455
      %v8457 = vpop.f32.mrb[0].mxu0
      %8458 = vmatprep.mubr.bf16.mxu0 0
      %8459 = vmatmul.mubr.bf16.gmra.mrb[0].mxu0 %v3888
      %v8460 = vpop.f32.mrb[0].mxu0
      %v8461 = vadd.f32 0.0, %v8460
      %v8462 = vpop.f32.mrb[0].mxu0
      %v8463 = vpop.f32.mrb[0].mxu0
      %v8464 = vadd.f32 0.0, %v8463
      %v8465 = vpop.f32.mrb[0].mxu0
      %8466 = vmatprep.mubr.bf16.mxu0 0
      %8467 = vmatmul.mubr.bf16.gmra.mrb[0].mxu0 %v3891
      %v8468 = vpop.f32.mrb[0].mxu0
      %v8469 = vadd.f32 0.0, %v8468
      %v8470 = vpop.f32.mrb[0].mxu0
      %v8471 = vpop.f32.mrb[0].mxu0
      %v8472 = vadd.f32 0.0, %v8471
      %v8473 = vpop.f32.mrb[0].mxu0
      %8474 = vmatprep.mubr.bf16.mxu0 0
      %8475 = vmatmul.mubr.bf16.gmra.mrb[0].mxu0 %v3894
      %v8476 = vpop.f32.mrb[0].mxu0
      %v8477 = vadd.f32 0.0, %v8476
      %v8478 = vpop.f32.mrb[0].mxu0
      %v8479 = vpop.f32.mrb[0].mxu0
      %v8480 = vadd.f32 0.0, %v8479
      %v8481 = vpop.f32.mrb[0].mxu0
      %8482 = vmatprep.mubr.bf16.mxu0 0
      %8483 = vmatmul.mubr.bf16.gmra.mrb[0].mxu0 %v3897
      %v8484 = vpop.f32.mrb[0].mxu0
      %v8485 = vadd.f32 0.0, %v8484
      %v8486 = vpop.f32.mrb[0].mxu0
      %v8487 = vpop.f32.mrb[0].mxu0
      %v8488 = vadd.f32 0.0, %v8487
      %v8489 = vpop.f32.mrb[0].mxu0
      %8490 = vmatprep.mubr.bf16.mxu0 0
      %8491 = vmatmul.mubr.bf16.gmra.mrb[0].mxu0 %v3900
      %v8492 = vpop.f32.mrb[0].mxu0
      %v8493 = vadd.f32 0.0, %v8492
      %v8494 = vpop.f32.mrb[0].mxu0
      %v8495 = vpop.f32.mrb[0].mxu0
      %v8496 = vadd.f32 0.0, %v8495
      %v8497 = vpop.f32.mrb[0].mxu0
      %8498 = vmatprep.mubr.bf16.mxu0 0
      %8499 = vmatmul.mubr.bf16.gmra.mrb[0].mxu0 %v3903
      %v8500 = vpop.f32.mrb[0].mxu0
      %v8501 = vadd.f32 0.0, %v8500
      %v8502 = vpop.f32.mrb[0].mxu0
      %v8503 = vpop.f32.mrb[0].mxu0
      %v8504 = vadd.f32 0.0, %v8503
      %v8505 = vpop.f32.mrb[0].mxu0
      %8506 = vmatprep.mubr.bf16.mxu0 0
      %8507 = vmatmul.mubr.bf16.gmra.mrb[0].mxu0 %v3906
      %v8508 = vpop.f32.mrb[0].mxu0
      %v8509 = vadd.f32 0.0, %v8508
      %v8510 = vpop.f32.mrb[0].mxu0
      %v8511 = vpop.f32.mrb[0].mxu0
      %v8512 = vadd.f32 0.0, %v8511
      %v8513 = vpop.f32.mrb[0].mxu0
      %8514 = vmatprep.mubr.bf16.mxu0 0
      %8515 = vmatmul.mubr.bf16.gmra.mrb[0].mxu0 %v3909
      %v8516 = vpop.f32.mrb[0].mxu0
      %v8517 = vadd.f32 0.0, %v8516
      %v8518 = vpop.f32.mrb[0].mxu0
      %v8519 = vpop.f32.mrb[0].mxu0
      %v8520 = vadd.f32 0.0, %v8519
      %v8521 = vpop.f32.mrb[0].mxu0
      %8522 = vmatprep.mubr.bf16.mxu0 0
      %8523 = vmatmul.mubr.bf16.gmra.mrb[0].mxu0 %v3912
      %v8524 = vpop.f32.mrb[0].mxu0
      %v8525 = vadd.f32 0.0, %v8524
      %v8526 = vpop.f32.mrb[0].mxu0
      %v8527 = vpop.f32.mrb[0].mxu0
      %v8528 = vadd.f32 0.0, %v8527
      %v8529 = vpop.f32.mrb[0].mxu0
      %8530 = vmatprep.mubr.bf16.mxu0 0
      %8531 = vmatmul.mubr.bf16.gmra.mrb[0].mxu0 %v3915
      %v8532 = vpop.f32.mrb[0].mxu0
      %v8533 = vadd.f32 0.0, %v8532
      %v8534 = vpop.f32.mrb[0].mxu0
      %v8535 = vpop.f32.mrb[0].mxu0
      %v8536 = vadd.f32 0.0, %v8535
      %v8537 = vpop.f32.mrb[0].mxu0
      %8538 = vmatprep.mubr.bf16.mxu0 0
      %8539 = vmatmul.mubr.bf16.gmra.mrb[0].mxu0 %v3918
      %v8540 = vpop.f32.mrb[0].mxu0
      %v8541 = vadd.f32 0.0, %v8540
      %v8542 = vpop.f32.mrb[0].mxu0
      %v8543 = vpop.f32.mrb[0].mxu0
      %v8544 = vadd.f32 0.0, %v8543
      %v8545 = vpop.f32.mrb[0].mxu0
      %8546 = vmatprep.mubr.bf16.mxu0 0
      %8547 = vmatmul.mubr.bf16.gmra.mrb[0].mxu0 %v3921
      %v8548 = vpop.f32.mrb[0].mxu0
      %v8549 = vadd.f32 0.0, %v8548
      %v8550 = vpop.f32.mrb[0].mxu0
      %v8551 = vpop.f32.mrb[0].mxu0
      %v8552 = vadd.f32 0.0, %v8551
      %v8553 = vpop.f32.mrb[0].mxu0
      %8554 = vmatprep.mubr.bf16.mxu0 0
      %8555 = vmatmul.mubr.bf16.gmra.mrb[0].mxu0 %v3924
      %v8556 = vpop.f32.mrb[0].mxu0
      %v8557 = vadd.f32 0.0, %v8556
      %v8558 = vpop.f32.mrb[0].mxu0
      %v8559 = vpop.f32.mrb[0].mxu0
      %v8560 = vadd.f32 0.0, %v8559
      %v8561 = vpop.f32.mrb[0].mxu0
      %8562 = vmatprep.mubr.bf16.mxu0 0
      %8563 = vmatmul.mubr.bf16.gmra.mrb[0].mxu0 %v3927
      %v8564 = vpop.f32.mrb[0].mxu0
      %v8565 = vadd.f32 0.0, %v8564
      %v8566 = vpop.f32.mrb[0].mxu0
      %v8567 = vpop.f32.mrb[0].mxu0
      %v8568 = vadd.f32 0.0, %v8567
      %v8569 = vpop.f32.mrb[0].mxu0
      %8570 = vmatprep.mubr.bf16.mxu0 0
      %8571 = vmatmul.mubr.bf16.gmra.mrb[0].mxu0 %v3930
      %v8572 = vpop.f32.mrb[0].mxu0
      %v8573 = vadd.f32 0.0, %v8572
      %v8574 = vpop.f32.mrb[0].mxu0
      %v8575 = vpop.f32.mrb[0].mxu0
      %v8576 = vadd.f32 0.0, %v8575
      %v8577 = vpop.f32.mrb[0].mxu0
      %8578 = vmatprep.mubr.bf16.mxu0 0
      %8579 = vmatmul.mubr.bf16.gmra.mrb[0].mxu0 %v3933
      %v8580 = vpop.f32.mrb[0].mxu0
      %v8581 = vadd.f32 0.0, %v8580
      %v8582 = vpop.f32.mrb[0].mxu0
      %v8583 = vpop.f32.mrb[0].mxu0
      %v8584 = vadd.f32 0.0, %v8583
      %v8585 = vpop.f32.mrb[0].mxu0
      %8586 = vmatprep.mubr.bf16.mxu0 0
      %8587 = vmatmul.mubr.bf16.gmra.mrb[0].mxu0 %v3936
      %v8588 = vpop.f32.mrb[0].mxu0
      %v8589 = vadd.f32 0.0, %v8588
      %v8590 = vpop.f32.mrb[0].mxu0
      %v8591 = vpop.f32.mrb[0].mxu0
      %v8592 = vadd.f32 0.0, %v8591
      %v8593 = vpop.f32.mrb[0].mxu0
      %8594 = vmatprep.mubr.bf16.mxu0 0
      %8595 = vmatmul.mubr.bf16.gmra.mrb[0].mxu0 %v3939
      %v8596 = vpop.f32.mrb[0].mxu0
      %v8597 = vadd.f32 0.0, %v8596
      %v8598 = vpop.f32.mrb[0].mxu0
      %v8599 = vpop.f32.mrb[0].mxu0
      %v8600 = vadd.f32 0.0, %v8599
      %v8601 = vpop.f32.mrb[0].mxu0
      %8602 = vmatprep.mubr.bf16.mxu0 0
      %8603 = vmatmul.mubr.bf16.gmra.mrb[0].mxu0 %v3942
      %v8604 = vpop.f32.mrb[0].mxu0
      %v8605 = vadd.f32 0.0, %v8604
      %v8606 = vpop.f32.mrb[0].mxu0
      %v8607 = vpop.f32.mrb[0].mxu0
      %v8608 = vadd.f32 0.0, %v8607
      %v8609 = vpop.f32.mrb[0].mxu0
      %8610 = vmatprep.mubr.bf16.mxu0 0
      %8611 = vmatmul.mubr.bf16.gmra.mrb[0].mxu0 %v3945
      %v8612 = vpop.f32.mrb[0].mxu0
      %v8613 = vadd.f32 0.0, %v8612
      %v8614 = vpop.f32.mrb[0].mxu0
      %v8615 = vpop.f32.mrb[0].mxu0
      %v8616 = vadd.f32 0.0, %v8615
      %v8617 = vpop.f32.mrb[0].mxu0
      %8618 = vmatprep.mubr.bf16.mxu0 0
      %8619 = vmatmul.mubr.bf16.gmra.mrb[0].mxu0 %v3948
      %v8620 = vpop.f32.mrb[0].mxu0
      %v8621 = vadd.f32 0.0, %v8620
      %v8622 = vpop.f32.mrb[0].mxu0
      %v8623 = vpop.f32.mrb[0].mxu0
      %v8624 = vadd.f32 0.0, %v8623
      %v8625 = vpop.f32.mrb[0].mxu0
      %8626 = vmatprep.mubr.bf16.mxu0 0
      %8627 = vmatmul.mubr.bf16.gmra.mrb[0].mxu0 %v3951
      %v8628 = vpop.f32.mrb[0].mxu0
      %v8629 = vadd.f32 0.0, %v8628
      %v8630 = vpop.f32.mrb[0].mxu0
      %v8631 = vpop.f32.mrb[0].mxu0
      %v8632 = vadd.f32 0.0, %v8631
      %v8633 = vpop.f32.mrb[0].mxu0
      %8634 = vmatprep.mubr.bf16.mxu0 0
      %8635 = vmatmul.mubr.bf16.gmra.mrb[0].mxu0 %v3954
      %v8636 = vpop.f32.mrb[0].mxu0
      %v8637 = vadd.f32 0.0, %v8636
      %v8638 = vpop.f32.mrb[0].mxu0
      %v8639 = vpop.f32.mrb[0].mxu0
      %v8640 = vadd.f32 0.0, %v8639
      %v8641 = vpop.f32.mrb[0].mxu0
      %8642 = vmatprep.mubr.bf16.mxu0 0
      %8643 = vmatmul.mubr.bf16.gmra.mrb[0].mxu0 %v3957
      %v8644 = vpop.f32.mrb[0].mxu0
      %v8645 = vadd.f32 0.0, %v8644
      %v8646 = vpop.f32.mrb[0].mxu0
      %v8647 = vpop.f32.mrb[0].mxu0
      %v8648 = vadd.f32 0.0, %v8647
      %v8649 = vpop.f32.mrb[0].mxu0
      %8650 = vmatprep.mubr.bf16.mxu0 0
      %8651 = vmatmul.mubr.bf16.gmra.mrb[0].mxu0 %v3960
      %v8652 = vpop.f32.mrb[0].mxu0
      %v8653 = vadd.f32 0.0, %v8652
      %v8654 = vpop.f32.mrb[0].mxu0
      %v8655 = vpop.f32.mrb[0].mxu0
      %v8656 = vadd.f32 0.0, %v8655
      %v8657 = vpop.f32.mrb[0].mxu0
      %8658 = vmatprep.mubr.bf16.mxu0 0
      %8659 = vmatmul.mubr.bf16.gmra.mrb[0].mxu0 %v3963
      %v8660 = vpop.f32.mrb[0].mxu0
      %v8661 = vadd.f32 0.0, %v8660
      %v8662 = vpop.f32.mrb[0].mxu0
      %v8663 = vpop.f32.mrb[0].mxu0
      %v8664 = vadd.f32 0.0, %v8663
      %v8665 = vpop.f32.mrb[0].mxu0
      %8666 = vmatprep.mubr.bf16.mxu0 0
      %8667 = vmatmul.mubr.bf16.gmra.mrb[0].mxu0 %v3966
      %v8668 = vpop.f32.mrb[0].mxu0
      %v8669 = vadd.f32 0.0, %v8668
      %v8670 = vpop.f32.mrb[0].mxu0
      %v8671 = vpop.f32.mrb[0].mxu0
      %v8672 = vadd.f32 0.0, %v8671
      %v8673 = vpop.f32.mrb[0].mxu0
      %8674 = vmatprep.mubr.bf16.mxu0 0
      %8675 = vmatmul.mubr.bf16.gmra.mrb[0].mxu0 %v3969
      %v8676 = vpop.f32.mrb[0].mxu0
      %v8677 = vadd.f32 0.0, %v8676
      %v8678 = vpop.f32.mrb[0].mxu0
      %v8679 = vpop.f32.mrb[0].mxu0
      %v8680 = vadd.f32 0.0, %v8679
      %v8681 = vpop.f32.mrb[0].mxu0
      %8682 = vmatprep.mubr.bf16.mxu0 0
      %8683 = vmatmul.mubr.bf16.gmra.mrb[0].mxu0 %v3972
      %v8684 = vpop.f32.mrb[0].mxu0
      %v8685 = vadd.f32 0.0, %v8684
      %v8686 = vpop.f32.mrb[0].mxu0
      %v8687 = vpop.f32.mrb[0].mxu0
      %v8688 = vadd.f32 0.0, %v8687
      %v8689 = vpop.f32.mrb[0].mxu0
      %8690 = vmatprep.mubr.bf16.mxu0 0
      %8691 = vmatmul.mubr.bf16.gmra.mrb[0].mxu0 %v6091
      %v8692 = vpop.f32.mrb[0].mxu0
      %v8693 = vadd.f32 0.0, %v8692
      %v8694 = vpop.f32.mrb[0].mxu0
      %v8695 = vpop.f32.mrb[0].mxu0
      %v8696 = vadd.f32 0.0, %v8695
      %v8697 = vpop.f32.mrb[0].mxu0
      %8698 = vmatprep.mubr.bf16.mxu0 0
      %8699 = vmatmul.mubr.bf16.gmra.mrb[0].mxu0 %v6094
      %v8700 = vpop.f32.mrb[0].mxu0
      %v8701 = vadd.f32 0.0, %v8700
      %v8702 = vpop.f32.mrb[0].mxu0
      %v8703 = vpop.f32.mrb[0].mxu0
      %v8704 = vadd.f32 0.0, %v8703
      %v8705 = vpop.f32.mrb[0].mxu0
      %8706 = vmatprep.mubr.bf16.mxu0 0
      %8707 = vmatmul.mubr.bf16.gmra.mrb[0].mxu0 %v3783
      %v8708 = vpop.f32.mrb[0].mxu0
      %v8709 = vadd.f32 0.0, %v8708
      %v8710 = vpop.f32.mrb[0].mxu0
      %v8711 = vpop.f32.mrb[0].mxu0
      %v8712 = vadd.f32 0.0, %v8711
      %v8713 = vpop.f32.mrb[0].mxu0
      %8714 = vmatprep.mubr.bf16.mxu0 0
      %8715 = vmatmul.mubr.bf16.gmra.mrb[0].mxu0 %v3786
      %v8716 = vpop.f32.mrb[0].mxu0
      %v8717 = vadd.f32 0.0, %v8716
      %v8718 = vpop.f32.mrb[0].mxu0
      %v8719 = vpop.f32.mrb[0].mxu0
      %v8720 = vadd.f32 0.0, %v8719
      %v8721 = vpop.f32.mrb[0].mxu0
      %8722 = vdwg.mxu0
      %v8723 = vadd.f32 %v8030, %v8213
      %v8724 = vadd.f32 %v8031, %v8216
      %v8725 = vadd.f32 %v8032, %v8221
      %v8726 = vadd.f32 %v8033, %v8224
      %v8727 = vadd.f32 %v8034, %v8229
      %v8728 = vadd.f32 %v8035, %v8232
      %v8729 = vadd.f32 %v8036, %v8237
      %v8730 = vadd.f32 %v8037, %v8240
      %v8731 = vadd.f32 %v8038, %v8245
      %v8732 = vadd.f32 %v8039, %v8248
      %v8733 = vadd.f32 %v8040, %v8253
      %v8734 = vadd.f32 %v8041, %v8256
      %v8735 = vadd.f32 %v8042, %v8261
      %v8736 = vadd.f32 %v8043, %v8264
      %v8737 = vadd.f32 %v8044, %v8269
      %v8738 = vadd.f32 %v8045, %v8272
      %v8739 = vadd.f32 %v8046, %v8277
      %v8740 = vadd.f32 %v8047, %v8280
      %v8741 = vadd.f32 %v8048, %v8285
      %v8742 = vadd.f32 %v8049, %v8288
      %v8743 = vadd.f32 %v8050, %v8293
      %v8744 = vadd.f32 %v8051, %v8296
      %v8745 = vadd.f32 %v8052, %v8301
      %v8746 = vadd.f32 %v8053, %v8304
      %v8747 = vadd.f32 %v8054, %v8309
      %v8748 = vadd.f32 %v8055, %v8312
      %v8749 = vadd.f32 %v8056, %v8317
      %v8750 = vadd.f32 %v8057, %v8320
      %v8751 = vadd.f32 %v8058, %v8325
      %v8752 = vadd.f32 %v8059, %v8328
      %v8753 = vadd.f32 %v8060, %v8333
      %v8754 = vadd.f32 %v8061, %v8336
      %v8755 = vadd.f32 %v8062, %v8341
      %v8756 = vadd.f32 %v8063, %v8344
      %v8757 = vadd.f32 %v8064, %v8349
      %v8758 = vadd.f32 %v8065, %v8352
      %v8759 = vadd.f32 %v8066, %v8357
      %v8760 = vadd.f32 %v8067, %v8360
      %v8761 = vadd.f32 %v8068, %v8365
      %v8762 = vadd.f32 %v8069, %v8368
      %v8763 = vadd.f32 %v8070, %v8373
      %v8764 = vadd.f32 %v8071, %v8376
      %v8765 = vadd.f32 %v8072, %v8381
      %v8766 = vadd.f32 %v8073, %v8384
      %v8767 = vadd.f32 %v8074, %v8389
      %v8768 = vadd.f32 %v8075, %v8392
      %v8769 = vadd.f32 %v8076, %v8397
      %v8770 = vadd.f32 %v8077, %v8400
      %v8771 = vadd.f32 %v8078, %v8405
      %v8772 = vadd.f32 %v8079, %v8408
      %v8773 = vadd.f32 %v8080, %v8413
      %v8774 = vadd.f32 %v8081, %v8416
      %v8775 = vadd.f32 %v8082, %v8421
      %v8776 = vadd.f32 %v8083, %v8424
      %v8777 = vadd.f32 %v8084, %v8429
      %v8778 = vadd.f32 %v8085, %v8432
      %v8779 = vadd.f32 %v8086, %v8437
      %v8780 = vadd.f32 %v8087, %v8440
      %v8781 = vadd.f32 %v8088, %v8445
      %v8782 = vadd.f32 %v8089, %v8448
      %v8783 = vadd.f32 %v8090, %v8453
      %v8784 = vadd.f32 %v8091, %v8456
      %v8785 = vadd.f32 %v8092, %v8461
      %v8786 = vadd.f32 %v8093, %v8464
      %v8787 = vadd.f32 %v8094, %v8469
      %v8788 = vadd.f32 %v8095, %v8472
      %v8789 = vadd.f32 %v8096, %v8477
      %v8790 = vadd.f32 %v8097, %v8480
      %v8791 = vadd.f32 %v8098, %v8485
      %v8792 = vadd.f32 %v8099, %v8488
      %v8793 = vadd.f32 %v8100, %v8493
      %v8794 = vadd.f32 %v8101, %v8496
      %v8795 = vadd.f32 %v8102, %v8501
      %v8796 = vadd.f32 %v8103, %v8504
      %v8797 = vadd.f32 %v8104, %v8509
      %v8798 = vadd.f32 %v8105, %v8512
      %v8799 = vadd.f32 %v8106, %v8517
      %v8800 = vadd.f32 %v8107, %v8520
      %v8801 = vadd.f32 %v8108, %v8525
      %v8802 = vadd.f32 %v8109, %v8528
      %v8803 = vadd.f32 %v8110, %v8533
      %v8804 = vadd.f32 %v8111, %v8536
      %v8805 = vadd.f32 %v8112, %v8541
      %v8806 = vadd.f32 %v8113, %v8544
      %v8807 = vadd.f32 %v8114, %v8549
      %v8808 = vadd.f32 %v8115, %v8552
      %v8809 = vadd.f32 %v8116, %v8557
      %v8810 = vadd.f32 %v8117, %v8560
      %v8811 = vadd.f32 %v8118, %v8565
      %v8812 = vadd.f32 %v8119, %v8568
      %v8813 = vadd.f32 %v8120, %v8573
      %v8814 = vadd.f32 %v8121, %v8576
      %v8815 = vadd.f32 %v8122, %v8581
      %v8816 = vadd.f32 %v8123, %v8584
      %v8817 = vadd.f32 %v8124, %v8589
      %v8818 = vadd.f32 %v8125, %v8592
      %v8819 = vadd.f32 %v8126, %v8597
      %v8820 = vadd.f32 %v8127, %v8600
      %v8821 = vadd.f32 %v8128, %v8605
      %v8822 = vadd.f32 %v8129, %v8608
      %v8823 = vadd.f32 %v8130, %v8613
      %v8824 = vadd.f32 %v8131, %v8616
      %v8825 = vadd.f32 %v8132, %v8621
      %v8826 = vadd.f32 %v8133, %v8624
      %v8827 = vadd.f32 %v8134, %v8629
      %v8828 = vadd.f32 %v8135, %v8632
      %v8829 = vadd.f32 %v8136, %v8637
      %v8830 = vadd.f32 %v8137, %v8640
      %v8831 = vadd.f32 %v8138, %v8645
      %v8832 = vadd.f32 %v8139, %v8648
      %v8833 = vadd.f32 %v8140, %v8653
      %v8834 = vadd.f32 %v8141, %v8656
      %v8835 = vadd.f32 %v8142, %v8661
      %v8836 = vadd.f32 %v8143, %v8664
      %v8837 = vadd.f32 %v8144, %v8669
      %v8838 = vadd.f32 %v8145, %v8672
      %v8839 = vadd.f32 %v8146, %v8677
      %v8840 = vadd.f32 %v8147, %v8680
      %v8841 = vadd.f32 %v8148, %v8685
      %v8842 = vadd.f32 %v8149, %v8688
      %v8843 = vadd.f32 %v8150, %v8693
      %v8844 = vadd.f32 %v8151, %v8696
      %v8845 = vadd.f32 %v8152, %v8701
      %v8846 = vadd.f32 %v8153, %v8704
      %v8847 = vadd.f32 %v8154, %v8709
      %v8848 = vadd.f32 %v8155, %v8712
      %v8849 = vadd.f32 %v8156, %v8717
      %v8850 = vadd.f32 %v8157, %v8720
      %v8851 = vpack.c.bf16 %v8724, %v8723
      %v8852 = vpack.c.bf16 %v8726, %v8725
      %v8853 = vpack.c.bf16 %v8728, %v8727
      %v8854 = vpack.c.bf16 %v8730, %v8729
      %v8855 = vpack.c.bf16 %v8732, %v8731
      %v8856 = vpack.c.bf16 %v8734, %v8733
      %v8857 = vpack.c.bf16 %v8736, %v8735
      %v8858 = vpack.c.bf16 %v8738, %v8737
      %v8859 = vpack.c.bf16 %v8740, %v8739
      %v8860 = vpack.c.bf16 %v8742, %v8741
      %v8861 = vpack.c.bf16 %v8744, %v8743
      %v8862 = vpack.c.bf16 %v8746, %v8745
      %v8863 = vpack.c.bf16 %v8748, %v8747
      %v8864 = vpack.c.bf16 %v8750, %v8749
      %v8865 = vpack.c.bf16 %v8752, %v8751
      %v8866 = vpack.c.bf16 %v8754, %v8753
      %v8867 = vpack.c.bf16 %v8756, %v8755
      %v8868 = vpack.c.bf16 %v8758, %v8757
      %v8869 = vpack.c.bf16 %v8760, %v8759
      %v8870 = vpack.c.bf16 %v8762, %v8761
      %v8871 = vpack.c.bf16 %v8764, %v8763
      %v8872 = vpack.c.bf16 %v8766, %v8765
      %v8873 = vpack.c.bf16 %v8768, %v8767
      %v8874 = vpack.c.bf16 %v8770, %v8769
      %v8875 = vpack.c.bf16 %v8772, %v8771
      %v8876 = vpack.c.bf16 %v8774, %v8773
      %v8877 = vpack.c.bf16 %v8776, %v8775
      %v8878 = vpack.c.bf16 %v8778, %v8777
      %v8879 = vpack.c.bf16 %v8780, %v8779
      %v8880 = vpack.c.bf16 %v8782, %v8781
      %v8881 = vpack.c.bf16 %v8784, %v8783
      %v8882 = vpack.c.bf16 %v8786, %v8785
      %v8883 = vpack.c.bf16 %v8788, %v8787
      %v8884 = vpack.c.bf16 %v8790, %v8789
      %v8885 = vpack.c.bf16 %v8792, %v8791
      %v8886 = vpack.c.bf16 %v8794, %v8793
      %v8887 = vpack.c.bf16 %v8796, %v8795
      %v8888 = vpack.c.bf16 %v8798, %v8797
      %v8889 = vpack.c.bf16 %v8800, %v8799
      %v8890 = vpack.c.bf16 %v8802, %v8801
      %v8891 = vpack.c.bf16 %v8804, %v8803
      %v8892 = vpack.c.bf16 %v8806, %v8805
      %v8893 = vpack.c.bf16 %v8808, %v8807
      %v8894 = vpack.c.bf16 %v8810, %v8809
      %v8895 = vpack.c.bf16 %v8812, %v8811
      %v8896 = vpack.c.bf16 %v8814, %v8813
      %v8897 = vpack.c.bf16 %v8816, %v8815
      %v8898 = vpack.c.bf16 %v8818, %v8817
      %v8899 = vpack.c.bf16 %v8820, %v8819
      %v8900 = vpack.c.bf16 %v8822, %v8821
      %v8901 = vpack.c.bf16 %v8824, %v8823
      %v8902 = vpack.c.bf16 %v8826, %v8825
      %v8903 = vpack.c.bf16 %v8828, %v8827
      %v8904 = vpack.c.bf16 %v8830, %v8829
      %v8905 = vpack.c.bf16 %v8832, %v8831
      %v8906 = vpack.c.bf16 %v8834, %v8833
      %v8907 = vpack.c.bf16 %v8836, %v8835
      %v8908 = vpack.c.bf16 %v8838, %v8837
      %v8909 = vpack.c.bf16 %v8840, %v8839
      %v8910 = vpack.c.bf16 %v8842, %v8841
      %v8911 = vpack.c.bf16 %v8844, %v8843
      %v8912 = vpack.c.bf16 %v8846, %v8845
      %v8913 = vpack.c.bf16 %v8848, %v8847
      %v8914 = vpack.c.bf16 %v8850, %v8849
      %v8979 = vunpack.c.l.b16 %v8851
      %v8980 = vunpack.c.h.b16 %v8851
      %v8981 = vunpack.c.l.b16 %v8852
      %v8982 = vunpack.c.h.b16 %v8852
      %v8983 = vunpack.c.l.b16 %v8853
      %v8984 = vunpack.c.h.b16 %v8853
      %v8985 = vunpack.c.l.b16 %v8854
      %v8986 = vunpack.c.h.b16 %v8854
      %v8987 = vunpack.c.l.b16 %v8855
      %v8988 = vunpack.c.h.b16 %v8855
      %v8989 = vunpack.c.l.b16 %v8856
      %v8990 = vunpack.c.h.b16 %v8856
      %v8991 = vunpack.c.l.b16 %v8857
      %v8992 = vunpack.c.h.b16 %v8857
      %v8993 = vunpack.c.l.b16 %v8858
      %v8994 = vunpack.c.h.b16 %v8858
      %v8995 = vunpack.c.l.b16 %v8859
      %v8996 = vunpack.c.h.b16 %v8859
      %v8997 = vunpack.c.l.b16 %v8860
      %v8998 = vunpack.c.h.b16 %v8860
      %v8999 = vunpack.c.l.b16 %v8861
      %v9000 = vunpack.c.h.b16 %v8861
      %v9001 = vunpack.c.l.b16 %v8862
      %v9002 = vunpack.c.h.b16 %v8862
      %v9003 = vunpack.c.l.b16 %v8863
      %v9004 = vunpack.c.h.b16 %v8863
      %v9005 = vunpack.c.l.b16 %v8864
      %v9006 = vunpack.c.h.b16 %v8864
      %v9007 = vunpack.c.l.b16 %v8865
      %v9008 = vunpack.c.h.b16 %v8865
      %v9009 = vunpack.c.l.b16 %v8866
      %v9010 = vunpack.c.h.b16 %v8866
      %v9011 = vunpack.c.l.b16 %v8867
      %v9012 = vunpack.c.h.b16 %v8867
      %v9013 = vunpack.c.l.b16 %v8868
      %v9014 = vunpack.c.h.b16 %v8868
      %v9015 = vunpack.c.l.b16 %v8869
      %v9016 = vunpack.c.h.b16 %v8869
      %v9017 = vunpack.c.l.b16 %v8870
      %v9018 = vunpack.c.h.b16 %v8870
      %v9019 = vunpack.c.l.b16 %v8871
      %v9020 = vunpack.c.h.b16 %v8871
      %v9021 = vunpack.c.l.b16 %v8872
      %v9022 = vunpack.c.h.b16 %v8872
      %v9023 = vunpack.c.l.b16 %v8873
      %v9024 = vunpack.c.h.b16 %v8873
      %v9025 = vunpack.c.l.b16 %v8874
      %v9026 = vunpack.c.h.b16 %v8874
      %v9027 = vunpack.c.l.b16 %v8875
      %v9028 = vunpack.c.h.b16 %v8875
      %v9029 = vunpack.c.l.b16 %v8876
      %v9030 = vunpack.c.h.b16 %v8876
      %v9031 = vunpack.c.l.b16 %v8877
      %v9032 = vunpack.c.h.b16 %v8877
      %v9033 = vunpack.c.l.b16 %v8878
      %v9034 = vunpack.c.h.b16 %v8878
      %v9035 = vunpack.c.l.b16 %v8879
      %v9036 = vunpack.c.h.b16 %v8879
      %v9037 = vunpack.c.l.b16 %v8880
      %v9038 = vunpack.c.h.b16 %v8880
      %v9039 = vunpack.c.l.b16 %v8881
      %v9040 = vunpack.c.h.b16 %v8881
      %v9041 = vunpack.c.l.b16 %v8882
      %v9042 = vunpack.c.h.b16 %v8882
      %v9043 = vunpack.c.l.b16 %v8883
      %v9044 = vunpack.c.h.b16 %v8883
      %v9045 = vunpack.c.l.b16 %v8884
      %v9046 = vunpack.c.h.b16 %v8884
      %v9047 = vunpack.c.l.b16 %v8885
      %v9048 = vunpack.c.h.b16 %v8885
      %v9049 = vunpack.c.l.b16 %v8886
      %v9050 = vunpack.c.h.b16 %v8886
      %v9051 = vunpack.c.l.b16 %v8887
      %v9052 = vunpack.c.h.b16 %v8887
      %v9053 = vunpack.c.l.b16 %v8888
      %v9054 = vunpack.c.h.b16 %v8888
      %v9055 = vunpack.c.l.b16 %v8889
      %v9056 = vunpack.c.h.b16 %v8889
      %v9057 = vunpack.c.l.b16 %v8890
      %v9058 = vunpack.c.h.b16 %v8890
      %v9059 = vunpack.c.l.b16 %v8891
      %v9060 = vunpack.c.h.b16 %v8891
      %v9061 = vunpack.c.l.b16 %v8892
      %v9062 = vunpack.c.h.b16 %v8892
      %v9063 = vunpack.c.l.b16 %v8893
      %v9064 = vunpack.c.h.b16 %v8893
      %v9065 = vunpack.c.l.b16 %v8894
      %v9066 = vunpack.c.h.b16 %v8894
      %v9067 = vunpack.c.l.b16 %v8895
      %v9068 = vunpack.c.h.b16 %v8895
      %v9069 = vunpack.c.l.b16 %v8896
      %v9070 = vunpack.c.h.b16 %v8896
      %v9071 = vunpack.c.l.b16 %v8897
      %v9072 = vunpack.c.h.b16 %v8897
      %v9073 = vunpack.c.l.b16 %v8898
      %v9074 = vunpack.c.h.b16 %v8898
      %v9075 = vunpack.c.l.b16 %v8899
      %v9076 = vunpack.c.h.b16 %v8899
      %v9077 = vunpack.c.l.b16 %v8900
      %v9078 = vunpack.c.h.b16 %v8900
      %v9079 = vunpack.c.l.b16 %v8901
      %v9080 = vunpack.c.h.b16 %v8901
      %v9081 = vunpack.c.l.b16 %v8902
      %v9082 = vunpack.c.h.b16 %v8902
      %v9083 = vunpack.c.l.b16 %v8903
      %v9084 = vunpack.c.h.b16 %v8903
      %v9085 = vunpack.c.l.b16 %v8904
      %v9086 = vunpack.c.h.b16 %v8904
      %v9087 = vunpack.c.l.b16 %v8905
      %v9088 = vunpack.c.h.b16 %v8905
      %v9089 = vunpack.c.l.b16 %v8906
      %v9090 = vunpack.c.h.b16 %v8906
      %v9091 = vunpack.c.l.b16 %v8907
      %v9092 = vunpack.c.h.b16 %v8907
      %v9093 = vunpack.c.l.b16 %v8908
      %v9094 = vunpack.c.h.b16 %v8908
      %v9095 = vunpack.c.l.b16 %v8909
      %v9096 = vunpack.c.h.b16 %v8909
      %v9097 = vunpack.c.l.b16 %v8910
      %v9098 = vunpack.c.h.b16 %v8910
      %v9099 = vunpack.c.l.b16 %v8911
      %v9100 = vunpack.c.h.b16 %v8911
      %v9101 = vunpack.c.l.b16 %v8912
      %v9102 = vunpack.c.h.b16 %v8912
      %v9103 = vunpack.c.l.b16 %v8913
      %v9104 = vunpack.c.h.b16 %v8913
      %v9105 = vunpack.c.l.b16 %v8914
      %v9106 = vunpack.c.h.b16 %v8914
      %v9107 = vpack.c.b16 %v8979, %v8979
      %v9108 = vpack.c.b16 %v8980, %v8980
      %v9109 = vpack.c.b16 %v8981, %v8981
      %v9110 = vpack.c.b16 %v8982, %v8982
      %v9111 = vpack.c.b16 %v8983, %v8983
      %v9112 = vpack.c.b16 %v8984, %v8984
      %v9113 = vpack.c.b16 %v8985, %v8985
      %v9114 = vpack.c.b16 %v8986, %v8986
      %v9115 = vpack.c.b16 %v8987, %v8987
      %v9116 = vpack.c.b16 %v8988, %v8988
      %v9117 = vpack.c.b16 %v8989, %v8989
      %v9118 = vpack.c.b16 %v8990, %v8990
      %v9119 = vpack.c.b16 %v8991, %v8991
      %v9120 = vpack.c.b16 %v8992, %v8992
      %v9121 = vpack.c.b16 %v8993, %v8993
      %v9122 = vpack.c.b16 %v8994, %v8994
      %v9123 = vpack.c.b16 %v8995, %v8995
      %v9124 = vpack.c.b16 %v8996, %v8996
      %v9125 = vpack.c.b16 %v8997, %v8997
      %v9126 = vpack.c.b16 %v8998, %v8998
      %v9127 = vpack.c.b16 %v8999, %v8999
      %v9128 = vpack.c.b16 %v9000, %v9000
      %v9129 = vpack.c.b16 %v9001, %v9001
      %v9130 = vpack.c.b16 %v9002, %v9002
      %v9131 = vpack.c.b16 %v9003, %v9003
      %v9132 = vpack.c.b16 %v9004, %v9004
      %v9133 = vpack.c.b16 %v9005, %v9005
      %v9134 = vpack.c.b16 %v9006, %v9006
      %v9135 = vpack.c.b16 %v9007, %v9007
      %v9136 = vpack.c.b16 %v9008, %v9008
      %v9137 = vpack.c.b16 %v9009, %v9009
      %v9138 = vpack.c.b16 %v9010, %v9010
      %v9139 = vpack.c.b16 %v9011, %v9011
      %v9140 = vpack.c.b16 %v9012, %v9012
      %v9141 = vpack.c.b16 %v9013, %v9013
      %v9142 = vpack.c.b16 %v9014, %v9014
      %v9143 = vpack.c.b16 %v9015, %v9015
      %v9144 = vpack.c.b16 %v9016, %v9016
      %v9145 = vpack.c.b16 %v9017, %v9017
      %v9146 = vpack.c.b16 %v9018, %v9018
      %v9147 = vpack.c.b16 %v9019, %v9019
      %v9148 = vpack.c.b16 %v9020, %v9020
      %v9149 = vpack.c.b16 %v9021, %v9021
      %v9150 = vpack.c.b16 %v9022, %v9022
      %v9151 = vpack.c.b16 %v9023, %v9023
      %v9152 = vpack.c.b16 %v9024, %v9024
      %v9153 = vpack.c.b16 %v9025, %v9025
      %v9154 = vpack.c.b16 %v9026, %v9026
      %v9155 = vpack.c.b16 %v9027, %v9027
      %v9156 = vpack.c.b16 %v9028, %v9028
      %v9157 = vpack.c.b16 %v9029, %v9029
      %v9158 = vpack.c.b16 %v9030, %v9030
      %v9159 = vpack.c.b16 %v9031, %v9031
      %v9160 = vpack.c.b16 %v9032, %v9032
      %v9161 = vpack.c.b16 %v9033, %v9033
      %v9162 = vpack.c.b16 %v9034, %v9034
      %v9163 = vpack.c.b16 %v9035, %v9035
      %v9164 = vpack.c.b16 %v9036, %v9036
      %v9165 = vpack.c.b16 %v9037, %v9037
      %v9166 = vpack.c.b16 %v9038, %v9038
      %v9167 = vpack.c.b16 %v9039, %v9039
      %v9168 = vpack.c.b16 %v9040, %v9040
      %v9169 = vpack.c.b16 %v9041, %v9041
      %v9170 = vpack.c.b16 %v9042, %v9042
      %v9171 = vpack.c.b16 %v9043, %v9043
      %v9172 = vpack.c.b16 %v9044, %v9044
      %v9173 = vpack.c.b16 %v9045, %v9045
      %v9174 = vpack.c.b16 %v9046, %v9046
      %v9175 = vpack.c.b16 %v9047, %v9047
      %v9176 = vpack.c.b16 %v9048, %v9048
      %v9177 = vpack.c.b16 %v9049, %v9049
      %v9178 = vpack.c.b16 %v9050, %v9050
      %v9179 = vpack.c.b16 %v9051, %v9051
      %v9180 = vpack.c.b16 %v9052, %v9052
      %v9181 = vpack.c.b16 %v9053, %v9053
      %v9182 = vpack.c.b16 %v9054, %v9054
      %v9183 = vpack.c.b16 %v9055, %v9055
      %v9184 = vpack.c.b16 %v9056, %v9056
      %v9185 = vpack.c.b16 %v9057, %v9057
      %v9186 = vpack.c.b16 %v9058, %v9058
      %v9187 = vpack.c.b16 %v9059, %v9059
      %v9188 = vpack.c.b16 %v9060, %v9060
      %v9189 = vpack.c.b16 %v9061, %v9061
      %v9190 = vpack.c.b16 %v9062, %v9062
      %v9191 = vpack.c.b16 %v9063, %v9063
      %v9192 = vpack.c.b16 %v9064, %v9064
      %v9193 = vpack.c.b16 %v9065, %v9065
      %v9194 = vpack.c.b16 %v9066, %v9066
      %v9195 = vpack.c.b16 %v9067, %v9067
      %v9196 = vpack.c.b16 %v9068, %v9068
      %v9197 = vpack.c.b16 %v9069, %v9069
      %v9198 = vpack.c.b16 %v9070, %v9070
      %v9199 = vpack.c.b16 %v9071, %v9071
      %v9200 = vpack.c.b16 %v9072, %v9072
      %v9201 = vpack.c.b16 %v9073, %v9073
      %v9202 = vpack.c.b16 %v9074, %v9074
      %v9203 = vpack.c.b16 %v9075, %v9075
      %v9204 = vpack.c.b16 %v9076, %v9076
      %v9205 = vpack.c.b16 %v9077, %v9077
      %v9206 = vpack.c.b16 %v9078, %v9078
      %v9207 = vpack.c.b16 %v9079, %v9079
      %v9208 = vpack.c.b16 %v9080, %v9080
      %v9209 = vpack.c.b16 %v9081, %v9081
      %v9210 = vpack.c.b16 %v9082, %v9082
      %v9211 = vpack.c.b16 %v9083, %v9083
      %v9212 = vpack.c.b16 %v9084, %v9084
      %v9213 = vpack.c.b16 %v9085, %v9085
      %v9214 = vpack.c.b16 %v9086, %v9086
      %v9215 = vpack.c.b16 %v9087, %v9087
      %v9216 = vpack.c.b16 %v9088, %v9088
      %v9217 = vpack.c.b16 %v9089, %v9089
      %v9218 = vpack.c.b16 %v9090, %v9090
      %v9219 = vpack.c.b16 %v9091, %v9091
      %v9220 = vpack.c.b16 %v9092, %v9092
      %v9221 = vpack.c.b16 %v9093, %v9093
      %v9222 = vpack.c.b16 %v9094, %v9094
      %v9223 = vpack.c.b16 %v9095, %v9095
      %v9224 = vpack.c.b16 %v9096, %v9096
      %v9225 = vpack.c.b16 %v9097, %v9097
      %v9226 = vpack.c.b16 %v9098, %v9098
      %v9227 = vpack.c.b16 %v9099, %v9099
      %v9228 = vpack.c.b16 %v9100, %v9100
      %v9229 = vpack.c.b16 %v9101, %v9101
      %v9230 = vpack.c.b16 %v9102, %v9102
      %v9231 = vpack.c.b16 %v9103, %v9103
      %v9232 = vpack.c.b16 %v9104, %v9104
      %v9233 = vpack.c.b16 %v9105, %v9105
      %v9234 = vpack.c.b16 %v9106, %v9106
      %vm9363 = vcmask 519168
      %9364 = vst.msk [vmem:[%s214] sm:$0xf] %vm9363, %v9107
      %9365 = vst.msk [vmem:[%s214 + $0x4] sm:$0xf] %vm9363, %v9108
      %9366 = vst.msk [vmem:[%s214 + $0x8] sm:$0xf] %vm9363, %v9109
      %9367 = vst.msk [vmem:[%s214 + $0xc] sm:$0xf] %vm9363, %v9110
      %9368 = vst.msk [vmem:[%s214 + $0x10] sm:$0xf] %vm9363, %v9111
      %9369 = vst.msk [vmem:[%s214 + $0x14] sm:$0xf] %vm9363, %v9112
      %9370 = vst.msk [vmem:[%s214 + $0x18] sm:$0xf] %vm9363, %v9113
      %9371 = vst.msk [vmem:[%s214 + $0x1c] sm:$0xf] %vm9363, %v9114
      %9372 = vst.msk [vmem:[%s214 + $0x20] sm:$0xf] %vm9363, %v9115
      %9373 = vst.msk [vmem:[%s214 + $0x24] sm:$0xf] %vm9363, %v9116
      %9374 = vst.msk [vmem:[%s214 + $0x28] sm:$0xf] %vm9363, %v9117
      %9375 = vst.msk [vmem:[%s214 + $0x2c] sm:$0xf] %vm9363, %v9118
      %9376 = vst.msk [vmem:[%s214 + $0x30] sm:$0xf] %vm9363, %v9119
      %9377 = vst.msk [vmem:[%s214 + $0x34] sm:$0xf] %vm9363, %v9120
      %9378 = vst.msk [vmem:[%s214 + $0x38] sm:$0xf] %vm9363, %v9121
      %9379 = vst.msk [vmem:[%s214 + $0x3c] sm:$0xf] %vm9363, %v9122
      %9380 = vst.msk [vmem:[%s214 + $0x40] sm:$0xf] %vm9363, %v9123
      %9381 = vst.msk [vmem:[%s214 + $0x44] sm:$0xf] %vm9363, %v9124
      %9382 = vst.msk [vmem:[%s214 + $0x48] sm:$0xf] %vm9363, %v9125
      %9383 = vst.msk [vmem:[%s214 + $0x4c] sm:$0xf] %vm9363, %v9126
      %9384 = vst.msk [vmem:[%s214 + $0x50] sm:$0xf] %vm9363, %v9127
      %9385 = vst.msk [vmem:[%s214 + $0x54] sm:$0xf] %vm9363, %v9128
      %9386 = vst.msk [vmem:[%s214 + $0x58] sm:$0xf] %vm9363, %v9129
      %9387 = vst.msk [vmem:[%s214 + $0x5c] sm:$0xf] %vm9363, %v9130
      %9388 = vst.msk [vmem:[%s214 + $0x60] sm:$0xf] %vm9363, %v9131
      %9389 = vst.msk [vmem:[%s214 + $0x64] sm:$0xf] %vm9363, %v9132
      %9390 = vst.msk [vmem:[%s214 + $0x68] sm:$0xf] %vm9363, %v9133
      %9391 = vst.msk [vmem:[%s214 + $0x6c] sm:$0xf] %vm9363, %v9134
      %9392 = vst.msk [vmem:[%s214 + $0x70] sm:$0xf] %vm9363, %v9135
      %9393 = vst.msk [vmem:[%s214 + $0x74] sm:$0xf] %vm9363, %v9136
      %9394 = vst.msk [vmem:[%s214 + $0x78] sm:$0xf] %vm9363, %v9137
      %9395 = vst.msk [vmem:[%s214 + $0x7c] sm:$0xf] %vm9363, %v9138
      %9396 = vst.msk [vmem:[%s214 + $0x80] sm:$0xf] %vm9363, %v9139
      %9397 = vst.msk [vmem:[%s214 + $0x84] sm:$0xf] %vm9363, %v9140
      %9398 = vst.msk [vmem:[%s214 + $0x88] sm:$0xf] %vm9363, %v9141
      %9399 = vst.msk [vmem:[%s214 + $0x8c] sm:$0xf] %vm9363, %v9142
      %9400 = vst.msk [vmem:[%s214 + $0x90] sm:$0xf] %vm9363, %v9143
      %9401 = vst.msk [vmem:[%s214 + $0x94] sm:$0xf] %vm9363, %v9144
      %9402 = vst.msk [vmem:[%s214 + $0x98] sm:$0xf] %vm9363, %v9145
      %9403 = vst.msk [vmem:[%s214 + $0x9c] sm:$0xf] %vm9363, %v9146
      %9404 = vst.msk [vmem:[%s214 + $0xa0] sm:$0xf] %vm9363, %v9147
      %9405 = vst.msk [vmem:[%s214 + $0xa4] sm:$0xf] %vm9363, %v9148
      %9406 = vst.msk [vmem:[%s214 + $0xa8] sm:$0xf] %vm9363, %v9149
      %9407 = vst.msk [vmem:[%s214 + $0xac] sm:$0xf] %vm9363, %v9150
      %9408 = vst.msk [vmem:[%s214 + $0xb0] sm:$0xf] %vm9363, %v9151
      %9409 = vst.msk [vmem:[%s214 + $0xb4] sm:$0xf] %vm9363, %v9152
      %9410 = vst.msk [vmem:[%s214 + $0xb8] sm:$0xf] %vm9363, %v9153
      %9411 = vst.msk [vmem:[%s214 + $0xbc] sm:$0xf] %vm9363, %v9154
      %9412 = vst.msk [vmem:[%s214 + $0xc0] sm:$0xf] %vm9363, %v9155
      %9413 = vst.msk [vmem:[%s214 + $0xc4] sm:$0xf] %vm9363, %v9156
      %9414 = vst.msk [vmem:[%s214 + $0xc8] sm:$0xf] %vm9363, %v9157
      %9415 = vst.msk [vmem:[%s214 + $0xcc] sm:$0xf] %vm9363, %v9158
      %9416 = vst.msk [vmem:[%s214 + $0xd0] sm:$0xf] %vm9363, %v9159
      %9417 = vst.msk [vmem:[%s214 + $0xd4] sm:$0xf] %vm9363, %v9160
      %9418 = vst.msk [vmem:[%s214 + $0xd8] sm:$0xf] %vm9363, %v9161
      %9419 = vst.msk [vmem:[%s214 + $0xdc] sm:$0xf] %vm9363, %v9162
      %9420 = vst.msk [vmem:[%s214 + $0xe0] sm:$0xf] %vm9363, %v9163
      %9421 = vst.msk [vmem:[%s214 + $0xe4] sm:$0xf] %vm9363, %v9164
      %9422 = vst.msk [vmem:[%s214 + $0xe8] sm:$0xf] %vm9363, %v9165
      %9423 = vst.msk [vmem:[%s214 + $0xec] sm:$0xf] %vm9363, %v9166
      %9424 = vst.msk [vmem:[%s214 + $0xf0] sm:$0xf] %vm9363, %v9167
      %9425 = vst.msk [vmem:[%s214 + $0xf4] sm:$0xf] %vm9363, %v9168
      %9426 = vst.msk [vmem:[%s214 + $0xf8] sm:$0xf] %vm9363, %v9169
      %9427 = vst.msk [vmem:[%s214 + $0xfc] sm:$0xf] %vm9363, %v9170
      %9428 = vst.msk [vmem:[%s214 + $0x100] sm:$0xf] %vm9363, %v9171
      %9429 = vst.msk [vmem:[%s214 + $0x104] sm:$0xf] %vm9363, %v9172
      %9430 = vst.msk [vmem:[%s214 + $0x108] sm:$0xf] %vm9363, %v9173
      %9431 = vst.msk [vmem:[%s214 + $0x10c] sm:$0xf] %vm9363, %v9174
      %9432 = vst.msk [vmem:[%s214 + $0x110] sm:$0xf] %vm9363, %v9175
      %9433 = vst.msk [vmem:[%s214 + $0x114] sm:$0xf] %vm9363, %v9176
      %9434 = vst.msk [vmem:[%s214 + $0x118] sm:$0xf] %vm9363, %v9177
      %9435 = vst.msk [vmem:[%s214 + $0x11c] sm:$0xf] %vm9363, %v9178
      %9436 = vst.msk [vmem:[%s214 + $0x120] sm:$0xf] %vm9363, %v9179
      %9437 = vst.msk [vmem:[%s214 + $0x124] sm:$0xf] %vm9363, %v9180
      %9438 = vst.msk [vmem:[%s214 + $0x128] sm:$0xf] %vm9363, %v9181
      %9439 = vst.msk [vmem:[%s214 + $0x12c] sm:$0xf] %vm9363, %v9182
      %9440 = vst.msk [vmem:[%s214 + $0x130] sm:$0xf] %vm9363, %v9183
      %9441 = vst.msk [vmem:[%s214 + $0x134] sm:$0xf] %vm9363, %v9184
      %9442 = vst.msk [vmem:[%s214 + $0x138] sm:$0xf] %vm9363, %v9185
      %9443 = vst.msk [vmem:[%s214 + $0x13c] sm:$0xf] %vm9363, %v9186
      %9444 = vst.msk [vmem:[%s214 + $0x140] sm:$0xf] %vm9363, %v9187
      %9445 = vst.msk [vmem:[%s214 + $0x144] sm:$0xf] %vm9363, %v9188
      %9446 = vst.msk [vmem:[%s214 + $0x148] sm:$0xf] %vm9363, %v9189
      %9447 = vst.msk [vmem:[%s214 + $0x14c] sm:$0xf] %vm9363, %v9190
      %9448 = vst.msk [vmem:[%s214 + $0x150] sm:$0xf] %vm9363, %v9191
      %9449 = vst.msk [vmem:[%s214 + $0x154] sm:$0xf] %vm9363, %v9192
      %9450 = vst.msk [vmem:[%s214 + $0x158] sm:$0xf] %vm9363, %v9193
      %9451 = vst.msk [vmem:[%s214 + $0x15c] sm:$0xf] %vm9363, %v9194
      %9452 = vst.msk [vmem:[%s214 + $0x160] sm:$0xf] %vm9363, %v9195
      %9453 = vst.msk [vmem:[%s214 + $0x164] sm:$0xf] %vm9363, %v9196
      %9454 = vst.msk [vmem:[%s214 + $0x168] sm:$0xf] %vm9363, %v9197
      %9455 = vst.msk [vmem:[%s214 + $0x16c] sm:$0xf] %vm9363, %v9198
      %9456 = vst.msk [vmem:[%s214 + $0x170] sm:$0xf] %vm9363, %v9199
      %9457 = vst.msk [vmem:[%s214 + $0x174] sm:$0xf] %vm9363, %v9200
      %9458 = vst.msk [vmem:[%s214 + $0x178] sm:$0xf] %vm9363, %v9201
      %9459 = vst.msk [vmem:[%s214 + $0x17c] sm:$0xf] %vm9363, %v9202
      %9460 = vst.msk [vmem:[%s214 + $0x180] sm:$0xf] %vm9363, %v9203
      %9461 = vst.msk [vmem:[%s214 + $0x184] sm:$0xf] %vm9363, %v9204
      %9462 = vst.msk [vmem:[%s214 + $0x188] sm:$0xf] %vm9363, %v9205
      %9463 = vst.msk [vmem:[%s214 + $0x18c] sm:$0xf] %vm9363, %v9206
      %9464 = vst.msk [vmem:[%s214 + $0x190] sm:$0xf] %vm9363, %v9207
      %9465 = vst.msk [vmem:[%s214 + $0x194] sm:$0xf] %vm9363, %v9208
      %9466 = vst.msk [vmem:[%s214 + $0x198] sm:$0xf] %vm9363, %v9209
      %9467 = vst.msk [vmem:[%s214 + $0x19c] sm:$0xf] %vm9363, %v9210
      %9468 = vst.msk [vmem:[%s214 + $0x1a0] sm:$0xf] %vm9363, %v9211
      %9469 = vst.msk [vmem:[%s214 + $0x1a4] sm:$0xf] %vm9363, %v9212
      %9470 = vst.msk [vmem:[%s214 + $0x1a8] sm:$0xf] %vm9363, %v9213
      %9471 = vst.msk [vmem:[%s214 + $0x1ac] sm:$0xf] %vm9363, %v9214
      %9472 = vst.msk [vmem:[%s214 + $0x1b0] sm:$0xf] %vm9363, %v9215
      %9473 = vst.msk [vmem:[%s214 + $0x1b4] sm:$0xf] %vm9363, %v9216
      %9474 = vst.msk [vmem:[%s214 + $0x1b8] sm:$0xf] %vm9363, %v9217
      %9475 = vst.msk [vmem:[%s214 + $0x1bc] sm:$0xf] %vm9363, %v9218
      %9476 = vst.msk [vmem:[%s214 + $0x1c0] sm:$0xf] %vm9363, %v9219
      %9477 = vst.msk [vmem:[%s214 + $0x1c4] sm:$0xf] %vm9363, %v9220
      %9478 = vst.msk [vmem:[%s214 + $0x1c8] sm:$0xf] %vm9363, %v9221
      %9479 = vst.msk [vmem:[%s214 + $0x1cc] sm:$0xf] %vm9363, %v9222
      %9480 = vst.msk [vmem:[%s214 + $0x1d0] sm:$0xf] %vm9363, %v9223
      %9481 = vst.msk [vmem:[%s214 + $0x1d4] sm:$0xf] %vm9363, %v9224
      %9482 = vst.msk [vmem:[%s214 + $0x1d8] sm:$0xf] %vm9363, %v9225
      %9483 = vst.msk [vmem:[%s214 + $0x1dc] sm:$0xf] %vm9363, %v9226
      %9484 = vst.msk [vmem:[%s214 + $0x1e0] sm:$0xf] %vm9363, %v9227
      %9485 = vst.msk [vmem:[%s214 + $0x1e4] sm:$0xf] %vm9363, %v9228
      %9486 = vst.msk [vmem:[%s214 + $0x1e8] sm:$0xf] %vm9363, %v9229
      %9487 = vst.msk [vmem:[%s214 + $0x1ec] sm:$0xf] %vm9363, %v9230
      %9488 = vst.msk [vmem:[%s214 + $0x1f0] sm:$0xf] %vm9363, %v9231
      %9489 = vst.msk [vmem:[%s214 + $0x1f4] sm:$0xf] %vm9363, %v9232
      %9490 = vst.msk [vmem:[%s214 + $0x1f8] sm:$0xf] %vm9363, %v9233
      %9491 = vst.msk [vmem:[%s214 + $0x1fc] sm:$0xf] %vm9363, %v9234
      %p9492 = scmp.eq.s32.totalorder %s20, 0
      // Predicated region
      $region29: #{_conv_bn_relu_impl.2} parent=27 // pred_check
        %p9493 = pneg %p9492
      $region30: #{_conv_bn_relu_impl.2} parent=27 // pred_check_branch
        %9495 = sbr.rel (%p9493) target = $region32
      $region31: #{_conv_bn_relu_impl.2} parent=27 // pred_region
        %vm9496 = vcmask 517120
        %9497 = vst.msk [vmem:[%s218] sm:$0x3] %vm9496, 0.0
      $region32: #{_conv_bn_relu_impl.2} parent=27 // pred_fallthru
        _
      %vm9498 = vcmask 523264
      %v9499 = vsel %vm9498, %v8723, 0.0
      %v9500 = vsel %vm9498, %v8724, 0.0
      %v9501 = vadd.f32 %v9499, %v9500
      %v9502 = vsel %vm9498, %v8725, 0.0
      %v9503 = vadd.f32 %v9501, %v9502
      %v9504 = vsel %vm9498, %v8726, 0.0
      %v9505 = vadd.f32 %v9503, %v9504
      %v9506 = vsel %vm9498, %v8727, 0.0
      %v9507 = vadd.f32 %v9505, %v9506
      %v9508 = vsel %vm9498, %v8728, 0.0
      %v9509 = vadd.f32 %v9507, %v9508
      %v9510 = vsel %vm9498, %v8729, 0.0
      %v9511 = vadd.f32 %v9509, %v9510
      %v9512 = vsel %vm9498, %v8730, 0.0
      %v9513 = vadd.f32 %v9511, %v9512
      %v9514 = vsel %vm9498, %v8731, 0.0
      %v9515 = vadd.f32 %v9513, %v9514
      %v9516 = vsel %vm9498, %v8732, 0.0
      %v9517 = vadd.f32 %v9515, %v9516
      %v9518 = vsel %vm9498, %v8733, 0.0
      %v9519 = vadd.f32 %v9517, %v9518
      %v9520 = vsel %vm9498, %v8734, 0.0
      %v9521 = vadd.f32 %v9519, %v9520
      %v9522 = vsel %vm9498, %v8735, 0.0
      %v9523 = vadd.f32 %v9521, %v9522
      %v9524 = vsel %vm9498, %v8736, 0.0
      %v9525 = vadd.f32 %v9523, %v9524
      %v9526 = vsel %vm9498, %v8737, 0.0
      %v9527 = vadd.f32 %v9525, %v9526
      %v9528 = vsel %vm9498, %v8738, 0.0
      %v9529 = vadd.f32 %v9527, %v9528
      %v9530 = vsel %vm9498, %v8739, 0.0
      %v9531 = vadd.f32 %v9529, %v9530
      %v9532 = vsel %vm9498, %v8740, 0.0
      %v9533 = vadd.f32 %v9531, %v9532
      %v9534 = vsel %vm9498, %v8741, 0.0
      %v9535 = vadd.f32 %v9533, %v9534
      %v9536 = vsel %vm9498, %v8742, 0.0
      %v9537 = vadd.f32 %v9535, %v9536
      %v9538 = vsel %vm9498, %v8743, 0.0
      %v9539 = vadd.f32 %v9537, %v9538
      %v9540 = vsel %vm9498, %v8744, 0.0
      %v9541 = vadd.f32 %v9539, %v9540
      %v9542 = vsel %vm9498, %v8745, 0.0
      %v9543 = vadd.f32 %v9541, %v9542
      %v9544 = vsel %vm9498, %v8746, 0.0
      %v9545 = vadd.f32 %v9543, %v9544
      %v9546 = vsel %vm9498, %v8747, 0.0
      %v9547 = vadd.f32 %v9545, %v9546
      %v9548 = vsel %vm9498, %v8748, 0.0
      %v9549 = vadd.f32 %v9547, %v9548
      %v9550 = vsel %vm9498, %v8749, 0.0
      %v9551 = vadd.f32 %v9549, %v9550
      %v9552 = vsel %vm9498, %v8750, 0.0
      %v9553 = vadd.f32 %v9551, %v9552
      %v9554 = vsel %vm9498, %v8751, 0.0
      %v9555 = vadd.f32 %v9553, %v9554
      %v9556 = vsel %vm9498, %v8752, 0.0
      %v9557 = vadd.f32 %v9555, %v9556
      %v9558 = vsel %vm9498, %v8753, 0.0
      %v9559 = vadd.f32 %v9557, %v9558
      %v9560 = vsel %vm9498, %v8754, 0.0
      %v9561 = vadd.f32 %v9559, %v9560
      %v9562 = vsel %vm9498, %v8755, 0.0
      %v9563 = vadd.f32 %v9561, %v9562
      %v9564 = vsel %vm9498, %v8756, 0.0
      %v9565 = vadd.f32 %v9563, %v9564
      %v9566 = vsel %vm9498, %v8757, 0.0
      %v9567 = vadd.f32 %v9565, %v9566
      %v9568 = vsel %vm9498, %v8758, 0.0
      %v9569 = vadd.f32 %v9567, %v9568
      %v9570 = vsel %vm9498, %v8759, 0.0
      %v9571 = vadd.f32 %v9569, %v9570
      %v9572 = vsel %vm9498, %v8760, 0.0
      %v9573 = vadd.f32 %v9571, %v9572
      %v9574 = vsel %vm9498, %v8761, 0.0
      %v9575 = vadd.f32 %v9573, %v9574
      %v9576 = vsel %vm9498, %v8762, 0.0
      %v9577 = vadd.f32 %v9575, %v9576
      %v9578 = vsel %vm9498, %v8763, 0.0
      %v9579 = vadd.f32 %v9577, %v9578
      %v9580 = vsel %vm9498, %v8764, 0.0
      %v9581 = vadd.f32 %v9579, %v9580
      %v9582 = vsel %vm9498, %v8765, 0.0
      %v9583 = vadd.f32 %v9581, %v9582
      %v9584 = vsel %vm9498, %v8766, 0.0
      %v9585 = vadd.f32 %v9583, %v9584
      %v9586 = vsel %vm9498, %v8767, 0.0
      %v9587 = vadd.f32 %v9585, %v9586
      %v9588 = vsel %vm9498, %v8768, 0.0
      %v9589 = vadd.f32 %v9587, %v9588
      %v9590 = vsel %vm9498, %v8769, 0.0
      %v9591 = vadd.f32 %v9589, %v9590
      %v9592 = vsel %vm9498, %v8770, 0.0
      %v9593 = vadd.f32 %v9591, %v9592
      %v9594 = vsel %vm9498, %v8771, 0.0
      %v9595 = vadd.f32 %v9593, %v9594
      %v9596 = vsel %vm9498, %v8772, 0.0
      %v9597 = vadd.f32 %v9595, %v9596
      %v9598 = vsel %vm9498, %v8773, 0.0
      %v9599 = vadd.f32 %v9597, %v9598
      %v9600 = vsel %vm9498, %v8774, 0.0
      %v9601 = vadd.f32 %v9599, %v9600
      %v9602 = vsel %vm9498, %v8775, 0.0
      %v9603 = vadd.f32 %v9601, %v9602
      %v9604 = vsel %vm9498, %v8776, 0.0
      %v9605 = vadd.f32 %v9603, %v9604
      %v9606 = vsel %vm9498, %v8777, 0.0
      %v9607 = vadd.f32 %v9605, %v9606
      %v9608 = vsel %vm9498, %v8778, 0.0
      %v9609 = vadd.f32 %v9607, %v9608
      %v9610 = vsel %vm9498, %v8779, 0.0
      %v9611 = vadd.f32 %v9609, %v9610
      %v9612 = vsel %vm9498, %v8780, 0.0
      %v9613 = vadd.f32 %v9611, %v9612
      %v9614 = vsel %vm9498, %v8781, 0.0
      %v9615 = vadd.f32 %v9613, %v9614
      %v9616 = vsel %vm9498, %v8782, 0.0
      %v9617 = vadd.f32 %v9615, %v9616
      %v9618 = vsel %vm9498, %v8783, 0.0
      %v9619 = vadd.f32 %v9617, %v9618
      %v9620 = vsel %vm9498, %v8784, 0.0
      %v9621 = vadd.f32 %v9619, %v9620
      %v9622 = vsel %vm9498, %v8785, 0.0
      %v9623 = vadd.f32 %v9621, %v9622
      %v9624 = vsel %vm9498, %v8786, 0.0
      %v9625 = vadd.f32 %v9623, %v9624
      %v9626 = vsel %vm9498, %v8787, 0.0
      %v9627 = vadd.f32 %v9625, %v9626
      %v9628 = vsel %vm9498, %v8788, 0.0
      %v9629 = vadd.f32 %v9627, %v9628
      %v9630 = vsel %vm9498, %v8789, 0.0
      %v9631 = vadd.f32 %v9629, %v9630
      %v9632 = vsel %vm9498, %v8790, 0.0
      %v9633 = vadd.f32 %v9631, %v9632
      %v9634 = vsel %vm9498, %v8791, 0.0
      %v9635 = vadd.f32 %v9633, %v9634
      %v9636 = vsel %vm9498, %v8792, 0.0
      %v9637 = vadd.f32 %v9635, %v9636
      %v9638 = vsel %vm9498, %v8793, 0.0
      %v9639 = vadd.f32 %v9637, %v9638
      %v9640 = vsel %vm9498, %v8794, 0.0
      %v9641 = vadd.f32 %v9639, %v9640
      %v9642 = vsel %vm9498, %v8795, 0.0
      %v9643 = vadd.f32 %v9641, %v9642
      %v9644 = vsel %vm9498, %v8796, 0.0
      %v9645 = vadd.f32 %v9643, %v9644
      %v9646 = vsel %vm9498, %v8797, 0.0
      %v9647 = vadd.f32 %v9645, %v9646
      %v9648 = vsel %vm9498, %v8798, 0.0
      %v9649 = vadd.f32 %v9647, %v9648
      %v9650 = vsel %vm9498, %v8799, 0.0
      %v9651 = vadd.f32 %v9649, %v9650
      %v9652 = vsel %vm9498, %v8800, 0.0
      %v9653 = vadd.f32 %v9651, %v9652
      %v9654 = vsel %vm9498, %v8801, 0.0
      %v9655 = vadd.f32 %v9653, %v9654
      %v9656 = vsel %vm9498, %v8802, 0.0
      %v9657 = vadd.f32 %v9655, %v9656
      %v9658 = vsel %vm9498, %v8803, 0.0
      %v9659 = vadd.f32 %v9657, %v9658
      %v9660 = vsel %vm9498, %v8804, 0.0
      %v9661 = vadd.f32 %v9659, %v9660
      %v9662 = vsel %vm9498, %v8805, 0.0
      %v9663 = vadd.f32 %v9661, %v9662
      %v9664 = vsel %vm9498, %v8806, 0.0
      %v9665 = vadd.f32 %v9663, %v9664
      %v9666 = vsel %vm9498, %v8807, 0.0
      %v9667 = vadd.f32 %v9665, %v9666
      %v9668 = vsel %vm9498, %v8808, 0.0
      %v9669 = vadd.f32 %v9667, %v9668
      %v9670 = vsel %vm9498, %v8809, 0.0
      %v9671 = vadd.f32 %v9669, %v9670
      %v9672 = vsel %vm9498, %v8810, 0.0
      %v9673 = vadd.f32 %v9671, %v9672
      %v9674 = vsel %vm9498, %v8811, 0.0
      %v9675 = vadd.f32 %v9673, %v9674
      %v9676 = vsel %vm9498, %v8812, 0.0
      %v9677 = vadd.f32 %v9675, %v9676
      %v9678 = vsel %vm9498, %v8813, 0.0
      %v9679 = vadd.f32 %v9677, %v9678
      %v9680 = vsel %vm9498, %v8814, 0.0
      %v9681 = vadd.f32 %v9679, %v9680
      %v9682 = vsel %vm9498, %v8815, 0.0
      %v9683 = vadd.f32 %v9681, %v9682
      %v9684 = vsel %vm9498, %v8816, 0.0
      %v9685 = vadd.f32 %v9683, %v9684
      %v9686 = vsel %vm9498, %v8817, 0.0
      %v9687 = vadd.f32 %v9685, %v9686
      %v9688 = vsel %vm9498, %v8818, 0.0
      %v9689 = vadd.f32 %v9687, %v9688
      %v9690 = vsel %vm9498, %v8819, 0.0
      %v9691 = vadd.f32 %v9689, %v9690
      %v9692 = vsel %vm9498, %v8820, 0.0
      %v9693 = vadd.f32 %v9691, %v9692
      %v9694 = vsel %vm9498, %v8821, 0.0
      %v9695 = vadd.f32 %v9693, %v9694
      %v9696 = vsel %vm9498, %v8822, 0.0
      %v9697 = vadd.f32 %v9695, %v9696
      %v9698 = vsel %vm9498, %v8823, 0.0
      %v9699 = vadd.f32 %v9697, %v9698
      %v9700 = vsel %vm9498, %v8824, 0.0
      %v9701 = vadd.f32 %v9699, %v9700
      %v9702 = vsel %vm9498, %v8825, 0.0
      %v9703 = vadd.f32 %v9701, %v9702
      %v9704 = vsel %vm9498, %v8826, 0.0
      %v9705 = vadd.f32 %v9703, %v9704
      %v9706 = vsel %vm9498, %v8827, 0.0
      %v9707 = vadd.f32 %v9705, %v9706
      %v9708 = vsel %vm9498, %v8828, 0.0
      %v9709 = vadd.f32 %v9707, %v9708
      %v9710 = vsel %vm9498, %v8829, 0.0
      %v9711 = vadd.f32 %v9709, %v9710
      %v9712 = vsel %vm9498, %v8830, 0.0
      %v9713 = vadd.f32 %v9711, %v9712
      %v9714 = vsel %vm9498, %v8831, 0.0
      %v9715 = vadd.f32 %v9713, %v9714
      %v9716 = vsel %vm9498, %v8832, 0.0
      %v9717 = vadd.f32 %v9715, %v9716
      %v9718 = vsel %vm9498, %v8833, 0.0
      %v9719 = vadd.f32 %v9717, %v9718
      %v9720 = vsel %vm9498, %v8834, 0.0
      %v9721 = vadd.f32 %v9719, %v9720
      %v9722 = vsel %vm9498, %v8835, 0.0
      %v9723 = vadd.f32 %v9721, %v9722
      %v9724 = vsel %vm9498, %v8836, 0.0
      %v9725 = vadd.f32 %v9723, %v9724
      %v9726 = vsel %vm9498, %v8837, 0.0
      %v9727 = vadd.f32 %v9725, %v9726
      %v9728 = vsel %vm9498, %v8838, 0.0
      %v9729 = vadd.f32 %v9727, %v9728
      %v9730 = vsel %vm9498, %v8839, 0.0
      %v9731 = vadd.f32 %v9729, %v9730
      %v9732 = vsel %vm9498, %v8840, 0.0
      %v9733 = vadd.f32 %v9731, %v9732
      %v9734 = vsel %vm9498, %v8841, 0.0
      %v9735 = vadd.f32 %v9733, %v9734
      %v9736 = vsel %vm9498, %v8842, 0.0
      %v9737 = vadd.f32 %v9735, %v9736
      %v9738 = vsel %vm9498, %v8843, 0.0
      %v9739 = vadd.f32 %v9737, %v9738
      %v9740 = vsel %vm9498, %v8844, 0.0
      %v9741 = vadd.f32 %v9739, %v9740
      %v9742 = vsel %vm9498, %v8845, 0.0
      %v9743 = vadd.f32 %v9741, %v9742
      %v9744 = vsel %vm9498, %v8846, 0.0
      %v9745 = vadd.f32 %v9743, %v9744
      %v9746 = vsel %vm9498, %v8847, 0.0
      %v9747 = vadd.f32 %v9745, %v9746
      %v9748 = vsel %vm9498, %v8848, 0.0
      %v9749 = vadd.f32 %v9747, %v9748
      %v9750 = vsel %vm9498, %v8849, 0.0
      %v9751 = vadd.f32 %v9749, %v9750
      %v9752 = vsel %vm9498, %v8850, 0.0
      %v9753 = vadd.f32 %v9751, %v9752
      %v9754 = vrot.slane %v9753, 4
      %v9755 = vadd.f32 %v9753, %v9754
      %v9756 = vrot.slane %v9755, 2
      %v9757 = vadd.f32 %v9755, %v9756
      %v9758 = vrot.slane %v9757, 1
      %v9759 = vadd.f32 %v9757, %v9758
      %v9760 = vmul.f32 %v8723, %v8723
      %v9761 = vmul.f32 %v8724, %v8724
      %v9762 = vmul.f32 %v8725, %v8725
      %v9763 = vmul.f32 %v8726, %v8726
      %v9764 = vmul.f32 %v8727, %v8727
      %v9765 = vmul.f32 %v8728, %v8728
      %v9766 = vmul.f32 %v8729, %v8729
      %v9767 = vmul.f32 %v8730, %v8730
      %v9768 = vmul.f32 %v8731, %v8731
      %v9769 = vmul.f32 %v8732, %v8732
      %v9770 = vmul.f32 %v8733, %v8733
      %v9771 = vmul.f32 %v8734, %v8734
      %v9772 = vmul.f32 %v8735, %v8735
      %v9773 = vmul.f32 %v8736, %v8736
      %v9774 = vmul.f32 %v8737, %v8737
      %v9775 = vmul.f32 %v8738, %v8738
      %v9776 = vmul.f32 %v8739, %v8739
      %v9777 = vmul.f32 %v8740, %v8740
      %v9778 = vmul.f32 %v8741, %v8741
      %v9779 = vmul.f32 %v8742, %v8742
      %v9780 = vmul.f32 %v8743, %v8743
      %v9781 = vmul.f32 %v8744, %v8744
      %v9782 = vmul.f32 %v8745, %v8745
      %v9783 = vmul.f32 %v8746, %v8746
      %v9784 = vmul.f32 %v8747, %v8747
      %v9785 = vmul.f32 %v8748, %v8748
      %v9786 = vmul.f32 %v8749, %v8749
      %v9787 = vmul.f32 %v8750, %v8750
      %v9788 = vmul.f32 %v8751, %v8751
      %v9789 = vmul.f32 %v8752, %v8752
      %v9790 = vmul.f32 %v8753, %v8753
      %v9791 = vmul.f32 %v8754, %v8754
      %v9792 = vmul.f32 %v8755, %v8755
      %v9793 = vmul.f32 %v8756, %v8756
      %v9794 = vmul.f32 %v8757, %v8757
      %v9795 = vmul.f32 %v8758, %v8758
      %v9796 = vmul.f32 %v8759, %v8759
      %v9797 = vmul.f32 %v8760, %v8760
      %v9798 = vmul.f32 %v8761, %v8761
      %v9799 = vmul.f32 %v8762, %v8762
      %v9800 = vmul.f32 %v8763, %v8763
      %v9801 = vmul.f32 %v8764, %v8764
      %v9802 = vmul.f32 %v8765, %v8765
      %v9803 = vmul.f32 %v8766, %v8766
      %v9804 = vmul.f32 %v8767, %v8767
      %v9805 = vmul.f32 %v8768, %v8768
      %v9806 = vmul.f32 %v8769, %v8769
      %v9807 = vmul.f32 %v8770, %v8770
      %v9808 = vmul.f32 %v8771, %v8771
      %v9809 = vmul.f32 %v8772, %v8772
      %v9810 = vmul.f32 %v8773, %v8773
      %v9811 = vmul.f32 %v8774, %v8774
      %v9812 = vmul.f32 %v8775, %v8775
      %v9813 = vmul.f32 %v8776, %v8776
      %v9814 = vmul.f32 %v8777, %v8777
      %v9815 = vmul.f32 %v8778, %v8778
      %v9816 = vmul.f32 %v8779, %v8779
      %v9817 = vmul.f32 %v8780, %v8780
      %v9818 = vmul.f32 %v8781, %v8781
      %v9819 = vmul.f32 %v8782, %v8782
      %v9820 = vmul.f32 %v8783, %v8783
      %v9821 = vmul.f32 %v8784, %v8784
      %v9822 = vmul.f32 %v8785, %v8785
      %v9823 = vmul.f32 %v8786, %v8786
      %v9824 = vmul.f32 %v8787, %v8787
      %v9825 = vmul.f32 %v8788, %v8788
      %v9826 = vmul.f32 %v8789, %v8789
      %v9827 = vmul.f32 %v8790, %v8790
      %v9828 = vmul.f32 %v8791, %v8791
      %v9829 = vmul.f32 %v8792, %v8792
      %v9830 = vmul.f32 %v8793, %v8793
      %v9831 = vmul.f32 %v8794, %v8794
      %v9832 = vmul.f32 %v8795, %v8795
      %v9833 = vmul.f32 %v8796, %v8796
      %v9834 = vmul.f32 %v8797, %v8797
      %v9835 = vmul.f32 %v8798, %v8798
      %v9836 = vmul.f32 %v8799, %v8799
      %v9837 = vmul.f32 %v8800, %v8800
      %v9838 = vmul.f32 %v8801, %v8801
      %v9839 = vmul.f32 %v8802, %v8802
      %v9840 = vmul.f32 %v8803, %v8803
      %v9841 = vmul.f32 %v8804, %v8804
      %v9842 = vmul.f32 %v8805, %v8805
      %v9843 = vmul.f32 %v8806, %v8806
      %v9844 = vmul.f32 %v8807, %v8807
      %v9845 = vmul.f32 %v8808, %v8808
      %v9846 = vmul.f32 %v8809, %v8809
      %v9847 = vmul.f32 %v8810, %v8810
      %v9848 = vmul.f32 %v8811, %v8811
      %v9849 = vmul.f32 %v8812, %v8812
      %v9850 = vmul.f32 %v8813, %v8813
      %v9851 = vmul.f32 %v8814, %v8814
      %v9852 = vmul.f32 %v8815, %v8815
      %v9853 = vmul.f32 %v8816, %v8816
      %v9854 = vmul.f32 %v8817, %v8817
      %v9855 = vmul.f32 %v8818, %v8818
      %v9856 = vmul.f32 %v8819, %v8819
      %v9857 = vmul.f32 %v8820, %v8820
      %v9858 = vmul.f32 %v8821, %v8821
      %v9859 = vmul.f32 %v8822, %v8822
      %v9860 = vmul.f32 %v8823, %v8823
      %v9861 = vmul.f32 %v8824, %v8824
      %v9862 = vmul.f32 %v8825, %v8825
      %v9863 = vmul.f32 %v8826, %v8826
      %v9864 = vmul.f32 %v8827, %v8827
      %v9865 = vmul.f32 %v8828, %v8828
      %v9866 = vmul.f32 %v8829, %v8829
      %v9867 = vmul.f32 %v8830, %v8830
      %v9868 = vmul.f32 %v8831, %v8831
      %v9869 = vmul.f32 %v8832, %v8832
      %v9870 = vmul.f32 %v8833, %v8833
      %v9871 = vmul.f32 %v8834, %v8834
      %v9872 = vmul.f32 %v8835, %v8835
      %v9873 = vmul.f32 %v8836, %v8836
      %v9874 = vmul.f32 %v8837, %v8837
      %v9875 = vmul.f32 %v8838, %v8838
      %v9876 = vmul.f32 %v8839, %v8839
      %v9877 = vmul.f32 %v8840, %v8840
      %v9878 = vmul.f32 %v8841, %v8841
      %v9879 = vmul.f32 %v8842, %v8842
      %v9880 = vmul.f32 %v8843, %v8843
      %v9881 = vmul.f32 %v8844, %v8844
      %v9882 = vmul.f32 %v8845, %v8845
      %v9883 = vmul.f32 %v8846, %v8846
      %v9884 = vmul.f32 %v8847, %v8847
      %v9885 = vmul.f32 %v8848, %v8848
      %v9886 = vmul.f32 %v8849, %v8849
      %v9887 = vmul.f32 %v8850, %v8850
      %v9888 = vsel %vm9498, %v9760, 0.0
      %v9889 = vsel %vm9498, %v9761, 0.0
      %v9890 = vadd.f32 %v9888, %v9889
      %v9891 = vsel %vm9498, %v9762, 0.0
      %v9892 = vadd.f32 %v9890, %v9891
      %v9893 = vsel %vm9498, %v9763, 0.0
      %v9894 = vadd.f32 %v9892, %v9893
      %v9895 = vsel %vm9498, %v9764, 0.0
      %v9896 = vadd.f32 %v9894, %v9895
      %v9897 = vsel %vm9498, %v9765, 0.0
      %v9898 = vadd.f32 %v9896, %v9897
      %v9899 = vsel %vm9498, %v9766, 0.0
      %v9900 = vadd.f32 %v9898, %v9899
      %v9901 = vsel %vm9498, %v9767, 0.0
      %v9902 = vadd.f32 %v9900, %v9901
      %v9903 = vsel %vm9498, %v9768, 0.0
      %v9904 = vadd.f32 %v9902, %v9903
      %v9905 = vsel %vm9498, %v9769, 0.0
      %v9906 = vadd.f32 %v9904, %v9905
      %v9907 = vsel %vm9498, %v9770, 0.0
      %v9908 = vadd.f32 %v9906, %v9907
      %v9909 = vsel %vm9498, %v9771, 0.0
      %v9910 = vadd.f32 %v9908, %v9909
      %v9911 = vsel %vm9498, %v9772, 0.0
      %v9912 = vadd.f32 %v9910, %v9911
      %v9913 = vsel %vm9498, %v9773, 0.0
      %v9914 = vadd.f32 %v9912, %v9913
      %v9915 = vsel %vm9498, %v9774, 0.0
      %v9916 = vadd.f32 %v9914, %v9915
      %v9917 = vsel %vm9498, %v9775, 0.0
      %v9918 = vadd.f32 %v9916, %v9917
      %v9919 = vsel %vm9498, %v9776, 0.0
      %v9920 = vadd.f32 %v9918, %v9919
      %v9921 = vsel %vm9498, %v9777, 0.0
      %v9922 = vadd.f32 %v9920, %v9921
      %v9923 = vsel %vm9498, %v9778, 0.0
      %v9924 = vadd.f32 %v9922, %v9923
      %v9925 = vsel %vm9498, %v9779, 0.0
      %v9926 = vadd.f32 %v9924, %v9925
      %v9927 = vsel %vm9498, %v9780, 0.0
      %v9928 = vadd.f32 %v9926, %v9927
      %v9929 = vsel %vm9498, %v9781, 0.0
      %v9930 = vadd.f32 %v9928, %v9929
      %v9931 = vsel %vm9498, %v9782, 0.0
      %v9932 = vadd.f32 %v9930, %v9931
      %v9933 = vsel %vm9498, %v9783, 0.0
      %v9934 = vadd.f32 %v9932, %v9933
      %v9935 = vsel %vm9498, %v9784, 0.0
      %v9936 = vadd.f32 %v9934, %v9935
      %v9937 = vsel %vm9498, %v9785, 0.0
      %v9938 = vadd.f32 %v9936, %v9937
      %v9939 = vsel %vm9498, %v9786, 0.0
      %v9940 = vadd.f32 %v9938, %v9939
      %v9941 = vsel %vm9498, %v9787, 0.0
      %v9942 = vadd.f32 %v9940, %v9941
      %v9943 = vsel %vm9498, %v9788, 0.0
      %v9944 = vadd.f32 %v9942, %v9943
      %v9945 = vsel %vm9498, %v9789, 0.0
      %v9946 = vadd.f32 %v9944, %v9945
      %v9947 = vsel %vm9498, %v9790, 0.0
      %v9948 = vadd.f32 %v9946, %v9947
      %v9949 = vsel %vm9498, %v9791, 0.0
      %v9950 = vadd.f32 %v9948, %v9949
      %v9951 = vsel %vm9498, %v9792, 0.0
      %v9952 = vadd.f32 %v9950, %v9951
      %v9953 = vsel %vm9498, %v9793, 0.0
      %v9954 = vadd.f32 %v9952, %v9953
      %v9955 = vsel %vm9498, %v9794, 0.0
      %v9956 = vadd.f32 %v9954, %v9955
      %v9957 = vsel %vm9498, %v9795, 0.0
      %v9958 = vadd.f32 %v9956, %v9957
      %v9959 = vsel %vm9498, %v9796, 0.0
      %v9960 = vadd.f32 %v9958, %v9959
      %v9961 = vsel %vm9498, %v9797, 0.0
      %v9962 = vadd.f32 %v9960, %v9961
      %v9963 = vsel %vm9498, %v9798, 0.0
      %v9964 = vadd.f32 %v9962, %v9963
      %v9965 = vsel %vm9498, %v9799, 0.0
      %v9966 = vadd.f32 %v9964, %v9965
      %v9967 = vsel %vm9498, %v9800, 0.0
      %v9968 = vadd.f32 %v9966, %v9967
      %v9969 = vsel %vm9498, %v9801, 0.0
      %v9970 = vadd.f32 %v9968, %v9969
      %v9971 = vsel %vm9498, %v9802, 0.0
      %v9972 = vadd.f32 %v9970, %v9971
      %v9973 = vsel %vm9498, %v9803, 0.0
      %v9974 = vadd.f32 %v9972, %v9973
      %v9975 = vsel %vm9498, %v9804, 0.0
      %v9976 = vadd.f32 %v9974, %v9975
      %v9977 = vsel %vm9498, %v9805, 0.0
      %v9978 = vadd.f32 %v9976, %v9977
      %v9979 = vsel %vm9498, %v9806, 0.0
      %v9980 = vadd.f32 %v9978, %v9979
      %v9981 = vsel %vm9498, %v9807, 0.0
      %v9982 = vadd.f32 %v9980, %v9981
      %v9983 = vsel %vm9498, %v9808, 0.0
      %v9984 = vadd.f32 %v9982, %v9983
      %v9985 = vsel %vm9498, %v9809, 0.0
      %v9986 = vadd.f32 %v9984, %v9985
      %v9987 = vsel %vm9498, %v9810, 0.0
      %v9988 = vadd.f32 %v9986, %v9987
      %v9989 = vsel %vm9498, %v9811, 0.0
      %v9990 = vadd.f32 %v9988, %v9989
      %v9991 = vsel %vm9498, %v9812, 0.0
      %v9992 = vadd.f32 %v9990, %v9991
      %v9993 = vsel %vm9498, %v9813, 0.0
      %v9994 = vadd.f32 %v9992, %v9993
      %v9995 = vsel %vm9498, %v9814, 0.0
      %v9996 = vadd.f32 %v9994, %v9995
      %v9997 = vsel %vm9498, %v9815, 0.0
      %v9998 = vadd.f32 %v9996, %v9997
      %v9999 = vsel %vm9498, %v9816, 0.0
      %v10000 = vadd.f32 %v9998, %v9999
      %v10001 = vsel %vm9498, %v9817, 0.0
      %v10002 = vadd.f32 %v10000, %v10001
      %v10003 = vsel %vm9498, %v9818, 0.0
      %v10004 = vadd.f32 %v10002, %v10003
      %v10005 = vsel %vm9498, %v9819, 0.0
      %v10006 = vadd.f32 %v10004, %v10005
      %v10007 = vsel %vm9498, %v9820, 0.0
      %v10008 = vadd.f32 %v10006, %v10007
      %v10009 = vsel %vm9498, %v9821, 0.0
      %v10010 = vadd.f32 %v10008, %v10009
      %v10011 = vsel %vm9498, %v9822, 0.0
      %v10012 = vadd.f32 %v10010, %v10011
      %v10013 = vsel %vm9498, %v9823, 0.0
      %v10014 = vadd.f32 %v10012, %v10013
      %v10015 = vsel %vm9498, %v9824, 0.0
      %v10016 = vadd.f32 %v10014, %v10015
      %v10017 = vsel %vm9498, %v9825, 0.0
      %v10018 = vadd.f32 %v10016, %v10017
      %v10019 = vsel %vm9498, %v9826, 0.0
      %v10020 = vadd.f32 %v10018, %v10019
      %v10021 = vsel %vm9498, %v9827, 0.0
      %v10022 = vadd.f32 %v10020, %v10021
      %v10023 = vsel %vm9498, %v9828, 0.0
      %v10024 = vadd.f32 %v10022, %v10023
      %v10025 = vsel %vm9498, %v9829, 0.0
      %v10026 = vadd.f32 %v10024, %v10025
      %v10027 = vsel %vm9498, %v9830, 0.0
      %v10028 = vadd.f32 %v10026, %v10027
      %v10029 = vsel %vm9498, %v9831, 0.0
      %v10030 = vadd.f32 %v10028, %v10029
      %v10031 = vsel %vm9498, %v9832, 0.0
      %v10032 = vadd.f32 %v10030, %v10031
      %v10033 = vsel %vm9498, %v9833, 0.0
      %v10034 = vadd.f32 %v10032, %v10033
      %v10035 = vsel %vm9498, %v9834, 0.0
      %v10036 = vadd.f32 %v10034, %v10035
      %v10037 = vsel %vm9498, %v9835, 0.0
      %v10038 = vadd.f32 %v10036, %v10037
      %v10039 = vsel %vm9498, %v9836, 0.0
      %v10040 = vadd.f32 %v10038, %v10039
      %v10041 = vsel %vm9498, %v9837, 0.0
      %v10042 = vadd.f32 %v10040, %v10041
      %v10043 = vsel %vm9498, %v9838, 0.0
      %v10044 = vadd.f32 %v10042, %v10043
      %v10045 = vsel %vm9498, %v9839, 0.0
      %v10046 = vadd.f32 %v10044, %v10045
      %v10047 = vsel %vm9498, %v9840, 0.0
      %v10048 = vadd.f32 %v10046, %v10047
      %v10049 = vsel %vm9498, %v9841, 0.0
      %v10050 = vadd.f32 %v10048, %v10049
      %v10051 = vsel %vm9498, %v9842, 0.0
      %v10052 = vadd.f32 %v10050, %v10051
      %v10053 = vsel %vm9498, %v9843, 0.0
      %v10054 = vadd.f32 %v10052, %v10053
      %v10055 = vsel %vm9498, %v9844, 0.0
      %v10056 = vadd.f32 %v10054, %v10055
      %v10057 = vsel %vm9498, %v9845, 0.0
      %v10058 = vadd.f32 %v10056, %v10057
      %v10059 = vsel %vm9498, %v9846, 0.0
      %v10060 = vadd.f32 %v10058, %v10059
      %v10061 = vsel %vm9498, %v9847, 0.0
      %v10062 = vadd.f32 %v10060, %v10061
      %v10063 = vsel %vm9498, %v9848, 0.0
      %v10064 = vadd.f32 %v10062, %v10063
      %v10065 = vsel %vm9498, %v9849, 0.0
      %v10066 = vadd.f32 %v10064, %v10065
      %v10067 = vsel %vm9498, %v9850, 0.0
      %v10068 = vadd.f32 %v10066, %v10067
      %v10069 = vsel %vm9498, %v9851, 0.0
      %v10070 = vadd.f32 %v10068, %v10069
      %v10071 = vsel %vm9498, %v9852, 0.0
      %v10072 = vadd.f32 %v10070, %v10071
      %v10073 = vsel %vm9498, %v9853, 0.0
      %v10074 = vadd.f32 %v10072, %v10073
      %v10075 = vsel %vm9498, %v9854, 0.0
      %v10076 = vadd.f32 %v10074, %v10075
      %v10077 = vsel %vm9498, %v9855, 0.0
      %v10078 = vadd.f32 %v10076, %v10077
      %v10079 = vsel %vm9498, %v9856, 0.0
      %v10080 = vadd.f32 %v10078, %v10079
      %v10081 = vsel %vm9498, %v9857, 0.0
      %v10082 = vadd.f32 %v10080, %v10081
      %v10083 = vsel %vm9498, %v9858, 0.0
      %v10084 = vadd.f32 %v10082, %v10083
      %v10085 = vsel %vm9498, %v9859, 0.0
      %v10086 = vadd.f32 %v10084, %v10085
      %v10087 = vsel %vm9498, %v9860, 0.0
      %v10088 = vadd.f32 %v10086, %v10087
      %v10089 = vsel %vm9498, %v9861, 0.0
      %v10090 = vadd.f32 %v10088, %v10089
      %v10091 = vsel %vm9498, %v9862, 0.0
      %v10092 = vadd.f32 %v10090, %v10091
      %v10093 = vsel %vm9498, %v9863, 0.0
      %v10094 = vadd.f32 %v10092, %v10093
      %v10095 = vsel %vm9498, %v9864, 0.0
      %v10096 = vadd.f32 %v10094, %v10095
      %v10097 = vsel %vm9498, %v9865, 0.0
      %v10098 = vadd.f32 %v10096, %v10097
      %v10099 = vsel %vm9498, %v9866, 0.0
      %v10100 = vadd.f32 %v10098, %v10099
      %v10101 = vsel %vm9498, %v9867, 0.0
      %v10102 = vadd.f32 %v10100, %v10101
      %v10103 = vsel %vm9498, %v9868, 0.0
      %v10104 = vadd.f32 %v10102, %v10103
      %v10105 = vsel %vm9498, %v9869, 0.0
      %v10106 = vadd.f32 %v10104, %v10105
      %v10107 = vsel %vm9498, %v9870, 0.0
      %v10108 = vadd.f32 %v10106, %v10107
      %v10109 = vsel %vm9498, %v9871, 0.0
      %v10110 = vadd.f32 %v10108, %v10109
      %v10111 = vsel %vm9498, %v9872, 0.0
      %v10112 = vadd.f32 %v10110, %v10111
      %v10113 = vsel %vm9498, %v9873, 0.0
      %v10114 = vadd.f32 %v10112, %v10113
      %v10115 = vsel %vm9498, %v9874, 0.0
      %v10116 = vadd.f32 %v10114, %v10115
      %v10117 = vsel %vm9498, %v9875, 0.0
      %v10118 = vadd.f32 %v10116, %v10117
      %v10119 = vsel %vm9498, %v9876, 0.0
      %v10120 = vadd.f32 %v10118, %v10119
      %v10121 = vsel %vm9498, %v9877, 0.0
      %v10122 = vadd.f32 %v10120, %v10121
      %v10123 = vsel %vm9498, %v9878, 0.0
      %v10124 = vadd.f32 %v10122, %v10123
      %v10125 = vsel %vm9498, %v9879, 0.0
      %v10126 = vadd.f32 %v10124, %v10125
      %v10127 = vsel %vm9498, %v9880, 0.0
      %v10128 = vadd.f32 %v10126, %v10127
      %v10129 = vsel %vm9498, %v9881, 0.0
      %v10130 = vadd.f32 %v10128, %v10129
      %v10131 = vsel %vm9498, %v9882, 0.0
      %v10132 = vadd.f32 %v10130, %v10131
      %v10133 = vsel %vm9498, %v9883, 0.0
      %v10134 = vadd.f32 %v10132, %v10133
      %v10135 = vsel %vm9498, %v9884, 0.0
      %v10136 = vadd.f32 %v10134, %v10135
      %v10137 = vsel %vm9498, %v9885, 0.0
      %v10138 = vadd.f32 %v10136, %v10137
      %v10139 = vsel %vm9498, %v9886, 0.0
      %v10140 = vadd.f32 %v10138, %v10139
      %v10141 = vsel %vm9498, %v9887, 0.0
      %v10142 = vadd.f32 %v10140, %v10141
      %v10143 = vrot.slane %v10142, 4
      %v10144 = vadd.f32 %v10142, %v10143
      %v10145 = vrot.slane %v10144, 2
      %v10146 = vadd.f32 %v10144, %v10145
      %v10147 = vrot.slane %v10146, 1
      %v10148 = vadd.f32 %v10146, %v10147
      %v10149 = vld [vmem:[%s218] sm:$0x3]
      %v10150 = vsel %vm2295, %v9759, %v10148
      %v10151 = vadd.f32 %v10149, %v10150
      %vm10152 = vcmask 517120
      %10153 = vst.msk [vmem:[%s218] sm:$0x3] %vm10152, %v10151
      %p10154 = scmp.lt.s32.totalorder %s20, 1
      %s10155 = scalar_select %p10154, %s20, 1
      %p10156 = scmp.lt.s32.totalorder %s19, 0
      %s10157 = scalar_select %p10156, %s19, 0
      %s10158 = smul.addr %s10155, 128
      %s10159 = sadd.s32 %s10157, %s10158
      %s10160 = smul.addr %s10159, 4
      %s10161 = scalar_lea.vmem %s2, %s10160
      %p10162 = scmp.lt.s32.totalorder %s19, 0
      %s10163 = scalar_select %p10162, %s19, 0
      %s10164 = smul.addr %s10163, 2
      %s10165 = scalar_lea.vmem %s3, %s10164
      // Predicated region
      $region33: #{_conv_bn_relu_impl.2} parent=27 // pred_check
        %p10166 = pneg %p99
      $region34: #{_conv_bn_relu_impl.2} parent=27 // pred_check_branch
        %10168 = sbr.rel (%p10166) target = $region36
      $region35: #{_conv_bn_relu_impl.2} parent=27 // pred_region
        _
      $region36: #{_conv_bn_relu_impl.2} parent=27 // pred_fallthru
        _
      // Predicated region
      $region37: #{_conv_bn_relu_impl.2} parent=27 // pred_check
        %p10169 = pneg %p125
      $region38: #{_conv_bn_relu_impl.2} parent=27 // pred_check_branch
        %10171 = sbr.rel (%p10169) target = $region40
      $region39: #{_conv_bn_relu_impl.2} parent=27 // pred_region
        _
      $region40: #{_conv_bn_relu_impl.2} parent=27 // pred_fallthru
        _
      // Predicated region
      $region41: #{_conv_bn_relu_impl.2} parent=27 // pred_check
        %p10172 = pneg %p125
      $region42: #{_conv_bn_relu_impl.2} parent=27 // pred_check_branch
        %10174 = sbr.rel (%p10172) target = $region44
      $region43: #{_conv_bn_relu_impl.2} parent=27 // pred_region
        %p10175 = scmp.lt.s32.totalorder %s19, 0
        %s10176 = scalar_select %p10175, %s19, 0
        %s10177 = smul.addr %s10176, 2
        %s10178 = scalar_lea.vmem %s3, %s10177
      $region44: #{_conv_bn_relu_impl.2} parent=27 // pred_fallthru
        _
    $region28: #{_conv_bn_relu_impl.2} parent=5 // pred_fallthru
      _
    %p10179 = scmp.le.s32.totalorder 2, %s10
    // Predicated region
    $region45: #{_conv_bn_relu_impl.2} parent=5 // pred_check
      %p10180 = pneg %p10179
    $region46: #{_conv_bn_relu_impl.2} parent=5 // pred_check_branch
      %10182 = sbr.rel (%p10180) target = $region48
    $region47: #{_conv_bn_relu_impl.2} parent=5 // pred_region
      %s10183 = ssub.s32 %s10, 2
      // Predicated region
      $region49: #{_conv_bn_relu_impl.2} parent=47 // pred_check
        %p10184 = pneg %p105
      $region50: #{_conv_bn_relu_impl.2} parent=47 // pred_check_branch
        %10186 = sbr.rel (%p10184) target = $region52
      $region51: #{_conv_bn_relu_impl.2} parent=47 // pred_region
        %p10187 = scmp.lt.s32.totalorder %s22, 1
        %s10188 = scalar_select %p10187, %s22, 1
        %p10189 = scmp.lt.s32.totalorder %s21, 0
        %s10190 = scalar_select %p10189, %s21, 0
        %s10191 = smul.addr %s10188, 128
        %s10192 = sadd.s32 %s10190, %s10191
        %s10193 = smul.addr %s10192, 4
        %s10194 = scalar_lea.vmem %s2, %s10193
      $region52: #{_conv_bn_relu_impl.2} parent=47 // pred_fallthru
        _
    $region48: #{_conv_bn_relu_impl.2} parent=5 // pred_fallthru
      _
  $region6: #{_conv_bn_relu_impl.2} parent=0 // loop_footer
    %s14 = sadd.s32 1, %s10
  $region7: #{_conv_bn_relu_impl.2} parent=0 // loop_footer_branch
    %9 = sbr.rel target = $region3
  $region8: #{_conv_bn_relu_impl.2} parent=0 // loop_exit
    _

</llo_original>
